<compile_context>
chip_gen: v7x
topology: tpu7x:2x2x1
jax: 0.10.0
libtpu: 0.0.40
codegen_flags: <defaults>
</compile_context>

<pallas_src>
import jax
import jax.numpy as jnp
from jax import lax
from jax.experimental import pallas as pl
from jax.experimental.pallas import tpu as pltpu

# Small-shape config (same ratios as the real model: hop=256, win=512,
# n_fft=1024, dim_extractor=513, hidden_size=256).
B = 2                       # batch
N = 128                     # audio samples
HOP = 8                     # hop length
WIN = 16                    # window length
NFFT = 32                   # FFT size
F = NFFT // 2 + 1           # feature dim ("dim_extractor") = 17
H = (F - 1) // 2            # LSTM hidden size = 8   (2*H == F - 1)
D = 2 * H                   # BiLSTM output dim = PoolAttFF input dim = 16
G = 4 * H                   # per-direction packed gate width (i|f|g|o) = 32
T = 1 + N // HOP            # frames (center=True) = 17
NPAD = N + NFFT             # padded audio length = 160


def _sigmoid(x):
    # logistic sigmoid via tanh -> EUP transcendental slot instead of VPU divide
    return 0.5 * (jnp.tanh(0.5 * x) + 1.0)


# ----------------------------------------------------------------------------
# Fused kernel: framing + STFT magnitude + 2x BiLSTM + PoolAttFF + sigmoid
# ----------------------------------------------------------------------------
def _fused_kernel(xp_ref, win_ref, trig_ref,
                  wih0_ref, whh0_ref, b0_ref,
                  wih1_ref, whh1_ref, b1_ref,
                  pw1_ref, pb1_ref, pw2_ref, pb2_ref, pw3_ref, pb3_ref,
                  out_ref, feats_ref,
                  frames_sc, h1_sc, h2_sc):
    f32, bf16 = jnp.float32, jnp.bfloat16

    # ---- 1) framing (center=True) + window; time-major rows (row = t*B + b) ----
    win = win_ref[...]                                            # (1, NFFT)
    for t in range(T):
        frames_sc[pl.ds(t * B, B), :] = xp_ref[:, t * HOP:t * HOP + NFFT] * win

    # ---- 2) STFT magnitude: single (T*B, NFFT) @ (NFFT, 2F) MXU matmul ----
    spec = jnp.dot(frames_sc[...].astype(bf16), trig_ref[...].astype(bf16),
                   preferred_element_type=f32)                    # (T*B, 2F)
    re = spec[:, :F]
    im = spec[:, F:]
    feat = jnp.log(1.0 + jnp.sqrt(re * re + im * im + 1e-14))     # (T*B, F)

    # Single contiguous time-major store; (B, T, F) permute happens in wrapper.
    feats_ref[...] = feat

    # ---- 3) 2-layer BiLSTM: fwd+bwd fused per step (block-diag W_hh) ----
    def run_layer(x2d, wih_p, whh_p, b_p, out_sc):
        # x2d: (T*B, Din); wih_p: (Din, 2G); whh_p: (2H, 2G); b_p: (1, 2G)
        # column layout: [fwd i|f|g|o (G cols) | bwd i|f|g|o (G cols)]
        xproj = jnp.dot(x2d.astype(bf16), wih_p.astype(bf16),
                        preferred_element_type=f32) + b_p         # (T*B, 2G)
        whh_b = whh_p.astype(bf16)
        h = jnp.zeros((B, 2 * H), f32)                            # [h_fwd | h_bwd]
        c_f = jnp.zeros((B, H), f32)
        c_b = jnp.zeros((B, H), f32)
        for t in range(T):                                        # fully unrolled
            tb = T - 1 - t
            # one recurrent matmul drives BOTH directions (block-diagonal W_hh)
            hz = jnp.dot(h.astype(bf16), whh_b, preferred_element_type=f32)  # (B, 2G)

            z_f = xproj[t * B:(t + 1) * B, 0:G] + hz[:, 0:G]
            i_f = _sigmoid(z_f[:, 0 * H:1 * H])
            f_f = _sigmoid(z_f[:, 1 * H:2 * H])
            g_f = jnp.tanh(z_f[:, 2 * H:3 * H])
            o_f = _sigmoid(z_f[:, 3 * H:4 * H])
            c_f = f_f * c_f + i_f * g_f
            h_f = o_f * jnp.tanh(c_f)

            z_b = xproj[tb * B:(tb + 1) * B, G:2 * G] + hz[:, G:2 * G]
            i_b = _sigmoid(z_b[:, 0 * H:1 * H])
            f_b = _sigmoid(z_b[:, 1 * H:2 * H])
            g_b = jnp.tanh(z_b[:, 2 * H:3 * H])
            o_b = _sigmoid(z_b[:, 3 * H:4 * H])
            c_b = f_b * c_b + i_b * g_b
            h_b = o_b * jnp.tanh(c_b)

            out_sc[pl.ds(t * B, B), pl.ds(0, H)] = h_f
            out_sc[pl.ds(tb * B, B), pl.ds(H, H)] = h_b
            h = jnp.concatenate([h_f, h_b], axis=1)               # next-step state

    run_layer(feat, wih0_ref[...], whh0_ref[...], b0_ref[...], h1_sc)
    run_layer(h1_sc[...], wih1_ref[...], whh1_ref[...], b1_ref[...], h2_sc)

    # ---- 4) PoolAttFF (linear1->relu->linear2->softmax(T)->pool->linear3) + sigmoid ----
    seq = h2_sc[...]                                              # (T*B, D) time-major
    hid = jnp.maximum(
        jnp.dot(seq.astype(bf16), pw1_ref[...].astype(bf16),
                preferred_element_type=f32) + pb1_ref[...], 0.0)  # (T*B, 2D)
    logit = jnp.sum(hid * pw2_ref[...], axis=-1, keepdims=True) + pb2_ref[...]  # (T*B, 1)

    row_b = lax.broadcasted_iota(jnp.int32, (T * B, 1), 0) % B    # batch id per row
    pooled = []
    for b in range(B):                                            # mask-based softmax per batch
        lb = jnp.where(row_b == b, logit, -1e30)
        m = jnp.max(lb, axis=0, keepdims=True)
        e = jnp.exp(lb - m)                                       # other-batch rows -> 0
        att = e / jnp.sum(e, axis=0, keepdims=True)               # (T*B, 1)
        pooled.append(jnp.sum(att * seq, axis=0, keepdims=True))  # (1, D)
    pooled = jnp.concatenate(pooled, axis=0)                      # (B, D)

    y = jnp.sum(pooled * pw3_ref[...], axis=-1, keepdims=True) + pb3_ref[...]   # (B, 1)
    out_ref[...] = _sigmoid(y)


# ----------------------------------------------------------------------------
# Wrapper
# ----------------------------------------------------------------------------
def _pad_audio(x):
    pad = NFFT // 2
    return jnp.pad(x, ((0, 0), (pad, pad)), mode="reflect")       # torch.stft default


@jax.jit
def forward(x, packed, window, trig):
    xp = _pad_audio(x)
    pp = packed["pool"]
    args = (xp, window, trig,
            packed["wih0"], packed["whh0"], packed["b0"],
            packed["wih1"], packed["whh1"], packed["b1"],
            pp["w1"], pp["b1"], pp["w2"], pp["b2"], pp["w3"], pp["b3"])
    vmem = lambda: pl.BlockSpec(memory_space=pltpu.MemorySpace.VMEM)
    out, feats_tm = pl.pallas_call(
        _fused_kernel,
        out_shape=(jax.ShapeDtypeStruct((B, 1), jnp.float32),
                   jax.ShapeDtypeStruct((T * B, F), jnp.float32)),
        in_specs=[vmem() for _ in args],
        out_specs=(vmem(), vmem()),
        scratch_shapes=[
            pltpu.VMEM((T * B, NFFT), jnp.float32),               # windowed frames
            pltpu.VMEM((T * B, D), jnp.float32),                  # BiLSTM layer-1 output
            pltpu.VMEM((T * B, D), jnp.float32),                  # BiLSTM layer-2 output
        ],
    )(*args)
    # layout plumbing only: time-major (T*B, F) slab -> (B, T, F)
    out_feats = jnp.transpose(feats_tm.reshape(T, B, F), (1, 0, 2))
    return out, out_feats


# ----------------------------------------------------------------------------
# Constants & parameters
# ----------------------------------------------------------------------------
def make_stft_constants():
    n = jnp.arange(NFFT, dtype=jnp.float32)[:, None]
    f = jnp.arange(F, dtype=jnp.float32)[None, :]
    ang = 2.0 * jnp.pi * n * f / NFFT
    trig = jnp.concatenate([jnp.cos(ang), jnp.sin(ang)], axis=1)  # (NFFT, 2F)
    # periodic Hamming window of length WIN, centered / zero-padded to NFFT
    ham = 0.54 - 0.46 * jnp.cos(2.0 * jnp.pi * jnp.arange(WIN, dtype=jnp.float32) / WIN)
    left = (NFFT - WIN) // 2
    window = jnp.zeros((NFFT,), jnp.float32).at[left:left + WIN].set(ham)
    return window.reshape(1, NFFT), trig


def init_params(key):
    ks = jax.random.split(key, 8)

    def u(k, shape, fan_in):
        bound = 1.0 / (fan_in ** 0.5)
        return jax.random.uniform(k, shape, jnp.float32, -bound, bound)

    def lstm_layer(k, din):
        k1, k2, k3 = jax.random.split(k, 3)
        return {
            "wih": u(k1, (2, din, G), din),   # [dir, Din, i|f|g|o]
            "whh": u(k2, (2, H, G), H),
            "b":   u(k3, (2, 1, G), H),       # b_ih + b_hh combined
        }

    return {
        "l0": lstm_layer(ks[0], F),
        "l1": lstm_layer(ks[1], D),
        "pool": {
            "w1": u(ks[2], (D, 2 * D), D),
            "b1": u(ks[3], (1, 2 * D), D),
            "w2": u(ks[4], (1, 2 * D), 2 * D),   # linear2 weight as a row
            "b2": u(ks[5], (1, 1), 2 * D),
            "w3": u(ks[6], (1, D), D),           # linear3 weight as a row
            "b3": u(ks[7], (1, 1), D),
        },
    }


def pack_params(params):
    """Pack per-direction LSTM weights for the fused fwd/bwd recurrence."""
    def pack_lstm(lp):
        wih = jnp.concatenate([lp["wih"][0], lp["wih"][1]], axis=1)   # (Din, 2G)
        whh = jnp.zeros((2 * H, 2 * G), jnp.float32)                  # block-diagonal
        whh = whh.at[:H, :G].set(lp["whh"][0])
        whh = whh.at[H:, G:].set(lp["whh"][1])
        b = jnp.concatenate([lp["b"][0], lp["b"][1]], axis=1)          # (1, 2G)
        return wih, whh, b

    wih0, whh0, b0 = pack_lstm(params["l0"])
    wih1, whh1, b1 = pack_lstm(params["l1"])
    return {"wih0": wih0, "whh0": whh0, "b0": b0,
            "wih1": wih1, "whh1": whh1, "b1": b1,
            "pool": params["pool"]}


# ----------------------------------------------------------------------------
# Pure-JAX reference (same math, no Pallas) for a correctness cross-check
# ----------------------------------------------------------------------------
def reference_forward(x, params, window, trig):
    f32, bf16 = jnp.float32, jnp.bfloat16
    xp = _pad_audio(x)
    frames = jnp.stack([xp[:, t * HOP:t * HOP + NFFT] for t in range(T)], axis=1)  # (B,T,NFFT)
    fr = (frames * window[0]).astype(bf16)
    spec = jnp.dot(fr.reshape(B * T, NFFT), trig.astype(bf16),
                   preferred_element_type=f32).reshape(B, T, 2 * F)
    re, im = spec[..., :F], spec[..., F:]
    out_feats = jnp.log(1.0 + jnp.sqrt(re * re + im * im + 1e-14))  # (B, T, F)

    def lstm_dir(xseq, wih, whh, b, reverse):
        xs = jnp.flip(xseq, 0) if reverse else xseq                 # (T, B, Din)
        xproj = jnp.dot(xs.reshape(T * B, -1).astype(bf16), wih.astype(bf16),
                        preferred_element_type=f32) + b
        xproj = xproj.reshape(T, B, G)
        whh_b = whh.astype(bf16)

        def step(carry, xp_t):
            h, c = carry
            z = xp_t + jnp.dot(h.astype(bf16), whh_b, preferred_element_type=f32)
            i = _sigmoid(z[:, :H]); f = _sigmoid(z[:, H:2 * H])
            g = jnp.tanh(z[:, 2 * H:3 * H]); o = _sigmoid(z[:, 3 * H:])
            c = f * c + i * g
            h = o * jnp.tanh(c)
            return (h, c), h

        init = (jnp.zeros((B, H), f32), jnp.zeros((B, H), f32))
        _, hs = lax.scan(step, init, xproj)
        return jnp.flip(hs, 0) if reverse else hs

    def bilstm(xseq, lp):
        hf = lstm_dir(xseq, lp["wih"][0], lp["whh"][0], lp["b"][0], False)
        hb = lstm_dir(xseq, lp["wih"][1], lp["whh"][1], lp["b"][1], True)
        return jnp.concatenate([hf, hb], axis=-1)

    xt = jnp.transpose(out_feats, (1, 0, 2))                        # (T, B, F)
    h1 = bilstm(xt, params["l0"])
    h2 = bilstm(h1, params["l1"])
    seq = jnp.transpose(h2, (1, 0, 2))                              # (B, T, D)

    pp = params["pool"]
    hid = jnp.maximum(
        jnp.dot(seq.reshape(B * T, D).astype(bf16), pp["w1"].astype(bf16),
                preferred_element_type=f32) + pp["b1"], 0.0)
    logit = (jnp.sum(hid * pp["w2"], axis=-1) + pp["b2"][0, 0]).reshape(B, T)
    att = jax.nn.softmax(logit, axis=-1)
    pooled = jnp.einsum("bt,btd->bd", att, seq)
    y = jnp.sum(pooled * pp["w3"], axis=-1, keepdims=True) + pp["b3"]
    return _sigmoid(y), out_feats


if __name__ == "__main__":
    key = jax.random.PRNGKey(0)
    kx, kp = jax.random.split(key)
    x = jax.random.normal(kx, (B, N), jnp.float32)
    params = init_params(kp)
    packed = pack_params(params)
    window, trig = make_stft_constants()

    out, out_feats = forward(x, packed, window, trig)
    out = jax.block_until_ready(out)
    out_feats = jax.block_until_ready(out_feats)

    assert out.shape == (B, 1) and out_feats.shape == (B, T, F)
    assert bool(jnp.all(jnp.isfinite(out))) and bool(jnp.all(jnp.isfinite(out_feats)))

    ref_out, ref_feats = reference_forward(x, params, window, trig)
    assert bool(jnp.allclose(out_feats, ref_feats, atol=2e-3, rtol=2e-2)), "out_feats mismatch"
    assert bool(jnp.allclose(out, ref_out, atol=2e-3, rtol=2e-2)), "out mismatch"

    print("KERNEL_OK")
</pallas_src>

<mosaic_0001>
module attributes {stable_mosaic.version = 11 : i64} {
  func.func @_fused_kernel(%arg0: memref<2x160xf32, #tpu.memory_space<vmem>>, %arg1: memref<1x32xf32, #tpu.memory_space<vmem>>, %arg2: memref<32x34xf32, #tpu.memory_space<vmem>>, %arg3: memref<17x64xf32, #tpu.memory_space<vmem>>, %arg4: memref<16x64xf32, #tpu.memory_space<vmem>>, %arg5: memref<1x64xf32, #tpu.memory_space<vmem>>, %arg6: memref<16x64xf32, #tpu.memory_space<vmem>>, %arg7: memref<16x64xf32, #tpu.memory_space<vmem>>, %arg8: memref<1x64xf32, #tpu.memory_space<vmem>>, %arg9: memref<16x32xf32, #tpu.memory_space<vmem>>, %arg10: memref<1x32xf32, #tpu.memory_space<vmem>>, %arg11: memref<1x32xf32, #tpu.memory_space<vmem>>, %arg12: memref<1x1xf32, #tpu.memory_space<vmem>>, %arg13: memref<1x16xf32, #tpu.memory_space<vmem>>, %arg14: memref<1x1xf32, #tpu.memory_space<vmem>>, %arg15: memref<2x1xf32, #tpu.memory_space<vmem>>, %arg16: memref<34x17xf32, #tpu.memory_space<vmem>>, %arg17: memref<34x32xf32, #tpu.memory_space<vmem>>, %arg18: memref<34x16xf32, #tpu.memory_space<vmem>>, %arg19: memref<34x16xf32, #tpu.memory_space<vmem>>) attributes {dimension_semantics = [], scalar_prefetch = 0 : i64, scratch_operands = 3 : i64, tpu.core_type = #tpu.core_type<tc>} {
    %c0 = arith.constant 0 : index
    %c0_0 = arith.constant 0 : index
    %0 = vector.load %arg1[%c0, %c0_0] : memref<1x32xf32, #tpu.memory_space<vmem>>, vector<1x32xf32>
    %c0_1 = arith.constant 0 : index
    %c0_2 = arith.constant 0 : index
    %1 = vector.load %arg0[%c0_1, %c0_2] : memref<2x160xf32, #tpu.memory_space<vmem>>, vector<2x32xf32>
    %2 = vector.broadcast %0 : vector<1x32xf32> to vector<2x32xf32>
    %3 = arith.mulf %1, %2 : vector<2x32xf32>
    %c0_3 = arith.constant 0 : index
    %c0_4 = arith.constant 0 : index
    %4 = vector.load %arg17[%c0_3, %c0_4] : memref<34x32xf32, #tpu.memory_space<vmem>>, vector<2x32xf32>
    tpu.vector_store %arg17[%c0_3, %c0_4], %3 {strides = array<i32>} : memref<34x32xf32, #tpu.memory_space<vmem>>, vector<2x32xf32>,
    %c0_5 = arith.constant 0 : index
    %c8 = arith.constant 8 : index
    %5 = vector.load %arg0[%c0_5, %c8] : memref<2x160xf32, #tpu.memory_space<vmem>>, vector<2x32xf32>
    %6 = vector.broadcast %0 : vector<1x32xf32> to vector<2x32xf32>
    %7 = arith.mulf %5, %6 : vector<2x32xf32>
    %c2 = arith.constant 2 : index
    %c0_6 = arith.constant 0 : index
    %8 = vector.load %arg17[%c2, %c0_6] : memref<34x32xf32, #tpu.memory_space<vmem>>, vector<2x32xf32>
    tpu.vector_store %arg17[%c2, %c0_6], %7 {strides = array<i32>} : memref<34x32xf32, #tpu.memory_space<vmem>>, vector<2x32xf32>,
    %c0_7 = arith.constant 0 : index
    %c16 = arith.constant 16 : index
    %9 = vector.load %arg0[%c0_7, %c16] : memref<2x160xf32, #tpu.memory_space<vmem>>, vector<2x32xf32>
    %10 = vector.broadcast %0 : vector<1x32xf32> to vector<2x32xf32>
    %11 = arith.mulf %9, %10 : vector<2x32xf32>
    %c4 = arith.constant 4 : index
    %c0_8 = arith.constant 0 : index
    %12 = vector.load %arg17[%c4, %c0_8] : memref<34x32xf32, #tpu.memory_space<vmem>>, vector<2x32xf32>
    tpu.vector_store %arg17[%c4, %c0_8], %11 {strides = array<i32>} : memref<34x32xf32, #tpu.memory_space<vmem>>, vector<2x32xf32>,
    %c0_9 = arith.constant 0 : index
    %c24 = arith.constant 24 : index
    %13 = vector.load %arg0[%c0_9, %c24] : memref<2x160xf32, #tpu.memory_space<vmem>>, vector<2x32xf32>
    %14 = vector.broadcast %0 : vector<1x32xf32> to vector<2x32xf32>
    %15 = arith.mulf %13, %14 : vector<2x32xf32>
    %c6 = arith.constant 6 : index
    %c0_10 = arith.constant 0 : index
    %16 = vector.load %arg17[%c6, %c0_10] : memref<34x32xf32, #tpu.memory_space<vmem>>, vector<2x32xf32>
    tpu.vector_store %arg17[%c6, %c0_10], %15 {strides = array<i32>} : memref<34x32xf32, #tpu.memory_space<vmem>>, vector<2x32xf32>,
    %c0_11 = arith.constant 0 : index
    %c32 = arith.constant 32 : index
    %17 = vector.load %arg0[%c0_11, %c32] : memref<2x160xf32, #tpu.memory_space<vmem>>, vector<2x32xf32>
    %18 = vector.broadcast %0 : vector<1x32xf32> to vector<2x32xf32>
    %19 = arith.mulf %17, %18 : vector<2x32xf32>
    %c8_12 = arith.constant 8 : index
    %c0_13 = arith.constant 0 : index
    %20 = vector.load %arg17[%c8_12, %c0_13] : memref<34x32xf32, #tpu.memory_space<vmem>>, vector<2x32xf32>
    tpu.vector_store %arg17[%c8_12, %c0_13], %19 {strides = array<i32>} : memref<34x32xf32, #tpu.memory_space<vmem>>, vector<2x32xf32>,
    %c0_14 = arith.constant 0 : index
    %c40 = arith.constant 40 : index
    %21 = vector.load %arg0[%c0_14, %c40] : memref<2x160xf32, #tpu.memory_space<vmem>>, vector<2x32xf32>
    %22 = vector.broadcast %0 : vector<1x32xf32> to vector<2x32xf32>
    %23 = arith.mulf %21, %22 : vector<2x32xf32>
    %c10 = arith.constant 10 : index
    %c0_15 = arith.constant 0 : index
    %24 = vector.load %arg17[%c10, %c0_15] : memref<34x32xf32, #tpu.memory_space<vmem>>, vector<2x32xf32>
    tpu.vector_store %arg17[%c10, %c0_15], %23 {strides = array<i32>} : memref<34x32xf32, #tpu.memory_space<vmem>>, vector<2x32xf32>,
    %c0_16 = arith.constant 0 : index
    %c48 = arith.constant 48 : index
    %25 = vector.load %arg0[%c0_16, %c48] : memref<2x160xf32, #tpu.memory_space<vmem>>, vector<2x32xf32>
    %26 = vector.broadcast %0 : vector<1x32xf32> to vector<2x32xf32>
    %27 = arith.mulf %25, %26 : vector<2x32xf32>
    %c12 = arith.constant 12 : index
    %c0_17 = arith.constant 0 : index
    %28 = vector.load %arg17[%c12, %c0_17] : memref<34x32xf32, #tpu.memory_space<vmem>>, vector<2x32xf32>
    tpu.vector_store %arg17[%c12, %c0_17], %27 {strides = array<i32>} : memref<34x32xf32, #tpu.memory_space<vmem>>, vector<2x32xf32>,
    %c0_18 = arith.constant 0 : index
    %c56 = arith.constant 56 : index
    %29 = vector.load %arg0[%c0_18, %c56] : memref<2x160xf32, #tpu.memory_space<vmem>>, vector<2x32xf32>
    %30 = vector.broadcast %0 : vector<1x32xf32> to vector<2x32xf32>
    %31 = arith.mulf %29, %30 : vector<2x32xf32>
    %c14 = arith.constant 14 : index
    %c0_19 = arith.constant 0 : index
    %32 = vector.load %arg17[%c14, %c0_19] : memref<34x32xf32, #tpu.memory_space<vmem>>, vector<2x32xf32>
    tpu.vector_store %arg17[%c14, %c0_19], %31 {strides = array<i32>} : memref<34x32xf32, #tpu.memory_space<vmem>>, vector<2x32xf32>,
    %c0_20 = arith.constant 0 : index
    %c64 = arith.constant 64 : index
    %33 = vector.load %arg0[%c0_20, %c64] : memref<2x160xf32, #tpu.memory_space<vmem>>, vector<2x32xf32>
    %34 = vector.broadcast %0 : vector<1x32xf32> to vector<2x32xf32>
    %35 = arith.mulf %33, %34 : vector<2x32xf32>
    %c16_21 = arith.constant 16 : index
    %c0_22 = arith.constant 0 : index
    %36 = vector.load %arg17[%c16_21, %c0_22] : memref<34x32xf32, #tpu.memory_space<vmem>>, vector<2x32xf32>
    tpu.vector_store %arg17[%c16_21, %c0_22], %35 {strides = array<i32>} : memref<34x32xf32, #tpu.memory_space<vmem>>, vector<2x32xf32>,
    %c0_23 = arith.constant 0 : index
    %c72 = arith.constant 72 : index
    %37 = vector.load %arg0[%c0_23, %c72] : memref<2x160xf32, #tpu.memory_space<vmem>>, vector<2x32xf32>
    %38 = vector.broadcast %0 : vector<1x32xf32> to vector<2x32xf32>
    %39 = arith.mulf %37, %38 : vector<2x32xf32>
    %c18 = arith.constant 18 : index
    %c0_24 = arith.constant 0 : index
    %40 = vector.load %arg17[%c18, %c0_24] : memref<34x32xf32, #tpu.memory_space<vmem>>, vector<2x32xf32>
    tpu.vector_store %arg17[%c18, %c0_24], %39 {strides = array<i32>} : memref<34x32xf32, #tpu.memory_space<vmem>>, vector<2x32xf32>,
    %c0_25 = arith.constant 0 : index
    %c80 = arith.constant 80 : index
    %41 = vector.load %arg0[%c0_25, %c80] : memref<2x160xf32, #tpu.memory_space<vmem>>, vector<2x32xf32>
    %42 = vector.broadcast %0 : vector<1x32xf32> to vector<2x32xf32>
    %43 = arith.mulf %41, %42 : vector<2x32xf32>
    %c20 = arith.constant 20 : index
    %c0_26 = arith.constant 0 : index
    %44 = vector.load %arg17[%c20, %c0_26] : memref<34x32xf32, #tpu.memory_space<vmem>>, vector<2x32xf32>
    tpu.vector_store %arg17[%c20, %c0_26], %43 {strides = array<i32>} : memref<34x32xf32, #tpu.memory_space<vmem>>, vector<2x32xf32>,
    %c0_27 = arith.constant 0 : index
    %c88 = arith.constant 88 : index
    %45 = vector.load %arg0[%c0_27, %c88] : memref<2x160xf32, #tpu.memory_space<vmem>>, vector<2x32xf32>
    %46 = vector.broadcast %0 : vector<1x32xf32> to vector<2x32xf32>
    %47 = arith.mulf %45, %46 : vector<2x32xf32>
    %c22 = arith.constant 22 : index
    %c0_28 = arith.constant 0 : index
    %48 = vector.load %arg17[%c22, %c0_28] : memref<34x32xf32, #tpu.memory_space<vmem>>, vector<2x32xf32>
    tpu.vector_store %arg17[%c22, %c0_28], %47 {strides = array<i32>} : memref<34x32xf32, #tpu.memory_space<vmem>>, vector<2x32xf32>,
    %c0_29 = arith.constant 0 : index
    %c96 = arith.constant 96 : index
    %49 = vector.load %arg0[%c0_29, %c96] : memref<2x160xf32, #tpu.memory_space<vmem>>, vector<2x32xf32>
    %50 = vector.broadcast %0 : vector<1x32xf32> to vector<2x32xf32>
    %51 = arith.mulf %49, %50 : vector<2x32xf32>
    %c24_30 = arith.constant 24 : index
    %c0_31 = arith.constant 0 : index
    %52 = vector.load %arg17[%c24_30, %c0_31] : memref<34x32xf32, #tpu.memory_space<vmem>>, vector<2x32xf32>
    tpu.vector_store %arg17[%c24_30, %c0_31], %51 {strides = array<i32>} : memref<34x32xf32, #tpu.memory_space<vmem>>, vector<2x32xf32>,
    %c0_32 = arith.constant 0 : index
    %c104 = arith.constant 104 : index
    %53 = vector.load %arg0[%c0_32, %c104] : memref<2x160xf32, #tpu.memory_space<vmem>>, vector<2x32xf32>
    %54 = vector.broadcast %0 : vector<1x32xf32> to vector<2x32xf32>
    %55 = arith.mulf %53, %54 : vector<2x32xf32>
    %c26 = arith.constant 26 : index
    %c0_33 = arith.constant 0 : index
    %56 = vector.load %arg17[%c26, %c0_33] : memref<34x32xf32, #tpu.memory_space<vmem>>, vector<2x32xf32>
    tpu.vector_store %arg17[%c26, %c0_33], %55 {strides = array<i32>} : memref<34x32xf32, #tpu.memory_space<vmem>>, vector<2x32xf32>,
    %c0_34 = arith.constant 0 : index
    %c112 = arith.constant 112 : index
    %57 = vector.load %arg0[%c0_34, %c112] : memref<2x160xf32, #tpu.memory_space<vmem>>, vector<2x32xf32>
    %58 = vector.broadcast %0 : vector<1x32xf32> to vector<2x32xf32>
    %59 = arith.mulf %57, %58 : vector<2x32xf32>
    %c28 = arith.constant 28 : index
    %c0_35 = arith.constant 0 : index
    %60 = vector.load %arg17[%c28, %c0_35] : memref<34x32xf32, #tpu.memory_space<vmem>>, vector<2x32xf32>
    tpu.vector_store %arg17[%c28, %c0_35], %59 {strides = array<i32>} : memref<34x32xf32, #tpu.memory_space<vmem>>, vector<2x32xf32>,
    %c0_36 = arith.constant 0 : index
    %c120 = arith.constant 120 : index
    %61 = vector.load %arg0[%c0_36, %c120] : memref<2x160xf32, #tpu.memory_space<vmem>>, vector<2x32xf32>
    %62 = vector.broadcast %0 : vector<1x32xf32> to vector<2x32xf32>
    %63 = arith.mulf %61, %62 : vector<2x32xf32>
    %c30 = arith.constant 30 : index
    %c0_37 = arith.constant 0 : index
    %64 = vector.load %arg17[%c30, %c0_37] : memref<34x32xf32, #tpu.memory_space<vmem>>, vector<2x32xf32>
    tpu.vector_store %arg17[%c30, %c0_37], %63 {strides = array<i32>} : memref<34x32xf32, #tpu.memory_space<vmem>>, vector<2x32xf32>,
    %c0_38 = arith.constant 0 : index
    %c128 = arith.constant 128 : index
    %65 = vector.load %arg0[%c0_38, %c128] : memref<2x160xf32, #tpu.memory_space<vmem>>, vector<2x32xf32>
    %66 = vector.broadcast %0 : vector<1x32xf32> to vector<2x32xf32>
    %67 = arith.mulf %65, %66 : vector<2x32xf32>
    %c32_39 = arith.constant 32 : index
    %c0_40 = arith.constant 0 : index
    %68 = vector.load %arg17[%c32_39, %c0_40] : memref<34x32xf32, #tpu.memory_space<vmem>>, vector<2x32xf32>
    tpu.vector_store %arg17[%c32_39, %c0_40], %67 {strides = array<i32>} : memref<34x32xf32, #tpu.memory_space<vmem>>, vector<2x32xf32>,
    %c0_41 = arith.constant 0 : index
    %c0_42 = arith.constant 0 : index
    %69 = vector.load %arg17[%c0_41, %c0_42] : memref<34x32xf32, #tpu.memory_space<vmem>>, vector<34x32xf32>
    %70 = arith.truncf %69 : vector<34x32xf32> to vector<34x32xbf16>
    %c0_43 = arith.constant 0 : index
    %c0_44 = arith.constant 0 : index
    %71 = vector.load %arg2[%c0_43, %c0_44] : memref<32x34xf32, #tpu.memory_space<vmem>>, vector<32x34xf32>
    %72 = arith.truncf %71 : vector<32x34xf32> to vector<32x34xbf16>
    %cst = arith.constant dense<0.000000e+00> : vector<34x34xf32>
    %73 = tpu.matmul %70, %72, %cst {dimension_numbers = #tpu.dot_dimension_numbers<[1], [0], [0], [1], [0, 0, 1, 1], [], []>} : vector<34x32xbf16>, vector<32x34xbf16>, vector<34x34xf32> -> vector<34x34xf32>
    %74 = vector.extract_strided_slice %73 {offsets = [0, 0], sizes = [34, 17], strides = [1, 1]} : vector<34x34xf32> to vector<34x17xf32>
    %75 = vector.extract_strided_slice %73 {offsets = [0, 17], sizes = [34, 17], strides = [1, 1]} : vector<34x34xf32> to vector<34x17xf32>
    %76 = arith.mulf %74, %74 : vector<34x17xf32>
    %77 = arith.mulf %75, %75 : vector<34x17xf32>
    %78 = arith.addf %76, %77 : vector<34x17xf32>
    %cst_45 = arith.constant 9.99999982E-15 : f32
    %79 = vector.broadcast %cst_45 : f32 to vector<34x17xf32>
    %80 = arith.addf %78, %79 : vector<34x17xf32>
    %81 = math.sqrt %80 : vector<34x17xf32>
    %cst_46 = arith.constant 1.000000e+00 : f32
    %82 = vector.broadcast %cst_46 : f32 to vector<34x17xf32>
    %83 = arith.addf %82, %81 : vector<34x17xf32>
    %84 = math.log %83 : vector<34x17xf32>
    %c0_47 = arith.constant 0 : index
    %c0_48 = arith.constant 0 : index
    %85 = vector.load %arg16[%c0_47, %c0_48] : memref<34x17xf32, #tpu.memory_space<vmem>>, vector<34x17xf32>
    tpu.vector_store %arg16[%c0_47, %c0_48], %84 {strides = array<i32>} : memref<34x17xf32, #tpu.memory_space<vmem>>, vector<34x17xf32>,
    %c0_49 = arith.constant 0 : index
    %c0_50 = arith.constant 0 : index
    %86 = vector.load %arg3[%c0_49, %c0_50] : memref<17x64xf32, #tpu.memory_space<vmem>>, vector<17x64xf32>
    %c0_51 = arith.constant 0 : index
    %c0_52 = arith.constant 0 : index
    %87 = vector.load %arg4[%c0_51, %c0_52] : memref<16x64xf32, #tpu.memory_space<vmem>>, vector<16x64xf32>
    %c0_53 = arith.constant 0 : index
    %c0_54 = arith.constant 0 : index
    %88 = vector.load %arg5[%c0_53, %c0_54] : memref<1x64xf32, #tpu.memory_space<vmem>>, vector<1x64xf32>
    %89 = arith.truncf %84 : vector<34x17xf32> to vector<34x17xbf16>
    %90 = arith.truncf %86 : vector<17x64xf32> to vector<17x64xbf16>
    %cst_55 = arith.constant dense<0.000000e+00> : vector<34x64xf32>
    %91 = tpu.matmul %89, %90, %cst_55 {dimension_numbers = #tpu.dot_dimension_numbers<[1], [0], [0], [1], [0, 0, 1, 1], [], []>} : vector<34x17xbf16>, vector<17x64xbf16>, vector<34x64xf32> -> vector<34x64xf32>
    %92 = vector.broadcast %88 : vector<1x64xf32> to vector<34x64xf32>
    %93 = arith.addf %91, %92 : vector<34x64xf32>
    %94 = arith.truncf %87 : vector<16x64xf32> to vector<16x64xbf16>
    %cst_56 = arith.constant 0.000000e+00 : f32
    %95 = vector.broadcast %cst_56 : f32 to vector<2x16xf32>
    %cst_57 = arith.constant 0.000000e+00 : f32
    %96 = vector.broadcast %cst_57 : f32 to vector<2x8xf32>
    %cst_58 = arith.constant 0.000000e+00 : f32
    %97 = vector.broadcast %cst_58 : f32 to vector<2x8xf32>
    %98 = arith.truncf %95 : vector<2x16xf32> to vector<2x16xbf16>
    %cst_59 = arith.constant dense<0.000000e+00> : vector<2x64xf32>
    %99 = tpu.matmul %98, %94, %cst_59 {dimension_numbers = #tpu.dot_dimension_numbers<[1], [0], [0], [1], [0, 0, 1, 1], [], []>} : vector<2x16xbf16>, vector<16x64xbf16>, vector<2x64xf32> -> vector<2x64xf32>
    %100 = vector.extract_strided_slice %93 {offsets = [0, 0], sizes = [2, 32], strides = [1, 1]} : vector<34x64xf32> to vector<2x32xf32>
    %101 = vector.extract_strided_slice %99 {offsets = [0, 0], sizes = [2, 32], strides = [1, 1]} : vector<2x64xf32> to vector<2x32xf32>
    %102 = arith.addf %100, %101 : vector<2x32xf32>
    %103 = vector.extract_strided_slice %102 {offsets = [0, 0], sizes = [2, 8], strides = [1, 1]} : vector<2x32xf32> to vector<2x8xf32>
    %cst_60 = arith.constant 5.000000e-01 : f32
    %104 = vector.broadcast %cst_60 : f32 to vector<2x8xf32>
    %105 = arith.mulf %104, %103 : vector<2x8xf32>
    %106 = math.tanh %105 : vector<2x8xf32>
    %cst_61 = arith.constant 1.000000e+00 : f32
    %107 = vector.broadcast %cst_61 : f32 to vector<2x8xf32>
    %108 = arith.addf %106, %107 : vector<2x8xf32>
    %cst_62 = arith.constant 5.000000e-01 : f32
    %109 = vector.broadcast %cst_62 : f32 to vector<2x8xf32>
    %110 = arith.mulf %109, %108 : vector<2x8xf32>
    %111 = vector.extract_strided_slice %102 {offsets = [0, 8], sizes = [2, 8], strides = [1, 1]} : vector<2x32xf32> to vector<2x8xf32>
    %cst_63 = arith.constant 5.000000e-01 : f32
    %112 = vector.broadcast %cst_63 : f32 to vector<2x8xf32>
    %113 = arith.mulf %112, %111 : vector<2x8xf32>
    %114 = math.tanh %113 : vector<2x8xf32>
    %cst_64 = arith.constant 1.000000e+00 : f32
    %115 = vector.broadcast %cst_64 : f32 to vector<2x8xf32>
    %116 = arith.addf %114, %115 : vector<2x8xf32>
    %cst_65 = arith.constant 5.000000e-01 : f32
    %117 = vector.broadcast %cst_65 : f32 to vector<2x8xf32>
    %118 = arith.mulf %117, %116 : vector<2x8xf32>
    %119 = vector.extract_strided_slice %102 {offsets = [0, 16], sizes = [2, 8], strides = [1, 1]} : vector<2x32xf32> to vector<2x8xf32>
    %120 = math.tanh %119 : vector<2x8xf32>
    %121 = vector.extract_strided_slice %102 {offsets = [0, 24], sizes = [2, 8], strides = [1, 1]} : vector<2x32xf32> to vector<2x8xf32>
    %cst_66 = arith.constant 5.000000e-01 : f32
    %122 = vector.broadcast %cst_66 : f32 to vector<2x8xf32>
    %123 = arith.mulf %122, %121 : vector<2x8xf32>
    %124 = math.tanh %123 : vector<2x8xf32>
    %cst_67 = arith.constant 1.000000e+00 : f32
    %125 = vector.broadcast %cst_67 : f32 to vector<2x8xf32>
    %126 = arith.addf %124, %125 : vector<2x8xf32>
    %cst_68 = arith.constant 5.000000e-01 : f32
    %127 = vector.broadcast %cst_68 : f32 to vector<2x8xf32>
    %128 = arith.mulf %127, %126 : vector<2x8xf32>
    %129 = arith.mulf %118, %96 : vector<2x8xf32>
    %130 = arith.mulf %110, %120 : vector<2x8xf32>
    %131 = arith.addf %129, %130 : vector<2x8xf32>
    %132 = math.tanh %131 : vector<2x8xf32>
    %133 = arith.mulf %128, %132 : vector<2x8xf32>
    %134 = vector.extract_strided_slice %93 {offsets = [32, 32], sizes = [2, 32], strides = [1, 1]} : vector<34x64xf32> to vector<2x32xf32>
    %135 = vector.extract_strided_slice %99 {offsets = [0, 32], sizes = [2, 32], strides = [1, 1]} : vector<2x64xf32> to vector<2x32xf32>
    %136 = arith.addf %134, %135 : vector<2x32xf32>
    %137 = vector.extract_strided_slice %136 {offsets = [0, 0], sizes = [2, 8], strides = [1, 1]} : vector<2x32xf32> to vector<2x8xf32>
    %cst_69 = arith.constant 5.000000e-01 : f32
    %138 = vector.broadcast %cst_69 : f32 to vector<2x8xf32>
    %139 = arith.mulf %138, %137 : vector<2x8xf32>
    %140 = math.tanh %139 : vector<2x8xf32>
    %cst_70 = arith.constant 1.000000e+00 : f32
    %141 = vector.broadcast %cst_70 : f32 to vector<2x8xf32>
    %142 = arith.addf %140, %141 : vector<2x8xf32>
    %cst_71 = arith.constant 5.000000e-01 : f32
    %143 = vector.broadcast %cst_71 : f32 to vector<2x8xf32>
    %144 = arith.mulf %143, %142 : vector<2x8xf32>
    %145 = vector.extract_strided_slice %136 {offsets = [0, 8], sizes = [2, 8], strides = [1, 1]} : vector<2x32xf32> to vector<2x8xf32>
    %cst_72 = arith.constant 5.000000e-01 : f32
    %146 = vector.broadcast %cst_72 : f32 to vector<2x8xf32>
    %147 = arith.mulf %146, %145 : vector<2x8xf32>
    %148 = math.tanh %147 : vector<2x8xf32>
    %cst_73 = arith.constant 1.000000e+00 : f32
    %149 = vector.broadcast %cst_73 : f32 to vector<2x8xf32>
    %150 = arith.addf %148, %149 : vector<2x8xf32>
    %cst_74 = arith.constant 5.000000e-01 : f32
    %151 = vector.broadcast %cst_74 : f32 to vector<2x8xf32>
    %152 = arith.mulf %151, %150 : vector<2x8xf32>
    %153 = vector.extract_strided_slice %136 {offsets = [0, 16], sizes = [2, 8], strides = [1, 1]} : vector<2x32xf32> to vector<2x8xf32>
    %154 = math.tanh %153 : vector<2x8xf32>
    %155 = vector.extract_strided_slice %136 {offsets = [0, 24], sizes = [2, 8], strides = [1, 1]} : vector<2x32xf32> to vector<2x8xf32>
    %cst_75 = arith.constant 5.000000e-01 : f32
    %156 = vector.broadcast %cst_75 : f32 to vector<2x8xf32>
    %157 = arith.mulf %156, %155 : vector<2x8xf32>
    %158 = math.tanh %157 : vector<2x8xf32>
    %cst_76 = arith.constant 1.000000e+00 : f32
    %159 = vector.broadcast %cst_76 : f32 to vector<2x8xf32>
    %160 = arith.addf %158, %159 : vector<2x8xf32>
    %cst_77 = arith.constant 5.000000e-01 : f32
    %161 = vector.broadcast %cst_77 : f32 to vector<2x8xf32>
    %162 = arith.mulf %161, %160 : vector<2x8xf32>
    %163 = arith.mulf %152, %97 : vector<2x8xf32>
    %164 = arith.mulf %144, %154 : vector<2x8xf32>
    %165 = arith.addf %163, %164 : vector<2x8xf32>
    %166 = math.tanh %165 : vector<2x8xf32>
    %167 = arith.mulf %162, %166 : vector<2x8xf32>
    %c0_78 = arith.constant 0 : index
    %c0_79 = arith.constant 0 : index
    %168 = vector.load %arg18[%c0_78, %c0_79] : memref<34x16xf32, #tpu.memory_space<vmem>>, vector<2x8xf32>
    tpu.vector_store %arg18[%c0_78, %c0_79], %133 {strides = array<i32>} : memref<34x16xf32, #tpu.memory_space<vmem>>, vector<2x8xf32>,
    %c32_80 = arith.constant 32 : index
    %c8_81 = arith.constant 8 : index
    %169 = vector.load %arg18[%c32_80, %c8_81] : memref<34x16xf32, #tpu.memory_space<vmem>>, vector<2x8xf32>
    tpu.vector_store %arg18[%c32_80, %c8_81], %167 {strides = array<i32>} : memref<34x16xf32, #tpu.memory_space<vmem>>, vector<2x8xf32>,
    %170 = tpu.concatenate %133, %167 in 1 : vector<2x8xf32>, vector<2x8xf32> -> vector<2x16xf32>
    %171 = arith.truncf %170 : vector<2x16xf32> to vector<2x16xbf16>
    %cst_82 = arith.constant dense<0.000000e+00> : vector<2x64xf32>
    %172 = tpu.matmul %171, %94, %cst_82 {dimension_numbers = #tpu.dot_dimension_numbers<[1], [0], [0], [1], [0, 0, 1, 1], [], []>} : vector<2x16xbf16>, vector<16x64xbf16>, vector<2x64xf32> -> vector<2x64xf32>
    %173 = vector.extract_strided_slice %93 {offsets = [2, 0], sizes = [2, 32], strides = [1, 1]} : vector<34x64xf32> to vector<2x32xf32>
    %174 = vector.extract_strided_slice %172 {offsets = [0, 0], sizes = [2, 32], strides = [1, 1]} : vector<2x64xf32> to vector<2x32xf32>
    %175 = arith.addf %173, %174 : vector<2x32xf32>
    %176 = vector.extract_strided_slice %175 {offsets = [0, 0], sizes = [2, 8], strides = [1, 1]} : vector<2x32xf32> to vector<2x8xf32>
    %cst_83 = arith.constant 5.000000e-01 : f32
    %177 = vector.broadcast %cst_83 : f32 to vector<2x8xf32>
    %178 = arith.mulf %177, %176 : vector<2x8xf32>
    %179 = math.tanh %178 : vector<2x8xf32>
    %cst_84 = arith.constant 1.000000e+00 : f32
    %180 = vector.broadcast %cst_84 : f32 to vector<2x8xf32>
    %181 = arith.addf %179, %180 : vector<2x8xf32>
    %cst_85 = arith.constant 5.000000e-01 : f32
    %182 = vector.broadcast %cst_85 : f32 to vector<2x8xf32>
    %183 = arith.mulf %182, %181 : vector<2x8xf32>
    %184 = vector.extract_strided_slice %175 {offsets = [0, 8], sizes = [2, 8], strides = [1, 1]} : vector<2x32xf32> to vector<2x8xf32>
    %cst_86 = arith.constant 5.000000e-01 : f32
    %185 = vector.broadcast %cst_86 : f32 to vector<2x8xf32>
    %186 = arith.mulf %185, %184 : vector<2x8xf32>
    %187 = math.tanh %186 : vector<2x8xf32>
    %cst_87 = arith.constant 1.000000e+00 : f32
    %188 = vector.broadcast %cst_87 : f32 to vector<2x8xf32>
    %189 = arith.addf %187, %188 : vector<2x8xf32>
    %cst_88 = arith.constant 5.000000e-01 : f32
    %190 = vector.broadcast %cst_88 : f32 to vector<2x8xf32>
    %191 = arith.mulf %190, %189 : vector<2x8xf32>
    %192 = vector.extract_strided_slice %175 {offsets = [0, 16], sizes = [2, 8], strides = [1, 1]} : vector<2x32xf32> to vector<2x8xf32>
    %193 = math.tanh %192 : vector<2x8xf32>
    %194 = vector.extract_strided_slice %175 {offsets = [0, 24], sizes = [2, 8], strides = [1, 1]} : vector<2x32xf32> to vector<2x8xf32>
    %cst_89 = arith.constant 5.000000e-01 : f32
    %195 = vector.broadcast %cst_89 : f32 to vector<2x8xf32>
    %196 = arith.mulf %195, %194 : vector<2x8xf32>
    %197 = math.tanh %196 : vector<2x8xf32>
    %cst_90 = arith.constant 1.000000e+00 : f32
    %198 = vector.broadcast %cst_90 : f32 to vector<2x8xf32>
    %199 = arith.addf %197, %198 : vector<2x8xf32>
    %cst_91 = arith.constant 5.000000e-01 : f32
    %200 = vector.broadcast %cst_91 : f32 to vector<2x8xf32>
    %201 = arith.mulf %200, %199 : vector<2x8xf32>
    %202 = arith.mulf %191, %131 : vector<2x8xf32>
    %203 = arith.mulf %183, %193 : vector<2x8xf32>
    %204 = arith.addf %202, %203 : vector<2x8xf32>
    %205 = math.tanh %204 : vector<2x8xf32>
    %206 = arith.mulf %201, %205 : vector<2x8xf32>
    %207 = vector.extract_strided_slice %93 {offsets = [30, 32], sizes = [2, 32], strides = [1, 1]} : vector<34x64xf32> to vector<2x32xf32>
    %208 = vector.extract_strided_slice %172 {offsets = [0, 32], sizes = [2, 32], strides = [1, 1]} : vector<2x64xf32> to vector<2x32xf32>
    %209 = arith.addf %207, %208 : vector<2x32xf32>
    %210 = vector.extract_strided_slice %209 {offsets = [0, 0], sizes = [2, 8], strides = [1, 1]} : vector<2x32xf32> to vector<2x8xf32>
    %cst_92 = arith.constant 5.000000e-01 : f32
    %211 = vector.broadcast %cst_92 : f32 to vector<2x8xf32>
    %212 = arith.mulf %211, %210 : vector<2x8xf32>
    %213 = math.tanh %212 : vector<2x8xf32>
    %cst_93 = arith.constant 1.000000e+00 : f32
    %214 = vector.broadcast %cst_93 : f32 to vector<2x8xf32>
    %215 = arith.addf %213, %214 : vector<2x8xf32>
    %cst_94 = arith.constant 5.000000e-01 : f32
    %216 = vector.broadcast %cst_94 : f32 to vector<2x8xf32>
    %217 = arith.mulf %216, %215 : vector<2x8xf32>
    %218 = vector.extract_strided_slice %209 {offsets = [0, 8], sizes = [2, 8], strides = [1, 1]} : vector<2x32xf32> to vector<2x8xf32>
    %cst_95 = arith.constant 5.000000e-01 : f32
    %219 = vector.broadcast %cst_95 : f32 to vector<2x8xf32>
    %220 = arith.mulf %219, %218 : vector<2x8xf32>
    %221 = math.tanh %220 : vector<2x8xf32>
    %cst_96 = arith.constant 1.000000e+00 : f32
    %222 = vector.broadcast %cst_96 : f32 to vector<2x8xf32>
    %223 = arith.addf %221, %222 : vector<2x8xf32>
    %cst_97 = arith.constant 5.000000e-01 : f32
    %224 = vector.broadcast %cst_97 : f32 to vector<2x8xf32>
    %225 = arith.mulf %224, %223 : vector<2x8xf32>
    %226 = vector.extract_strided_slice %209 {offsets = [0, 16], sizes = [2, 8], strides = [1, 1]} : vector<2x32xf32> to vector<2x8xf32>
    %227 = math.tanh %226 : vector<2x8xf32>
    %228 = vector.extract_strided_slice %209 {offsets = [0, 24], sizes = [2, 8], strides = [1, 1]} : vector<2x32xf32> to vector<2x8xf32>
    %cst_98 = arith.constant 5.000000e-01 : f32
    %229 = vector.broadcast %cst_98 : f32 to vector<2x8xf32>
    %230 = arith.mulf %229, %228 : vector<2x8xf32>
    %231 = math.tanh %230 : vector<2x8xf32>
    %cst_99 = arith.constant 1.000000e+00 : f32
    %232 = vector.broadcast %cst_99 : f32 to vector<2x8xf32>
    %233 = arith.addf %231, %232 : vector<2x8xf32>
    %cst_100 = arith.constant 5.000000e-01 : f32
    %234 = vector.broadcast %cst_100 : f32 to vector<2x8xf32>
    %235 = arith.mulf %234, %233 : vector<2x8xf32>
    %236 = arith.mulf %225, %165 : vector<2x8xf32>
    %237 = arith.mulf %217, %227 : vector<2x8xf32>
    %238 = arith.addf %236, %237 : vector<2x8xf32>
    %239 = math.tanh %238 : vector<2x8xf32>
    %240 = arith.mulf %235, %239 : vector<2x8xf32>
    %c2_101 = arith.constant 2 : index
    %c0_102 = arith.constant 0 : index
    %241 = vector.load %arg18[%c2_101, %c0_102] : memref<34x16xf32, #tpu.memory_space<vmem>>, vector<2x8xf32>
    tpu.vector_store %arg18[%c2_101, %c0_102], %206 {strides = array<i32>} : memref<34x16xf32, #tpu.memory_space<vmem>>, vector<2x8xf32>,
    %c30_103 = arith.constant 30 : index
    %c8_104 = arith.constant 8 : index
    %242 = vector.load %arg18[%c30_103, %c8_104] : memref<34x16xf32, #tpu.memory_space<vmem>>, vector<2x8xf32>
    tpu.vector_store %arg18[%c30_103, %c8_104], %240 {strides = array<i32>} : memref<34x16xf32, #tpu.memory_space<vmem>>, vector<2x8xf32>,
    %243 = tpu.concatenate %206, %240 in 1 : vector<2x8xf32>, vector<2x8xf32> -> vector<2x16xf32>
    %244 = arith.truncf %243 : vector<2x16xf32> to vector<2x16xbf16>
    %cst_105 = arith.constant dense<0.000000e+00> : vector<2x64xf32>
    %245 = tpu.matmul %244, %94, %cst_105 {dimension_numbers = #tpu.dot_dimension_numbers<[1], [0], [0], [1], [0, 0, 1, 1], [], []>} : vector<2x16xbf16>, vector<16x64xbf16>, vector<2x64xf32> -> vector<2x64xf32>
    %246 = vector.extract_strided_slice %93 {offsets = [4, 0], sizes = [2, 32], strides = [1, 1]} : vector<34x64xf32> to vector<2x32xf32>
    %247 = vector.extract_strided_slice %245 {offsets = [0, 0], sizes = [2, 32], strides = [1, 1]} : vector<2x64xf32> to vector<2x32xf32>
    %248 = arith.addf %246, %247 : vector<2x32xf32>
    %249 = vector.extract_strided_slice %248 {offsets = [0, 0], sizes = [2, 8], strides = [1, 1]} : vector<2x32xf32> to vector<2x8xf32>
    %cst_106 = arith.constant 5.000000e-01 : f32
    %250 = vector.broadcast %cst_106 : f32 to vector<2x8xf32>
    %251 = arith.mulf %250, %249 : vector<2x8xf32>
    %252 = math.tanh %251 : vector<2x8xf32>
    %cst_107 = arith.constant 1.000000e+00 : f32
    %253 = vector.broadcast %cst_107 : f32 to vector<2x8xf32>
    %254 = arith.addf %252, %253 : vector<2x8xf32>
    %cst_108 = arith.constant 5.000000e-01 : f32
    %255 = vector.broadcast %cst_108 : f32 to vector<2x8xf32>
    %256 = arith.mulf %255, %254 : vector<2x8xf32>
    %257 = vector.extract_strided_slice %248 {offsets = [0, 8], sizes = [2, 8], strides = [1, 1]} : vector<2x32xf32> to vector<2x8xf32>
    %cst_109 = arith.constant 5.000000e-01 : f32
    %258 = vector.broadcast %cst_109 : f32 to vector<2x8xf32>
    %259 = arith.mulf %258, %257 : vector<2x8xf32>
    %260 = math.tanh %259 : vector<2x8xf32>
    %cst_110 = arith.constant 1.000000e+00 : f32
    %261 = vector.broadcast %cst_110 : f32 to vector<2x8xf32>
    %262 = arith.addf %260, %261 : vector<2x8xf32>
    %cst_111 = arith.constant 5.000000e-01 : f32
    %263 = vector.broadcast %cst_111 : f32 to vector<2x8xf32>
    %264 = arith.mulf %263, %262 : vector<2x8xf32>
    %265 = vector.extract_strided_slice %248 {offsets = [0, 16], sizes = [2, 8], strides = [1, 1]} : vector<2x32xf32> to vector<2x8xf32>
    %266 = math.tanh %265 : vector<2x8xf32>
    %267 = vector.extract_strided_slice %248 {offsets = [0, 24], sizes = [2, 8], strides = [1, 1]} : vector<2x32xf32> to vector<2x8xf32>
    %cst_112 = arith.constant 5.000000e-01 : f32
    %268 = vector.broadcast %cst_112 : f32 to vector<2x8xf32>
    %269 = arith.mulf %268, %267 : vector<2x8xf32>
    %270 = math.tanh %269 : vector<2x8xf32>
    %cst_113 = arith.constant 1.000000e+00 : f32
    %271 = vector.broadcast %cst_113 : f32 to vector<2x8xf32>
    %272 = arith.addf %270, %271 : vector<2x8xf32>
    %cst_114 = arith.constant 5.000000e-01 : f32
    %273 = vector.broadcast %cst_114 : f32 to vector<2x8xf32>
    %274 = arith.mulf %273, %272 : vector<2x8xf32>
    %275 = arith.mulf %264, %204 : vector<2x8xf32>
    %276 = arith.mulf %256, %266 : vector<2x8xf32>
    %277 = arith.addf %275, %276 : vector<2x8xf32>
    %278 = math.tanh %277 : vector<2x8xf32>
    %279 = arith.mulf %274, %278 : vector<2x8xf32>
    %280 = vector.extract_strided_slice %93 {offsets = [28, 32], sizes = [2, 32], strides = [1, 1]} : vector<34x64xf32> to vector<2x32xf32>
    %281 = vector.extract_strided_slice %245 {offsets = [0, 32], sizes = [2, 32], strides = [1, 1]} : vector<2x64xf32> to vector<2x32xf32>
    %282 = arith.addf %280, %281 : vector<2x32xf32>
    %283 = vector.extract_strided_slice %282 {offsets = [0, 0], sizes = [2, 8], strides = [1, 1]} : vector<2x32xf32> to vector<2x8xf32>
    %cst_115 = arith.constant 5.000000e-01 : f32
    %284 = vector.broadcast %cst_115 : f32 to vector<2x8xf32>
    %285 = arith.mulf %284, %283 : vector<2x8xf32>
    %286 = math.tanh %285 : vector<2x8xf32>
    %cst_116 = arith.constant 1.000000e+00 : f32
    %287 = vector.broadcast %cst_116 : f32 to vector<2x8xf32>
    %288 = arith.addf %286, %287 : vector<2x8xf32>
    %cst_117 = arith.constant 5.000000e-01 : f32
    %289 = vector.broadcast %cst_117 : f32 to vector<2x8xf32>
    %290 = arith.mulf %289, %288 : vector<2x8xf32>
    %291 = vector.extract_strided_slice %282 {offsets = [0, 8], sizes = [2, 8], strides = [1, 1]} : vector<2x32xf32> to vector<2x8xf32>
    %cst_118 = arith.constant 5.000000e-01 : f32
    %292 = vector.broadcast %cst_118 : f32 to vector<2x8xf32>
    %293 = arith.mulf %292, %291 : vector<2x8xf32>
    %294 = math.tanh %293 : vector<2x8xf32>
    %cst_119 = arith.constant 1.000000e+00 : f32
    %295 = vector.broadcast %cst_119 : f32 to vector<2x8xf32>
    %296 = arith.addf %294, %295 : vector<2x8xf32>
    %cst_120 = arith.constant 5.000000e-01 : f32
    %297 = vector.broadcast %cst_120 : f32 to vector<2x8xf32>
    %298 = arith.mulf %297, %296 : vector<2x8xf32>
    %299 = vector.extract_strided_slice %282 {offsets = [0, 16], sizes = [2, 8], strides = [1, 1]} : vector<2x32xf32> to vector<2x8xf32>
    %300 = math.tanh %299 : vector<2x8xf32>
    %301 = vector.extract_strided_slice %282 {offsets = [0, 24], sizes = [2, 8], strides = [1, 1]} : vector<2x32xf32> to vector<2x8xf32>
    %cst_121 = arith.constant 5.000000e-01 : f32
    %302 = vector.broadcast %cst_121 : f32 to vector<2x8xf32>
    %303 = arith.mulf %302, %301 : vector<2x8xf32>
    %304 = math.tanh %303 : vector<2x8xf32>
    %cst_122 = arith.constant 1.000000e+00 : f32
    %305 = vector.broadcast %cst_122 : f32 to vector<2x8xf32>
    %306 = arith.addf %304, %305 : vector<2x8xf32>
    %cst_123 = arith.constant 5.000000e-01 : f32
    %307 = vector.broadcast %cst_123 : f32 to vector<2x8xf32>
    %308 = arith.mulf %307, %306 : vector<2x8xf32>
    %309 = arith.mulf %298, %238 : vector<2x8xf32>
    %310 = arith.mulf %290, %300 : vector<2x8xf32>
    %311 = arith.addf %309, %310 : vector<2x8xf32>
    %312 = math.tanh %311 : vector<2x8xf32>
    %313 = arith.mulf %308, %312 : vector<2x8xf32>
    %c4_124 = arith.constant 4 : index
    %c0_125 = arith.constant 0 : index
    %314 = vector.load %arg18[%c4_124, %c0_125] : memref<34x16xf32, #tpu.memory_space<vmem>>, vector<2x8xf32>
    tpu.vector_store %arg18[%c4_124, %c0_125], %279 {strides = array<i32>} : memref<34x16xf32, #tpu.memory_space<vmem>>, vector<2x8xf32>,
    %c28_126 = arith.constant 28 : index
    %c8_127 = arith.constant 8 : index
    %315 = vector.load %arg18[%c28_126, %c8_127] : memref<34x16xf32, #tpu.memory_space<vmem>>, vector<2x8xf32>
    tpu.vector_store %arg18[%c28_126, %c8_127], %313 {strides = array<i32>} : memref<34x16xf32, #tpu.memory_space<vmem>>, vector<2x8xf32>,
    %316 = tpu.concatenate %279, %313 in 1 : vector<2x8xf32>, vector<2x8xf32> -> vector<2x16xf32>
    %317 = arith.truncf %316 : vector<2x16xf32> to vector<2x16xbf16>
    %cst_128 = arith.constant dense<0.000000e+00> : vector<2x64xf32>
    %318 = tpu.matmul %317, %94, %cst_128 {dimension_numbers = #tpu.dot_dimension_numbers<[1], [0], [0], [1], [0, 0, 1, 1], [], []>} : vector<2x16xbf16>, vector<16x64xbf16>, vector<2x64xf32> -> vector<2x64xf32>
    %319 = vector.extract_strided_slice %93 {offsets = [6, 0], sizes = [2, 32], strides = [1, 1]} : vector<34x64xf32> to vector<2x32xf32>
    %320 = vector.extract_strided_slice %318 {offsets = [0, 0], sizes = [2, 32], strides = [1, 1]} : vector<2x64xf32> to vector<2x32xf32>
    %321 = arith.addf %319, %320 : vector<2x32xf32>
    %322 = vector.extract_strided_slice %321 {offsets = [0, 0], sizes = [2, 8], strides = [1, 1]} : vector<2x32xf32> to vector<2x8xf32>
    %cst_129 = arith.constant 5.000000e-01 : f32
    %323 = vector.broadcast %cst_129 : f32 to vector<2x8xf32>
    %324 = arith.mulf %323, %322 : vector<2x8xf32>
    %325 = math.tanh %324 : vector<2x8xf32>
    %cst_130 = arith.constant 1.000000e+00 : f32
    %326 = vector.broadcast %cst_130 : f32 to vector<2x8xf32>
    %327 = arith.addf %325, %326 : vector<2x8xf32>
    %cst_131 = arith.constant 5.000000e-01 : f32
    %328 = vector.broadcast %cst_131 : f32 to vector<2x8xf32>
    %329 = arith.mulf %328, %327 : vector<2x8xf32>
    %330 = vector.extract_strided_slice %321 {offsets = [0, 8], sizes = [2, 8], strides = [1, 1]} : vector<2x32xf32> to vector<2x8xf32>
    %cst_132 = arith.constant 5.000000e-01 : f32
    %331 = vector.broadcast %cst_132 : f32 to vector<2x8xf32>
    %332 = arith.mulf %331, %330 : vector<2x8xf32>
    %333 = math.tanh %332 : vector<2x8xf32>
    %cst_133 = arith.constant 1.000000e+00 : f32
    %334 = vector.broadcast %cst_133 : f32 to vector<2x8xf32>
    %335 = arith.addf %333, %334 : vector<2x8xf32>
    %cst_134 = arith.constant 5.000000e-01 : f32
    %336 = vector.broadcast %cst_134 : f32 to vector<2x8xf32>
    %337 = arith.mulf %336, %335 : vector<2x8xf32>
    %338 = vector.extract_strided_slice %321 {offsets = [0, 16], sizes = [2, 8], strides = [1, 1]} : vector<2x32xf32> to vector<2x8xf32>
    %339 = math.tanh %338 : vector<2x8xf32>
    %340 = vector.extract_strided_slice %321 {offsets = [0, 24], sizes = [2, 8], strides = [1, 1]} : vector<2x32xf32> to vector<2x8xf32>
    %cst_135 = arith.constant 5.000000e-01 : f32
    %341 = vector.broadcast %cst_135 : f32 to vector<2x8xf32>
    %342 = arith.mulf %341, %340 : vector<2x8xf32>
    %343 = math.tanh %342 : vector<2x8xf32>
    %cst_136 = arith.constant 1.000000e+00 : f32
    %344 = vector.broadcast %cst_136 : f32 to vector<2x8xf32>
    %345 = arith.addf %343, %344 : vector<2x8xf32>
    %cst_137 = arith.constant 5.000000e-01 : f32
    %346 = vector.broadcast %cst_137 : f32 to vector<2x8xf32>
    %347 = arith.mulf %346, %345 : vector<2x8xf32>
    %348 = arith.mulf %337, %277 : vector<2x8xf32>
    %349 = arith.mulf %329, %339 : vector<2x8xf32>
    %350 = arith.addf %348, %349 : vector<2x8xf32>
    %351 = math.tanh %350 : vector<2x8xf32>
    %352 = arith.mulf %347, %351 : vector<2x8xf32>
    %353 = vector.extract_strided_slice %93 {offsets = [26, 32], sizes = [2, 32], strides = [1, 1]} : vector<34x64xf32> to vector<2x32xf32>
    %354 = vector.extract_strided_slice %318 {offsets = [0, 32], sizes = [2, 32], strides = [1, 1]} : vector<2x64xf32> to vector<2x32xf32>
    %355 = arith.addf %353, %354 : vector<2x32xf32>
    %356 = vector.extract_strided_slice %355 {offsets = [0, 0], sizes = [2, 8], strides = [1, 1]} : vector<2x32xf32> to vector<2x8xf32>
    %cst_138 = arith.constant 5.000000e-01 : f32
    %357 = vector.broadcast %cst_138 : f32 to vector<2x8xf32>
    %358 = arith.mulf %357, %356 : vector<2x8xf32>
    %359 = math.tanh %358 : vector<2x8xf32>
    %cst_139 = arith.constant 1.000000e+00 : f32
    %360 = vector.broadcast %cst_139 : f32 to vector<2x8xf32>
    %361 = arith.addf %359, %360 : vector<2x8xf32>
    %cst_140 = arith.constant 5.000000e-01 : f32
    %362 = vector.broadcast %cst_140 : f32 to vector<2x8xf32>
    %363 = arith.mulf %362, %361 : vector<2x8xf32>
    %364 = vector.extract_strided_slice %355 {offsets = [0, 8], sizes = [2, 8], strides = [1, 1]} : vector<2x32xf32> to vector<2x8xf32>
    %cst_141 = arith.constant 5.000000e-01 : f32
    %365 = vector.broadcast %cst_141 : f32 to vector<2x8xf32>
    %366 = arith.mulf %365, %364 : vector<2x8xf32>
    %367 = math.tanh %366 : vector<2x8xf32>
    %cst_142 = arith.constant 1.000000e+00 : f32
    %368 = vector.broadcast %cst_142 : f32 to vector<2x8xf32>
    %369 = arith.addf %367, %368 : vector<2x8xf32>
    %cst_143 = arith.constant 5.000000e-01 : f32
    %370 = vector.broadcast %cst_143 : f32 to vector<2x8xf32>
    %371 = arith.mulf %370, %369 : vector<2x8xf32>
    %372 = vector.extract_strided_slice %355 {offsets = [0, 16], sizes = [2, 8], strides = [1, 1]} : vector<2x32xf32> to vector<2x8xf32>
    %373 = math.tanh %372 : vector<2x8xf32>
    %374 = vector.extract_strided_slice %355 {offsets = [0, 24], sizes = [2, 8], strides = [1, 1]} : vector<2x32xf32> to vector<2x8xf32>
    %cst_144 = arith.constant 5.000000e-01 : f32
    %375 = vector.broadcast %cst_144 : f32 to vector<2x8xf32>
    %376 = arith.mulf %375, %374 : vector<2x8xf32>
    %377 = math.tanh %376 : vector<2x8xf32>
    %cst_145 = arith.constant 1.000000e+00 : f32
    %378 = vector.broadcast %cst_145 : f32 to vector<2x8xf32>
    %379 = arith.addf %377, %378 : vector<2x8xf32>
    %cst_146 = arith.constant 5.000000e-01 : f32
    %380 = vector.broadcast %cst_146 : f32 to vector<2x8xf32>
    %381 = arith.mulf %380, %379 : vector<2x8xf32>
    %382 = arith.mulf %371, %311 : vector<2x8xf32>
    %383 = arith.mulf %363, %373 : vector<2x8xf32>
    %384 = arith.addf %382, %383 : vector<2x8xf32>
    %385 = math.tanh %384 : vector<2x8xf32>
    %386 = arith.mulf %381, %385 : vector<2x8xf32>
    %c6_147 = arith.constant 6 : index
    %c0_148 = arith.constant 0 : index
    %387 = vector.load %arg18[%c6_147, %c0_148] : memref<34x16xf32, #tpu.memory_space<vmem>>, vector<2x8xf32>
    tpu.vector_store %arg18[%c6_147, %c0_148], %352 {strides = array<i32>} : memref<34x16xf32, #tpu.memory_space<vmem>>, vector<2x8xf32>,
    %c26_149 = arith.constant 26 : index
    %c8_150 = arith.constant 8 : index
    %388 = vector.load %arg18[%c26_149, %c8_150] : memref<34x16xf32, #tpu.memory_space<vmem>>, vector<2x8xf32>
    tpu.vector_store %arg18[%c26_149, %c8_150], %386 {strides = array<i32>} : memref<34x16xf32, #tpu.memory_space<vmem>>, vector<2x8xf32>,
    %389 = tpu.concatenate %352, %386 in 1 : vector<2x8xf32>, vector<2x8xf32> -> vector<2x16xf32>
    %390 = arith.truncf %389 : vector<2x16xf32> to vector<2x16xbf16>
    %cst_151 = arith.constant dense<0.000000e+00> : vector<2x64xf32>
    %391 = tpu.matmul %390, %94, %cst_151 {dimension_numbers = #tpu.dot_dimension_numbers<[1], [0], [0], [1], [0, 0, 1, 1], [], []>} : vector<2x16xbf16>, vector<16x64xbf16>, vector<2x64xf32> -> vector<2x64xf32>
    %392 = vector.extract_strided_slice %93 {offsets = [8, 0], sizes = [2, 32], strides = [1, 1]} : vector<34x64xf32> to vector<2x32xf32>
    %393 = vector.extract_strided_slice %391 {offsets = [0, 0], sizes = [2, 32], strides = [1, 1]} : vector<2x64xf32> to vector<2x32xf32>
    %394 = arith.addf %392, %393 : vector<2x32xf32>
    %395 = vector.extract_strided_slice %394 {offsets = [0, 0], sizes = [2, 8], strides = [1, 1]} : vector<2x32xf32> to vector<2x8xf32>
    %cst_152 = arith.constant 5.000000e-01 : f32
    %396 = vector.broadcast %cst_152 : f32 to vector<2x8xf32>
    %397 = arith.mulf %396, %395 : vector<2x8xf32>
    %398 = math.tanh %397 : vector<2x8xf32>
    %cst_153 = arith.constant 1.000000e+00 : f32
    %399 = vector.broadcast %cst_153 : f32 to vector<2x8xf32>
    %400 = arith.addf %398, %399 : vector<2x8xf32>
    %cst_154 = arith.constant 5.000000e-01 : f32
    %401 = vector.broadcast %cst_154 : f32 to vector<2x8xf32>
    %402 = arith.mulf %401, %400 : vector<2x8xf32>
    %403 = vector.extract_strided_slice %394 {offsets = [0, 8], sizes = [2, 8], strides = [1, 1]} : vector<2x32xf32> to vector<2x8xf32>
    %cst_155 = arith.constant 5.000000e-01 : f32
    %404 = vector.broadcast %cst_155 : f32 to vector<2x8xf32>
    %405 = arith.mulf %404, %403 : vector<2x8xf32>
    %406 = math.tanh %405 : vector<2x8xf32>
    %cst_156 = arith.constant 1.000000e+00 : f32
    %407 = vector.broadcast %cst_156 : f32 to vector<2x8xf32>
    %408 = arith.addf %406, %407 : vector<2x8xf32>
    %cst_157 = arith.constant 5.000000e-01 : f32
    %409 = vector.broadcast %cst_157 : f32 to vector<2x8xf32>
    %410 = arith.mulf %409, %408 : vector<2x8xf32>
    %411 = vector.extract_strided_slice %394 {offsets = [0, 16], sizes = [2, 8], strides = [1, 1]} : vector<2x32xf32> to vector<2x8xf32>
    %412 = math.tanh %411 : vector<2x8xf32>
    %413 = vector.extract_strided_slice %394 {offsets = [0, 24], sizes = [2, 8], strides = [1, 1]} : vector<2x32xf32> to vector<2x8xf32>
    %cst_158 = arith.constant 5.000000e-01 : f32
    %414 = vector.broadcast %cst_158 : f32 to vector<2x8xf32>
    %415 = arith.mulf %414, %413 : vector<2x8xf32>
    %416 = math.tanh %415 : vector<2x8xf32>
    %cst_159 = arith.constant 1.000000e+00 : f32
    %417 = vector.broadcast %cst_159 : f32 to vector<2x8xf32>
    %418 = arith.addf %416, %417 : vector<2x8xf32>
    %cst_160 = arith.constant 5.000000e-01 : f32
    %419 = vector.broadcast %cst_160 : f32 to vector<2x8xf32>
    %420 = arith.mulf %419, %418 : vector<2x8xf32>
    %421 = arith.mulf %410, %350 : vector<2x8xf32>
    %422 = arith.mulf %402, %412 : vector<2x8xf32>
    %423 = arith.addf %421, %422 : vector<2x8xf32>
    %424 = math.tanh %423 : vector<2x8xf32>
    %425 = arith.mulf %420, %424 : vector<2x8xf32>
    %426 = vector.extract_strided_slice %93 {offsets = [24, 32], sizes = [2, 32], strides = [1, 1]} : vector<34x64xf32> to vector<2x32xf32>
    %427 = vector.extract_strided_slice %391 {offsets = [0, 32], sizes = [2, 32], strides = [1, 1]} : vector<2x64xf32> to vector<2x32xf32>
    %428 = arith.addf %426, %427 : vector<2x32xf32>
    %429 = vector.extract_strided_slice %428 {offsets = [0, 0], sizes = [2, 8], strides = [1, 1]} : vector<2x32xf32> to vector<2x8xf32>
    %cst_161 = arith.constant 5.000000e-01 : f32
    %430 = vector.broadcast %cst_161 : f32 to vector<2x8xf32>
    %431 = arith.mulf %430, %429 : vector<2x8xf32>
    %432 = math.tanh %431 : vector<2x8xf32>
    %cst_162 = arith.constant 1.000000e+00 : f32
    %433 = vector.broadcast %cst_162 : f32 to vector<2x8xf32>
    %434 = arith.addf %432, %433 : vector<2x8xf32>
    %cst_163 = arith.constant 5.000000e-01 : f32
    %435 = vector.broadcast %cst_163 : f32 to vector<2x8xf32>
    %436 = arith.mulf %435, %434 : vector<2x8xf32>
    %437 = vector.extract_strided_slice %428 {offsets = [0, 8], sizes = [2, 8], strides = [1, 1]} : vector<2x32xf32> to vector<2x8xf32>
    %cst_164 = arith.constant 5.000000e-01 : f32
    %438 = vector.broadcast %cst_164 : f32 to vector<2x8xf32>
    %439 = arith.mulf %438, %437 : vector<2x8xf32>
    %440 = math.tanh %439 : vector<2x8xf32>
    %cst_165 = arith.constant 1.000000e+00 : f32
    %441 = vector.broadcast %cst_165 : f32 to vector<2x8xf32>
    %442 = arith.addf %440, %441 : vector<2x8xf32>
    %cst_166 = arith.constant 5.000000e-01 : f32
    %443 = vector.broadcast %cst_166 : f32 to vector<2x8xf32>
    %444 = arith.mulf %443, %442 : vector<2x8xf32>
    %445 = vector.extract_strided_slice %428 {offsets = [0, 16], sizes = [2, 8], strides = [1, 1]} : vector<2x32xf32> to vector<2x8xf32>
    %446 = math.tanh %445 : vector<2x8xf32>
    %447 = vector.extract_strided_slice %428 {offsets = [0, 24], sizes = [2, 8], strides = [1, 1]} : vector<2x32xf32> to vector<2x8xf32>
    %cst_167 = arith.constant 5.000000e-01 : f32
    %448 = vector.broadcast %cst_167 : f32 to vector<2x8xf32>
    %449 = arith.mulf %448, %447 : vector<2x8xf32>
    %450 = math.tanh %449 : vector<2x8xf32>
    %cst_168 = arith.constant 1.000000e+00 : f32
    %451 = vector.broadcast %cst_168 : f32 to vector<2x8xf32>
    %452 = arith.addf %450, %451 : vector<2x8xf32>
    %cst_169 = arith.constant 5.000000e-01 : f32
    %453 = vector.broadcast %cst_169 : f32 to vector<2x8xf32>
    %454 = arith.mulf %453, %452 : vector<2x8xf32>
    %455 = arith.mulf %444, %384 : vector<2x8xf32>
    %456 = arith.mulf %436, %446 : vector<2x8xf32>
    %457 = arith.addf %455, %456 : vector<2x8xf32>
    %458 = math.tanh %457 : vector<2x8xf32>
    %459 = arith.mulf %454, %458 : vector<2x8xf32>
    %c8_170 = arith.constant 8 : index
    %c0_171 = arith.constant 0 : index
    %460 = vector.load %arg18[%c8_170, %c0_171] : memref<34x16xf32, #tpu.memory_space<vmem>>, vector<2x8xf32>
    tpu.vector_store %arg18[%c8_170, %c0_171], %425 {strides = array<i32>} : memref<34x16xf32, #tpu.memory_space<vmem>>, vector<2x8xf32>,
    %c24_172 = arith.constant 24 : index
    %c8_173 = arith.constant 8 : index
    %461 = vector.load %arg18[%c24_172, %c8_173] : memref<34x16xf32, #tpu.memory_space<vmem>>, vector<2x8xf32>
    tpu.vector_store %arg18[%c24_172, %c8_173], %459 {strides = array<i32>} : memref<34x16xf32, #tpu.memory_space<vmem>>, vector<2x8xf32>,
    %462 = tpu.concatenate %425, %459 in 1 : vector<2x8xf32>, vector<2x8xf32> -> vector<2x16xf32>
    %463 = arith.truncf %462 : vector<2x16xf32> to vector<2x16xbf16>
    %cst_174 = arith.constant dense<0.000000e+00> : vector<2x64xf32>
    %464 = tpu.matmul %463, %94, %cst_174 {dimension_numbers = #tpu.dot_dimension_numbers<[1], [0], [0], [1], [0, 0, 1, 1], [], []>} : vector<2x16xbf16>, vector<16x64xbf16>, vector<2x64xf32> -> vector<2x64xf32>
    %465 = vector.extract_strided_slice %93 {offsets = [10, 0], sizes = [2, 32], strides = [1, 1]} : vector<34x64xf32> to vector<2x32xf32>
    %466 = vector.extract_strided_slice %464 {offsets = [0, 0], sizes = [2, 32], strides = [1, 1]} : vector<2x64xf32> to vector<2x32xf32>
    %467 = arith.addf %465, %466 : vector<2x32xf32>
    %468 = vector.extract_strided_slice %467 {offsets = [0, 0], sizes = [2, 8], strides = [1, 1]} : vector<2x32xf32> to vector<2x8xf32>
    %cst_175 = arith.constant 5.000000e-01 : f32
    %469 = vector.broadcast %cst_175 : f32 to vector<2x8xf32>
    %470 = arith.mulf %469, %468 : vector<2x8xf32>
    %471 = math.tanh %470 : vector<2x8xf32>
    %cst_176 = arith.constant 1.000000e+00 : f32
    %472 = vector.broadcast %cst_176 : f32 to vector<2x8xf32>
    %473 = arith.addf %471, %472 : vector<2x8xf32>
    %cst_177 = arith.constant 5.000000e-01 : f32
    %474 = vector.broadcast %cst_177 : f32 to vector<2x8xf32>
    %475 = arith.mulf %474, %473 : vector<2x8xf32>
    %476 = vector.extract_strided_slice %467 {offsets = [0, 8], sizes = [2, 8], strides = [1, 1]} : vector<2x32xf32> to vector<2x8xf32>
    %cst_178 = arith.constant 5.000000e-01 : f32
    %477 = vector.broadcast %cst_178 : f32 to vector<2x8xf32>
    %478 = arith.mulf %477, %476 : vector<2x8xf32>
    %479 = math.tanh %478 : vector<2x8xf32>
    %cst_179 = arith.constant 1.000000e+00 : f32
    %480 = vector.broadcast %cst_179 : f32 to vector<2x8xf32>
    %481 = arith.addf %479, %480 : vector<2x8xf32>
    %cst_180 = arith.constant 5.000000e-01 : f32
    %482 = vector.broadcast %cst_180 : f32 to vector<2x8xf32>
    %483 = arith.mulf %482, %481 : vector<2x8xf32>
    %484 = vector.extract_strided_slice %467 {offsets = [0, 16], sizes = [2, 8], strides = [1, 1]} : vector<2x32xf32> to vector<2x8xf32>
    %485 = math.tanh %484 : vector<2x8xf32>
    %486 = vector.extract_strided_slice %467 {offsets = [0, 24], sizes = [2, 8], strides = [1, 1]} : vector<2x32xf32> to vector<2x8xf32>
    %cst_181 = arith.constant 5.000000e-01 : f32
    %487 = vector.broadcast %cst_181 : f32 to vector<2x8xf32>
    %488 = arith.mulf %487, %486 : vector<2x8xf32>
    %489 = math.tanh %488 : vector<2x8xf32>
    %cst_182 = arith.constant 1.000000e+00 : f32
    %490 = vector.broadcast %cst_182 : f32 to vector<2x8xf32>
    %491 = arith.addf %489, %490 : vector<2x8xf32>
    %cst_183 = arith.constant 5.000000e-01 : f32
    %492 = vector.broadcast %cst_183 : f32 to vector<2x8xf32>
    %493 = arith.mulf %492, %491 : vector<2x8xf32>
    %494 = arith.mulf %483, %423 : vector<2x8xf32>
    %495 = arith.mulf %475, %485 : vector<2x8xf32>
    %496 = arith.addf %494, %495 : vector<2x8xf32>
    %497 = math.tanh %496 : vector<2x8xf32>
    %498 = arith.mulf %493, %497 : vector<2x8xf32>
    %499 = vector.extract_strided_slice %93 {offsets = [22, 32], sizes = [2, 32], strides = [1, 1]} : vector<34x64xf32> to vector<2x32xf32>
    %500 = vector.extract_strided_slice %464 {offsets = [0, 32], sizes = [2, 32], strides = [1, 1]} : vector<2x64xf32> to vector<2x32xf32>
    %501 = arith.addf %499, %500 : vector<2x32xf32>
    %502 = vector.extract_strided_slice %501 {offsets = [0, 0], sizes = [2, 8], strides = [1, 1]} : vector<2x32xf32> to vector<2x8xf32>
    %cst_184 = arith.constant 5.000000e-01 : f32
    %503 = vector.broadcast %cst_184 : f32 to vector<2x8xf32>
    %504 = arith.mulf %503, %502 : vector<2x8xf32>
    %505 = math.tanh %504 : vector<2x8xf32>
    %cst_185 = arith.constant 1.000000e+00 : f32
    %506 = vector.broadcast %cst_185 : f32 to vector<2x8xf32>
    %507 = arith.addf %505, %506 : vector<2x8xf32>
    %cst_186 = arith.constant 5.000000e-01 : f32
    %508 = vector.broadcast %cst_186 : f32 to vector<2x8xf32>
    %509 = arith.mulf %508, %507 : vector<2x8xf32>
    %510 = vector.extract_strided_slice %501 {offsets = [0, 8], sizes = [2, 8], strides = [1, 1]} : vector<2x32xf32> to vector<2x8xf32>
    %cst_187 = arith.constant 5.000000e-01 : f32
    %511 = vector.broadcast %cst_187 : f32 to vector<2x8xf32>
    %512 = arith.mulf %511, %510 : vector<2x8xf32>
    %513 = math.tanh %512 : vector<2x8xf32>
    %cst_188 = arith.constant 1.000000e+00 : f32
    %514 = vector.broadcast %cst_188 : f32 to vector<2x8xf32>
    %515 = arith.addf %513, %514 : vector<2x8xf32>
    %cst_189 = arith.constant 5.000000e-01 : f32
    %516 = vector.broadcast %cst_189 : f32 to vector<2x8xf32>
    %517 = arith.mulf %516, %515 : vector<2x8xf32>
    %518 = vector.extract_strided_slice %501 {offsets = [0, 16], sizes = [2, 8], strides = [1, 1]} : vector<2x32xf32> to vector<2x8xf32>
    %519 = math.tanh %518 : vector<2x8xf32>
    %520 = vector.extract_strided_slice %501 {offsets = [0, 24], sizes = [2, 8], strides = [1, 1]} : vector<2x32xf32> to vector<2x8xf32>
    %cst_190 = arith.constant 5.000000e-01 : f32
    %521 = vector.broadcast %cst_190 : f32 to vector<2x8xf32>
    %522 = arith.mulf %521, %520 : vector<2x8xf32>
    %523 = math.tanh %522 : vector<2x8xf32>
    %cst_191 = arith.constant 1.000000e+00 : f32
    %524 = vector.broadcast %cst_191 : f32 to vector<2x8xf32>
    %525 = arith.addf %523, %524 : vector<2x8xf32>
    %cst_192 = arith.constant 5.000000e-01 : f32
    %526 = vector.broadcast %cst_192 : f32 to vector<2x8xf32>
    %527 = arith.mulf %526, %525 : vector<2x8xf32>
    %528 = arith.mulf %517, %457 : vector<2x8xf32>
    %529 = arith.mulf %509, %519 : vector<2x8xf32>
    %530 = arith.addf %528, %529 : vector<2x8xf32>
    %531 = math.tanh %530 : vector<2x8xf32>
    %532 = arith.mulf %527, %531 : vector<2x8xf32>
    %c10_193 = arith.constant 10 : index
    %c0_194 = arith.constant 0 : index
    %533 = vector.load %arg18[%c10_193, %c0_194] : memref<34x16xf32, #tpu.memory_space<vmem>>, vector<2x8xf32>
    tpu.vector_store %arg18[%c10_193, %c0_194], %498 {strides = array<i32>} : memref<34x16xf32, #tpu.memory_space<vmem>>, vector<2x8xf32>,
    %c22_195 = arith.constant 22 : index
    %c8_196 = arith.constant 8 : index
    %534 = vector.load %arg18[%c22_195, %c8_196] : memref<34x16xf32, #tpu.memory_space<vmem>>, vector<2x8xf32>
    tpu.vector_store %arg18[%c22_195, %c8_196], %532 {strides = array<i32>} : memref<34x16xf32, #tpu.memory_space<vmem>>, vector<2x8xf32>,
    %535 = tpu.concatenate %498, %532 in 1 : vector<2x8xf32>, vector<2x8xf32> -> vector<2x16xf32>
    %536 = arith.truncf %535 : vector<2x16xf32> to vector<2x16xbf16>
    %cst_197 = arith.constant dense<0.000000e+00> : vector<2x64xf32>
    %537 = tpu.matmul %536, %94, %cst_197 {dimension_numbers = #tpu.dot_dimension_numbers<[1], [0], [0], [1], [0, 0, 1, 1], [], []>} : vector<2x16xbf16>, vector<16x64xbf16>, vector<2x64xf32> -> vector<2x64xf32>
    %538 = vector.extract_strided_slice %93 {offsets = [12, 0], sizes = [2, 32], strides = [1, 1]} : vector<34x64xf32> to vector<2x32xf32>
    %539 = vector.extract_strided_slice %537 {offsets = [0, 0], sizes = [2, 32], strides = [1, 1]} : vector<2x64xf32> to vector<2x32xf32>
    %540 = arith.addf %538, %539 : vector<2x32xf32>
    %541 = vector.extract_strided_slice %540 {offsets = [0, 0], sizes = [2, 8], strides = [1, 1]} : vector<2x32xf32> to vector<2x8xf32>
    %cst_198 = arith.constant 5.000000e-01 : f32
    %542 = vector.broadcast %cst_198 : f32 to vector<2x8xf32>
    %543 = arith.mulf %542, %541 : vector<2x8xf32>
    %544 = math.tanh %543 : vector<2x8xf32>
    %cst_199 = arith.constant 1.000000e+00 : f32
    %545 = vector.broadcast %cst_199 : f32 to vector<2x8xf32>
    %546 = arith.addf %544, %545 : vector<2x8xf32>
    %cst_200 = arith.constant 5.000000e-01 : f32
    %547 = vector.broadcast %cst_200 : f32 to vector<2x8xf32>
    %548 = arith.mulf %547, %546 : vector<2x8xf32>
    %549 = vector.extract_strided_slice %540 {offsets = [0, 8], sizes = [2, 8], strides = [1, 1]} : vector<2x32xf32> to vector<2x8xf32>
    %cst_201 = arith.constant 5.000000e-01 : f32
    %550 = vector.broadcast %cst_201 : f32 to vector<2x8xf32>
    %551 = arith.mulf %550, %549 : vector<2x8xf32>
    %552 = math.tanh %551 : vector<2x8xf32>
    %cst_202 = arith.constant 1.000000e+00 : f32
    %553 = vector.broadcast %cst_202 : f32 to vector<2x8xf32>
    %554 = arith.addf %552, %553 : vector<2x8xf32>
    %cst_203 = arith.constant 5.000000e-01 : f32
    %555 = vector.broadcast %cst_203 : f32 to vector<2x8xf32>
    %556 = arith.mulf %555, %554 : vector<2x8xf32>
    %557 = vector.extract_strided_slice %540 {offsets = [0, 16], sizes = [2, 8], strides = [1, 1]} : vector<2x32xf32> to vector<2x8xf32>
    %558 = math.tanh %557 : vector<2x8xf32>
    %559 = vector.extract_strided_slice %540 {offsets = [0, 24], sizes = [2, 8], strides = [1, 1]} : vector<2x32xf32> to vector<2x8xf32>
    %cst_204 = arith.constant 5.000000e-01 : f32
    %560 = vector.broadcast %cst_204 : f32 to vector<2x8xf32>
    %561 = arith.mulf %560, %559 : vector<2x8xf32>
    %562 = math.tanh %561 : vector<2x8xf32>
    %cst_205 = arith.constant 1.000000e+00 : f32
    %563 = vector.broadcast %cst_205 : f32 to vector<2x8xf32>
    %564 = arith.addf %562, %563 : vector<2x8xf32>
    %cst_206 = arith.constant 5.000000e-01 : f32
    %565 = vector.broadcast %cst_206 : f32 to vector<2x8xf32>
    %566 = arith.mulf %565, %564 : vector<2x8xf32>
    %567 = arith.mulf %556, %496 : vector<2x8xf32>
    %568 = arith.mulf %548, %558 : vector<2x8xf32>
    %569 = arith.addf %567, %568 : vector<2x8xf32>
    %570 = math.tanh %569 : vector<2x8xf32>
    %571 = arith.mulf %566, %570 : vector<2x8xf32>
    %572 = vector.extract_strided_slice %93 {offsets = [20, 32], sizes = [2, 32], strides = [1, 1]} : vector<34x64xf32> to vector<2x32xf32>
    %573 = vector.extract_strided_slice %537 {offsets = [0, 32], sizes = [2, 32], strides = [1, 1]} : vector<2x64xf32> to vector<2x32xf32>
    %574 = arith.addf %572, %573 : vector<2x32xf32>
    %575 = vector.extract_strided_slice %574 {offsets = [0, 0], sizes = [2, 8], strides = [1, 1]} : vector<2x32xf32> to vector<2x8xf32>
    %cst_207 = arith.constant 5.000000e-01 : f32
    %576 = vector.broadcast %cst_207 : f32 to vector<2x8xf32>
    %577 = arith.mulf %576, %575 : vector<2x8xf32>
    %578 = math.tanh %577 : vector<2x8xf32>
    %cst_208 = arith.constant 1.000000e+00 : f32
    %579 = vector.broadcast %cst_208 : f32 to vector<2x8xf32>
    %580 = arith.addf %578, %579 : vector<2x8xf32>
    %cst_209 = arith.constant 5.000000e-01 : f32
    %581 = vector.broadcast %cst_209 : f32 to vector<2x8xf32>
    %582 = arith.mulf %581, %580 : vector<2x8xf32>
    %583 = vector.extract_strided_slice %574 {offsets = [0, 8], sizes = [2, 8], strides = [1, 1]} : vector<2x32xf32> to vector<2x8xf32>
    %cst_210 = arith.constant 5.000000e-01 : f32
    %584 = vector.broadcast %cst_210 : f32 to vector<2x8xf32>
    %585 = arith.mulf %584, %583 : vector<2x8xf32>
    %586 = math.tanh %585 : vector<2x8xf32>
    %cst_211 = arith.constant 1.000000e+00 : f32
    %587 = vector.broadcast %cst_211 : f32 to vector<2x8xf32>
    %588 = arith.addf %586, %587 : vector<2x8xf32>
    %cst_212 = arith.constant 5.000000e-01 : f32
    %589 = vector.broadcast %cst_212 : f32 to vector<2x8xf32>
    %590 = arith.mulf %589, %588 : vector<2x8xf32>
    %591 = vector.extract_strided_slice %574 {offsets = [0, 16], sizes = [2, 8], strides = [1, 1]} : vector<2x32xf32> to vector<2x8xf32>
    %592 = math.tanh %591 : vector<2x8xf32>
    %593 = vector.extract_strided_slice %574 {offsets = [0, 24], sizes = [2, 8], strides = [1, 1]} : vector<2x32xf32> to vector<2x8xf32>
    %cst_213 = arith.constant 5.000000e-01 : f32
    %594 = vector.broadcast %cst_213 : f32 to vector<2x8xf32>
    %595 = arith.mulf %594, %593 : vector<2x8xf32>
    %596 = math.tanh %595 : vector<2x8xf32>
    %cst_214 = arith.constant 1.000000e+00 : f32
    %597 = vector.broadcast %cst_214 : f32 to vector<2x8xf32>
    %598 = arith.addf %596, %597 : vector<2x8xf32>
    %cst_215 = arith.constant 5.000000e-01 : f32
    %599 = vector.broadcast %cst_215 : f32 to vector<2x8xf32>
    %600 = arith.mulf %599, %598 : vector<2x8xf32>
    %601 = arith.mulf %590, %530 : vector<2x8xf32>
    %602 = arith.mulf %582, %592 : vector<2x8xf32>
    %603 = arith.addf %601, %602 : vector<2x8xf32>
    %604 = math.tanh %603 : vector<2x8xf32>
    %605 = arith.mulf %600, %604 : vector<2x8xf32>
    %c12_216 = arith.constant 12 : index
    %c0_217 = arith.constant 0 : index
    %606 = vector.load %arg18[%c12_216, %c0_217] : memref<34x16xf32, #tpu.memory_space<vmem>>, vector<2x8xf32>
    tpu.vector_store %arg18[%c12_216, %c0_217], %571 {strides = array<i32>} : memref<34x16xf32, #tpu.memory_space<vmem>>, vector<2x8xf32>,
    %c20_218 = arith.constant 20 : index
    %c8_219 = arith.constant 8 : index
    %607 = vector.load %arg18[%c20_218, %c8_219] : memref<34x16xf32, #tpu.memory_space<vmem>>, vector<2x8xf32>
    tpu.vector_store %arg18[%c20_218, %c8_219], %605 {strides = array<i32>} : memref<34x16xf32, #tpu.memory_space<vmem>>, vector<2x8xf32>,
    %608 = tpu.concatenate %571, %605 in 1 : vector<2x8xf32>, vector<2x8xf32> -> vector<2x16xf32>
    %609 = arith.truncf %608 : vector<2x16xf32> to vector<2x16xbf16>
    %cst_220 = arith.constant dense<0.000000e+00> : vector<2x64xf32>
    %610 = tpu.matmul %609, %94, %cst_220 {dimension_numbers = #tpu.dot_dimension_numbers<[1], [0], [0], [1], [0, 0, 1, 1], [], []>} : vector<2x16xbf16>, vector<16x64xbf16>, vector<2x64xf32> -> vector<2x64xf32>
    %611 = vector.extract_strided_slice %93 {offsets = [14, 0], sizes = [2, 32], strides = [1, 1]} : vector<34x64xf32> to vector<2x32xf32>
    %612 = vector.extract_strided_slice %610 {offsets = [0, 0], sizes = [2, 32], strides = [1, 1]} : vector<2x64xf32> to vector<2x32xf32>
    %613 = arith.addf %611, %612 : vector<2x32xf32>
    %614 = vector.extract_strided_slice %613 {offsets = [0, 0], sizes = [2, 8], strides = [1, 1]} : vector<2x32xf32> to vector<2x8xf32>
    %cst_221 = arith.constant 5.000000e-01 : f32
    %615 = vector.broadcast %cst_221 : f32 to vector<2x8xf32>
    %616 = arith.mulf %615, %614 : vector<2x8xf32>
    %617 = math.tanh %616 : vector<2x8xf32>
    %cst_222 = arith.constant 1.000000e+00 : f32
    %618 = vector.broadcast %cst_222 : f32 to vector<2x8xf32>
    %619 = arith.addf %617, %618 : vector<2x8xf32>
    %cst_223 = arith.constant 5.000000e-01 : f32
    %620 = vector.broadcast %cst_223 : f32 to vector<2x8xf32>
    %621 = arith.mulf %620, %619 : vector<2x8xf32>
    %622 = vector.extract_strided_slice %613 {offsets = [0, 8], sizes = [2, 8], strides = [1, 1]} : vector<2x32xf32> to vector<2x8xf32>
    %cst_224 = arith.constant 5.000000e-01 : f32
    %623 = vector.broadcast %cst_224 : f32 to vector<2x8xf32>
    %624 = arith.mulf %623, %622 : vector<2x8xf32>
    %625 = math.tanh %624 : vector<2x8xf32>
    %cst_225 = arith.constant 1.000000e+00 : f32
    %626 = vector.broadcast %cst_225 : f32 to vector<2x8xf32>
    %627 = arith.addf %625, %626 : vector<2x8xf32>
    %cst_226 = arith.constant 5.000000e-01 : f32
    %628 = vector.broadcast %cst_226 : f32 to vector<2x8xf32>
    %629 = arith.mulf %628, %627 : vector<2x8xf32>
    %630 = vector.extract_strided_slice %613 {offsets = [0, 16], sizes = [2, 8], strides = [1, 1]} : vector<2x32xf32> to vector<2x8xf32>
    %631 = math.tanh %630 : vector<2x8xf32>
    %632 = vector.extract_strided_slice %613 {offsets = [0, 24], sizes = [2, 8], strides = [1, 1]} : vector<2x32xf32> to vector<2x8xf32>
    %cst_227 = arith.constant 5.000000e-01 : f32
    %633 = vector.broadcast %cst_227 : f32 to vector<2x8xf32>
    %634 = arith.mulf %633, %632 : vector<2x8xf32>
    %635 = math.tanh %634 : vector<2x8xf32>
    %cst_228 = arith.constant 1.000000e+00 : f32
    %636 = vector.broadcast %cst_228 : f32 to vector<2x8xf32>
    %637 = arith.addf %635, %636 : vector<2x8xf32>
    %cst_229 = arith.constant 5.000000e-01 : f32
    %638 = vector.broadcast %cst_229 : f32 to vector<2x8xf32>
    %639 = arith.mulf %638, %637 : vector<2x8xf32>
    %640 = arith.mulf %629, %569 : vector<2x8xf32>
    %641 = arith.mulf %621, %631 : vector<2x8xf32>
    %642 = arith.addf %640, %641 : vector<2x8xf32>
    %643 = math.tanh %642 : vector<2x8xf32>
    %644 = arith.mulf %639, %643 : vector<2x8xf32>
    %645 = vector.extract_strided_slice %93 {offsets = [18, 32], sizes = [2, 32], strides = [1, 1]} : vector<34x64xf32> to vector<2x32xf32>
    %646 = vector.extract_strided_slice %610 {offsets = [0, 32], sizes = [2, 32], strides = [1, 1]} : vector<2x64xf32> to vector<2x32xf32>
    %647 = arith.addf %645, %646 : vector<2x32xf32>
    %648 = vector.extract_strided_slice %647 {offsets = [0, 0], sizes = [2, 8], strides = [1, 1]} : vector<2x32xf32> to vector<2x8xf32>
    %cst_230 = arith.constant 5.000000e-01 : f32
    %649 = vector.broadcast %cst_230 : f32 to vector<2x8xf32>
    %650 = arith.mulf %649, %648 : vector<2x8xf32>
    %651 = math.tanh %650 : vector<2x8xf32>
    %cst_231 = arith.constant 1.000000e+00 : f32
    %652 = vector.broadcast %cst_231 : f32 to vector<2x8xf32>
    %653 = arith.addf %651, %652 : vector<2x8xf32>
    %cst_232 = arith.constant 5.000000e-01 : f32
    %654 = vector.broadcast %cst_232 : f32 to vector<2x8xf32>
    %655 = arith.mulf %654, %653 : vector<2x8xf32>
    %656 = vector.extract_strided_slice %647 {offsets = [0, 8], sizes = [2, 8], strides = [1, 1]} : vector<2x32xf32> to vector<2x8xf32>
    %cst_233 = arith.constant 5.000000e-01 : f32
    %657 = vector.broadcast %cst_233 : f32 to vector<2x8xf32>
    %658 = arith.mulf %657, %656 : vector<2x8xf32>
    %659 = math.tanh %658 : vector<2x8xf32>
    %cst_234 = arith.constant 1.000000e+00 : f32
    %660 = vector.broadcast %cst_234 : f32 to vector<2x8xf32>
    %661 = arith.addf %659, %660 : vector<2x8xf32>
    %cst_235 = arith.constant 5.000000e-01 : f32
    %662 = vector.broadcast %cst_235 : f32 to vector<2x8xf32>
    %663 = arith.mulf %662, %661 : vector<2x8xf32>
    %664 = vector.extract_strided_slice %647 {offsets = [0, 16], sizes = [2, 8], strides = [1, 1]} : vector<2x32xf32> to vector<2x8xf32>
    %665 = math.tanh %664 : vector<2x8xf32>
    %666 = vector.extract_strided_slice %647 {offsets = [0, 24], sizes = [2, 8], strides = [1, 1]} : vector<2x32xf32> to vector<2x8xf32>
    %cst_236 = arith.constant 5.000000e-01 : f32
    %667 = vector.broadcast %cst_236 : f32 to vector<2x8xf32>
    %668 = arith.mulf %667, %666 : vector<2x8xf32>
    %669 = math.tanh %668 : vector<2x8xf32>
    %cst_237 = arith.constant 1.000000e+00 : f32
    %670 = vector.broadcast %cst_237 : f32 to vector<2x8xf32>
    %671 = arith.addf %669, %670 : vector<2x8xf32>
    %cst_238 = arith.constant 5.000000e-01 : f32
    %672 = vector.broadcast %cst_238 : f32 to vector<2x8xf32>
    %673 = arith.mulf %672, %671 : vector<2x8xf32>
    %674 = arith.mulf %663, %603 : vector<2x8xf32>
    %675 = arith.mulf %655, %665 : vector<2x8xf32>
    %676 = arith.addf %674, %675 : vector<2x8xf32>
    %677 = math.tanh %676 : vector<2x8xf32>
    %678 = arith.mulf %673, %677 : vector<2x8xf32>
    %c14_239 = arith.constant 14 : index
    %c0_240 = arith.constant 0 : index
    %679 = vector.load %arg18[%c14_239, %c0_240] : memref<34x16xf32, #tpu.memory_space<vmem>>, vector<2x8xf32>
    tpu.vector_store %arg18[%c14_239, %c0_240], %644 {strides = array<i32>} : memref<34x16xf32, #tpu.memory_space<vmem>>, vector<2x8xf32>,
    %c18_241 = arith.constant 18 : index
    %c8_242 = arith.constant 8 : index
    %680 = vector.load %arg18[%c18_241, %c8_242] : memref<34x16xf32, #tpu.memory_space<vmem>>, vector<2x8xf32>
    tpu.vector_store %arg18[%c18_241, %c8_242], %678 {strides = array<i32>} : memref<34x16xf32, #tpu.memory_space<vmem>>, vector<2x8xf32>,
    %681 = tpu.concatenate %644, %678 in 1 : vector<2x8xf32>, vector<2x8xf32> -> vector<2x16xf32>
    %682 = arith.truncf %681 : vector<2x16xf32> to vector<2x16xbf16>
    %cst_243 = arith.constant dense<0.000000e+00> : vector<2x64xf32>
    %683 = tpu.matmul %682, %94, %cst_243 {dimension_numbers = #tpu.dot_dimension_numbers<[1], [0], [0], [1], [0, 0, 1, 1], [], []>} : vector<2x16xbf16>, vector<16x64xbf16>, vector<2x64xf32> -> vector<2x64xf32>
    %684 = vector.extract_strided_slice %93 {offsets = [16, 0], sizes = [2, 32], strides = [1, 1]} : vector<34x64xf32> to vector<2x32xf32>
    %685 = vector.extract_strided_slice %683 {offsets = [0, 0], sizes = [2, 32], strides = [1, 1]} : vector<2x64xf32> to vector<2x32xf32>
    %686 = arith.addf %684, %685 : vector<2x32xf32>
    %687 = vector.extract_strided_slice %686 {offsets = [0, 0], sizes = [2, 8], strides = [1, 1]} : vector<2x32xf32> to vector<2x8xf32>
    %cst_244 = arith.constant 5.000000e-01 : f32
    %688 = vector.broadcast %cst_244 : f32 to vector<2x8xf32>
    %689 = arith.mulf %688, %687 : vector<2x8xf32>
    %690 = math.tanh %689 : vector<2x8xf32>
    %cst_245 = arith.constant 1.000000e+00 : f32
    %691 = vector.broadcast %cst_245 : f32 to vector<2x8xf32>
    %692 = arith.addf %690, %691 : vector<2x8xf32>
    %cst_246 = arith.constant 5.000000e-01 : f32
    %693 = vector.broadcast %cst_246 : f32 to vector<2x8xf32>
    %694 = arith.mulf %693, %692 : vector<2x8xf32>
    %695 = vector.extract_strided_slice %686 {offsets = [0, 8], sizes = [2, 8], strides = [1, 1]} : vector<2x32xf32> to vector<2x8xf32>
    %cst_247 = arith.constant 5.000000e-01 : f32
    %696 = vector.broadcast %cst_247 : f32 to vector<2x8xf32>
    %697 = arith.mulf %696, %695 : vector<2x8xf32>
    %698 = math.tanh %697 : vector<2x8xf32>
    %cst_248 = arith.constant 1.000000e+00 : f32
    %699 = vector.broadcast %cst_248 : f32 to vector<2x8xf32>
    %700 = arith.addf %698, %699 : vector<2x8xf32>
    %cst_249 = arith.constant 5.000000e-01 : f32
    %701 = vector.broadcast %cst_249 : f32 to vector<2x8xf32>
    %702 = arith.mulf %701, %700 : vector<2x8xf32>
    %703 = vector.extract_strided_slice %686 {offsets = [0, 16], sizes = [2, 8], strides = [1, 1]} : vector<2x32xf32> to vector<2x8xf32>
    %704 = math.tanh %703 : vector<2x8xf32>
    %705 = vector.extract_strided_slice %686 {offsets = [0, 24], sizes = [2, 8], strides = [1, 1]} : vector<2x32xf32> to vector<2x8xf32>
    %cst_250 = arith.constant 5.000000e-01 : f32
    %706 = vector.broadcast %cst_250 : f32 to vector<2x8xf32>
    %707 = arith.mulf %706, %705 : vector<2x8xf32>
    %708 = math.tanh %707 : vector<2x8xf32>
    %cst_251 = arith.constant 1.000000e+00 : f32
    %709 = vector.broadcast %cst_251 : f32 to vector<2x8xf32>
    %710 = arith.addf %708, %709 : vector<2x8xf32>
    %cst_252 = arith.constant 5.000000e-01 : f32
    %711 = vector.broadcast %cst_252 : f32 to vector<2x8xf32>
    %712 = arith.mulf %711, %710 : vector<2x8xf32>
    %713 = arith.mulf %702, %642 : vector<2x8xf32>
    %714 = arith.mulf %694, %704 : vector<2x8xf32>
    %715 = arith.addf %713, %714 : vector<2x8xf32>
    %716 = math.tanh %715 : vector<2x8xf32>
    %717 = arith.mulf %712, %716 : vector<2x8xf32>
    %718 = vector.extract_strided_slice %93 {offsets = [16, 32], sizes = [2, 32], strides = [1, 1]} : vector<34x64xf32> to vector<2x32xf32>
    %719 = vector.extract_strided_slice %683 {offsets = [0, 32], sizes = [2, 32], strides = [1, 1]} : vector<2x64xf32> to vector<2x32xf32>
    %720 = arith.addf %718, %719 : vector<2x32xf32>
    %721 = vector.extract_strided_slice %720 {offsets = [0, 0], sizes = [2, 8], strides = [1, 1]} : vector<2x32xf32> to vector<2x8xf32>
    %cst_253 = arith.constant 5.000000e-01 : f32
    %722 = vector.broadcast %cst_253 : f32 to vector<2x8xf32>
    %723 = arith.mulf %722, %721 : vector<2x8xf32>
    %724 = math.tanh %723 : vector<2x8xf32>
    %cst_254 = arith.constant 1.000000e+00 : f32
    %725 = vector.broadcast %cst_254 : f32 to vector<2x8xf32>
    %726 = arith.addf %724, %725 : vector<2x8xf32>
    %cst_255 = arith.constant 5.000000e-01 : f32
    %727 = vector.broadcast %cst_255 : f32 to vector<2x8xf32>
    %728 = arith.mulf %727, %726 : vector<2x8xf32>
    %729 = vector.extract_strided_slice %720 {offsets = [0, 8], sizes = [2, 8], strides = [1, 1]} : vector<2x32xf32> to vector<2x8xf32>
    %cst_256 = arith.constant 5.000000e-01 : f32
    %730 = vector.broadcast %cst_256 : f32 to vector<2x8xf32>
    %731 = arith.mulf %730, %729 : vector<2x8xf32>
    %732 = math.tanh %731 : vector<2x8xf32>
    %cst_257 = arith.constant 1.000000e+00 : f32
    %733 = vector.broadcast %cst_257 : f32 to vector<2x8xf32>
    %734 = arith.addf %732, %733 : vector<2x8xf32>
    %cst_258 = arith.constant 5.000000e-01 : f32
    %735 = vector.broadcast %cst_258 : f32 to vector<2x8xf32>
    %736 = arith.mulf %735, %734 : vector<2x8xf32>
    %737 = vector.extract_strided_slice %720 {offsets = [0, 16], sizes = [2, 8], strides = [1, 1]} : vector<2x32xf32> to vector<2x8xf32>
    %738 = math.tanh %737 : vector<2x8xf32>
    %739 = vector.extract_strided_slice %720 {offsets = [0, 24], sizes = [2, 8], strides = [1, 1]} : vector<2x32xf32> to vector<2x8xf32>
    %cst_259 = arith.constant 5.000000e-01 : f32
    %740 = vector.broadcast %cst_259 : f32 to vector<2x8xf32>
    %741 = arith.mulf %740, %739 : vector<2x8xf32>
    %742 = math.tanh %741 : vector<2x8xf32>
    %cst_260 = arith.constant 1.000000e+00 : f32
    %743 = vector.broadcast %cst_260 : f32 to vector<2x8xf32>
    %744 = arith.addf %742, %743 : vector<2x8xf32>
    %cst_261 = arith.constant 5.000000e-01 : f32
    %745 = vector.broadcast %cst_261 : f32 to vector<2x8xf32>
    %746 = arith.mulf %745, %744 : vector<2x8xf32>
    %747 = arith.mulf %736, %676 : vector<2x8xf32>
    %748 = arith.mulf %728, %738 : vector<2x8xf32>
    %749 = arith.addf %747, %748 : vector<2x8xf32>
    %750 = math.tanh %749 : vector<2x8xf32>
    %751 = arith.mulf %746, %750 : vector<2x8xf32>
    %c16_262 = arith.constant 16 : index
    %c0_263 = arith.constant 0 : index
    %752 = vector.load %arg18[%c16_262, %c0_263] : memref<34x16xf32, #tpu.memory_space<vmem>>, vector<2x8xf32>
    tpu.vector_store %arg18[%c16_262, %c0_263], %717 {strides = array<i32>} : memref<34x16xf32, #tpu.memory_space<vmem>>, vector<2x8xf32>,
    %c16_264 = arith.constant 16 : index
    %c8_265 = arith.constant 8 : index
    %753 = vector.load %arg18[%c16_264, %c8_265] : memref<34x16xf32, #tpu.memory_space<vmem>>, vector<2x8xf32>
    tpu.vector_store %arg18[%c16_264, %c8_265], %751 {strides = array<i32>} : memref<34x16xf32, #tpu.memory_space<vmem>>, vector<2x8xf32>,
    %754 = tpu.concatenate %717, %751 in 1 : vector<2x8xf32>, vector<2x8xf32> -> vector<2x16xf32>
    %755 = arith.truncf %754 : vector<2x16xf32> to vector<2x16xbf16>
    %cst_266 = arith.constant dense<0.000000e+00> : vector<2x64xf32>
    %756 = tpu.matmul %755, %94, %cst_266 {dimension_numbers = #tpu.dot_dimension_numbers<[1], [0], [0], [1], [0, 0, 1, 1], [], []>} : vector<2x16xbf16>, vector<16x64xbf16>, vector<2x64xf32> -> vector<2x64xf32>
    %757 = vector.extract_strided_slice %93 {offsets = [18, 0], sizes = [2, 32], strides = [1, 1]} : vector<34x64xf32> to vector<2x32xf32>
    %758 = vector.extract_strided_slice %756 {offsets = [0, 0], sizes = [2, 32], strides = [1, 1]} : vector<2x64xf32> to vector<2x32xf32>
    %759 = arith.addf %757, %758 : vector<2x32xf32>
    %760 = vector.extract_strided_slice %759 {offsets = [0, 0], sizes = [2, 8], strides = [1, 1]} : vector<2x32xf32> to vector<2x8xf32>
    %cst_267 = arith.constant 5.000000e-01 : f32
    %761 = vector.broadcast %cst_267 : f32 to vector<2x8xf32>
    %762 = arith.mulf %761, %760 : vector<2x8xf32>
    %763 = math.tanh %762 : vector<2x8xf32>
    %cst_268 = arith.constant 1.000000e+00 : f32
    %764 = vector.broadcast %cst_268 : f32 to vector<2x8xf32>
    %765 = arith.addf %763, %764 : vector<2x8xf32>
    %cst_269 = arith.constant 5.000000e-01 : f32
    %766 = vector.broadcast %cst_269 : f32 to vector<2x8xf32>
    %767 = arith.mulf %766, %765 : vector<2x8xf32>
    %768 = vector.extract_strided_slice %759 {offsets = [0, 8], sizes = [2, 8], strides = [1, 1]} : vector<2x32xf32> to vector<2x8xf32>
    %cst_270 = arith.constant 5.000000e-01 : f32
    %769 = vector.broadcast %cst_270 : f32 to vector<2x8xf32>
    %770 = arith.mulf %769, %768 : vector<2x8xf32>
    %771 = math.tanh %770 : vector<2x8xf32>
    %cst_271 = arith.constant 1.000000e+00 : f32
    %772 = vector.broadcast %cst_271 : f32 to vector<2x8xf32>
    %773 = arith.addf %771, %772 : vector<2x8xf32>
    %cst_272 = arith.constant 5.000000e-01 : f32
    %774 = vector.broadcast %cst_272 : f32 to vector<2x8xf32>
    %775 = arith.mulf %774, %773 : vector<2x8xf32>
    %776 = vector.extract_strided_slice %759 {offsets = [0, 16], sizes = [2, 8], strides = [1, 1]} : vector<2x32xf32> to vector<2x8xf32>
    %777 = math.tanh %776 : vector<2x8xf32>
    %778 = vector.extract_strided_slice %759 {offsets = [0, 24], sizes = [2, 8], strides = [1, 1]} : vector<2x32xf32> to vector<2x8xf32>
    %cst_273 = arith.constant 5.000000e-01 : f32
    %779 = vector.broadcast %cst_273 : f32 to vector<2x8xf32>
    %780 = arith.mulf %779, %778 : vector<2x8xf32>
    %781 = math.tanh %780 : vector<2x8xf32>
    %cst_274 = arith.constant 1.000000e+00 : f32
    %782 = vector.broadcast %cst_274 : f32 to vector<2x8xf32>
    %783 = arith.addf %781, %782 : vector<2x8xf32>
    %cst_275 = arith.constant 5.000000e-01 : f32
    %784 = vector.broadcast %cst_275 : f32 to vector<2x8xf32>
    %785 = arith.mulf %784, %783 : vector<2x8xf32>
    %786 = arith.mulf %775, %715 : vector<2x8xf32>
    %787 = arith.mulf %767, %777 : vector<2x8xf32>
    %788 = arith.addf %786, %787 : vector<2x8xf32>
    %789 = math.tanh %788 : vector<2x8xf32>
    %790 = arith.mulf %785, %789 : vector<2x8xf32>
    %791 = vector.extract_strided_slice %93 {offsets = [14, 32], sizes = [2, 32], strides = [1, 1]} : vector<34x64xf32> to vector<2x32xf32>
    %792 = vector.extract_strided_slice %756 {offsets = [0, 32], sizes = [2, 32], strides = [1, 1]} : vector<2x64xf32> to vector<2x32xf32>
    %793 = arith.addf %791, %792 : vector<2x32xf32>
    %794 = vector.extract_strided_slice %793 {offsets = [0, 0], sizes = [2, 8], strides = [1, 1]} : vector<2x32xf32> to vector<2x8xf32>
    %cst_276 = arith.constant 5.000000e-01 : f32
    %795 = vector.broadcast %cst_276 : f32 to vector<2x8xf32>
    %796 = arith.mulf %795, %794 : vector<2x8xf32>
    %797 = math.tanh %796 : vector<2x8xf32>
    %cst_277 = arith.constant 1.000000e+00 : f32
    %798 = vector.broadcast %cst_277 : f32 to vector<2x8xf32>
    %799 = arith.addf %797, %798 : vector<2x8xf32>
    %cst_278 = arith.constant 5.000000e-01 : f32
    %800 = vector.broadcast %cst_278 : f32 to vector<2x8xf32>
    %801 = arith.mulf %800, %799 : vector<2x8xf32>
    %802 = vector.extract_strided_slice %793 {offsets = [0, 8], sizes = [2, 8], strides = [1, 1]} : vector<2x32xf32> to vector<2x8xf32>
    %cst_279 = arith.constant 5.000000e-01 : f32
    %803 = vector.broadcast %cst_279 : f32 to vector<2x8xf32>
    %804 = arith.mulf %803, %802 : vector<2x8xf32>
    %805 = math.tanh %804 : vector<2x8xf32>
    %cst_280 = arith.constant 1.000000e+00 : f32
    %806 = vector.broadcast %cst_280 : f32 to vector<2x8xf32>
    %807 = arith.addf %805, %806 : vector<2x8xf32>
    %cst_281 = arith.constant 5.000000e-01 : f32
    %808 = vector.broadcast %cst_281 : f32 to vector<2x8xf32>
    %809 = arith.mulf %808, %807 : vector<2x8xf32>
    %810 = vector.extract_strided_slice %793 {offsets = [0, 16], sizes = [2, 8], strides = [1, 1]} : vector<2x32xf32> to vector<2x8xf32>
    %811 = math.tanh %810 : vector<2x8xf32>
    %812 = vector.extract_strided_slice %793 {offsets = [0, 24], sizes = [2, 8], strides = [1, 1]} : vector<2x32xf32> to vector<2x8xf32>
    %cst_282 = arith.constant 5.000000e-01 : f32
    %813 = vector.broadcast %cst_282 : f32 to vector<2x8xf32>
    %814 = arith.mulf %813, %812 : vector<2x8xf32>
    %815 = math.tanh %814 : vector<2x8xf32>
    %cst_283 = arith.constant 1.000000e+00 : f32
    %816 = vector.broadcast %cst_283 : f32 to vector<2x8xf32>
    %817 = arith.addf %815, %816 : vector<2x8xf32>
    %cst_284 = arith.constant 5.000000e-01 : f32
    %818 = vector.broadcast %cst_284 : f32 to vector<2x8xf32>
    %819 = arith.mulf %818, %817 : vector<2x8xf32>
    %820 = arith.mulf %809, %749 : vector<2x8xf32>
    %821 = arith.mulf %801, %811 : vector<2x8xf32>
    %822 = arith.addf %820, %821 : vector<2x8xf32>
    %823 = math.tanh %822 : vector<2x8xf32>
    %824 = arith.mulf %819, %823 : vector<2x8xf32>
    %c18_285 = arith.constant 18 : index
    %c0_286 = arith.constant 0 : index
    %825 = vector.load %arg18[%c18_285, %c0_286] : memref<34x16xf32, #tpu.memory_space<vmem>>, vector<2x8xf32>
    tpu.vector_store %arg18[%c18_285, %c0_286], %790 {strides = array<i32>} : memref<34x16xf32, #tpu.memory_space<vmem>>, vector<2x8xf32>,
    %c14_287 = arith.constant 14 : index
    %c8_288 = arith.constant 8 : index
    %826 = vector.load %arg18[%c14_287, %c8_288] : memref<34x16xf32, #tpu.memory_space<vmem>>, vector<2x8xf32>
    tpu.vector_store %arg18[%c14_287, %c8_288], %824 {strides = array<i32>} : memref<34x16xf32, #tpu.memory_space<vmem>>, vector<2x8xf32>,
    %827 = tpu.concatenate %790, %824 in 1 : vector<2x8xf32>, vector<2x8xf32> -> vector<2x16xf32>
    %828 = arith.truncf %827 : vector<2x16xf32> to vector<2x16xbf16>
    %cst_289 = arith.constant dense<0.000000e+00> : vector<2x64xf32>
    %829 = tpu.matmul %828, %94, %cst_289 {dimension_numbers = #tpu.dot_dimension_numbers<[1], [0], [0], [1], [0, 0, 1, 1], [], []>} : vector<2x16xbf16>, vector<16x64xbf16>, vector<2x64xf32> -> vector<2x64xf32>
    %830 = vector.extract_strided_slice %93 {offsets = [20, 0], sizes = [2, 32], strides = [1, 1]} : vector<34x64xf32> to vector<2x32xf32>
    %831 = vector.extract_strided_slice %829 {offsets = [0, 0], sizes = [2, 32], strides = [1, 1]} : vector<2x64xf32> to vector<2x32xf32>
    %832 = arith.addf %830, %831 : vector<2x32xf32>
    %833 = vector.extract_strided_slice %832 {offsets = [0, 0], sizes = [2, 8], strides = [1, 1]} : vector<2x32xf32> to vector<2x8xf32>
    %cst_290 = arith.constant 5.000000e-01 : f32
    %834 = vector.broadcast %cst_290 : f32 to vector<2x8xf32>
    %835 = arith.mulf %834, %833 : vector<2x8xf32>
    %836 = math.tanh %835 : vector<2x8xf32>
    %cst_291 = arith.constant 1.000000e+00 : f32
    %837 = vector.broadcast %cst_291 : f32 to vector<2x8xf32>
    %838 = arith.addf %836, %837 : vector<2x8xf32>
    %cst_292 = arith.constant 5.000000e-01 : f32
    %839 = vector.broadcast %cst_292 : f32 to vector<2x8xf32>
    %840 = arith.mulf %839, %838 : vector<2x8xf32>
    %841 = vector.extract_strided_slice %832 {offsets = [0, 8], sizes = [2, 8], strides = [1, 1]} : vector<2x32xf32> to vector<2x8xf32>
    %cst_293 = arith.constant 5.000000e-01 : f32
    %842 = vector.broadcast %cst_293 : f32 to vector<2x8xf32>
    %843 = arith.mulf %842, %841 : vector<2x8xf32>
    %844 = math.tanh %843 : vector<2x8xf32>
    %cst_294 = arith.constant 1.000000e+00 : f32
    %845 = vector.broadcast %cst_294 : f32 to vector<2x8xf32>
    %846 = arith.addf %844, %845 : vector<2x8xf32>
    %cst_295 = arith.constant 5.000000e-01 : f32
    %847 = vector.broadcast %cst_295 : f32 to vector<2x8xf32>
    %848 = arith.mulf %847, %846 : vector<2x8xf32>
    %849 = vector.extract_strided_slice %832 {offsets = [0, 16], sizes = [2, 8], strides = [1, 1]} : vector<2x32xf32> to vector<2x8xf32>
    %850 = math.tanh %849 : vector<2x8xf32>
    %851 = vector.extract_strided_slice %832 {offsets = [0, 24], sizes = [2, 8], strides = [1, 1]} : vector<2x32xf32> to vector<2x8xf32>
    %cst_296 = arith.constant 5.000000e-01 : f32
    %852 = vector.broadcast %cst_296 : f32 to vector<2x8xf32>
    %853 = arith.mulf %852, %851 : vector<2x8xf32>
    %854 = math.tanh %853 : vector<2x8xf32>
    %cst_297 = arith.constant 1.000000e+00 : f32
    %855 = vector.broadcast %cst_297 : f32 to vector<2x8xf32>
    %856 = arith.addf %854, %855 : vector<2x8xf32>
    %cst_298 = arith.constant 5.000000e-01 : f32
    %857 = vector.broadcast %cst_298 : f32 to vector<2x8xf32>
    %858 = arith.mulf %857, %856 : vector<2x8xf32>
    %859 = arith.mulf %848, %788 : vector<2x8xf32>
    %860 = arith.mulf %840, %850 : vector<2x8xf32>
    %861 = arith.addf %859, %860 : vector<2x8xf32>
    %862 = math.tanh %861 : vector<2x8xf32>
    %863 = arith.mulf %858, %862 : vector<2x8xf32>
    %864 = vector.extract_strided_slice %93 {offsets = [12, 32], sizes = [2, 32], strides = [1, 1]} : vector<34x64xf32> to vector<2x32xf32>
    %865 = vector.extract_strided_slice %829 {offsets = [0, 32], sizes = [2, 32], strides = [1, 1]} : vector<2x64xf32> to vector<2x32xf32>
    %866 = arith.addf %864, %865 : vector<2x32xf32>
    %867 = vector.extract_strided_slice %866 {offsets = [0, 0], sizes = [2, 8], strides = [1, 1]} : vector<2x32xf32> to vector<2x8xf32>
    %cst_299 = arith.constant 5.000000e-01 : f32
    %868 = vector.broadcast %cst_299 : f32 to vector<2x8xf32>
    %869 = arith.mulf %868, %867 : vector<2x8xf32>
    %870 = math.tanh %869 : vector<2x8xf32>
    %cst_300 = arith.constant 1.000000e+00 : f32
    %871 = vector.broadcast %cst_300 : f32 to vector<2x8xf32>
    %872 = arith.addf %870, %871 : vector<2x8xf32>
    %cst_301 = arith.constant 5.000000e-01 : f32
    %873 = vector.broadcast %cst_301 : f32 to vector<2x8xf32>
    %874 = arith.mulf %873, %872 : vector<2x8xf32>
    %875 = vector.extract_strided_slice %866 {offsets = [0, 8], sizes = [2, 8], strides = [1, 1]} : vector<2x32xf32> to vector<2x8xf32>
    %cst_302 = arith.constant 5.000000e-01 : f32
    %876 = vector.broadcast %cst_302 : f32 to vector<2x8xf32>
    %877 = arith.mulf %876, %875 : vector<2x8xf32>
    %878 = math.tanh %877 : vector<2x8xf32>
    %cst_303 = arith.constant 1.000000e+00 : f32
    %879 = vector.broadcast %cst_303 : f32 to vector<2x8xf32>
    %880 = arith.addf %878, %879 : vector<2x8xf32>
    %cst_304 = arith.constant 5.000000e-01 : f32
    %881 = vector.broadcast %cst_304 : f32 to vector<2x8xf32>
    %882 = arith.mulf %881, %880 : vector<2x8xf32>
    %883 = vector.extract_strided_slice %866 {offsets = [0, 16], sizes = [2, 8], strides = [1, 1]} : vector<2x32xf32> to vector<2x8xf32>
    %884 = math.tanh %883 : vector<2x8xf32>
    %885 = vector.extract_strided_slice %866 {offsets = [0, 24], sizes = [2, 8], strides = [1, 1]} : vector<2x32xf32> to vector<2x8xf32>
    %cst_305 = arith.constant 5.000000e-01 : f32
    %886 = vector.broadcast %cst_305 : f32 to vector<2x8xf32>
    %887 = arith.mulf %886, %885 : vector<2x8xf32>
    %888 = math.tanh %887 : vector<2x8xf32>
    %cst_306 = arith.constant 1.000000e+00 : f32
    %889 = vector.broadcast %cst_306 : f32 to vector<2x8xf32>
    %890 = arith.addf %888, %889 : vector<2x8xf32>
    %cst_307 = arith.constant 5.000000e-01 : f32
    %891 = vector.broadcast %cst_307 : f32 to vector<2x8xf32>
    %892 = arith.mulf %891, %890 : vector<2x8xf32>
    %893 = arith.mulf %882, %822 : vector<2x8xf32>
    %894 = arith.mulf %874, %884 : vector<2x8xf32>
    %895 = arith.addf %893, %894 : vector<2x8xf32>
    %896 = math.tanh %895 : vector<2x8xf32>
    %897 = arith.mulf %892, %896 : vector<2x8xf32>
    %c20_308 = arith.constant 20 : index
    %c0_309 = arith.constant 0 : index
    %898 = vector.load %arg18[%c20_308, %c0_309] : memref<34x16xf32, #tpu.memory_space<vmem>>, vector<2x8xf32>
    tpu.vector_store %arg18[%c20_308, %c0_309], %863 {strides = array<i32>} : memref<34x16xf32, #tpu.memory_space<vmem>>, vector<2x8xf32>,
    %c12_310 = arith.constant 12 : index
    %c8_311 = arith.constant 8 : index
    %899 = vector.load %arg18[%c12_310, %c8_311] : memref<34x16xf32, #tpu.memory_space<vmem>>, vector<2x8xf32>
    tpu.vector_store %arg18[%c12_310, %c8_311], %897 {strides = array<i32>} : memref<34x16xf32, #tpu.memory_space<vmem>>, vector<2x8xf32>,
    %900 = tpu.concatenate %863, %897 in 1 : vector<2x8xf32>, vector<2x8xf32> -> vector<2x16xf32>
    %901 = arith.truncf %900 : vector<2x16xf32> to vector<2x16xbf16>
    %cst_312 = arith.constant dense<0.000000e+00> : vector<2x64xf32>
    %902 = tpu.matmul %901, %94, %cst_312 {dimension_numbers = #tpu.dot_dimension_numbers<[1], [0], [0], [1], [0, 0, 1, 1], [], []>} : vector<2x16xbf16>, vector<16x64xbf16>, vector<2x64xf32> -> vector<2x64xf32>
    %903 = vector.extract_strided_slice %93 {offsets = [22, 0], sizes = [2, 32], strides = [1, 1]} : vector<34x64xf32> to vector<2x32xf32>
    %904 = vector.extract_strided_slice %902 {offsets = [0, 0], sizes = [2, 32], strides = [1, 1]} : vector<2x64xf32> to vector<2x32xf32>
    %905 = arith.addf %903, %904 : vector<2x32xf32>
    %906 = vector.extract_strided_slice %905 {offsets = [0, 0], sizes = [2, 8], strides = [1, 1]} : vector<2x32xf32> to vector<2x8xf32>
    %cst_313 = arith.constant 5.000000e-01 : f32
    %907 = vector.broadcast %cst_313 : f32 to vector<2x8xf32>
    %908 = arith.mulf %907, %906 : vector<2x8xf32>
    %909 = math.tanh %908 : vector<2x8xf32>
    %cst_314 = arith.constant 1.000000e+00 : f32
    %910 = vector.broadcast %cst_314 : f32 to vector<2x8xf32>
    %911 = arith.addf %909, %910 : vector<2x8xf32>
    %cst_315 = arith.constant 5.000000e-01 : f32
    %912 = vector.broadcast %cst_315 : f32 to vector<2x8xf32>
    %913 = arith.mulf %912, %911 : vector<2x8xf32>
    %914 = vector.extract_strided_slice %905 {offsets = [0, 8], sizes = [2, 8], strides = [1, 1]} : vector<2x32xf32> to vector<2x8xf32>
    %cst_316 = arith.constant 5.000000e-01 : f32
    %915 = vector.broadcast %cst_316 : f32 to vector<2x8xf32>
    %916 = arith.mulf %915, %914 : vector<2x8xf32>
    %917 = math.tanh %916 : vector<2x8xf32>
    %cst_317 = arith.constant 1.000000e+00 : f32
    %918 = vector.broadcast %cst_317 : f32 to vector<2x8xf32>
    %919 = arith.addf %917, %918 : vector<2x8xf32>
    %cst_318 = arith.constant 5.000000e-01 : f32
    %920 = vector.broadcast %cst_318 : f32 to vector<2x8xf32>
    %921 = arith.mulf %920, %919 : vector<2x8xf32>
    %922 = vector.extract_strided_slice %905 {offsets = [0, 16], sizes = [2, 8], strides = [1, 1]} : vector<2x32xf32> to vector<2x8xf32>
    %923 = math.tanh %922 : vector<2x8xf32>
    %924 = vector.extract_strided_slice %905 {offsets = [0, 24], sizes = [2, 8], strides = [1, 1]} : vector<2x32xf32> to vector<2x8xf32>
    %cst_319 = arith.constant 5.000000e-01 : f32
    %925 = vector.broadcast %cst_319 : f32 to vector<2x8xf32>
    %926 = arith.mulf %925, %924 : vector<2x8xf32>
    %927 = math.tanh %926 : vector<2x8xf32>
    %cst_320 = arith.constant 1.000000e+00 : f32
    %928 = vector.broadcast %cst_320 : f32 to vector<2x8xf32>
    %929 = arith.addf %927, %928 : vector<2x8xf32>
    %cst_321 = arith.constant 5.000000e-01 : f32
    %930 = vector.broadcast %cst_321 : f32 to vector<2x8xf32>
    %931 = arith.mulf %930, %929 : vector<2x8xf32>
    %932 = arith.mulf %921, %861 : vector<2x8xf32>
    %933 = arith.mulf %913, %923 : vector<2x8xf32>
    %934 = arith.addf %932, %933 : vector<2x8xf32>
    %935 = math.tanh %934 : vector<2x8xf32>
    %936 = arith.mulf %931, %935 : vector<2x8xf32>
    %937 = vector.extract_strided_slice %93 {offsets = [10, 32], sizes = [2, 32], strides = [1, 1]} : vector<34x64xf32> to vector<2x32xf32>
    %938 = vector.extract_strided_slice %902 {offsets = [0, 32], sizes = [2, 32], strides = [1, 1]} : vector<2x64xf32> to vector<2x32xf32>
    %939 = arith.addf %937, %938 : vector<2x32xf32>
    %940 = vector.extract_strided_slice %939 {offsets = [0, 0], sizes = [2, 8], strides = [1, 1]} : vector<2x32xf32> to vector<2x8xf32>
    %cst_322 = arith.constant 5.000000e-01 : f32
    %941 = vector.broadcast %cst_322 : f32 to vector<2x8xf32>
    %942 = arith.mulf %941, %940 : vector<2x8xf32>
    %943 = math.tanh %942 : vector<2x8xf32>
    %cst_323 = arith.constant 1.000000e+00 : f32
    %944 = vector.broadcast %cst_323 : f32 to vector<2x8xf32>
    %945 = arith.addf %943, %944 : vector<2x8xf32>
    %cst_324 = arith.constant 5.000000e-01 : f32
    %946 = vector.broadcast %cst_324 : f32 to vector<2x8xf32>
    %947 = arith.mulf %946, %945 : vector<2x8xf32>
    %948 = vector.extract_strided_slice %939 {offsets = [0, 8], sizes = [2, 8], strides = [1, 1]} : vector<2x32xf32> to vector<2x8xf32>
    %cst_325 = arith.constant 5.000000e-01 : f32
    %949 = vector.broadcast %cst_325 : f32 to vector<2x8xf32>
    %950 = arith.mulf %949, %948 : vector<2x8xf32>
    %951 = math.tanh %950 : vector<2x8xf32>
    %cst_326 = arith.constant 1.000000e+00 : f32
    %952 = vector.broadcast %cst_326 : f32 to vector<2x8xf32>
    %953 = arith.addf %951, %952 : vector<2x8xf32>
    %cst_327 = arith.constant 5.000000e-01 : f32
    %954 = vector.broadcast %cst_327 : f32 to vector<2x8xf32>
    %955 = arith.mulf %954, %953 : vector<2x8xf32>
    %956 = vector.extract_strided_slice %939 {offsets = [0, 16], sizes = [2, 8], strides = [1, 1]} : vector<2x32xf32> to vector<2x8xf32>
    %957 = math.tanh %956 : vector<2x8xf32>
    %958 = vector.extract_strided_slice %939 {offsets = [0, 24], sizes = [2, 8], strides = [1, 1]} : vector<2x32xf32> to vector<2x8xf32>
    %cst_328 = arith.constant 5.000000e-01 : f32
    %959 = vector.broadcast %cst_328 : f32 to vector<2x8xf32>
    %960 = arith.mulf %959, %958 : vector<2x8xf32>
    %961 = math.tanh %960 : vector<2x8xf32>
    %cst_329 = arith.constant 1.000000e+00 : f32
    %962 = vector.broadcast %cst_329 : f32 to vector<2x8xf32>
    %963 = arith.addf %961, %962 : vector<2x8xf32>
    %cst_330 = arith.constant 5.000000e-01 : f32
    %964 = vector.broadcast %cst_330 : f32 to vector<2x8xf32>
    %965 = arith.mulf %964, %963 : vector<2x8xf32>
    %966 = arith.mulf %955, %895 : vector<2x8xf32>
    %967 = arith.mulf %947, %957 : vector<2x8xf32>
    %968 = arith.addf %966, %967 : vector<2x8xf32>
    %969 = math.tanh %968 : vector<2x8xf32>
    %970 = arith.mulf %965, %969 : vector<2x8xf32>
    %c22_331 = arith.constant 22 : index
    %c0_332 = arith.constant 0 : index
    %971 = vector.load %arg18[%c22_331, %c0_332] : memref<34x16xf32, #tpu.memory_space<vmem>>, vector<2x8xf32>
    tpu.vector_store %arg18[%c22_331, %c0_332], %936 {strides = array<i32>} : memref<34x16xf32, #tpu.memory_space<vmem>>, vector<2x8xf32>,
    %c10_333 = arith.constant 10 : index
    %c8_334 = arith.constant 8 : index
    %972 = vector.load %arg18[%c10_333, %c8_334] : memref<34x16xf32, #tpu.memory_space<vmem>>, vector<2x8xf32>
    tpu.vector_store %arg18[%c10_333, %c8_334], %970 {strides = array<i32>} : memref<34x16xf32, #tpu.memory_space<vmem>>, vector<2x8xf32>,
    %973 = tpu.concatenate %936, %970 in 1 : vector<2x8xf32>, vector<2x8xf32> -> vector<2x16xf32>
    %974 = arith.truncf %973 : vector<2x16xf32> to vector<2x16xbf16>
    %cst_335 = arith.constant dense<0.000000e+00> : vector<2x64xf32>
    %975 = tpu.matmul %974, %94, %cst_335 {dimension_numbers = #tpu.dot_dimension_numbers<[1], [0], [0], [1], [0, 0, 1, 1], [], []>} : vector<2x16xbf16>, vector<16x64xbf16>, vector<2x64xf32> -> vector<2x64xf32>
    %976 = vector.extract_strided_slice %93 {offsets = [24, 0], sizes = [2, 32], strides = [1, 1]} : vector<34x64xf32> to vector<2x32xf32>
    %977 = vector.extract_strided_slice %975 {offsets = [0, 0], sizes = [2, 32], strides = [1, 1]} : vector<2x64xf32> to vector<2x32xf32>
    %978 = arith.addf %976, %977 : vector<2x32xf32>
    %979 = vector.extract_strided_slice %978 {offsets = [0, 0], sizes = [2, 8], strides = [1, 1]} : vector<2x32xf32> to vector<2x8xf32>
    %cst_336 = arith.constant 5.000000e-01 : f32
    %980 = vector.broadcast %cst_336 : f32 to vector<2x8xf32>
    %981 = arith.mulf %980, %979 : vector<2x8xf32>
    %982 = math.tanh %981 : vector<2x8xf32>
    %cst_337 = arith.constant 1.000000e+00 : f32
    %983 = vector.broadcast %cst_337 : f32 to vector<2x8xf32>
    %984 = arith.addf %982, %983 : vector<2x8xf32>
    %cst_338 = arith.constant 5.000000e-01 : f32
    %985 = vector.broadcast %cst_338 : f32 to vector<2x8xf32>
    %986 = arith.mulf %985, %984 : vector<2x8xf32>
    %987 = vector.extract_strided_slice %978 {offsets = [0, 8], sizes = [2, 8], strides = [1, 1]} : vector<2x32xf32> to vector<2x8xf32>
    %cst_339 = arith.constant 5.000000e-01 : f32
    %988 = vector.broadcast %cst_339 : f32 to vector<2x8xf32>
    %989 = arith.mulf %988, %987 : vector<2x8xf32>
    %990 = math.tanh %989 : vector<2x8xf32>
    %cst_340 = arith.constant 1.000000e+00 : f32
    %991 = vector.broadcast %cst_340 : f32 to vector<2x8xf32>
    %992 = arith.addf %990, %991 : vector<2x8xf32>
    %cst_341 = arith.constant 5.000000e-01 : f32
    %993 = vector.broadcast %cst_341 : f32 to vector<2x8xf32>
    %994 = arith.mulf %993, %992 : vector<2x8xf32>
    %995 = vector.extract_strided_slice %978 {offsets = [0, 16], sizes = [2, 8], strides = [1, 1]} : vector<2x32xf32> to vector<2x8xf32>
    %996 = math.tanh %995 : vector<2x8xf32>
    %997 = vector.extract_strided_slice %978 {offsets = [0, 24], sizes = [2, 8], strides = [1, 1]} : vector<2x32xf32> to vector<2x8xf32>
    %cst_342 = arith.constant 5.000000e-01 : f32
    %998 = vector.broadcast %cst_342 : f32 to vector<2x8xf32>
    %999 = arith.mulf %998, %997 : vector<2x8xf32>
    %1000 = math.tanh %999 : vector<2x8xf32>
    %cst_343 = arith.constant 1.000000e+00 : f32
    %1001 = vector.broadcast %cst_343 : f32 to vector<2x8xf32>
    %1002 = arith.addf %1000, %1001 : vector<2x8xf32>
    %cst_344 = arith.constant 5.000000e-01 : f32
    %1003 = vector.broadcast %cst_344 : f32 to vector<2x8xf32>
    %1004 = arith.mulf %1003, %1002 : vector<2x8xf32>
    %1005 = arith.mulf %994, %934 : vector<2x8xf32>
    %1006 = arith.mulf %986, %996 : vector<2x8xf32>
    %1007 = arith.addf %1005, %1006 : vector<2x8xf32>
    %1008 = math.tanh %1007 : vector<2x8xf32>
    %1009 = arith.mulf %1004, %1008 : vector<2x8xf32>
    %1010 = vector.extract_strided_slice %93 {offsets = [8, 32], sizes = [2, 32], strides = [1, 1]} : vector<34x64xf32> to vector<2x32xf32>
    %1011 = vector.extract_strided_slice %975 {offsets = [0, 32], sizes = [2, 32], strides = [1, 1]} : vector<2x64xf32> to vector<2x32xf32>
    %1012 = arith.addf %1010, %1011 : vector<2x32xf32>
    %1013 = vector.extract_strided_slice %1012 {offsets = [0, 0], sizes = [2, 8], strides = [1, 1]} : vector<2x32xf32> to vector<2x8xf32>
    %cst_345 = arith.constant 5.000000e-01 : f32
    %1014 = vector.broadcast %cst_345 : f32 to vector<2x8xf32>
    %1015 = arith.mulf %1014, %1013 : vector<2x8xf32>
    %1016 = math.tanh %1015 : vector<2x8xf32>
    %cst_346 = arith.constant 1.000000e+00 : f32
    %1017 = vector.broadcast %cst_346 : f32 to vector<2x8xf32>
    %1018 = arith.addf %1016, %1017 : vector<2x8xf32>
    %cst_347 = arith.constant 5.000000e-01 : f32
    %1019 = vector.broadcast %cst_347 : f32 to vector<2x8xf32>
    %1020 = arith.mulf %1019, %1018 : vector<2x8xf32>
    %1021 = vector.extract_strided_slice %1012 {offsets = [0, 8], sizes = [2, 8], strides = [1, 1]} : vector<2x32xf32> to vector<2x8xf32>
    %cst_348 = arith.constant 5.000000e-01 : f32
    %1022 = vector.broadcast %cst_348 : f32 to vector<2x8xf32>
    %1023 = arith.mulf %1022, %1021 : vector<2x8xf32>
    %1024 = math.tanh %1023 : vector<2x8xf32>
    %cst_349 = arith.constant 1.000000e+00 : f32
    %1025 = vector.broadcast %cst_349 : f32 to vector<2x8xf32>
    %1026 = arith.addf %1024, %1025 : vector<2x8xf32>
    %cst_350 = arith.constant 5.000000e-01 : f32
    %1027 = vector.broadcast %cst_350 : f32 to vector<2x8xf32>
    %1028 = arith.mulf %1027, %1026 : vector<2x8xf32>
    %1029 = vector.extract_strided_slice %1012 {offsets = [0, 16], sizes = [2, 8], strides = [1, 1]} : vector<2x32xf32> to vector<2x8xf32>
    %1030 = math.tanh %1029 : vector<2x8xf32>
    %1031 = vector.extract_strided_slice %1012 {offsets = [0, 24], sizes = [2, 8], strides = [1, 1]} : vector<2x32xf32> to vector<2x8xf32>
    %cst_351 = arith.constant 5.000000e-01 : f32
    %1032 = vector.broadcast %cst_351 : f32 to vector<2x8xf32>
    %1033 = arith.mulf %1032, %1031 : vector<2x8xf32>
    %1034 = math.tanh %1033 : vector<2x8xf32>
    %cst_352 = arith.constant 1.000000e+00 : f32
    %1035 = vector.broadcast %cst_352 : f32 to vector<2x8xf32>
    %1036 = arith.addf %1034, %1035 : vector<2x8xf32>
    %cst_353 = arith.constant 5.000000e-01 : f32
    %1037 = vector.broadcast %cst_353 : f32 to vector<2x8xf32>
    %1038 = arith.mulf %1037, %1036 : vector<2x8xf32>
    %1039 = arith.mulf %1028, %968 : vector<2x8xf32>
    %1040 = arith.mulf %1020, %1030 : vector<2x8xf32>
    %1041 = arith.addf %1039, %1040 : vector<2x8xf32>
    %1042 = math.tanh %1041 : vector<2x8xf32>
    %1043 = arith.mulf %1038, %1042 : vector<2x8xf32>
    %c24_354 = arith.constant 24 : index
    %c0_355 = arith.constant 0 : index
    %1044 = vector.load %arg18[%c24_354, %c0_355] : memref<34x16xf32, #tpu.memory_space<vmem>>, vector<2x8xf32>
    tpu.vector_store %arg18[%c24_354, %c0_355], %1009 {strides = array<i32>} : memref<34x16xf32, #tpu.memory_space<vmem>>, vector<2x8xf32>,
    %c8_356 = arith.constant 8 : index
    %c8_357 = arith.constant 8 : index
    %1045 = vector.load %arg18[%c8_356, %c8_357] : memref<34x16xf32, #tpu.memory_space<vmem>>, vector<2x8xf32>
    tpu.vector_store %arg18[%c8_356, %c8_357], %1043 {strides = array<i32>} : memref<34x16xf32, #tpu.memory_space<vmem>>, vector<2x8xf32>,
    %1046 = tpu.concatenate %1009, %1043 in 1 : vector<2x8xf32>, vector<2x8xf32> -> vector<2x16xf32>
    %1047 = arith.truncf %1046 : vector<2x16xf32> to vector<2x16xbf16>
    %cst_358 = arith.constant dense<0.000000e+00> : vector<2x64xf32>
    %1048 = tpu.matmul %1047, %94, %cst_358 {dimension_numbers = #tpu.dot_dimension_numbers<[1], [0], [0], [1], [0, 0, 1, 1], [], []>} : vector<2x16xbf16>, vector<16x64xbf16>, vector<2x64xf32> -> vector<2x64xf32>
    %1049 = vector.extract_strided_slice %93 {offsets = [26, 0], sizes = [2, 32], strides = [1, 1]} : vector<34x64xf32> to vector<2x32xf32>
    %1050 = vector.extract_strided_slice %1048 {offsets = [0, 0], sizes = [2, 32], strides = [1, 1]} : vector<2x64xf32> to vector<2x32xf32>
    %1051 = arith.addf %1049, %1050 : vector<2x32xf32>
    %1052 = vector.extract_strided_slice %1051 {offsets = [0, 0], sizes = [2, 8], strides = [1, 1]} : vector<2x32xf32> to vector<2x8xf32>
    %cst_359 = arith.constant 5.000000e-01 : f32
    %1053 = vector.broadcast %cst_359 : f32 to vector<2x8xf32>
    %1054 = arith.mulf %1053, %1052 : vector<2x8xf32>
    %1055 = math.tanh %1054 : vector<2x8xf32>
    %cst_360 = arith.constant 1.000000e+00 : f32
    %1056 = vector.broadcast %cst_360 : f32 to vector<2x8xf32>
    %1057 = arith.addf %1055, %1056 : vector<2x8xf32>
    %cst_361 = arith.constant 5.000000e-01 : f32
    %1058 = vector.broadcast %cst_361 : f32 to vector<2x8xf32>
    %1059 = arith.mulf %1058, %1057 : vector<2x8xf32>
    %1060 = vector.extract_strided_slice %1051 {offsets = [0, 8], sizes = [2, 8], strides = [1, 1]} : vector<2x32xf32> to vector<2x8xf32>
    %cst_362 = arith.constant 5.000000e-01 : f32
    %1061 = vector.broadcast %cst_362 : f32 to vector<2x8xf32>
    %1062 = arith.mulf %1061, %1060 : vector<2x8xf32>
    %1063 = math.tanh %1062 : vector<2x8xf32>
    %cst_363 = arith.constant 1.000000e+00 : f32
    %1064 = vector.broadcast %cst_363 : f32 to vector<2x8xf32>
    %1065 = arith.addf %1063, %1064 : vector<2x8xf32>
    %cst_364 = arith.constant 5.000000e-01 : f32
    %1066 = vector.broadcast %cst_364 : f32 to vector<2x8xf32>
    %1067 = arith.mulf %1066, %1065 : vector<2x8xf32>
    %1068 = vector.extract_strided_slice %1051 {offsets = [0, 16], sizes = [2, 8], strides = [1, 1]} : vector<2x32xf32> to vector<2x8xf32>
    %1069 = math.tanh %1068 : vector<2x8xf32>
    %1070 = vector.extract_strided_slice %1051 {offsets = [0, 24], sizes = [2, 8], strides = [1, 1]} : vector<2x32xf32> to vector<2x8xf32>
    %cst_365 = arith.constant 5.000000e-01 : f32
    %1071 = vector.broadcast %cst_365 : f32 to vector<2x8xf32>
    %1072 = arith.mulf %1071, %1070 : vector<2x8xf32>
    %1073 = math.tanh %1072 : vector<2x8xf32>
    %cst_366 = arith.constant 1.000000e+00 : f32
    %1074 = vector.broadcast %cst_366 : f32 to vector<2x8xf32>
    %1075 = arith.addf %1073, %1074 : vector<2x8xf32>
    %cst_367 = arith.constant 5.000000e-01 : f32
    %1076 = vector.broadcast %cst_367 : f32 to vector<2x8xf32>
    %1077 = arith.mulf %1076, %1075 : vector<2x8xf32>
    %1078 = arith.mulf %1067, %1007 : vector<2x8xf32>
    %1079 = arith.mulf %1059, %1069 : vector<2x8xf32>
    %1080 = arith.addf %1078, %1079 : vector<2x8xf32>
    %1081 = math.tanh %1080 : vector<2x8xf32>
    %1082 = arith.mulf %1077, %1081 : vector<2x8xf32>
    %1083 = vector.extract_strided_slice %93 {offsets = [6, 32], sizes = [2, 32], strides = [1, 1]} : vector<34x64xf32> to vector<2x32xf32>
    %1084 = vector.extract_strided_slice %1048 {offsets = [0, 32], sizes = [2, 32], strides = [1, 1]} : vector<2x64xf32> to vector<2x32xf32>
    %1085 = arith.addf %1083, %1084 : vector<2x32xf32>
    %1086 = vector.extract_strided_slice %1085 {offsets = [0, 0], sizes = [2, 8], strides = [1, 1]} : vector<2x32xf32> to vector<2x8xf32>
    %cst_368 = arith.constant 5.000000e-01 : f32
    %1087 = vector.broadcast %cst_368 : f32 to vector<2x8xf32>
    %1088 = arith.mulf %1087, %1086 : vector<2x8xf32>
    %1089 = math.tanh %1088 : vector<2x8xf32>
    %cst_369 = arith.constant 1.000000e+00 : f32
    %1090 = vector.broadcast %cst_369 : f32 to vector<2x8xf32>
    %1091 = arith.addf %1089, %1090 : vector<2x8xf32>
    %cst_370 = arith.constant 5.000000e-01 : f32
    %1092 = vector.broadcast %cst_370 : f32 to vector<2x8xf32>
    %1093 = arith.mulf %1092, %1091 : vector<2x8xf32>
    %1094 = vector.extract_strided_slice %1085 {offsets = [0, 8], sizes = [2, 8], strides = [1, 1]} : vector<2x32xf32> to vector<2x8xf32>
    %cst_371 = arith.constant 5.000000e-01 : f32
    %1095 = vector.broadcast %cst_371 : f32 to vector<2x8xf32>
    %1096 = arith.mulf %1095, %1094 : vector<2x8xf32>
    %1097 = math.tanh %1096 : vector<2x8xf32>
    %cst_372 = arith.constant 1.000000e+00 : f32
    %1098 = vector.broadcast %cst_372 : f32 to vector<2x8xf32>
    %1099 = arith.addf %1097, %1098 : vector<2x8xf32>
    %cst_373 = arith.constant 5.000000e-01 : f32
    %1100 = vector.broadcast %cst_373 : f32 to vector<2x8xf32>
    %1101 = arith.mulf %1100, %1099 : vector<2x8xf32>
    %1102 = vector.extract_strided_slice %1085 {offsets = [0, 16], sizes = [2, 8], strides = [1, 1]} : vector<2x32xf32> to vector<2x8xf32>
    %1103 = math.tanh %1102 : vector<2x8xf32>
    %1104 = vector.extract_strided_slice %1085 {offsets = [0, 24], sizes = [2, 8], strides = [1, 1]} : vector<2x32xf32> to vector<2x8xf32>
    %cst_374 = arith.constant 5.000000e-01 : f32
    %1105 = vector.broadcast %cst_374 : f32 to vector<2x8xf32>
    %1106 = arith.mulf %1105, %1104 : vector<2x8xf32>
    %1107 = math.tanh %1106 : vector<2x8xf32>
    %cst_375 = arith.constant 1.000000e+00 : f32
    %1108 = vector.broadcast %cst_375 : f32 to vector<2x8xf32>
    %1109 = arith.addf %1107, %1108 : vector<2x8xf32>
    %cst_376 = arith.constant 5.000000e-01 : f32
    %1110 = vector.broadcast %cst_376 : f32 to vector<2x8xf32>
    %1111 = arith.mulf %1110, %1109 : vector<2x8xf32>
    %1112 = arith.mulf %1101, %1041 : vector<2x8xf32>
    %1113 = arith.mulf %1093, %1103 : vector<2x8xf32>
    %1114 = arith.addf %1112, %1113 : vector<2x8xf32>
    %1115 = math.tanh %1114 : vector<2x8xf32>
    %1116 = arith.mulf %1111, %1115 : vector<2x8xf32>
    %c26_377 = arith.constant 26 : index
    %c0_378 = arith.constant 0 : index
    %1117 = vector.load %arg18[%c26_377, %c0_378] : memref<34x16xf32, #tpu.memory_space<vmem>>, vector<2x8xf32>
    tpu.vector_store %arg18[%c26_377, %c0_378], %1082 {strides = array<i32>} : memref<34x16xf32, #tpu.memory_space<vmem>>, vector<2x8xf32>,
    %c6_379 = arith.constant 6 : index
    %c8_380 = arith.constant 8 : index
    %1118 = vector.load %arg18[%c6_379, %c8_380] : memref<34x16xf32, #tpu.memory_space<vmem>>, vector<2x8xf32>
    tpu.vector_store %arg18[%c6_379, %c8_380], %1116 {strides = array<i32>} : memref<34x16xf32, #tpu.memory_space<vmem>>, vector<2x8xf32>,
    %1119 = tpu.concatenate %1082, %1116 in 1 : vector<2x8xf32>, vector<2x8xf32> -> vector<2x16xf32>
    %1120 = arith.truncf %1119 : vector<2x16xf32> to vector<2x16xbf16>
    %cst_381 = arith.constant dense<0.000000e+00> : vector<2x64xf32>
    %1121 = tpu.matmul %1120, %94, %cst_381 {dimension_numbers = #tpu.dot_dimension_numbers<[1], [0], [0], [1], [0, 0, 1, 1], [], []>} : vector<2x16xbf16>, vector<16x64xbf16>, vector<2x64xf32> -> vector<2x64xf32>
    %1122 = vector.extract_strided_slice %93 {offsets = [28, 0], sizes = [2, 32], strides = [1, 1]} : vector<34x64xf32> to vector<2x32xf32>
    %1123 = vector.extract_strided_slice %1121 {offsets = [0, 0], sizes = [2, 32], strides = [1, 1]} : vector<2x64xf32> to vector<2x32xf32>
    %1124 = arith.addf %1122, %1123 : vector<2x32xf32>
    %1125 = vector.extract_strided_slice %1124 {offsets = [0, 0], sizes = [2, 8], strides = [1, 1]} : vector<2x32xf32> to vector<2x8xf32>
    %cst_382 = arith.constant 5.000000e-01 : f32
    %1126 = vector.broadcast %cst_382 : f32 to vector<2x8xf32>
    %1127 = arith.mulf %1126, %1125 : vector<2x8xf32>
    %1128 = math.tanh %1127 : vector<2x8xf32>
    %cst_383 = arith.constant 1.000000e+00 : f32
    %1129 = vector.broadcast %cst_383 : f32 to vector<2x8xf32>
    %1130 = arith.addf %1128, %1129 : vector<2x8xf32>
    %cst_384 = arith.constant 5.000000e-01 : f32
    %1131 = vector.broadcast %cst_384 : f32 to vector<2x8xf32>
    %1132 = arith.mulf %1131, %1130 : vector<2x8xf32>
    %1133 = vector.extract_strided_slice %1124 {offsets = [0, 8], sizes = [2, 8], strides = [1, 1]} : vector<2x32xf32> to vector<2x8xf32>
    %cst_385 = arith.constant 5.000000e-01 : f32
    %1134 = vector.broadcast %cst_385 : f32 to vector<2x8xf32>
    %1135 = arith.mulf %1134, %1133 : vector<2x8xf32>
    %1136 = math.tanh %1135 : vector<2x8xf32>
    %cst_386 = arith.constant 1.000000e+00 : f32
    %1137 = vector.broadcast %cst_386 : f32 to vector<2x8xf32>
    %1138 = arith.addf %1136, %1137 : vector<2x8xf32>
    %cst_387 = arith.constant 5.000000e-01 : f32
    %1139 = vector.broadcast %cst_387 : f32 to vector<2x8xf32>
    %1140 = arith.mulf %1139, %1138 : vector<2x8xf32>
    %1141 = vector.extract_strided_slice %1124 {offsets = [0, 16], sizes = [2, 8], strides = [1, 1]} : vector<2x32xf32> to vector<2x8xf32>
    %1142 = math.tanh %1141 : vector<2x8xf32>
    %1143 = vector.extract_strided_slice %1124 {offsets = [0, 24], sizes = [2, 8], strides = [1, 1]} : vector<2x32xf32> to vector<2x8xf32>
    %cst_388 = arith.constant 5.000000e-01 : f32
    %1144 = vector.broadcast %cst_388 : f32 to vector<2x8xf32>
    %1145 = arith.mulf %1144, %1143 : vector<2x8xf32>
    %1146 = math.tanh %1145 : vector<2x8xf32>
    %cst_389 = arith.constant 1.000000e+00 : f32
    %1147 = vector.broadcast %cst_389 : f32 to vector<2x8xf32>
    %1148 = arith.addf %1146, %1147 : vector<2x8xf32>
    %cst_390 = arith.constant 5.000000e-01 : f32
    %1149 = vector.broadcast %cst_390 : f32 to vector<2x8xf32>
    %1150 = arith.mulf %1149, %1148 : vector<2x8xf32>
    %1151 = arith.mulf %1140, %1080 : vector<2x8xf32>
    %1152 = arith.mulf %1132, %1142 : vector<2x8xf32>
    %1153 = arith.addf %1151, %1152 : vector<2x8xf32>
    %1154 = math.tanh %1153 : vector<2x8xf32>
    %1155 = arith.mulf %1150, %1154 : vector<2x8xf32>
    %1156 = vector.extract_strided_slice %93 {offsets = [4, 32], sizes = [2, 32], strides = [1, 1]} : vector<34x64xf32> to vector<2x32xf32>
    %1157 = vector.extract_strided_slice %1121 {offsets = [0, 32], sizes = [2, 32], strides = [1, 1]} : vector<2x64xf32> to vector<2x32xf32>
    %1158 = arith.addf %1156, %1157 : vector<2x32xf32>
    %1159 = vector.extract_strided_slice %1158 {offsets = [0, 0], sizes = [2, 8], strides = [1, 1]} : vector<2x32xf32> to vector<2x8xf32>
    %cst_391 = arith.constant 5.000000e-01 : f32
    %1160 = vector.broadcast %cst_391 : f32 to vector<2x8xf32>
    %1161 = arith.mulf %1160, %1159 : vector<2x8xf32>
    %1162 = math.tanh %1161 : vector<2x8xf32>
    %cst_392 = arith.constant 1.000000e+00 : f32
    %1163 = vector.broadcast %cst_392 : f32 to vector<2x8xf32>
    %1164 = arith.addf %1162, %1163 : vector<2x8xf32>
    %cst_393 = arith.constant 5.000000e-01 : f32
    %1165 = vector.broadcast %cst_393 : f32 to vector<2x8xf32>
    %1166 = arith.mulf %1165, %1164 : vector<2x8xf32>
    %1167 = vector.extract_strided_slice %1158 {offsets = [0, 8], sizes = [2, 8], strides = [1, 1]} : vector<2x32xf32> to vector<2x8xf32>
    %cst_394 = arith.constant 5.000000e-01 : f32
    %1168 = vector.broadcast %cst_394 : f32 to vector<2x8xf32>
    %1169 = arith.mulf %1168, %1167 : vector<2x8xf32>
    %1170 = math.tanh %1169 : vector<2x8xf32>
    %cst_395 = arith.constant 1.000000e+00 : f32
    %1171 = vector.broadcast %cst_395 : f32 to vector<2x8xf32>
    %1172 = arith.addf %1170, %1171 : vector<2x8xf32>
    %cst_396 = arith.constant 5.000000e-01 : f32
    %1173 = vector.broadcast %cst_396 : f32 to vector<2x8xf32>
    %1174 = arith.mulf %1173, %1172 : vector<2x8xf32>
    %1175 = vector.extract_strided_slice %1158 {offsets = [0, 16], sizes = [2, 8], strides = [1, 1]} : vector<2x32xf32> to vector<2x8xf32>
    %1176 = math.tanh %1175 : vector<2x8xf32>
    %1177 = vector.extract_strided_slice %1158 {offsets = [0, 24], sizes = [2, 8], strides = [1, 1]} : vector<2x32xf32> to vector<2x8xf32>
    %cst_397 = arith.constant 5.000000e-01 : f32
    %1178 = vector.broadcast %cst_397 : f32 to vector<2x8xf32>
    %1179 = arith.mulf %1178, %1177 : vector<2x8xf32>
    %1180 = math.tanh %1179 : vector<2x8xf32>
    %cst_398 = arith.constant 1.000000e+00 : f32
    %1181 = vector.broadcast %cst_398 : f32 to vector<2x8xf32>
    %1182 = arith.addf %1180, %1181 : vector<2x8xf32>
    %cst_399 = arith.constant 5.000000e-01 : f32
    %1183 = vector.broadcast %cst_399 : f32 to vector<2x8xf32>
    %1184 = arith.mulf %1183, %1182 : vector<2x8xf32>
    %1185 = arith.mulf %1174, %1114 : vector<2x8xf32>
    %1186 = arith.mulf %1166, %1176 : vector<2x8xf32>
    %1187 = arith.addf %1185, %1186 : vector<2x8xf32>
    %1188 = math.tanh %1187 : vector<2x8xf32>
    %1189 = arith.mulf %1184, %1188 : vector<2x8xf32>
    %c28_400 = arith.constant 28 : index
    %c0_401 = arith.constant 0 : index
    %1190 = vector.load %arg18[%c28_400, %c0_401] : memref<34x16xf32, #tpu.memory_space<vmem>>, vector<2x8xf32>
    tpu.vector_store %arg18[%c28_400, %c0_401], %1155 {strides = array<i32>} : memref<34x16xf32, #tpu.memory_space<vmem>>, vector<2x8xf32>,
    %c4_402 = arith.constant 4 : index
    %c8_403 = arith.constant 8 : index
    %1191 = vector.load %arg18[%c4_402, %c8_403] : memref<34x16xf32, #tpu.memory_space<vmem>>, vector<2x8xf32>
    tpu.vector_store %arg18[%c4_402, %c8_403], %1189 {strides = array<i32>} : memref<34x16xf32, #tpu.memory_space<vmem>>, vector<2x8xf32>,
    %1192 = tpu.concatenate %1155, %1189 in 1 : vector<2x8xf32>, vector<2x8xf32> -> vector<2x16xf32>
    %1193 = arith.truncf %1192 : vector<2x16xf32> to vector<2x16xbf16>
    %cst_404 = arith.constant dense<0.000000e+00> : vector<2x64xf32>
    %1194 = tpu.matmul %1193, %94, %cst_404 {dimension_numbers = #tpu.dot_dimension_numbers<[1], [0], [0], [1], [0, 0, 1, 1], [], []>} : vector<2x16xbf16>, vector<16x64xbf16>, vector<2x64xf32> -> vector<2x64xf32>
    %1195 = vector.extract_strided_slice %93 {offsets = [30, 0], sizes = [2, 32], strides = [1, 1]} : vector<34x64xf32> to vector<2x32xf32>
    %1196 = vector.extract_strided_slice %1194 {offsets = [0, 0], sizes = [2, 32], strides = [1, 1]} : vector<2x64xf32> to vector<2x32xf32>
    %1197 = arith.addf %1195, %1196 : vector<2x32xf32>
    %1198 = vector.extract_strided_slice %1197 {offsets = [0, 0], sizes = [2, 8], strides = [1, 1]} : vector<2x32xf32> to vector<2x8xf32>
    %cst_405 = arith.constant 5.000000e-01 : f32
    %1199 = vector.broadcast %cst_405 : f32 to vector<2x8xf32>
    %1200 = arith.mulf %1199, %1198 : vector<2x8xf32>
    %1201 = math.tanh %1200 : vector<2x8xf32>
    %cst_406 = arith.constant 1.000000e+00 : f32
    %1202 = vector.broadcast %cst_406 : f32 to vector<2x8xf32>
    %1203 = arith.addf %1201, %1202 : vector<2x8xf32>
    %cst_407 = arith.constant 5.000000e-01 : f32
    %1204 = vector.broadcast %cst_407 : f32 to vector<2x8xf32>
    %1205 = arith.mulf %1204, %1203 : vector<2x8xf32>
    %1206 = vector.extract_strided_slice %1197 {offsets = [0, 8], sizes = [2, 8], strides = [1, 1]} : vector<2x32xf32> to vector<2x8xf32>
    %cst_408 = arith.constant 5.000000e-01 : f32
    %1207 = vector.broadcast %cst_408 : f32 to vector<2x8xf32>
    %1208 = arith.mulf %1207, %1206 : vector<2x8xf32>
    %1209 = math.tanh %1208 : vector<2x8xf32>
    %cst_409 = arith.constant 1.000000e+00 : f32
    %1210 = vector.broadcast %cst_409 : f32 to vector<2x8xf32>
    %1211 = arith.addf %1209, %1210 : vector<2x8xf32>
    %cst_410 = arith.constant 5.000000e-01 : f32
    %1212 = vector.broadcast %cst_410 : f32 to vector<2x8xf32>
    %1213 = arith.mulf %1212, %1211 : vector<2x8xf32>
    %1214 = vector.extract_strided_slice %1197 {offsets = [0, 16], sizes = [2, 8], strides = [1, 1]} : vector<2x32xf32> to vector<2x8xf32>
    %1215 = math.tanh %1214 : vector<2x8xf32>
    %1216 = vector.extract_strided_slice %1197 {offsets = [0, 24], sizes = [2, 8], strides = [1, 1]} : vector<2x32xf32> to vector<2x8xf32>
    %cst_411 = arith.constant 5.000000e-01 : f32
    %1217 = vector.broadcast %cst_411 : f32 to vector<2x8xf32>
    %1218 = arith.mulf %1217, %1216 : vector<2x8xf32>
    %1219 = math.tanh %1218 : vector<2x8xf32>
    %cst_412 = arith.constant 1.000000e+00 : f32
    %1220 = vector.broadcast %cst_412 : f32 to vector<2x8xf32>
    %1221 = arith.addf %1219, %1220 : vector<2x8xf32>
    %cst_413 = arith.constant 5.000000e-01 : f32
    %1222 = vector.broadcast %cst_413 : f32 to vector<2x8xf32>
    %1223 = arith.mulf %1222, %1221 : vector<2x8xf32>
    %1224 = arith.mulf %1213, %1153 : vector<2x8xf32>
    %1225 = arith.mulf %1205, %1215 : vector<2x8xf32>
    %1226 = arith.addf %1224, %1225 : vector<2x8xf32>
    %1227 = math.tanh %1226 : vector<2x8xf32>
    %1228 = arith.mulf %1223, %1227 : vector<2x8xf32>
    %1229 = vector.extract_strided_slice %93 {offsets = [2, 32], sizes = [2, 32], strides = [1, 1]} : vector<34x64xf32> to vector<2x32xf32>
    %1230 = vector.extract_strided_slice %1194 {offsets = [0, 32], sizes = [2, 32], strides = [1, 1]} : vector<2x64xf32> to vector<2x32xf32>
    %1231 = arith.addf %1229, %1230 : vector<2x32xf32>
    %1232 = vector.extract_strided_slice %1231 {offsets = [0, 0], sizes = [2, 8], strides = [1, 1]} : vector<2x32xf32> to vector<2x8xf32>
    %cst_414 = arith.constant 5.000000e-01 : f32
    %1233 = vector.broadcast %cst_414 : f32 to vector<2x8xf32>
    %1234 = arith.mulf %1233, %1232 : vector<2x8xf32>
    %1235 = math.tanh %1234 : vector<2x8xf32>
    %cst_415 = arith.constant 1.000000e+00 : f32
    %1236 = vector.broadcast %cst_415 : f32 to vector<2x8xf32>
    %1237 = arith.addf %1235, %1236 : vector<2x8xf32>
    %cst_416 = arith.constant 5.000000e-01 : f32
    %1238 = vector.broadcast %cst_416 : f32 to vector<2x8xf32>
    %1239 = arith.mulf %1238, %1237 : vector<2x8xf32>
    %1240 = vector.extract_strided_slice %1231 {offsets = [0, 8], sizes = [2, 8], strides = [1, 1]} : vector<2x32xf32> to vector<2x8xf32>
    %cst_417 = arith.constant 5.000000e-01 : f32
    %1241 = vector.broadcast %cst_417 : f32 to vector<2x8xf32>
    %1242 = arith.mulf %1241, %1240 : vector<2x8xf32>
    %1243 = math.tanh %1242 : vector<2x8xf32>
    %cst_418 = arith.constant 1.000000e+00 : f32
    %1244 = vector.broadcast %cst_418 : f32 to vector<2x8xf32>
    %1245 = arith.addf %1243, %1244 : vector<2x8xf32>
    %cst_419 = arith.constant 5.000000e-01 : f32
    %1246 = vector.broadcast %cst_419 : f32 to vector<2x8xf32>
    %1247 = arith.mulf %1246, %1245 : vector<2x8xf32>
    %1248 = vector.extract_strided_slice %1231 {offsets = [0, 16], sizes = [2, 8], strides = [1, 1]} : vector<2x32xf32> to vector<2x8xf32>
    %1249 = math.tanh %1248 : vector<2x8xf32>
    %1250 = vector.extract_strided_slice %1231 {offsets = [0, 24], sizes = [2, 8], strides = [1, 1]} : vector<2x32xf32> to vector<2x8xf32>
    %cst_420 = arith.constant 5.000000e-01 : f32
    %1251 = vector.broadcast %cst_420 : f32 to vector<2x8xf32>
    %1252 = arith.mulf %1251, %1250 : vector<2x8xf32>
    %1253 = math.tanh %1252 : vector<2x8xf32>
    %cst_421 = arith.constant 1.000000e+00 : f32
    %1254 = vector.broadcast %cst_421 : f32 to vector<2x8xf32>
    %1255 = arith.addf %1253, %1254 : vector<2x8xf32>
    %cst_422 = arith.constant 5.000000e-01 : f32
    %1256 = vector.broadcast %cst_422 : f32 to vector<2x8xf32>
    %1257 = arith.mulf %1256, %1255 : vector<2x8xf32>
    %1258 = arith.mulf %1247, %1187 : vector<2x8xf32>
    %1259 = arith.mulf %1239, %1249 : vector<2x8xf32>
    %1260 = arith.addf %1258, %1259 : vector<2x8xf32>
    %1261 = math.tanh %1260 : vector<2x8xf32>
    %1262 = arith.mulf %1257, %1261 : vector<2x8xf32>
    %c30_423 = arith.constant 30 : index
    %c0_424 = arith.constant 0 : index
    %1263 = vector.load %arg18[%c30_423, %c0_424] : memref<34x16xf32, #tpu.memory_space<vmem>>, vector<2x8xf32>
    tpu.vector_store %arg18[%c30_423, %c0_424], %1228 {strides = array<i32>} : memref<34x16xf32, #tpu.memory_space<vmem>>, vector<2x8xf32>,
    %c2_425 = arith.constant 2 : index
    %c8_426 = arith.constant 8 : index
    %1264 = vector.load %arg18[%c2_425, %c8_426] : memref<34x16xf32, #tpu.memory_space<vmem>>, vector<2x8xf32>
    tpu.vector_store %arg18[%c2_425, %c8_426], %1262 {strides = array<i32>} : memref<34x16xf32, #tpu.memory_space<vmem>>, vector<2x8xf32>,
    %1265 = tpu.concatenate %1228, %1262 in 1 : vector<2x8xf32>, vector<2x8xf32> -> vector<2x16xf32>
    %1266 = arith.truncf %1265 : vector<2x16xf32> to vector<2x16xbf16>
    %cst_427 = arith.constant dense<0.000000e+00> : vector<2x64xf32>
    %1267 = tpu.matmul %1266, %94, %cst_427 {dimension_numbers = #tpu.dot_dimension_numbers<[1], [0], [0], [1], [0, 0, 1, 1], [], []>} : vector<2x16xbf16>, vector<16x64xbf16>, vector<2x64xf32> -> vector<2x64xf32>
    %1268 = vector.extract_strided_slice %93 {offsets = [32, 0], sizes = [2, 32], strides = [1, 1]} : vector<34x64xf32> to vector<2x32xf32>
    %1269 = vector.extract_strided_slice %1267 {offsets = [0, 0], sizes = [2, 32], strides = [1, 1]} : vector<2x64xf32> to vector<2x32xf32>
    %1270 = arith.addf %1268, %1269 : vector<2x32xf32>
    %1271 = vector.extract_strided_slice %1270 {offsets = [0, 0], sizes = [2, 8], strides = [1, 1]} : vector<2x32xf32> to vector<2x8xf32>
    %cst_428 = arith.constant 5.000000e-01 : f32
    %1272 = vector.broadcast %cst_428 : f32 to vector<2x8xf32>
    %1273 = arith.mulf %1272, %1271 : vector<2x8xf32>
    %1274 = math.tanh %1273 : vector<2x8xf32>
    %cst_429 = arith.constant 1.000000e+00 : f32
    %1275 = vector.broadcast %cst_429 : f32 to vector<2x8xf32>
    %1276 = arith.addf %1274, %1275 : vector<2x8xf32>
    %cst_430 = arith.constant 5.000000e-01 : f32
    %1277 = vector.broadcast %cst_430 : f32 to vector<2x8xf32>
    %1278 = arith.mulf %1277, %1276 : vector<2x8xf32>
    %1279 = vector.extract_strided_slice %1270 {offsets = [0, 8], sizes = [2, 8], strides = [1, 1]} : vector<2x32xf32> to vector<2x8xf32>
    %cst_431 = arith.constant 5.000000e-01 : f32
    %1280 = vector.broadcast %cst_431 : f32 to vector<2x8xf32>
    %1281 = arith.mulf %1280, %1279 : vector<2x8xf32>
    %1282 = math.tanh %1281 : vector<2x8xf32>
    %cst_432 = arith.constant 1.000000e+00 : f32
    %1283 = vector.broadcast %cst_432 : f32 to vector<2x8xf32>
    %1284 = arith.addf %1282, %1283 : vector<2x8xf32>
    %cst_433 = arith.constant 5.000000e-01 : f32
    %1285 = vector.broadcast %cst_433 : f32 to vector<2x8xf32>
    %1286 = arith.mulf %1285, %1284 : vector<2x8xf32>
    %1287 = vector.extract_strided_slice %1270 {offsets = [0, 16], sizes = [2, 8], strides = [1, 1]} : vector<2x32xf32> to vector<2x8xf32>
    %1288 = math.tanh %1287 : vector<2x8xf32>
    %1289 = vector.extract_strided_slice %1270 {offsets = [0, 24], sizes = [2, 8], strides = [1, 1]} : vector<2x32xf32> to vector<2x8xf32>
    %cst_434 = arith.constant 5.000000e-01 : f32
    %1290 = vector.broadcast %cst_434 : f32 to vector<2x8xf32>
    %1291 = arith.mulf %1290, %1289 : vector<2x8xf32>
    %1292 = math.tanh %1291 : vector<2x8xf32>
    %cst_435 = arith.constant 1.000000e+00 : f32
    %1293 = vector.broadcast %cst_435 : f32 to vector<2x8xf32>
    %1294 = arith.addf %1292, %1293 : vector<2x8xf32>
    %cst_436 = arith.constant 5.000000e-01 : f32
    %1295 = vector.broadcast %cst_436 : f32 to vector<2x8xf32>
    %1296 = arith.mulf %1295, %1294 : vector<2x8xf32>
    %1297 = arith.mulf %1286, %1226 : vector<2x8xf32>
    %1298 = arith.mulf %1278, %1288 : vector<2x8xf32>
    %1299 = arith.addf %1297, %1298 : vector<2x8xf32>
    %1300 = math.tanh %1299 : vector<2x8xf32>
    %1301 = arith.mulf %1296, %1300 : vector<2x8xf32>
    %1302 = vector.extract_strided_slice %93 {offsets = [0, 32], sizes = [2, 32], strides = [1, 1]} : vector<34x64xf32> to vector<2x32xf32>
    %1303 = vector.extract_strided_slice %1267 {offsets = [0, 32], sizes = [2, 32], strides = [1, 1]} : vector<2x64xf32> to vector<2x32xf32>
    %1304 = arith.addf %1302, %1303 : vector<2x32xf32>
    %1305 = vector.extract_strided_slice %1304 {offsets = [0, 0], sizes = [2, 8], strides = [1, 1]} : vector<2x32xf32> to vector<2x8xf32>
    %cst_437 = arith.constant 5.000000e-01 : f32
    %1306 = vector.broadcast %cst_437 : f32 to vector<2x8xf32>
    %1307 = arith.mulf %1306, %1305 : vector<2x8xf32>
    %1308 = math.tanh %1307 : vector<2x8xf32>
    %cst_438 = arith.constant 1.000000e+00 : f32
    %1309 = vector.broadcast %cst_438 : f32 to vector<2x8xf32>
    %1310 = arith.addf %1308, %1309 : vector<2x8xf32>
    %cst_439 = arith.constant 5.000000e-01 : f32
    %1311 = vector.broadcast %cst_439 : f32 to vector<2x8xf32>
    %1312 = arith.mulf %1311, %1310 : vector<2x8xf32>
    %1313 = vector.extract_strided_slice %1304 {offsets = [0, 8], sizes = [2, 8], strides = [1, 1]} : vector<2x32xf32> to vector<2x8xf32>
    %cst_440 = arith.constant 5.000000e-01 : f32
    %1314 = vector.broadcast %cst_440 : f32 to vector<2x8xf32>
    %1315 = arith.mulf %1314, %1313 : vector<2x8xf32>
    %1316 = math.tanh %1315 : vector<2x8xf32>
    %cst_441 = arith.constant 1.000000e+00 : f32
    %1317 = vector.broadcast %cst_441 : f32 to vector<2x8xf32>
    %1318 = arith.addf %1316, %1317 : vector<2x8xf32>
    %cst_442 = arith.constant 5.000000e-01 : f32
    %1319 = vector.broadcast %cst_442 : f32 to vector<2x8xf32>
    %1320 = arith.mulf %1319, %1318 : vector<2x8xf32>
    %1321 = vector.extract_strided_slice %1304 {offsets = [0, 16], sizes = [2, 8], strides = [1, 1]} : vector<2x32xf32> to vector<2x8xf32>
    %1322 = math.tanh %1321 : vector<2x8xf32>
    %1323 = vector.extract_strided_slice %1304 {offsets = [0, 24], sizes = [2, 8], strides = [1, 1]} : vector<2x32xf32> to vector<2x8xf32>
    %cst_443 = arith.constant 5.000000e-01 : f32
    %1324 = vector.broadcast %cst_443 : f32 to vector<2x8xf32>
    %1325 = arith.mulf %1324, %1323 : vector<2x8xf32>
    %1326 = math.tanh %1325 : vector<2x8xf32>
    %cst_444 = arith.constant 1.000000e+00 : f32
    %1327 = vector.broadcast %cst_444 : f32 to vector<2x8xf32>
    %1328 = arith.addf %1326, %1327 : vector<2x8xf32>
    %cst_445 = arith.constant 5.000000e-01 : f32
    %1329 = vector.broadcast %cst_445 : f32 to vector<2x8xf32>
    %1330 = arith.mulf %1329, %1328 : vector<2x8xf32>
    %1331 = arith.mulf %1320, %1260 : vector<2x8xf32>
    %1332 = arith.mulf %1312, %1322 : vector<2x8xf32>
    %1333 = arith.addf %1331, %1332 : vector<2x8xf32>
    %1334 = math.tanh %1333 : vector<2x8xf32>
    %1335 = arith.mulf %1330, %1334 : vector<2x8xf32>
    %c32_446 = arith.constant 32 : index
    %c0_447 = arith.constant 0 : index
    %1336 = vector.load %arg18[%c32_446, %c0_447] : memref<34x16xf32, #tpu.memory_space<vmem>>, vector<2x8xf32>
    tpu.vector_store %arg18[%c32_446, %c0_447], %1301 {strides = array<i32>} : memref<34x16xf32, #tpu.memory_space<vmem>>, vector<2x8xf32>,
    %c0_448 = arith.constant 0 : index
    %c8_449 = arith.constant 8 : index
    %1337 = vector.load %arg18[%c0_448, %c8_449] : memref<34x16xf32, #tpu.memory_space<vmem>>, vector<2x8xf32>
    tpu.vector_store %arg18[%c0_448, %c8_449], %1335 {strides = array<i32>} : memref<34x16xf32, #tpu.memory_space<vmem>>, vector<2x8xf32>,
    %c0_450 = arith.constant 0 : index
    %c0_451 = arith.constant 0 : index
    %1338 = vector.load %arg18[%c0_450, %c0_451] : memref<34x16xf32, #tpu.memory_space<vmem>>, vector<34x16xf32>
    %c0_452 = arith.constant 0 : index
    %c0_453 = arith.constant 0 : index
    %1339 = vector.load %arg6[%c0_452, %c0_453] : memref<16x64xf32, #tpu.memory_space<vmem>>, vector<16x64xf32>
    %c0_454 = arith.constant 0 : index
    %c0_455 = arith.constant 0 : index
    %1340 = vector.load %arg7[%c0_454, %c0_455] : memref<16x64xf32, #tpu.memory_space<vmem>>, vector<16x64xf32>
    %c0_456 = arith.constant 0 : index
    %c0_457 = arith.constant 0 : index
    %1341 = vector.load %arg8[%c0_456, %c0_457] : memref<1x64xf32, #tpu.memory_space<vmem>>, vector<1x64xf32>
    %1342 = arith.truncf %1338 : vector<34x16xf32> to vector<34x16xbf16>
    %1343 = arith.truncf %1339 : vector<16x64xf32> to vector<16x64xbf16>
    %cst_458 = arith.constant dense<0.000000e+00> : vector<34x64xf32>
    %1344 = tpu.matmul %1342, %1343, %cst_458 {dimension_numbers = #tpu.dot_dimension_numbers<[1], [0], [0], [1], [0, 0, 1, 1], [], []>} : vector<34x16xbf16>, vector<16x64xbf16>, vector<34x64xf32> -> vector<34x64xf32>
    %1345 = vector.broadcast %1341 : vector<1x64xf32> to vector<34x64xf32>
    %1346 = arith.addf %1344, %1345 : vector<34x64xf32>
    %1347 = arith.truncf %1340 : vector<16x64xf32> to vector<16x64xbf16>
    %cst_459 = arith.constant 0.000000e+00 : f32
    %1348 = vector.broadcast %cst_459 : f32 to vector<2x16xf32>
    %cst_460 = arith.constant 0.000000e+00 : f32
    %1349 = vector.broadcast %cst_460 : f32 to vector<2x8xf32>
    %cst_461 = arith.constant 0.000000e+00 : f32
    %1350 = vector.broadcast %cst_461 : f32 to vector<2x8xf32>
    %1351 = arith.truncf %1348 : vector<2x16xf32> to vector<2x16xbf16>
    %cst_462 = arith.constant dense<0.000000e+00> : vector<2x64xf32>
    %1352 = tpu.matmul %1351, %1347, %cst_462 {dimension_numbers = #tpu.dot_dimension_numbers<[1], [0], [0], [1], [0, 0, 1, 1], [], []>} : vector<2x16xbf16>, vector<16x64xbf16>, vector<2x64xf32> -> vector<2x64xf32>
    %1353 = vector.extract_strided_slice %1346 {offsets = [0, 0], sizes = [2, 32], strides = [1, 1]} : vector<34x64xf32> to vector<2x32xf32>
    %1354 = vector.extract_strided_slice %1352 {offsets = [0, 0], sizes = [2, 32], strides = [1, 1]} : vector<2x64xf32> to vector<2x32xf32>
    %1355 = arith.addf %1353, %1354 : vector<2x32xf32>
    %1356 = vector.extract_strided_slice %1355 {offsets = [0, 0], sizes = [2, 8], strides = [1, 1]} : vector<2x32xf32> to vector<2x8xf32>
    %cst_463 = arith.constant 5.000000e-01 : f32
    %1357 = vector.broadcast %cst_463 : f32 to vector<2x8xf32>
    %1358 = arith.mulf %1357, %1356 : vector<2x8xf32>
    %1359 = math.tanh %1358 : vector<2x8xf32>
    %cst_464 = arith.constant 1.000000e+00 : f32
    %1360 = vector.broadcast %cst_464 : f32 to vector<2x8xf32>
    %1361 = arith.addf %1359, %1360 : vector<2x8xf32>
    %cst_465 = arith.constant 5.000000e-01 : f32
    %1362 = vector.broadcast %cst_465 : f32 to vector<2x8xf32>
    %1363 = arith.mulf %1362, %1361 : vector<2x8xf32>
    %1364 = vector.extract_strided_slice %1355 {offsets = [0, 8], sizes = [2, 8], strides = [1, 1]} : vector<2x32xf32> to vector<2x8xf32>
    %cst_466 = arith.constant 5.000000e-01 : f32
    %1365 = vector.broadcast %cst_466 : f32 to vector<2x8xf32>
    %1366 = arith.mulf %1365, %1364 : vector<2x8xf32>
    %1367 = math.tanh %1366 : vector<2x8xf32>
    %cst_467 = arith.constant 1.000000e+00 : f32
    %1368 = vector.broadcast %cst_467 : f32 to vector<2x8xf32>
    %1369 = arith.addf %1367, %1368 : vector<2x8xf32>
    %cst_468 = arith.constant 5.000000e-01 : f32
    %1370 = vector.broadcast %cst_468 : f32 to vector<2x8xf32>
    %1371 = arith.mulf %1370, %1369 : vector<2x8xf32>
    %1372 = vector.extract_strided_slice %1355 {offsets = [0, 16], sizes = [2, 8], strides = [1, 1]} : vector<2x32xf32> to vector<2x8xf32>
    %1373 = math.tanh %1372 : vector<2x8xf32>
    %1374 = vector.extract_strided_slice %1355 {offsets = [0, 24], sizes = [2, 8], strides = [1, 1]} : vector<2x32xf32> to vector<2x8xf32>
    %cst_469 = arith.constant 5.000000e-01 : f32
    %1375 = vector.broadcast %cst_469 : f32 to vector<2x8xf32>
    %1376 = arith.mulf %1375, %1374 : vector<2x8xf32>
    %1377 = math.tanh %1376 : vector<2x8xf32>
    %cst_470 = arith.constant 1.000000e+00 : f32
    %1378 = vector.broadcast %cst_470 : f32 to vector<2x8xf32>
    %1379 = arith.addf %1377, %1378 : vector<2x8xf32>
    %cst_471 = arith.constant 5.000000e-01 : f32
    %1380 = vector.broadcast %cst_471 : f32 to vector<2x8xf32>
    %1381 = arith.mulf %1380, %1379 : vector<2x8xf32>
    %1382 = arith.mulf %1371, %1349 : vector<2x8xf32>
    %1383 = arith.mulf %1363, %1373 : vector<2x8xf32>
    %1384 = arith.addf %1382, %1383 : vector<2x8xf32>
    %1385 = math.tanh %1384 : vector<2x8xf32>
    %1386 = arith.mulf %1381, %1385 : vector<2x8xf32>
    %1387 = vector.extract_strided_slice %1346 {offsets = [32, 32], sizes = [2, 32], strides = [1, 1]} : vector<34x64xf32> to vector<2x32xf32>
    %1388 = vector.extract_strided_slice %1352 {offsets = [0, 32], sizes = [2, 32], strides = [1, 1]} : vector<2x64xf32> to vector<2x32xf32>
    %1389 = arith.addf %1387, %1388 : vector<2x32xf32>
    %1390 = vector.extract_strided_slice %1389 {offsets = [0, 0], sizes = [2, 8], strides = [1, 1]} : vector<2x32xf32> to vector<2x8xf32>
    %cst_472 = arith.constant 5.000000e-01 : f32
    %1391 = vector.broadcast %cst_472 : f32 to vector<2x8xf32>
    %1392 = arith.mulf %1391, %1390 : vector<2x8xf32>
    %1393 = math.tanh %1392 : vector<2x8xf32>
    %cst_473 = arith.constant 1.000000e+00 : f32
    %1394 = vector.broadcast %cst_473 : f32 to vector<2x8xf32>
    %1395 = arith.addf %1393, %1394 : vector<2x8xf32>
    %cst_474 = arith.constant 5.000000e-01 : f32
    %1396 = vector.broadcast %cst_474 : f32 to vector<2x8xf32>
    %1397 = arith.mulf %1396, %1395 : vector<2x8xf32>
    %1398 = vector.extract_strided_slice %1389 {offsets = [0, 8], sizes = [2, 8], strides = [1, 1]} : vector<2x32xf32> to vector<2x8xf32>
    %cst_475 = arith.constant 5.000000e-01 : f32
    %1399 = vector.broadcast %cst_475 : f32 to vector<2x8xf32>
    %1400 = arith.mulf %1399, %1398 : vector<2x8xf32>
    %1401 = math.tanh %1400 : vector<2x8xf32>
    %cst_476 = arith.constant 1.000000e+00 : f32
    %1402 = vector.broadcast %cst_476 : f32 to vector<2x8xf32>
    %1403 = arith.addf %1401, %1402 : vector<2x8xf32>
    %cst_477 = arith.constant 5.000000e-01 : f32
    %1404 = vector.broadcast %cst_477 : f32 to vector<2x8xf32>
    %1405 = arith.mulf %1404, %1403 : vector<2x8xf32>
    %1406 = vector.extract_strided_slice %1389 {offsets = [0, 16], sizes = [2, 8], strides = [1, 1]} : vector<2x32xf32> to vector<2x8xf32>
    %1407 = math.tanh %1406 : vector<2x8xf32>
    %1408 = vector.extract_strided_slice %1389 {offsets = [0, 24], sizes = [2, 8], strides = [1, 1]} : vector<2x32xf32> to vector<2x8xf32>
    %cst_478 = arith.constant 5.000000e-01 : f32
    %1409 = vector.broadcast %cst_478 : f32 to vector<2x8xf32>
    %1410 = arith.mulf %1409, %1408 : vector<2x8xf32>
    %1411 = math.tanh %1410 : vector<2x8xf32>
    %cst_479 = arith.constant 1.000000e+00 : f32
    %1412 = vector.broadcast %cst_479 : f32 to vector<2x8xf32>
    %1413 = arith.addf %1411, %1412 : vector<2x8xf32>
    %cst_480 = arith.constant 5.000000e-01 : f32
    %1414 = vector.broadcast %cst_480 : f32 to vector<2x8xf32>
    %1415 = arith.mulf %1414, %1413 : vector<2x8xf32>
    %1416 = arith.mulf %1405, %1350 : vector<2x8xf32>
    %1417 = arith.mulf %1397, %1407 : vector<2x8xf32>
    %1418 = arith.addf %1416, %1417 : vector<2x8xf32>
    %1419 = math.tanh %1418 : vector<2x8xf32>
    %1420 = arith.mulf %1415, %1419 : vector<2x8xf32>
    %c0_481 = arith.constant 0 : index
    %c0_482 = arith.constant 0 : index
    %1421 = vector.load %arg19[%c0_481, %c0_482] : memref<34x16xf32, #tpu.memory_space<vmem>>, vector<2x8xf32>
    tpu.vector_store %arg19[%c0_481, %c0_482], %1386 {strides = array<i32>} : memref<34x16xf32, #tpu.memory_space<vmem>>, vector<2x8xf32>,
    %c32_483 = arith.constant 32 : index
    %c8_484 = arith.constant 8 : index
    %1422 = vector.load %arg19[%c32_483, %c8_484] : memref<34x16xf32, #tpu.memory_space<vmem>>, vector<2x8xf32>
    tpu.vector_store %arg19[%c32_483, %c8_484], %1420 {strides = array<i32>} : memref<34x16xf32, #tpu.memory_space<vmem>>, vector<2x8xf32>,
    %1423 = tpu.concatenate %1386, %1420 in 1 : vector<2x8xf32>, vector<2x8xf32> -> vector<2x16xf32>
    %1424 = arith.truncf %1423 : vector<2x16xf32> to vector<2x16xbf16>
    %cst_485 = arith.constant dense<0.000000e+00> : vector<2x64xf32>
    %1425 = tpu.matmul %1424, %1347, %cst_485 {dimension_numbers = #tpu.dot_dimension_numbers<[1], [0], [0], [1], [0, 0, 1, 1], [], []>} : vector<2x16xbf16>, vector<16x64xbf16>, vector<2x64xf32> -> vector<2x64xf32>
    %1426 = vector.extract_strided_slice %1346 {offsets = [2, 0], sizes = [2, 32], strides = [1, 1]} : vector<34x64xf32> to vector<2x32xf32>
    %1427 = vector.extract_strided_slice %1425 {offsets = [0, 0], sizes = [2, 32], strides = [1, 1]} : vector<2x64xf32> to vector<2x32xf32>
    %1428 = arith.addf %1426, %1427 : vector<2x32xf32>
    %1429 = vector.extract_strided_slice %1428 {offsets = [0, 0], sizes = [2, 8], strides = [1, 1]} : vector<2x32xf32> to vector<2x8xf32>
    %cst_486 = arith.constant 5.000000e-01 : f32
    %1430 = vector.broadcast %cst_486 : f32 to vector<2x8xf32>
    %1431 = arith.mulf %1430, %1429 : vector<2x8xf32>
    %1432 = math.tanh %1431 : vector<2x8xf32>
    %cst_487 = arith.constant 1.000000e+00 : f32
    %1433 = vector.broadcast %cst_487 : f32 to vector<2x8xf32>
    %1434 = arith.addf %1432, %1433 : vector<2x8xf32>
    %cst_488 = arith.constant 5.000000e-01 : f32
    %1435 = vector.broadcast %cst_488 : f32 to vector<2x8xf32>
    %1436 = arith.mulf %1435, %1434 : vector<2x8xf32>
    %1437 = vector.extract_strided_slice %1428 {offsets = [0, 8], sizes = [2, 8], strides = [1, 1]} : vector<2x32xf32> to vector<2x8xf32>
    %cst_489 = arith.constant 5.000000e-01 : f32
    %1438 = vector.broadcast %cst_489 : f32 to vector<2x8xf32>
    %1439 = arith.mulf %1438, %1437 : vector<2x8xf32>
    %1440 = math.tanh %1439 : vector<2x8xf32>
    %cst_490 = arith.constant 1.000000e+00 : f32
    %1441 = vector.broadcast %cst_490 : f32 to vector<2x8xf32>
    %1442 = arith.addf %1440, %1441 : vector<2x8xf32>
    %cst_491 = arith.constant 5.000000e-01 : f32
    %1443 = vector.broadcast %cst_491 : f32 to vector<2x8xf32>
    %1444 = arith.mulf %1443, %1442 : vector<2x8xf32>
    %1445 = vector.extract_strided_slice %1428 {offsets = [0, 16], sizes = [2, 8], strides = [1, 1]} : vector<2x32xf32> to vector<2x8xf32>
    %1446 = math.tanh %1445 : vector<2x8xf32>
    %1447 = vector.extract_strided_slice %1428 {offsets = [0, 24], sizes = [2, 8], strides = [1, 1]} : vector<2x32xf32> to vector<2x8xf32>
    %cst_492 = arith.constant 5.000000e-01 : f32
    %1448 = vector.broadcast %cst_492 : f32 to vector<2x8xf32>
    %1449 = arith.mulf %1448, %1447 : vector<2x8xf32>
    %1450 = math.tanh %1449 : vector<2x8xf32>
    %cst_493 = arith.constant 1.000000e+00 : f32
    %1451 = vector.broadcast %cst_493 : f32 to vector<2x8xf32>
    %1452 = arith.addf %1450, %1451 : vector<2x8xf32>
    %cst_494 = arith.constant 5.000000e-01 : f32
    %1453 = vector.broadcast %cst_494 : f32 to vector<2x8xf32>
    %1454 = arith.mulf %1453, %1452 : vector<2x8xf32>
    %1455 = arith.mulf %1444, %1384 : vector<2x8xf32>
    %1456 = arith.mulf %1436, %1446 : vector<2x8xf32>
    %1457 = arith.addf %1455, %1456 : vector<2x8xf32>
    %1458 = math.tanh %1457 : vector<2x8xf32>
    %1459 = arith.mulf %1454, %1458 : vector<2x8xf32>
    %1460 = vector.extract_strided_slice %1346 {offsets = [30, 32], sizes = [2, 32], strides = [1, 1]} : vector<34x64xf32> to vector<2x32xf32>
    %1461 = vector.extract_strided_slice %1425 {offsets = [0, 32], sizes = [2, 32], strides = [1, 1]} : vector<2x64xf32> to vector<2x32xf32>
    %1462 = arith.addf %1460, %1461 : vector<2x32xf32>
    %1463 = vector.extract_strided_slice %1462 {offsets = [0, 0], sizes = [2, 8], strides = [1, 1]} : vector<2x32xf32> to vector<2x8xf32>
    %cst_495 = arith.constant 5.000000e-01 : f32
    %1464 = vector.broadcast %cst_495 : f32 to vector<2x8xf32>
    %1465 = arith.mulf %1464, %1463 : vector<2x8xf32>
    %1466 = math.tanh %1465 : vector<2x8xf32>
    %cst_496 = arith.constant 1.000000e+00 : f32
    %1467 = vector.broadcast %cst_496 : f32 to vector<2x8xf32>
    %1468 = arith.addf %1466, %1467 : vector<2x8xf32>
    %cst_497 = arith.constant 5.000000e-01 : f32
    %1469 = vector.broadcast %cst_497 : f32 to vector<2x8xf32>
    %1470 = arith.mulf %1469, %1468 : vector<2x8xf32>
    %1471 = vector.extract_strided_slice %1462 {offsets = [0, 8], sizes = [2, 8], strides = [1, 1]} : vector<2x32xf32> to vector<2x8xf32>
    %cst_498 = arith.constant 5.000000e-01 : f32
    %1472 = vector.broadcast %cst_498 : f32 to vector<2x8xf32>
    %1473 = arith.mulf %1472, %1471 : vector<2x8xf32>
    %1474 = math.tanh %1473 : vector<2x8xf32>
    %cst_499 = arith.constant 1.000000e+00 : f32
    %1475 = vector.broadcast %cst_499 : f32 to vector<2x8xf32>
    %1476 = arith.addf %1474, %1475 : vector<2x8xf32>
    %cst_500 = arith.constant 5.000000e-01 : f32
    %1477 = vector.broadcast %cst_500 : f32 to vector<2x8xf32>
    %1478 = arith.mulf %1477, %1476 : vector<2x8xf32>
    %1479 = vector.extract_strided_slice %1462 {offsets = [0, 16], sizes = [2, 8], strides = [1, 1]} : vector<2x32xf32> to vector<2x8xf32>
    %1480 = math.tanh %1479 : vector<2x8xf32>
    %1481 = vector.extract_strided_slice %1462 {offsets = [0, 24], sizes = [2, 8], strides = [1, 1]} : vector<2x32xf32> to vector<2x8xf32>
    %cst_501 = arith.constant 5.000000e-01 : f32
    %1482 = vector.broadcast %cst_501 : f32 to vector<2x8xf32>
    %1483 = arith.mulf %1482, %1481 : vector<2x8xf32>
    %1484 = math.tanh %1483 : vector<2x8xf32>
    %cst_502 = arith.constant 1.000000e+00 : f32
    %1485 = vector.broadcast %cst_502 : f32 to vector<2x8xf32>
    %1486 = arith.addf %1484, %1485 : vector<2x8xf32>
    %cst_503 = arith.constant 5.000000e-01 : f32
    %1487 = vector.broadcast %cst_503 : f32 to vector<2x8xf32>
    %1488 = arith.mulf %1487, %1486 : vector<2x8xf32>
    %1489 = arith.mulf %1478, %1418 : vector<2x8xf32>
    %1490 = arith.mulf %1470, %1480 : vector<2x8xf32>
    %1491 = arith.addf %1489, %1490 : vector<2x8xf32>
    %1492 = math.tanh %1491 : vector<2x8xf32>
    %1493 = arith.mulf %1488, %1492 : vector<2x8xf32>
    %c2_504 = arith.constant 2 : index
    %c0_505 = arith.constant 0 : index
    %1494 = vector.load %arg19[%c2_504, %c0_505] : memref<34x16xf32, #tpu.memory_space<vmem>>, vector<2x8xf32>
    tpu.vector_store %arg19[%c2_504, %c0_505], %1459 {strides = array<i32>} : memref<34x16xf32, #tpu.memory_space<vmem>>, vector<2x8xf32>,
    %c30_506 = arith.constant 30 : index
    %c8_507 = arith.constant 8 : index
    %1495 = vector.load %arg19[%c30_506, %c8_507] : memref<34x16xf32, #tpu.memory_space<vmem>>, vector<2x8xf32>
    tpu.vector_store %arg19[%c30_506, %c8_507], %1493 {strides = array<i32>} : memref<34x16xf32, #tpu.memory_space<vmem>>, vector<2x8xf32>,
    %1496 = tpu.concatenate %1459, %1493 in 1 : vector<2x8xf32>, vector<2x8xf32> -> vector<2x16xf32>
    %1497 = arith.truncf %1496 : vector<2x16xf32> to vector<2x16xbf16>
    %cst_508 = arith.constant dense<0.000000e+00> : vector<2x64xf32>
    %1498 = tpu.matmul %1497, %1347, %cst_508 {dimension_numbers = #tpu.dot_dimension_numbers<[1], [0], [0], [1], [0, 0, 1, 1], [], []>} : vector<2x16xbf16>, vector<16x64xbf16>, vector<2x64xf32> -> vector<2x64xf32>
    %1499 = vector.extract_strided_slice %1346 {offsets = [4, 0], sizes = [2, 32], strides = [1, 1]} : vector<34x64xf32> to vector<2x32xf32>
    %1500 = vector.extract_strided_slice %1498 {offsets = [0, 0], sizes = [2, 32], strides = [1, 1]} : vector<2x64xf32> to vector<2x32xf32>
    %1501 = arith.addf %1499, %1500 : vector<2x32xf32>
    %1502 = vector.extract_strided_slice %1501 {offsets = [0, 0], sizes = [2, 8], strides = [1, 1]} : vector<2x32xf32> to vector<2x8xf32>
    %cst_509 = arith.constant 5.000000e-01 : f32
    %1503 = vector.broadcast %cst_509 : f32 to vector<2x8xf32>
    %1504 = arith.mulf %1503, %1502 : vector<2x8xf32>
    %1505 = math.tanh %1504 : vector<2x8xf32>
    %cst_510 = arith.constant 1.000000e+00 : f32
    %1506 = vector.broadcast %cst_510 : f32 to vector<2x8xf32>
    %1507 = arith.addf %1505, %1506 : vector<2x8xf32>
    %cst_511 = arith.constant 5.000000e-01 : f32
    %1508 = vector.broadcast %cst_511 : f32 to vector<2x8xf32>
    %1509 = arith.mulf %1508, %1507 : vector<2x8xf32>
    %1510 = vector.extract_strided_slice %1501 {offsets = [0, 8], sizes = [2, 8], strides = [1, 1]} : vector<2x32xf32> to vector<2x8xf32>
    %cst_512 = arith.constant 5.000000e-01 : f32
    %1511 = vector.broadcast %cst_512 : f32 to vector<2x8xf32>
    %1512 = arith.mulf %1511, %1510 : vector<2x8xf32>
    %1513 = math.tanh %1512 : vector<2x8xf32>
    %cst_513 = arith.constant 1.000000e+00 : f32
    %1514 = vector.broadcast %cst_513 : f32 to vector<2x8xf32>
    %1515 = arith.addf %1513, %1514 : vector<2x8xf32>
    %cst_514 = arith.constant 5.000000e-01 : f32
    %1516 = vector.broadcast %cst_514 : f32 to vector<2x8xf32>
    %1517 = arith.mulf %1516, %1515 : vector<2x8xf32>
    %1518 = vector.extract_strided_slice %1501 {offsets = [0, 16], sizes = [2, 8], strides = [1, 1]} : vector<2x32xf32> to vector<2x8xf32>
    %1519 = math.tanh %1518 : vector<2x8xf32>
    %1520 = vector.extract_strided_slice %1501 {offsets = [0, 24], sizes = [2, 8], strides = [1, 1]} : vector<2x32xf32> to vector<2x8xf32>
    %cst_515 = arith.constant 5.000000e-01 : f32
    %1521 = vector.broadcast %cst_515 : f32 to vector<2x8xf32>
    %1522 = arith.mulf %1521, %1520 : vector<2x8xf32>
    %1523 = math.tanh %1522 : vector<2x8xf32>
    %cst_516 = arith.constant 1.000000e+00 : f32
    %1524 = vector.broadcast %cst_516 : f32 to vector<2x8xf32>
    %1525 = arith.addf %1523, %1524 : vector<2x8xf32>
    %cst_517 = arith.constant 5.000000e-01 : f32
    %1526 = vector.broadcast %cst_517 : f32 to vector<2x8xf32>
    %1527 = arith.mulf %1526, %1525 : vector<2x8xf32>
    %1528 = arith.mulf %1517, %1457 : vector<2x8xf32>
    %1529 = arith.mulf %1509, %1519 : vector<2x8xf32>
    %1530 = arith.addf %1528, %1529 : vector<2x8xf32>
    %1531 = math.tanh %1530 : vector<2x8xf32>
    %1532 = arith.mulf %1527, %1531 : vector<2x8xf32>
    %1533 = vector.extract_strided_slice %1346 {offsets = [28, 32], sizes = [2, 32], strides = [1, 1]} : vector<34x64xf32> to vector<2x32xf32>
    %1534 = vector.extract_strided_slice %1498 {offsets = [0, 32], sizes = [2, 32], strides = [1, 1]} : vector<2x64xf32> to vector<2x32xf32>
    %1535 = arith.addf %1533, %1534 : vector<2x32xf32>
    %1536 = vector.extract_strided_slice %1535 {offsets = [0, 0], sizes = [2, 8], strides = [1, 1]} : vector<2x32xf32> to vector<2x8xf32>
    %cst_518 = arith.constant 5.000000e-01 : f32
    %1537 = vector.broadcast %cst_518 : f32 to vector<2x8xf32>
    %1538 = arith.mulf %1537, %1536 : vector<2x8xf32>
    %1539 = math.tanh %1538 : vector<2x8xf32>
    %cst_519 = arith.constant 1.000000e+00 : f32
    %1540 = vector.broadcast %cst_519 : f32 to vector<2x8xf32>
    %1541 = arith.addf %1539, %1540 : vector<2x8xf32>
    %cst_520 = arith.constant 5.000000e-01 : f32
    %1542 = vector.broadcast %cst_520 : f32 to vector<2x8xf32>
    %1543 = arith.mulf %1542, %1541 : vector<2x8xf32>
    %1544 = vector.extract_strided_slice %1535 {offsets = [0, 8], sizes = [2, 8], strides = [1, 1]} : vector<2x32xf32> to vector<2x8xf32>
    %cst_521 = arith.constant 5.000000e-01 : f32
    %1545 = vector.broadcast %cst_521 : f32 to vector<2x8xf32>
    %1546 = arith.mulf %1545, %1544 : vector<2x8xf32>
    %1547 = math.tanh %1546 : vector<2x8xf32>
    %cst_522 = arith.constant 1.000000e+00 : f32
    %1548 = vector.broadcast %cst_522 : f32 to vector<2x8xf32>
    %1549 = arith.addf %1547, %1548 : vector<2x8xf32>
    %cst_523 = arith.constant 5.000000e-01 : f32
    %1550 = vector.broadcast %cst_523 : f32 to vector<2x8xf32>
    %1551 = arith.mulf %1550, %1549 : vector<2x8xf32>
    %1552 = vector.extract_strided_slice %1535 {offsets = [0, 16], sizes = [2, 8], strides = [1, 1]} : vector<2x32xf32> to vector<2x8xf32>
    %1553 = math.tanh %1552 : vector<2x8xf32>
    %1554 = vector.extract_strided_slice %1535 {offsets = [0, 24], sizes = [2, 8], strides = [1, 1]} : vector<2x32xf32> to vector<2x8xf32>
    %cst_524 = arith.constant 5.000000e-01 : f32
    %1555 = vector.broadcast %cst_524 : f32 to vector<2x8xf32>
    %1556 = arith.mulf %1555, %1554 : vector<2x8xf32>
    %1557 = math.tanh %1556 : vector<2x8xf32>
    %cst_525 = arith.constant 1.000000e+00 : f32
    %1558 = vector.broadcast %cst_525 : f32 to vector<2x8xf32>
    %1559 = arith.addf %1557, %1558 : vector<2x8xf32>
    %cst_526 = arith.constant 5.000000e-01 : f32
    %1560 = vector.broadcast %cst_526 : f32 to vector<2x8xf32>
    %1561 = arith.mulf %1560, %1559 : vector<2x8xf32>
    %1562 = arith.mulf %1551, %1491 : vector<2x8xf32>
    %1563 = arith.mulf %1543, %1553 : vector<2x8xf32>
    %1564 = arith.addf %1562, %1563 : vector<2x8xf32>
    %1565 = math.tanh %1564 : vector<2x8xf32>
    %1566 = arith.mulf %1561, %1565 : vector<2x8xf32>
    %c4_527 = arith.constant 4 : index
    %c0_528 = arith.constant 0 : index
    %1567 = vector.load %arg19[%c4_527, %c0_528] : memref<34x16xf32, #tpu.memory_space<vmem>>, vector<2x8xf32>
    tpu.vector_store %arg19[%c4_527, %c0_528], %1532 {strides = array<i32>} : memref<34x16xf32, #tpu.memory_space<vmem>>, vector<2x8xf32>,
    %c28_529 = arith.constant 28 : index
    %c8_530 = arith.constant 8 : index
    %1568 = vector.load %arg19[%c28_529, %c8_530] : memref<34x16xf32, #tpu.memory_space<vmem>>, vector<2x8xf32>
    tpu.vector_store %arg19[%c28_529, %c8_530], %1566 {strides = array<i32>} : memref<34x16xf32, #tpu.memory_space<vmem>>, vector<2x8xf32>,
    %1569 = tpu.concatenate %1532, %1566 in 1 : vector<2x8xf32>, vector<2x8xf32> -> vector<2x16xf32>
    %1570 = arith.truncf %1569 : vector<2x16xf32> to vector<2x16xbf16>
    %cst_531 = arith.constant dense<0.000000e+00> : vector<2x64xf32>
    %1571 = tpu.matmul %1570, %1347, %cst_531 {dimension_numbers = #tpu.dot_dimension_numbers<[1], [0], [0], [1], [0, 0, 1, 1], [], []>} : vector<2x16xbf16>, vector<16x64xbf16>, vector<2x64xf32> -> vector<2x64xf32>
    %1572 = vector.extract_strided_slice %1346 {offsets = [6, 0], sizes = [2, 32], strides = [1, 1]} : vector<34x64xf32> to vector<2x32xf32>
    %1573 = vector.extract_strided_slice %1571 {offsets = [0, 0], sizes = [2, 32], strides = [1, 1]} : vector<2x64xf32> to vector<2x32xf32>
    %1574 = arith.addf %1572, %1573 : vector<2x32xf32>
    %1575 = vector.extract_strided_slice %1574 {offsets = [0, 0], sizes = [2, 8], strides = [1, 1]} : vector<2x32xf32> to vector<2x8xf32>
    %cst_532 = arith.constant 5.000000e-01 : f32
    %1576 = vector.broadcast %cst_532 : f32 to vector<2x8xf32>
    %1577 = arith.mulf %1576, %1575 : vector<2x8xf32>
    %1578 = math.tanh %1577 : vector<2x8xf32>
    %cst_533 = arith.constant 1.000000e+00 : f32
    %1579 = vector.broadcast %cst_533 : f32 to vector<2x8xf32>
    %1580 = arith.addf %1578, %1579 : vector<2x8xf32>
    %cst_534 = arith.constant 5.000000e-01 : f32
    %1581 = vector.broadcast %cst_534 : f32 to vector<2x8xf32>
    %1582 = arith.mulf %1581, %1580 : vector<2x8xf32>
    %1583 = vector.extract_strided_slice %1574 {offsets = [0, 8], sizes = [2, 8], strides = [1, 1]} : vector<2x32xf32> to vector<2x8xf32>
    %cst_535 = arith.constant 5.000000e-01 : f32
    %1584 = vector.broadcast %cst_535 : f32 to vector<2x8xf32>
    %1585 = arith.mulf %1584, %1583 : vector<2x8xf32>
    %1586 = math.tanh %1585 : vector<2x8xf32>
    %cst_536 = arith.constant 1.000000e+00 : f32
    %1587 = vector.broadcast %cst_536 : f32 to vector<2x8xf32>
    %1588 = arith.addf %1586, %1587 : vector<2x8xf32>
    %cst_537 = arith.constant 5.000000e-01 : f32
    %1589 = vector.broadcast %cst_537 : f32 to vector<2x8xf32>
    %1590 = arith.mulf %1589, %1588 : vector<2x8xf32>
    %1591 = vector.extract_strided_slice %1574 {offsets = [0, 16], sizes = [2, 8], strides = [1, 1]} : vector<2x32xf32> to vector<2x8xf32>
    %1592 = math.tanh %1591 : vector<2x8xf32>
    %1593 = vector.extract_strided_slice %1574 {offsets = [0, 24], sizes = [2, 8], strides = [1, 1]} : vector<2x32xf32> to vector<2x8xf32>
    %cst_538 = arith.constant 5.000000e-01 : f32
    %1594 = vector.broadcast %cst_538 : f32 to vector<2x8xf32>
    %1595 = arith.mulf %1594, %1593 : vector<2x8xf32>
    %1596 = math.tanh %1595 : vector<2x8xf32>
    %cst_539 = arith.constant 1.000000e+00 : f32
    %1597 = vector.broadcast %cst_539 : f32 to vector<2x8xf32>
    %1598 = arith.addf %1596, %1597 : vector<2x8xf32>
    %cst_540 = arith.constant 5.000000e-01 : f32
    %1599 = vector.broadcast %cst_540 : f32 to vector<2x8xf32>
    %1600 = arith.mulf %1599, %1598 : vector<2x8xf32>
    %1601 = arith.mulf %1590, %1530 : vector<2x8xf32>
    %1602 = arith.mulf %1582, %1592 : vector<2x8xf32>
    %1603 = arith.addf %1601, %1602 : vector<2x8xf32>
    %1604 = math.tanh %1603 : vector<2x8xf32>
    %1605 = arith.mulf %1600, %1604 : vector<2x8xf32>
    %1606 = vector.extract_strided_slice %1346 {offsets = [26, 32], sizes = [2, 32], strides = [1, 1]} : vector<34x64xf32> to vector<2x32xf32>
    %1607 = vector.extract_strided_slice %1571 {offsets = [0, 32], sizes = [2, 32], strides = [1, 1]} : vector<2x64xf32> to vector<2x32xf32>
    %1608 = arith.addf %1606, %1607 : vector<2x32xf32>
    %1609 = vector.extract_strided_slice %1608 {offsets = [0, 0], sizes = [2, 8], strides = [1, 1]} : vector<2x32xf32> to vector<2x8xf32>
    %cst_541 = arith.constant 5.000000e-01 : f32
    %1610 = vector.broadcast %cst_541 : f32 to vector<2x8xf32>
    %1611 = arith.mulf %1610, %1609 : vector<2x8xf32>
    %1612 = math.tanh %1611 : vector<2x8xf32>
    %cst_542 = arith.constant 1.000000e+00 : f32
    %1613 = vector.broadcast %cst_542 : f32 to vector<2x8xf32>
    %1614 = arith.addf %1612, %1613 : vector<2x8xf32>
    %cst_543 = arith.constant 5.000000e-01 : f32
    %1615 = vector.broadcast %cst_543 : f32 to vector<2x8xf32>
    %1616 = arith.mulf %1615, %1614 : vector<2x8xf32>
    %1617 = vector.extract_strided_slice %1608 {offsets = [0, 8], sizes = [2, 8], strides = [1, 1]} : vector<2x32xf32> to vector<2x8xf32>
    %cst_544 = arith.constant 5.000000e-01 : f32
    %1618 = vector.broadcast %cst_544 : f32 to vector<2x8xf32>
    %1619 = arith.mulf %1618, %1617 : vector<2x8xf32>
    %1620 = math.tanh %1619 : vector<2x8xf32>
    %cst_545 = arith.constant 1.000000e+00 : f32
    %1621 = vector.broadcast %cst_545 : f32 to vector<2x8xf32>
    %1622 = arith.addf %1620, %1621 : vector<2x8xf32>
    %cst_546 = arith.constant 5.000000e-01 : f32
    %1623 = vector.broadcast %cst_546 : f32 to vector<2x8xf32>
    %1624 = arith.mulf %1623, %1622 : vector<2x8xf32>
    %1625 = vector.extract_strided_slice %1608 {offsets = [0, 16], sizes = [2, 8], strides = [1, 1]} : vector<2x32xf32> to vector<2x8xf32>
    %1626 = math.tanh %1625 : vector<2x8xf32>
    %1627 = vector.extract_strided_slice %1608 {offsets = [0, 24], sizes = [2, 8], strides = [1, 1]} : vector<2x32xf32> to vector<2x8xf32>
    %cst_547 = arith.constant 5.000000e-01 : f32
    %1628 = vector.broadcast %cst_547 : f32 to vector<2x8xf32>
    %1629 = arith.mulf %1628, %1627 : vector<2x8xf32>
    %1630 = math.tanh %1629 : vector<2x8xf32>
    %cst_548 = arith.constant 1.000000e+00 : f32
    %1631 = vector.broadcast %cst_548 : f32 to vector<2x8xf32>
    %1632 = arith.addf %1630, %1631 : vector<2x8xf32>
    %cst_549 = arith.constant 5.000000e-01 : f32
    %1633 = vector.broadcast %cst_549 : f32 to vector<2x8xf32>
    %1634 = arith.mulf %1633, %1632 : vector<2x8xf32>
    %1635 = arith.mulf %1624, %1564 : vector<2x8xf32>
    %1636 = arith.mulf %1616, %1626 : vector<2x8xf32>
    %1637 = arith.addf %1635, %1636 : vector<2x8xf32>
    %1638 = math.tanh %1637 : vector<2x8xf32>
    %1639 = arith.mulf %1634, %1638 : vector<2x8xf32>
    %c6_550 = arith.constant 6 : index
    %c0_551 = arith.constant 0 : index
    %1640 = vector.load %arg19[%c6_550, %c0_551] : memref<34x16xf32, #tpu.memory_space<vmem>>, vector<2x8xf32>
    tpu.vector_store %arg19[%c6_550, %c0_551], %1605 {strides = array<i32>} : memref<34x16xf32, #tpu.memory_space<vmem>>, vector<2x8xf32>,
    %c26_552 = arith.constant 26 : index
    %c8_553 = arith.constant 8 : index
    %1641 = vector.load %arg19[%c26_552, %c8_553] : memref<34x16xf32, #tpu.memory_space<vmem>>, vector<2x8xf32>
    tpu.vector_store %arg19[%c26_552, %c8_553], %1639 {strides = array<i32>} : memref<34x16xf32, #tpu.memory_space<vmem>>, vector<2x8xf32>,
    %1642 = tpu.concatenate %1605, %1639 in 1 : vector<2x8xf32>, vector<2x8xf32> -> vector<2x16xf32>
    %1643 = arith.truncf %1642 : vector<2x16xf32> to vector<2x16xbf16>
    %cst_554 = arith.constant dense<0.000000e+00> : vector<2x64xf32>
    %1644 = tpu.matmul %1643, %1347, %cst_554 {dimension_numbers = #tpu.dot_dimension_numbers<[1], [0], [0], [1], [0, 0, 1, 1], [], []>} : vector<2x16xbf16>, vector<16x64xbf16>, vector<2x64xf32> -> vector<2x64xf32>
    %1645 = vector.extract_strided_slice %1346 {offsets = [8, 0], sizes = [2, 32], strides = [1, 1]} : vector<34x64xf32> to vector<2x32xf32>
    %1646 = vector.extract_strided_slice %1644 {offsets = [0, 0], sizes = [2, 32], strides = [1, 1]} : vector<2x64xf32> to vector<2x32xf32>
    %1647 = arith.addf %1645, %1646 : vector<2x32xf32>
    %1648 = vector.extract_strided_slice %1647 {offsets = [0, 0], sizes = [2, 8], strides = [1, 1]} : vector<2x32xf32> to vector<2x8xf32>
    %cst_555 = arith.constant 5.000000e-01 : f32
    %1649 = vector.broadcast %cst_555 : f32 to vector<2x8xf32>
    %1650 = arith.mulf %1649, %1648 : vector<2x8xf32>
    %1651 = math.tanh %1650 : vector<2x8xf32>
    %cst_556 = arith.constant 1.000000e+00 : f32
    %1652 = vector.broadcast %cst_556 : f32 to vector<2x8xf32>
    %1653 = arith.addf %1651, %1652 : vector<2x8xf32>
    %cst_557 = arith.constant 5.000000e-01 : f32
    %1654 = vector.broadcast %cst_557 : f32 to vector<2x8xf32>
    %1655 = arith.mulf %1654, %1653 : vector<2x8xf32>
    %1656 = vector.extract_strided_slice %1647 {offsets = [0, 8], sizes = [2, 8], strides = [1, 1]} : vector<2x32xf32> to vector<2x8xf32>
    %cst_558 = arith.constant 5.000000e-01 : f32
    %1657 = vector.broadcast %cst_558 : f32 to vector<2x8xf32>
    %1658 = arith.mulf %1657, %1656 : vector<2x8xf32>
    %1659 = math.tanh %1658 : vector<2x8xf32>
    %cst_559 = arith.constant 1.000000e+00 : f32
    %1660 = vector.broadcast %cst_559 : f32 to vector<2x8xf32>
    %1661 = arith.addf %1659, %1660 : vector<2x8xf32>
    %cst_560 = arith.constant 5.000000e-01 : f32
    %1662 = vector.broadcast %cst_560 : f32 to vector<2x8xf32>
    %1663 = arith.mulf %1662, %1661 : vector<2x8xf32>
    %1664 = vector.extract_strided_slice %1647 {offsets = [0, 16], sizes = [2, 8], strides = [1, 1]} : vector<2x32xf32> to vector<2x8xf32>
    %1665 = math.tanh %1664 : vector<2x8xf32>
    %1666 = vector.extract_strided_slice %1647 {offsets = [0, 24], sizes = [2, 8], strides = [1, 1]} : vector<2x32xf32> to vector<2x8xf32>
    %cst_561 = arith.constant 5.000000e-01 : f32
    %1667 = vector.broadcast %cst_561 : f32 to vector<2x8xf32>
    %1668 = arith.mulf %1667, %1666 : vector<2x8xf32>
    %1669 = math.tanh %1668 : vector<2x8xf32>
    %cst_562 = arith.constant 1.000000e+00 : f32
    %1670 = vector.broadcast %cst_562 : f32 to vector<2x8xf32>
    %1671 = arith.addf %1669, %1670 : vector<2x8xf32>
    %cst_563 = arith.constant 5.000000e-01 : f32
    %1672 = vector.broadcast %cst_563 : f32 to vector<2x8xf32>
    %1673 = arith.mulf %1672, %1671 : vector<2x8xf32>
    %1674 = arith.mulf %1663, %1603 : vector<2x8xf32>
    %1675 = arith.mulf %1655, %1665 : vector<2x8xf32>
    %1676 = arith.addf %1674, %1675 : vector<2x8xf32>
    %1677 = math.tanh %1676 : vector<2x8xf32>
    %1678 = arith.mulf %1673, %1677 : vector<2x8xf32>
    %1679 = vector.extract_strided_slice %1346 {offsets = [24, 32], sizes = [2, 32], strides = [1, 1]} : vector<34x64xf32> to vector<2x32xf32>
    %1680 = vector.extract_strided_slice %1644 {offsets = [0, 32], sizes = [2, 32], strides = [1, 1]} : vector<2x64xf32> to vector<2x32xf32>
    %1681 = arith.addf %1679, %1680 : vector<2x32xf32>
    %1682 = vector.extract_strided_slice %1681 {offsets = [0, 0], sizes = [2, 8], strides = [1, 1]} : vector<2x32xf32> to vector<2x8xf32>
    %cst_564 = arith.constant 5.000000e-01 : f32
    %1683 = vector.broadcast %cst_564 : f32 to vector<2x8xf32>
    %1684 = arith.mulf %1683, %1682 : vector<2x8xf32>
    %1685 = math.tanh %1684 : vector<2x8xf32>
    %cst_565 = arith.constant 1.000000e+00 : f32
    %1686 = vector.broadcast %cst_565 : f32 to vector<2x8xf32>
    %1687 = arith.addf %1685, %1686 : vector<2x8xf32>
    %cst_566 = arith.constant 5.000000e-01 : f32
    %1688 = vector.broadcast %cst_566 : f32 to vector<2x8xf32>
    %1689 = arith.mulf %1688, %1687 : vector<2x8xf32>
    %1690 = vector.extract_strided_slice %1681 {offsets = [0, 8], sizes = [2, 8], strides = [1, 1]} : vector<2x32xf32> to vector<2x8xf32>
    %cst_567 = arith.constant 5.000000e-01 : f32
    %1691 = vector.broadcast %cst_567 : f32 to vector<2x8xf32>
    %1692 = arith.mulf %1691, %1690 : vector<2x8xf32>
    %1693 = math.tanh %1692 : vector<2x8xf32>
    %cst_568 = arith.constant 1.000000e+00 : f32
    %1694 = vector.broadcast %cst_568 : f32 to vector<2x8xf32>
    %1695 = arith.addf %1693, %1694 : vector<2x8xf32>
    %cst_569 = arith.constant 5.000000e-01 : f32
    %1696 = vector.broadcast %cst_569 : f32 to vector<2x8xf32>
    %1697 = arith.mulf %1696, %1695 : vector<2x8xf32>
    %1698 = vector.extract_strided_slice %1681 {offsets = [0, 16], sizes = [2, 8], strides = [1, 1]} : vector<2x32xf32> to vector<2x8xf32>
    %1699 = math.tanh %1698 : vector<2x8xf32>
    %1700 = vector.extract_strided_slice %1681 {offsets = [0, 24], sizes = [2, 8], strides = [1, 1]} : vector<2x32xf32> to vector<2x8xf32>
    %cst_570 = arith.constant 5.000000e-01 : f32
    %1701 = vector.broadcast %cst_570 : f32 to vector<2x8xf32>
    %1702 = arith.mulf %1701, %1700 : vector<2x8xf32>
    %1703 = math.tanh %1702 : vector<2x8xf32>
    %cst_571 = arith.constant 1.000000e+00 : f32
    %1704 = vector.broadcast %cst_571 : f32 to vector<2x8xf32>
    %1705 = arith.addf %1703, %1704 : vector<2x8xf32>
    %cst_572 = arith.constant 5.000000e-01 : f32
    %1706 = vector.broadcast %cst_572 : f32 to vector<2x8xf32>
    %1707 = arith.mulf %1706, %1705 : vector<2x8xf32>
    %1708 = arith.mulf %1697, %1637 : vector<2x8xf32>
    %1709 = arith.mulf %1689, %1699 : vector<2x8xf32>
    %1710 = arith.addf %1708, %1709 : vector<2x8xf32>
    %1711 = math.tanh %1710 : vector<2x8xf32>
    %1712 = arith.mulf %1707, %1711 : vector<2x8xf32>
    %c8_573 = arith.constant 8 : index
    %c0_574 = arith.constant 0 : index
    %1713 = vector.load %arg19[%c8_573, %c0_574] : memref<34x16xf32, #tpu.memory_space<vmem>>, vector<2x8xf32>
    tpu.vector_store %arg19[%c8_573, %c0_574], %1678 {strides = array<i32>} : memref<34x16xf32, #tpu.memory_space<vmem>>, vector<2x8xf32>,
    %c24_575 = arith.constant 24 : index
    %c8_576 = arith.constant 8 : index
    %1714 = vector.load %arg19[%c24_575, %c8_576] : memref<34x16xf32, #tpu.memory_space<vmem>>, vector<2x8xf32>
    tpu.vector_store %arg19[%c24_575, %c8_576], %1712 {strides = array<i32>} : memref<34x16xf32, #tpu.memory_space<vmem>>, vector<2x8xf32>,
    %1715 = tpu.concatenate %1678, %1712 in 1 : vector<2x8xf32>, vector<2x8xf32> -> vector<2x16xf32>
    %1716 = arith.truncf %1715 : vector<2x16xf32> to vector<2x16xbf16>
    %cst_577 = arith.constant dense<0.000000e+00> : vector<2x64xf32>
    %1717 = tpu.matmul %1716, %1347, %cst_577 {dimension_numbers = #tpu.dot_dimension_numbers<[1], [0], [0], [1], [0, 0, 1, 1], [], []>} : vector<2x16xbf16>, vector<16x64xbf16>, vector<2x64xf32> -> vector<2x64xf32>
    %1718 = vector.extract_strided_slice %1346 {offsets = [10, 0], sizes = [2, 32], strides = [1, 1]} : vector<34x64xf32> to vector<2x32xf32>
    %1719 = vector.extract_strided_slice %1717 {offsets = [0, 0], sizes = [2, 32], strides = [1, 1]} : vector<2x64xf32> to vector<2x32xf32>
    %1720 = arith.addf %1718, %1719 : vector<2x32xf32>
    %1721 = vector.extract_strided_slice %1720 {offsets = [0, 0], sizes = [2, 8], strides = [1, 1]} : vector<2x32xf32> to vector<2x8xf32>
    %cst_578 = arith.constant 5.000000e-01 : f32
    %1722 = vector.broadcast %cst_578 : f32 to vector<2x8xf32>
    %1723 = arith.mulf %1722, %1721 : vector<2x8xf32>
    %1724 = math.tanh %1723 : vector<2x8xf32>
    %cst_579 = arith.constant 1.000000e+00 : f32
    %1725 = vector.broadcast %cst_579 : f32 to vector<2x8xf32>
    %1726 = arith.addf %1724, %1725 : vector<2x8xf32>
    %cst_580 = arith.constant 5.000000e-01 : f32
    %1727 = vector.broadcast %cst_580 : f32 to vector<2x8xf32>
    %1728 = arith.mulf %1727, %1726 : vector<2x8xf32>
    %1729 = vector.extract_strided_slice %1720 {offsets = [0, 8], sizes = [2, 8], strides = [1, 1]} : vector<2x32xf32> to vector<2x8xf32>
    %cst_581 = arith.constant 5.000000e-01 : f32
    %1730 = vector.broadcast %cst_581 : f32 to vector<2x8xf32>
    %1731 = arith.mulf %1730, %1729 : vector<2x8xf32>
    %1732 = math.tanh %1731 : vector<2x8xf32>
    %cst_582 = arith.constant 1.000000e+00 : f32
    %1733 = vector.broadcast %cst_582 : f32 to vector<2x8xf32>
    %1734 = arith.addf %1732, %1733 : vector<2x8xf32>
    %cst_583 = arith.constant 5.000000e-01 : f32
    %1735 = vector.broadcast %cst_583 : f32 to vector<2x8xf32>
    %1736 = arith.mulf %1735, %1734 : vector<2x8xf32>
    %1737 = vector.extract_strided_slice %1720 {offsets = [0, 16], sizes = [2, 8], strides = [1, 1]} : vector<2x32xf32> to vector<2x8xf32>
    %1738 = math.tanh %1737 : vector<2x8xf32>
    %1739 = vector.extract_strided_slice %1720 {offsets = [0, 24], sizes = [2, 8], strides = [1, 1]} : vector<2x32xf32> to vector<2x8xf32>
    %cst_584 = arith.constant 5.000000e-01 : f32
    %1740 = vector.broadcast %cst_584 : f32 to vector<2x8xf32>
    %1741 = arith.mulf %1740, %1739 : vector<2x8xf32>
    %1742 = math.tanh %1741 : vector<2x8xf32>
    %cst_585 = arith.constant 1.000000e+00 : f32
    %1743 = vector.broadcast %cst_585 : f32 to vector<2x8xf32>
    %1744 = arith.addf %1742, %1743 : vector<2x8xf32>
    %cst_586 = arith.constant 5.000000e-01 : f32
    %1745 = vector.broadcast %cst_586 : f32 to vector<2x8xf32>
    %1746 = arith.mulf %1745, %1744 : vector<2x8xf32>
    %1747 = arith.mulf %1736, %1676 : vector<2x8xf32>
    %1748 = arith.mulf %1728, %1738 : vector<2x8xf32>
    %1749 = arith.addf %1747, %1748 : vector<2x8xf32>
    %1750 = math.tanh %1749 : vector<2x8xf32>
    %1751 = arith.mulf %1746, %1750 : vector<2x8xf32>
    %1752 = vector.extract_strided_slice %1346 {offsets = [22, 32], sizes = [2, 32], strides = [1, 1]} : vector<34x64xf32> to vector<2x32xf32>
    %1753 = vector.extract_strided_slice %1717 {offsets = [0, 32], sizes = [2, 32], strides = [1, 1]} : vector<2x64xf32> to vector<2x32xf32>
    %1754 = arith.addf %1752, %1753 : vector<2x32xf32>
    %1755 = vector.extract_strided_slice %1754 {offsets = [0, 0], sizes = [2, 8], strides = [1, 1]} : vector<2x32xf32> to vector<2x8xf32>
    %cst_587 = arith.constant 5.000000e-01 : f32
    %1756 = vector.broadcast %cst_587 : f32 to vector<2x8xf32>
    %1757 = arith.mulf %1756, %1755 : vector<2x8xf32>
    %1758 = math.tanh %1757 : vector<2x8xf32>
    %cst_588 = arith.constant 1.000000e+00 : f32
    %1759 = vector.broadcast %cst_588 : f32 to vector<2x8xf32>
    %1760 = arith.addf %1758, %1759 : vector<2x8xf32>
    %cst_589 = arith.constant 5.000000e-01 : f32
    %1761 = vector.broadcast %cst_589 : f32 to vector<2x8xf32>
    %1762 = arith.mulf %1761, %1760 : vector<2x8xf32>
    %1763 = vector.extract_strided_slice %1754 {offsets = [0, 8], sizes = [2, 8], strides = [1, 1]} : vector<2x32xf32> to vector<2x8xf32>
    %cst_590 = arith.constant 5.000000e-01 : f32
    %1764 = vector.broadcast %cst_590 : f32 to vector<2x8xf32>
    %1765 = arith.mulf %1764, %1763 : vector<2x8xf32>
    %1766 = math.tanh %1765 : vector<2x8xf32>
    %cst_591 = arith.constant 1.000000e+00 : f32
    %1767 = vector.broadcast %cst_591 : f32 to vector<2x8xf32>
    %1768 = arith.addf %1766, %1767 : vector<2x8xf32>
    %cst_592 = arith.constant 5.000000e-01 : f32
    %1769 = vector.broadcast %cst_592 : f32 to vector<2x8xf32>
    %1770 = arith.mulf %1769, %1768 : vector<2x8xf32>
    %1771 = vector.extract_strided_slice %1754 {offsets = [0, 16], sizes = [2, 8], strides = [1, 1]} : vector<2x32xf32> to vector<2x8xf32>
    %1772 = math.tanh %1771 : vector<2x8xf32>
    %1773 = vector.extract_strided_slice %1754 {offsets = [0, 24], sizes = [2, 8], strides = [1, 1]} : vector<2x32xf32> to vector<2x8xf32>
    %cst_593 = arith.constant 5.000000e-01 : f32
    %1774 = vector.broadcast %cst_593 : f32 to vector<2x8xf32>
    %1775 = arith.mulf %1774, %1773 : vector<2x8xf32>
    %1776 = math.tanh %1775 : vector<2x8xf32>
    %cst_594 = arith.constant 1.000000e+00 : f32
    %1777 = vector.broadcast %cst_594 : f32 to vector<2x8xf32>
    %1778 = arith.addf %1776, %1777 : vector<2x8xf32>
    %cst_595 = arith.constant 5.000000e-01 : f32
    %1779 = vector.broadcast %cst_595 : f32 to vector<2x8xf32>
    %1780 = arith.mulf %1779, %1778 : vector<2x8xf32>
    %1781 = arith.mulf %1770, %1710 : vector<2x8xf32>
    %1782 = arith.mulf %1762, %1772 : vector<2x8xf32>
    %1783 = arith.addf %1781, %1782 : vector<2x8xf32>
    %1784 = math.tanh %1783 : vector<2x8xf32>
    %1785 = arith.mulf %1780, %1784 : vector<2x8xf32>
    %c10_596 = arith.constant 10 : index
    %c0_597 = arith.constant 0 : index
    %1786 = vector.load %arg19[%c10_596, %c0_597] : memref<34x16xf32, #tpu.memory_space<vmem>>, vector<2x8xf32>
    tpu.vector_store %arg19[%c10_596, %c0_597], %1751 {strides = array<i32>} : memref<34x16xf32, #tpu.memory_space<vmem>>, vector<2x8xf32>,
    %c22_598 = arith.constant 22 : index
    %c8_599 = arith.constant 8 : index
    %1787 = vector.load %arg19[%c22_598, %c8_599] : memref<34x16xf32, #tpu.memory_space<vmem>>, vector<2x8xf32>
    tpu.vector_store %arg19[%c22_598, %c8_599], %1785 {strides = array<i32>} : memref<34x16xf32, #tpu.memory_space<vmem>>, vector<2x8xf32>,
    %1788 = tpu.concatenate %1751, %1785 in 1 : vector<2x8xf32>, vector<2x8xf32> -> vector<2x16xf32>
    %1789 = arith.truncf %1788 : vector<2x16xf32> to vector<2x16xbf16>
    %cst_600 = arith.constant dense<0.000000e+00> : vector<2x64xf32>
    %1790 = tpu.matmul %1789, %1347, %cst_600 {dimension_numbers = #tpu.dot_dimension_numbers<[1], [0], [0], [1], [0, 0, 1, 1], [], []>} : vector<2x16xbf16>, vector<16x64xbf16>, vector<2x64xf32> -> vector<2x64xf32>
    %1791 = vector.extract_strided_slice %1346 {offsets = [12, 0], sizes = [2, 32], strides = [1, 1]} : vector<34x64xf32> to vector<2x32xf32>
    %1792 = vector.extract_strided_slice %1790 {offsets = [0, 0], sizes = [2, 32], strides = [1, 1]} : vector<2x64xf32> to vector<2x32xf32>
    %1793 = arith.addf %1791, %1792 : vector<2x32xf32>
    %1794 = vector.extract_strided_slice %1793 {offsets = [0, 0], sizes = [2, 8], strides = [1, 1]} : vector<2x32xf32> to vector<2x8xf32>
    %cst_601 = arith.constant 5.000000e-01 : f32
    %1795 = vector.broadcast %cst_601 : f32 to vector<2x8xf32>
    %1796 = arith.mulf %1795, %1794 : vector<2x8xf32>
    %1797 = math.tanh %1796 : vector<2x8xf32>
    %cst_602 = arith.constant 1.000000e+00 : f32
    %1798 = vector.broadcast %cst_602 : f32 to vector<2x8xf32>
    %1799 = arith.addf %1797, %1798 : vector<2x8xf32>
    %cst_603 = arith.constant 5.000000e-01 : f32
    %1800 = vector.broadcast %cst_603 : f32 to vector<2x8xf32>
    %1801 = arith.mulf %1800, %1799 : vector<2x8xf32>
    %1802 = vector.extract_strided_slice %1793 {offsets = [0, 8], sizes = [2, 8], strides = [1, 1]} : vector<2x32xf32> to vector<2x8xf32>
    %cst_604 = arith.constant 5.000000e-01 : f32
    %1803 = vector.broadcast %cst_604 : f32 to vector<2x8xf32>
    %1804 = arith.mulf %1803, %1802 : vector<2x8xf32>
    %1805 = math.tanh %1804 : vector<2x8xf32>
    %cst_605 = arith.constant 1.000000e+00 : f32
    %1806 = vector.broadcast %cst_605 : f32 to vector<2x8xf32>
    %1807 = arith.addf %1805, %1806 : vector<2x8xf32>
    %cst_606 = arith.constant 5.000000e-01 : f32
    %1808 = vector.broadcast %cst_606 : f32 to vector<2x8xf32>
    %1809 = arith.mulf %1808, %1807 : vector<2x8xf32>
    %1810 = vector.extract_strided_slice %1793 {offsets = [0, 16], sizes = [2, 8], strides = [1, 1]} : vector<2x32xf32> to vector<2x8xf32>
    %1811 = math.tanh %1810 : vector<2x8xf32>
    %1812 = vector.extract_strided_slice %1793 {offsets = [0, 24], sizes = [2, 8], strides = [1, 1]} : vector<2x32xf32> to vector<2x8xf32>
    %cst_607 = arith.constant 5.000000e-01 : f32
    %1813 = vector.broadcast %cst_607 : f32 to vector<2x8xf32>
    %1814 = arith.mulf %1813, %1812 : vector<2x8xf32>
    %1815 = math.tanh %1814 : vector<2x8xf32>
    %cst_608 = arith.constant 1.000000e+00 : f32
    %1816 = vector.broadcast %cst_608 : f32 to vector<2x8xf32>
    %1817 = arith.addf %1815, %1816 : vector<2x8xf32>
    %cst_609 = arith.constant 5.000000e-01 : f32
    %1818 = vector.broadcast %cst_609 : f32 to vector<2x8xf32>
    %1819 = arith.mulf %1818, %1817 : vector<2x8xf32>
    %1820 = arith.mulf %1809, %1749 : vector<2x8xf32>
    %1821 = arith.mulf %1801, %1811 : vector<2x8xf32>
    %1822 = arith.addf %1820, %1821 : vector<2x8xf32>
    %1823 = math.tanh %1822 : vector<2x8xf32>
    %1824 = arith.mulf %1819, %1823 : vector<2x8xf32>
    %1825 = vector.extract_strided_slice %1346 {offsets = [20, 32], sizes = [2, 32], strides = [1, 1]} : vector<34x64xf32> to vector<2x32xf32>
    %1826 = vector.extract_strided_slice %1790 {offsets = [0, 32], sizes = [2, 32], strides = [1, 1]} : vector<2x64xf32> to vector<2x32xf32>
    %1827 = arith.addf %1825, %1826 : vector<2x32xf32>
    %1828 = vector.extract_strided_slice %1827 {offsets = [0, 0], sizes = [2, 8], strides = [1, 1]} : vector<2x32xf32> to vector<2x8xf32>
    %cst_610 = arith.constant 5.000000e-01 : f32
    %1829 = vector.broadcast %cst_610 : f32 to vector<2x8xf32>
    %1830 = arith.mulf %1829, %1828 : vector<2x8xf32>
    %1831 = math.tanh %1830 : vector<2x8xf32>
    %cst_611 = arith.constant 1.000000e+00 : f32
    %1832 = vector.broadcast %cst_611 : f32 to vector<2x8xf32>
    %1833 = arith.addf %1831, %1832 : vector<2x8xf32>
    %cst_612 = arith.constant 5.000000e-01 : f32
    %1834 = vector.broadcast %cst_612 : f32 to vector<2x8xf32>
    %1835 = arith.mulf %1834, %1833 : vector<2x8xf32>
    %1836 = vector.extract_strided_slice %1827 {offsets = [0, 8], sizes = [2, 8], strides = [1, 1]} : vector<2x32xf32> to vector<2x8xf32>
    %cst_613 = arith.constant 5.000000e-01 : f32
    %1837 = vector.broadcast %cst_613 : f32 to vector<2x8xf32>
    %1838 = arith.mulf %1837, %1836 : vector<2x8xf32>
    %1839 = math.tanh %1838 : vector<2x8xf32>
    %cst_614 = arith.constant 1.000000e+00 : f32
    %1840 = vector.broadcast %cst_614 : f32 to vector<2x8xf32>
    %1841 = arith.addf %1839, %1840 : vector<2x8xf32>
    %cst_615 = arith.constant 5.000000e-01 : f32
    %1842 = vector.broadcast %cst_615 : f32 to vector<2x8xf32>
    %1843 = arith.mulf %1842, %1841 : vector<2x8xf32>
    %1844 = vector.extract_strided_slice %1827 {offsets = [0, 16], sizes = [2, 8], strides = [1, 1]} : vector<2x32xf32> to vector<2x8xf32>
    %1845 = math.tanh %1844 : vector<2x8xf32>
    %1846 = vector.extract_strided_slice %1827 {offsets = [0, 24], sizes = [2, 8], strides = [1, 1]} : vector<2x32xf32> to vector<2x8xf32>
    %cst_616 = arith.constant 5.000000e-01 : f32
    %1847 = vector.broadcast %cst_616 : f32 to vector<2x8xf32>
    %1848 = arith.mulf %1847, %1846 : vector<2x8xf32>
    %1849 = math.tanh %1848 : vector<2x8xf32>
    %cst_617 = arith.constant 1.000000e+00 : f32
    %1850 = vector.broadcast %cst_617 : f32 to vector<2x8xf32>
    %1851 = arith.addf %1849, %1850 : vector<2x8xf32>
    %cst_618 = arith.constant 5.000000e-01 : f32
    %1852 = vector.broadcast %cst_618 : f32 to vector<2x8xf32>
    %1853 = arith.mulf %1852, %1851 : vector<2x8xf32>
    %1854 = arith.mulf %1843, %1783 : vector<2x8xf32>
    %1855 = arith.mulf %1835, %1845 : vector<2x8xf32>
    %1856 = arith.addf %1854, %1855 : vector<2x8xf32>
    %1857 = math.tanh %1856 : vector<2x8xf32>
    %1858 = arith.mulf %1853, %1857 : vector<2x8xf32>
    %c12_619 = arith.constant 12 : index
    %c0_620 = arith.constant 0 : index
    %1859 = vector.load %arg19[%c12_619, %c0_620] : memref<34x16xf32, #tpu.memory_space<vmem>>, vector<2x8xf32>
    tpu.vector_store %arg19[%c12_619, %c0_620], %1824 {strides = array<i32>} : memref<34x16xf32, #tpu.memory_space<vmem>>, vector<2x8xf32>,
    %c20_621 = arith.constant 20 : index
    %c8_622 = arith.constant 8 : index
    %1860 = vector.load %arg19[%c20_621, %c8_622] : memref<34x16xf32, #tpu.memory_space<vmem>>, vector<2x8xf32>
    tpu.vector_store %arg19[%c20_621, %c8_622], %1858 {strides = array<i32>} : memref<34x16xf32, #tpu.memory_space<vmem>>, vector<2x8xf32>,
    %1861 = tpu.concatenate %1824, %1858 in 1 : vector<2x8xf32>, vector<2x8xf32> -> vector<2x16xf32>
    %1862 = arith.truncf %1861 : vector<2x16xf32> to vector<2x16xbf16>
    %cst_623 = arith.constant dense<0.000000e+00> : vector<2x64xf32>
    %1863 = tpu.matmul %1862, %1347, %cst_623 {dimension_numbers = #tpu.dot_dimension_numbers<[1], [0], [0], [1], [0, 0, 1, 1], [], []>} : vector<2x16xbf16>, vector<16x64xbf16>, vector<2x64xf32> -> vector<2x64xf32>
    %1864 = vector.extract_strided_slice %1346 {offsets = [14, 0], sizes = [2, 32], strides = [1, 1]} : vector<34x64xf32> to vector<2x32xf32>
    %1865 = vector.extract_strided_slice %1863 {offsets = [0, 0], sizes = [2, 32], strides = [1, 1]} : vector<2x64xf32> to vector<2x32xf32>
    %1866 = arith.addf %1864, %1865 : vector<2x32xf32>
    %1867 = vector.extract_strided_slice %1866 {offsets = [0, 0], sizes = [2, 8], strides = [1, 1]} : vector<2x32xf32> to vector<2x8xf32>
    %cst_624 = arith.constant 5.000000e-01 : f32
    %1868 = vector.broadcast %cst_624 : f32 to vector<2x8xf32>
    %1869 = arith.mulf %1868, %1867 : vector<2x8xf32>
    %1870 = math.tanh %1869 : vector<2x8xf32>
    %cst_625 = arith.constant 1.000000e+00 : f32
    %1871 = vector.broadcast %cst_625 : f32 to vector<2x8xf32>
    %1872 = arith.addf %1870, %1871 : vector<2x8xf32>
    %cst_626 = arith.constant 5.000000e-01 : f32
    %1873 = vector.broadcast %cst_626 : f32 to vector<2x8xf32>
    %1874 = arith.mulf %1873, %1872 : vector<2x8xf32>
    %1875 = vector.extract_strided_slice %1866 {offsets = [0, 8], sizes = [2, 8], strides = [1, 1]} : vector<2x32xf32> to vector<2x8xf32>
    %cst_627 = arith.constant 5.000000e-01 : f32
    %1876 = vector.broadcast %cst_627 : f32 to vector<2x8xf32>
    %1877 = arith.mulf %1876, %1875 : vector<2x8xf32>
    %1878 = math.tanh %1877 : vector<2x8xf32>
    %cst_628 = arith.constant 1.000000e+00 : f32
    %1879 = vector.broadcast %cst_628 : f32 to vector<2x8xf32>
    %1880 = arith.addf %1878, %1879 : vector<2x8xf32>
    %cst_629 = arith.constant 5.000000e-01 : f32
    %1881 = vector.broadcast %cst_629 : f32 to vector<2x8xf32>
    %1882 = arith.mulf %1881, %1880 : vector<2x8xf32>
    %1883 = vector.extract_strided_slice %1866 {offsets = [0, 16], sizes = [2, 8], strides = [1, 1]} : vector<2x32xf32> to vector<2x8xf32>
    %1884 = math.tanh %1883 : vector<2x8xf32>
    %1885 = vector.extract_strided_slice %1866 {offsets = [0, 24], sizes = [2, 8], strides = [1, 1]} : vector<2x32xf32> to vector<2x8xf32>
    %cst_630 = arith.constant 5.000000e-01 : f32
    %1886 = vector.broadcast %cst_630 : f32 to vector<2x8xf32>
    %1887 = arith.mulf %1886, %1885 : vector<2x8xf32>
    %1888 = math.tanh %1887 : vector<2x8xf32>
    %cst_631 = arith.constant 1.000000e+00 : f32
    %1889 = vector.broadcast %cst_631 : f32 to vector<2x8xf32>
    %1890 = arith.addf %1888, %1889 : vector<2x8xf32>
    %cst_632 = arith.constant 5.000000e-01 : f32
    %1891 = vector.broadcast %cst_632 : f32 to vector<2x8xf32>
    %1892 = arith.mulf %1891, %1890 : vector<2x8xf32>
    %1893 = arith.mulf %1882, %1822 : vector<2x8xf32>
    %1894 = arith.mulf %1874, %1884 : vector<2x8xf32>
    %1895 = arith.addf %1893, %1894 : vector<2x8xf32>
    %1896 = math.tanh %1895 : vector<2x8xf32>
    %1897 = arith.mulf %1892, %1896 : vector<2x8xf32>
    %1898 = vector.extract_strided_slice %1346 {offsets = [18, 32], sizes = [2, 32], strides = [1, 1]} : vector<34x64xf32> to vector<2x32xf32>
    %1899 = vector.extract_strided_slice %1863 {offsets = [0, 32], sizes = [2, 32], strides = [1, 1]} : vector<2x64xf32> to vector<2x32xf32>
    %1900 = arith.addf %1898, %1899 : vector<2x32xf32>
    %1901 = vector.extract_strided_slice %1900 {offsets = [0, 0], sizes = [2, 8], strides = [1, 1]} : vector<2x32xf32> to vector<2x8xf32>
    %cst_633 = arith.constant 5.000000e-01 : f32
    %1902 = vector.broadcast %cst_633 : f32 to vector<2x8xf32>
    %1903 = arith.mulf %1902, %1901 : vector<2x8xf32>
    %1904 = math.tanh %1903 : vector<2x8xf32>
    %cst_634 = arith.constant 1.000000e+00 : f32
    %1905 = vector.broadcast %cst_634 : f32 to vector<2x8xf32>
    %1906 = arith.addf %1904, %1905 : vector<2x8xf32>
    %cst_635 = arith.constant 5.000000e-01 : f32
    %1907 = vector.broadcast %cst_635 : f32 to vector<2x8xf32>
    %1908 = arith.mulf %1907, %1906 : vector<2x8xf32>
    %1909 = vector.extract_strided_slice %1900 {offsets = [0, 8], sizes = [2, 8], strides = [1, 1]} : vector<2x32xf32> to vector<2x8xf32>
    %cst_636 = arith.constant 5.000000e-01 : f32
    %1910 = vector.broadcast %cst_636 : f32 to vector<2x8xf32>
    %1911 = arith.mulf %1910, %1909 : vector<2x8xf32>
    %1912 = math.tanh %1911 : vector<2x8xf32>
    %cst_637 = arith.constant 1.000000e+00 : f32
    %1913 = vector.broadcast %cst_637 : f32 to vector<2x8xf32>
    %1914 = arith.addf %1912, %1913 : vector<2x8xf32>
    %cst_638 = arith.constant 5.000000e-01 : f32
    %1915 = vector.broadcast %cst_638 : f32 to vector<2x8xf32>
    %1916 = arith.mulf %1915, %1914 : vector<2x8xf32>
    %1917 = vector.extract_strided_slice %1900 {offsets = [0, 16], sizes = [2, 8], strides = [1, 1]} : vector<2x32xf32> to vector<2x8xf32>
    %1918 = math.tanh %1917 : vector<2x8xf32>
    %1919 = vector.extract_strided_slice %1900 {offsets = [0, 24], sizes = [2, 8], strides = [1, 1]} : vector<2x32xf32> to vector<2x8xf32>
    %cst_639 = arith.constant 5.000000e-01 : f32
    %1920 = vector.broadcast %cst_639 : f32 to vector<2x8xf32>
    %1921 = arith.mulf %1920, %1919 : vector<2x8xf32>
    %1922 = math.tanh %1921 : vector<2x8xf32>
    %cst_640 = arith.constant 1.000000e+00 : f32
    %1923 = vector.broadcast %cst_640 : f32 to vector<2x8xf32>
    %1924 = arith.addf %1922, %1923 : vector<2x8xf32>
    %cst_641 = arith.constant 5.000000e-01 : f32
    %1925 = vector.broadcast %cst_641 : f32 to vector<2x8xf32>
    %1926 = arith.mulf %1925, %1924 : vector<2x8xf32>
    %1927 = arith.mulf %1916, %1856 : vector<2x8xf32>
    %1928 = arith.mulf %1908, %1918 : vector<2x8xf32>
    %1929 = arith.addf %1927, %1928 : vector<2x8xf32>
    %1930 = math.tanh %1929 : vector<2x8xf32>
    %1931 = arith.mulf %1926, %1930 : vector<2x8xf32>
    %c14_642 = arith.constant 14 : index
    %c0_643 = arith.constant 0 : index
    %1932 = vector.load %arg19[%c14_642, %c0_643] : memref<34x16xf32, #tpu.memory_space<vmem>>, vector<2x8xf32>
    tpu.vector_store %arg19[%c14_642, %c0_643], %1897 {strides = array<i32>} : memref<34x16xf32, #tpu.memory_space<vmem>>, vector<2x8xf32>,
    %c18_644 = arith.constant 18 : index
    %c8_645 = arith.constant 8 : index
    %1933 = vector.load %arg19[%c18_644, %c8_645] : memref<34x16xf32, #tpu.memory_space<vmem>>, vector<2x8xf32>
    tpu.vector_store %arg19[%c18_644, %c8_645], %1931 {strides = array<i32>} : memref<34x16xf32, #tpu.memory_space<vmem>>, vector<2x8xf32>,
    %1934 = tpu.concatenate %1897, %1931 in 1 : vector<2x8xf32>, vector<2x8xf32> -> vector<2x16xf32>
    %1935 = arith.truncf %1934 : vector<2x16xf32> to vector<2x16xbf16>
    %cst_646 = arith.constant dense<0.000000e+00> : vector<2x64xf32>
    %1936 = tpu.matmul %1935, %1347, %cst_646 {dimension_numbers = #tpu.dot_dimension_numbers<[1], [0], [0], [1], [0, 0, 1, 1], [], []>} : vector<2x16xbf16>, vector<16x64xbf16>, vector<2x64xf32> -> vector<2x64xf32>
    %1937 = vector.extract_strided_slice %1346 {offsets = [16, 0], sizes = [2, 32], strides = [1, 1]} : vector<34x64xf32> to vector<2x32xf32>
    %1938 = vector.extract_strided_slice %1936 {offsets = [0, 0], sizes = [2, 32], strides = [1, 1]} : vector<2x64xf32> to vector<2x32xf32>
    %1939 = arith.addf %1937, %1938 : vector<2x32xf32>
    %1940 = vector.extract_strided_slice %1939 {offsets = [0, 0], sizes = [2, 8], strides = [1, 1]} : vector<2x32xf32> to vector<2x8xf32>
    %cst_647 = arith.constant 5.000000e-01 : f32
    %1941 = vector.broadcast %cst_647 : f32 to vector<2x8xf32>
    %1942 = arith.mulf %1941, %1940 : vector<2x8xf32>
    %1943 = math.tanh %1942 : vector<2x8xf32>
    %cst_648 = arith.constant 1.000000e+00 : f32
    %1944 = vector.broadcast %cst_648 : f32 to vector<2x8xf32>
    %1945 = arith.addf %1943, %1944 : vector<2x8xf32>
    %cst_649 = arith.constant 5.000000e-01 : f32
    %1946 = vector.broadcast %cst_649 : f32 to vector<2x8xf32>
    %1947 = arith.mulf %1946, %1945 : vector<2x8xf32>
    %1948 = vector.extract_strided_slice %1939 {offsets = [0, 8], sizes = [2, 8], strides = [1, 1]} : vector<2x32xf32> to vector<2x8xf32>
    %cst_650 = arith.constant 5.000000e-01 : f32
    %1949 = vector.broadcast %cst_650 : f32 to vector<2x8xf32>
    %1950 = arith.mulf %1949, %1948 : vector<2x8xf32>
    %1951 = math.tanh %1950 : vector<2x8xf32>
    %cst_651 = arith.constant 1.000000e+00 : f32
    %1952 = vector.broadcast %cst_651 : f32 to vector<2x8xf32>
    %1953 = arith.addf %1951, %1952 : vector<2x8xf32>
    %cst_652 = arith.constant 5.000000e-01 : f32
    %1954 = vector.broadcast %cst_652 : f32 to vector<2x8xf32>
    %1955 = arith.mulf %1954, %1953 : vector<2x8xf32>
    %1956 = vector.extract_strided_slice %1939 {offsets = [0, 16], sizes = [2, 8], strides = [1, 1]} : vector<2x32xf32> to vector<2x8xf32>
    %1957 = math.tanh %1956 : vector<2x8xf32>
    %1958 = vector.extract_strided_slice %1939 {offsets = [0, 24], sizes = [2, 8], strides = [1, 1]} : vector<2x32xf32> to vector<2x8xf32>
    %cst_653 = arith.constant 5.000000e-01 : f32
    %1959 = vector.broadcast %cst_653 : f32 to vector<2x8xf32>
    %1960 = arith.mulf %1959, %1958 : vector<2x8xf32>
    %1961 = math.tanh %1960 : vector<2x8xf32>
    %cst_654 = arith.constant 1.000000e+00 : f32
    %1962 = vector.broadcast %cst_654 : f32 to vector<2x8xf32>
    %1963 = arith.addf %1961, %1962 : vector<2x8xf32>
    %cst_655 = arith.constant 5.000000e-01 : f32
    %1964 = vector.broadcast %cst_655 : f32 to vector<2x8xf32>
    %1965 = arith.mulf %1964, %1963 : vector<2x8xf32>
    %1966 = arith.mulf %1955, %1895 : vector<2x8xf32>
    %1967 = arith.mulf %1947, %1957 : vector<2x8xf32>
    %1968 = arith.addf %1966, %1967 : vector<2x8xf32>
    %1969 = math.tanh %1968 : vector<2x8xf32>
    %1970 = arith.mulf %1965, %1969 : vector<2x8xf32>
    %1971 = vector.extract_strided_slice %1346 {offsets = [16, 32], sizes = [2, 32], strides = [1, 1]} : vector<34x64xf32> to vector<2x32xf32>
    %1972 = vector.extract_strided_slice %1936 {offsets = [0, 32], sizes = [2, 32], strides = [1, 1]} : vector<2x64xf32> to vector<2x32xf32>
    %1973 = arith.addf %1971, %1972 : vector<2x32xf32>
    %1974 = vector.extract_strided_slice %1973 {offsets = [0, 0], sizes = [2, 8], strides = [1, 1]} : vector<2x32xf32> to vector<2x8xf32>
    %cst_656 = arith.constant 5.000000e-01 : f32
    %1975 = vector.broadcast %cst_656 : f32 to vector<2x8xf32>
    %1976 = arith.mulf %1975, %1974 : vector<2x8xf32>
    %1977 = math.tanh %1976 : vector<2x8xf32>
    %cst_657 = arith.constant 1.000000e+00 : f32
    %1978 = vector.broadcast %cst_657 : f32 to vector<2x8xf32>
    %1979 = arith.addf %1977, %1978 : vector<2x8xf32>
    %cst_658 = arith.constant 5.000000e-01 : f32
    %1980 = vector.broadcast %cst_658 : f32 to vector<2x8xf32>
    %1981 = arith.mulf %1980, %1979 : vector<2x8xf32>
    %1982 = vector.extract_strided_slice %1973 {offsets = [0, 8], sizes = [2, 8], strides = [1, 1]} : vector<2x32xf32> to vector<2x8xf32>
    %cst_659 = arith.constant 5.000000e-01 : f32
    %1983 = vector.broadcast %cst_659 : f32 to vector<2x8xf32>
    %1984 = arith.mulf %1983, %1982 : vector<2x8xf32>
    %1985 = math.tanh %1984 : vector<2x8xf32>
    %cst_660 = arith.constant 1.000000e+00 : f32
    %1986 = vector.broadcast %cst_660 : f32 to vector<2x8xf32>
    %1987 = arith.addf %1985, %1986 : vector<2x8xf32>
    %cst_661 = arith.constant 5.000000e-01 : f32
    %1988 = vector.broadcast %cst_661 : f32 to vector<2x8xf32>
    %1989 = arith.mulf %1988, %1987 : vector<2x8xf32>
    %1990 = vector.extract_strided_slice %1973 {offsets = [0, 16], sizes = [2, 8], strides = [1, 1]} : vector<2x32xf32> to vector<2x8xf32>
    %1991 = math.tanh %1990 : vector<2x8xf32>
    %1992 = vector.extract_strided_slice %1973 {offsets = [0, 24], sizes = [2, 8], strides = [1, 1]} : vector<2x32xf32> to vector<2x8xf32>
    %cst_662 = arith.constant 5.000000e-01 : f32
    %1993 = vector.broadcast %cst_662 : f32 to vector<2x8xf32>
    %1994 = arith.mulf %1993, %1992 : vector<2x8xf32>
    %1995 = math.tanh %1994 : vector<2x8xf32>
    %cst_663 = arith.constant 1.000000e+00 : f32
    %1996 = vector.broadcast %cst_663 : f32 to vector<2x8xf32>
    %1997 = arith.addf %1995, %1996 : vector<2x8xf32>
    %cst_664 = arith.constant 5.000000e-01 : f32
    %1998 = vector.broadcast %cst_664 : f32 to vector<2x8xf32>
    %1999 = arith.mulf %1998, %1997 : vector<2x8xf32>
    %2000 = arith.mulf %1989, %1929 : vector<2x8xf32>
    %2001 = arith.mulf %1981, %1991 : vector<2x8xf32>
    %2002 = arith.addf %2000, %2001 : vector<2x8xf32>
    %2003 = math.tanh %2002 : vector<2x8xf32>
    %2004 = arith.mulf %1999, %2003 : vector<2x8xf32>
    %c16_665 = arith.constant 16 : index
    %c0_666 = arith.constant 0 : index
    %2005 = vector.load %arg19[%c16_665, %c0_666] : memref<34x16xf32, #tpu.memory_space<vmem>>, vector<2x8xf32>
    tpu.vector_store %arg19[%c16_665, %c0_666], %1970 {strides = array<i32>} : memref<34x16xf32, #tpu.memory_space<vmem>>, vector<2x8xf32>,
    %c16_667 = arith.constant 16 : index
    %c8_668 = arith.constant 8 : index
    %2006 = vector.load %arg19[%c16_667, %c8_668] : memref<34x16xf32, #tpu.memory_space<vmem>>, vector<2x8xf32>
    tpu.vector_store %arg19[%c16_667, %c8_668], %2004 {strides = array<i32>} : memref<34x16xf32, #tpu.memory_space<vmem>>, vector<2x8xf32>,
    %2007 = tpu.concatenate %1970, %2004 in 1 : vector<2x8xf32>, vector<2x8xf32> -> vector<2x16xf32>
    %2008 = arith.truncf %2007 : vector<2x16xf32> to vector<2x16xbf16>
    %cst_669 = arith.constant dense<0.000000e+00> : vector<2x64xf32>
    %2009 = tpu.matmul %2008, %1347, %cst_669 {dimension_numbers = #tpu.dot_dimension_numbers<[1], [0], [0], [1], [0, 0, 1, 1], [], []>} : vector<2x16xbf16>, vector<16x64xbf16>, vector<2x64xf32> -> vector<2x64xf32>
    %2010 = vector.extract_strided_slice %1346 {offsets = [18, 0], sizes = [2, 32], strides = [1, 1]} : vector<34x64xf32> to vector<2x32xf32>
    %2011 = vector.extract_strided_slice %2009 {offsets = [0, 0], sizes = [2, 32], strides = [1, 1]} : vector<2x64xf32> to vector<2x32xf32>
    %2012 = arith.addf %2010, %2011 : vector<2x32xf32>
    %2013 = vector.extract_strided_slice %2012 {offsets = [0, 0], sizes = [2, 8], strides = [1, 1]} : vector<2x32xf32> to vector<2x8xf32>
    %cst_670 = arith.constant 5.000000e-01 : f32
    %2014 = vector.broadcast %cst_670 : f32 to vector<2x8xf32>
    %2015 = arith.mulf %2014, %2013 : vector<2x8xf32>
    %2016 = math.tanh %2015 : vector<2x8xf32>
    %cst_671 = arith.constant 1.000000e+00 : f32
    %2017 = vector.broadcast %cst_671 : f32 to vector<2x8xf32>
    %2018 = arith.addf %2016, %2017 : vector<2x8xf32>
    %cst_672 = arith.constant 5.000000e-01 : f32
    %2019 = vector.broadcast %cst_672 : f32 to vector<2x8xf32>
    %2020 = arith.mulf %2019, %2018 : vector<2x8xf32>
    %2021 = vector.extract_strided_slice %2012 {offsets = [0, 8], sizes = [2, 8], strides = [1, 1]} : vector<2x32xf32> to vector<2x8xf32>
    %cst_673 = arith.constant 5.000000e-01 : f32
    %2022 = vector.broadcast %cst_673 : f32 to vector<2x8xf32>
    %2023 = arith.mulf %2022, %2021 : vector<2x8xf32>
    %2024 = math.tanh %2023 : vector<2x8xf32>
    %cst_674 = arith.constant 1.000000e+00 : f32
    %2025 = vector.broadcast %cst_674 : f32 to vector<2x8xf32>
    %2026 = arith.addf %2024, %2025 : vector<2x8xf32>
    %cst_675 = arith.constant 5.000000e-01 : f32
    %2027 = vector.broadcast %cst_675 : f32 to vector<2x8xf32>
    %2028 = arith.mulf %2027, %2026 : vector<2x8xf32>
    %2029 = vector.extract_strided_slice %2012 {offsets = [0, 16], sizes = [2, 8], strides = [1, 1]} : vector<2x32xf32> to vector<2x8xf32>
    %2030 = math.tanh %2029 : vector<2x8xf32>
    %2031 = vector.extract_strided_slice %2012 {offsets = [0, 24], sizes = [2, 8], strides = [1, 1]} : vector<2x32xf32> to vector<2x8xf32>
    %cst_676 = arith.constant 5.000000e-01 : f32
    %2032 = vector.broadcast %cst_676 : f32 to vector<2x8xf32>
    %2033 = arith.mulf %2032, %2031 : vector<2x8xf32>
    %2034 = math.tanh %2033 : vector<2x8xf32>
    %cst_677 = arith.constant 1.000000e+00 : f32
    %2035 = vector.broadcast %cst_677 : f32 to vector<2x8xf32>
    %2036 = arith.addf %2034, %2035 : vector<2x8xf32>
    %cst_678 = arith.constant 5.000000e-01 : f32
    %2037 = vector.broadcast %cst_678 : f32 to vector<2x8xf32>
    %2038 = arith.mulf %2037, %2036 : vector<2x8xf32>
    %2039 = arith.mulf %2028, %1968 : vector<2x8xf32>
    %2040 = arith.mulf %2020, %2030 : vector<2x8xf32>
    %2041 = arith.addf %2039, %2040 : vector<2x8xf32>
    %2042 = math.tanh %2041 : vector<2x8xf32>
    %2043 = arith.mulf %2038, %2042 : vector<2x8xf32>
    %2044 = vector.extract_strided_slice %1346 {offsets = [14, 32], sizes = [2, 32], strides = [1, 1]} : vector<34x64xf32> to vector<2x32xf32>
    %2045 = vector.extract_strided_slice %2009 {offsets = [0, 32], sizes = [2, 32], strides = [1, 1]} : vector<2x64xf32> to vector<2x32xf32>
    %2046 = arith.addf %2044, %2045 : vector<2x32xf32>
    %2047 = vector.extract_strided_slice %2046 {offsets = [0, 0], sizes = [2, 8], strides = [1, 1]} : vector<2x32xf32> to vector<2x8xf32>
    %cst_679 = arith.constant 5.000000e-01 : f32
    %2048 = vector.broadcast %cst_679 : f32 to vector<2x8xf32>
    %2049 = arith.mulf %2048, %2047 : vector<2x8xf32>
    %2050 = math.tanh %2049 : vector<2x8xf32>
    %cst_680 = arith.constant 1.000000e+00 : f32
    %2051 = vector.broadcast %cst_680 : f32 to vector<2x8xf32>
    %2052 = arith.addf %2050, %2051 : vector<2x8xf32>
    %cst_681 = arith.constant 5.000000e-01 : f32
    %2053 = vector.broadcast %cst_681 : f32 to vector<2x8xf32>
    %2054 = arith.mulf %2053, %2052 : vector<2x8xf32>
    %2055 = vector.extract_strided_slice %2046 {offsets = [0, 8], sizes = [2, 8], strides = [1, 1]} : vector<2x32xf32> to vector<2x8xf32>
    %cst_682 = arith.constant 5.000000e-01 : f32
    %2056 = vector.broadcast %cst_682 : f32 to vector<2x8xf32>
    %2057 = arith.mulf %2056, %2055 : vector<2x8xf32>
    %2058 = math.tanh %2057 : vector<2x8xf32>
    %cst_683 = arith.constant 1.000000e+00 : f32
    %2059 = vector.broadcast %cst_683 : f32 to vector<2x8xf32>
    %2060 = arith.addf %2058, %2059 : vector<2x8xf32>
    %cst_684 = arith.constant 5.000000e-01 : f32
    %2061 = vector.broadcast %cst_684 : f32 to vector<2x8xf32>
    %2062 = arith.mulf %2061, %2060 : vector<2x8xf32>
    %2063 = vector.extract_strided_slice %2046 {offsets = [0, 16], sizes = [2, 8], strides = [1, 1]} : vector<2x32xf32> to vector<2x8xf32>
    %2064 = math.tanh %2063 : vector<2x8xf32>
    %2065 = vector.extract_strided_slice %2046 {offsets = [0, 24], sizes = [2, 8], strides = [1, 1]} : vector<2x32xf32> to vector<2x8xf32>
    %cst_685 = arith.constant 5.000000e-01 : f32
    %2066 = vector.broadcast %cst_685 : f32 to vector<2x8xf32>
    %2067 = arith.mulf %2066, %2065 : vector<2x8xf32>
    %2068 = math.tanh %2067 : vector<2x8xf32>
    %cst_686 = arith.constant 1.000000e+00 : f32
    %2069 = vector.broadcast %cst_686 : f32 to vector<2x8xf32>
    %2070 = arith.addf %2068, %2069 : vector<2x8xf32>
    %cst_687 = arith.constant 5.000000e-01 : f32
    %2071 = vector.broadcast %cst_687 : f32 to vector<2x8xf32>
    %2072 = arith.mulf %2071, %2070 : vector<2x8xf32>
    %2073 = arith.mulf %2062, %2002 : vector<2x8xf32>
    %2074 = arith.mulf %2054, %2064 : vector<2x8xf32>
    %2075 = arith.addf %2073, %2074 : vector<2x8xf32>
    %2076 = math.tanh %2075 : vector<2x8xf32>
    %2077 = arith.mulf %2072, %2076 : vector<2x8xf32>
    %c18_688 = arith.constant 18 : index
    %c0_689 = arith.constant 0 : index
    %2078 = vector.load %arg19[%c18_688, %c0_689] : memref<34x16xf32, #tpu.memory_space<vmem>>, vector<2x8xf32>
    tpu.vector_store %arg19[%c18_688, %c0_689], %2043 {strides = array<i32>} : memref<34x16xf32, #tpu.memory_space<vmem>>, vector<2x8xf32>,
    %c14_690 = arith.constant 14 : index
    %c8_691 = arith.constant 8 : index
    %2079 = vector.load %arg19[%c14_690, %c8_691] : memref<34x16xf32, #tpu.memory_space<vmem>>, vector<2x8xf32>
    tpu.vector_store %arg19[%c14_690, %c8_691], %2077 {strides = array<i32>} : memref<34x16xf32, #tpu.memory_space<vmem>>, vector<2x8xf32>,
    %2080 = tpu.concatenate %2043, %2077 in 1 : vector<2x8xf32>, vector<2x8xf32> -> vector<2x16xf32>
    %2081 = arith.truncf %2080 : vector<2x16xf32> to vector<2x16xbf16>
    %cst_692 = arith.constant dense<0.000000e+00> : vector<2x64xf32>
    %2082 = tpu.matmul %2081, %1347, %cst_692 {dimension_numbers = #tpu.dot_dimension_numbers<[1], [0], [0], [1], [0, 0, 1, 1], [], []>} : vector<2x16xbf16>, vector<16x64xbf16>, vector<2x64xf32> -> vector<2x64xf32>
    %2083 = vector.extract_strided_slice %1346 {offsets = [20, 0], sizes = [2, 32], strides = [1, 1]} : vector<34x64xf32> to vector<2x32xf32>
    %2084 = vector.extract_strided_slice %2082 {offsets = [0, 0], sizes = [2, 32], strides = [1, 1]} : vector<2x64xf32> to vector<2x32xf32>
    %2085 = arith.addf %2083, %2084 : vector<2x32xf32>
    %2086 = vector.extract_strided_slice %2085 {offsets = [0, 0], sizes = [2, 8], strides = [1, 1]} : vector<2x32xf32> to vector<2x8xf32>
    %cst_693 = arith.constant 5.000000e-01 : f32
    %2087 = vector.broadcast %cst_693 : f32 to vector<2x8xf32>
    %2088 = arith.mulf %2087, %2086 : vector<2x8xf32>
    %2089 = math.tanh %2088 : vector<2x8xf32>
    %cst_694 = arith.constant 1.000000e+00 : f32
    %2090 = vector.broadcast %cst_694 : f32 to vector<2x8xf32>
    %2091 = arith.addf %2089, %2090 : vector<2x8xf32>
    %cst_695 = arith.constant 5.000000e-01 : f32
    %2092 = vector.broadcast %cst_695 : f32 to vector<2x8xf32>
    %2093 = arith.mulf %2092, %2091 : vector<2x8xf32>
    %2094 = vector.extract_strided_slice %2085 {offsets = [0, 8], sizes = [2, 8], strides = [1, 1]} : vector<2x32xf32> to vector<2x8xf32>
    %cst_696 = arith.constant 5.000000e-01 : f32
    %2095 = vector.broadcast %cst_696 : f32 to vector<2x8xf32>
    %2096 = arith.mulf %2095, %2094 : vector<2x8xf32>
    %2097 = math.tanh %2096 : vector<2x8xf32>
    %cst_697 = arith.constant 1.000000e+00 : f32
    %2098 = vector.broadcast %cst_697 : f32 to vector<2x8xf32>
    %2099 = arith.addf %2097, %2098 : vector<2x8xf32>
    %cst_698 = arith.constant 5.000000e-01 : f32
    %2100 = vector.broadcast %cst_698 : f32 to vector<2x8xf32>
    %2101 = arith.mulf %2100, %2099 : vector<2x8xf32>
    %2102 = vector.extract_strided_slice %2085 {offsets = [0, 16], sizes = [2, 8], strides = [1, 1]} : vector<2x32xf32> to vector<2x8xf32>
    %2103 = math.tanh %2102 : vector<2x8xf32>
    %2104 = vector.extract_strided_slice %2085 {offsets = [0, 24], sizes = [2, 8], strides = [1, 1]} : vector<2x32xf32> to vector<2x8xf32>
    %cst_699 = arith.constant 5.000000e-01 : f32
    %2105 = vector.broadcast %cst_699 : f32 to vector<2x8xf32>
    %2106 = arith.mulf %2105, %2104 : vector<2x8xf32>
    %2107 = math.tanh %2106 : vector<2x8xf32>
    %cst_700 = arith.constant 1.000000e+00 : f32
    %2108 = vector.broadcast %cst_700 : f32 to vector<2x8xf32>
    %2109 = arith.addf %2107, %2108 : vector<2x8xf32>
    %cst_701 = arith.constant 5.000000e-01 : f32
    %2110 = vector.broadcast %cst_701 : f32 to vector<2x8xf32>
    %2111 = arith.mulf %2110, %2109 : vector<2x8xf32>
    %2112 = arith.mulf %2101, %2041 : vector<2x8xf32>
    %2113 = arith.mulf %2093, %2103 : vector<2x8xf32>
    %2114 = arith.addf %2112, %2113 : vector<2x8xf32>
    %2115 = math.tanh %2114 : vector<2x8xf32>
    %2116 = arith.mulf %2111, %2115 : vector<2x8xf32>
    %2117 = vector.extract_strided_slice %1346 {offsets = [12, 32], sizes = [2, 32], strides = [1, 1]} : vector<34x64xf32> to vector<2x32xf32>
    %2118 = vector.extract_strided_slice %2082 {offsets = [0, 32], sizes = [2, 32], strides = [1, 1]} : vector<2x64xf32> to vector<2x32xf32>
    %2119 = arith.addf %2117, %2118 : vector<2x32xf32>
    %2120 = vector.extract_strided_slice %2119 {offsets = [0, 0], sizes = [2, 8], strides = [1, 1]} : vector<2x32xf32> to vector<2x8xf32>
    %cst_702 = arith.constant 5.000000e-01 : f32
    %2121 = vector.broadcast %cst_702 : f32 to vector<2x8xf32>
    %2122 = arith.mulf %2121, %2120 : vector<2x8xf32>
    %2123 = math.tanh %2122 : vector<2x8xf32>
    %cst_703 = arith.constant 1.000000e+00 : f32
    %2124 = vector.broadcast %cst_703 : f32 to vector<2x8xf32>
    %2125 = arith.addf %2123, %2124 : vector<2x8xf32>
    %cst_704 = arith.constant 5.000000e-01 : f32
    %2126 = vector.broadcast %cst_704 : f32 to vector<2x8xf32>
    %2127 = arith.mulf %2126, %2125 : vector<2x8xf32>
    %2128 = vector.extract_strided_slice %2119 {offsets = [0, 8], sizes = [2, 8], strides = [1, 1]} : vector<2x32xf32> to vector<2x8xf32>
    %cst_705 = arith.constant 5.000000e-01 : f32
    %2129 = vector.broadcast %cst_705 : f32 to vector<2x8xf32>
    %2130 = arith.mulf %2129, %2128 : vector<2x8xf32>
    %2131 = math.tanh %2130 : vector<2x8xf32>
    %cst_706 = arith.constant 1.000000e+00 : f32
    %2132 = vector.broadcast %cst_706 : f32 to vector<2x8xf32>
    %2133 = arith.addf %2131, %2132 : vector<2x8xf32>
    %cst_707 = arith.constant 5.000000e-01 : f32
    %2134 = vector.broadcast %cst_707 : f32 to vector<2x8xf32>
    %2135 = arith.mulf %2134, %2133 : vector<2x8xf32>
    %2136 = vector.extract_strided_slice %2119 {offsets = [0, 16], sizes = [2, 8], strides = [1, 1]} : vector<2x32xf32> to vector<2x8xf32>
    %2137 = math.tanh %2136 : vector<2x8xf32>
    %2138 = vector.extract_strided_slice %2119 {offsets = [0, 24], sizes = [2, 8], strides = [1, 1]} : vector<2x32xf32> to vector<2x8xf32>
    %cst_708 = arith.constant 5.000000e-01 : f32
    %2139 = vector.broadcast %cst_708 : f32 to vector<2x8xf32>
    %2140 = arith.mulf %2139, %2138 : vector<2x8xf32>
    %2141 = math.tanh %2140 : vector<2x8xf32>
    %cst_709 = arith.constant 1.000000e+00 : f32
    %2142 = vector.broadcast %cst_709 : f32 to vector<2x8xf32>
    %2143 = arith.addf %2141, %2142 : vector<2x8xf32>
    %cst_710 = arith.constant 5.000000e-01 : f32
    %2144 = vector.broadcast %cst_710 : f32 to vector<2x8xf32>
    %2145 = arith.mulf %2144, %2143 : vector<2x8xf32>
    %2146 = arith.mulf %2135, %2075 : vector<2x8xf32>
    %2147 = arith.mulf %2127, %2137 : vector<2x8xf32>
    %2148 = arith.addf %2146, %2147 : vector<2x8xf32>
    %2149 = math.tanh %2148 : vector<2x8xf32>
    %2150 = arith.mulf %2145, %2149 : vector<2x8xf32>
    %c20_711 = arith.constant 20 : index
    %c0_712 = arith.constant 0 : index
    %2151 = vector.load %arg19[%c20_711, %c0_712] : memref<34x16xf32, #tpu.memory_space<vmem>>, vector<2x8xf32>
    tpu.vector_store %arg19[%c20_711, %c0_712], %2116 {strides = array<i32>} : memref<34x16xf32, #tpu.memory_space<vmem>>, vector<2x8xf32>,
    %c12_713 = arith.constant 12 : index
    %c8_714 = arith.constant 8 : index
    %2152 = vector.load %arg19[%c12_713, %c8_714] : memref<34x16xf32, #tpu.memory_space<vmem>>, vector<2x8xf32>
    tpu.vector_store %arg19[%c12_713, %c8_714], %2150 {strides = array<i32>} : memref<34x16xf32, #tpu.memory_space<vmem>>, vector<2x8xf32>,
    %2153 = tpu.concatenate %2116, %2150 in 1 : vector<2x8xf32>, vector<2x8xf32> -> vector<2x16xf32>
    %2154 = arith.truncf %2153 : vector<2x16xf32> to vector<2x16xbf16>
    %cst_715 = arith.constant dense<0.000000e+00> : vector<2x64xf32>
    %2155 = tpu.matmul %2154, %1347, %cst_715 {dimension_numbers = #tpu.dot_dimension_numbers<[1], [0], [0], [1], [0, 0, 1, 1], [], []>} : vector<2x16xbf16>, vector<16x64xbf16>, vector<2x64xf32> -> vector<2x64xf32>
    %2156 = vector.extract_strided_slice %1346 {offsets = [22, 0], sizes = [2, 32], strides = [1, 1]} : vector<34x64xf32> to vector<2x32xf32>
    %2157 = vector.extract_strided_slice %2155 {offsets = [0, 0], sizes = [2, 32], strides = [1, 1]} : vector<2x64xf32> to vector<2x32xf32>
    %2158 = arith.addf %2156, %2157 : vector<2x32xf32>
    %2159 = vector.extract_strided_slice %2158 {offsets = [0, 0], sizes = [2, 8], strides = [1, 1]} : vector<2x32xf32> to vector<2x8xf32>
    %cst_716 = arith.constant 5.000000e-01 : f32
    %2160 = vector.broadcast %cst_716 : f32 to vector<2x8xf32>
    %2161 = arith.mulf %2160, %2159 : vector<2x8xf32>
    %2162 = math.tanh %2161 : vector<2x8xf32>
    %cst_717 = arith.constant 1.000000e+00 : f32
    %2163 = vector.broadcast %cst_717 : f32 to vector<2x8xf32>
    %2164 = arith.addf %2162, %2163 : vector<2x8xf32>
    %cst_718 = arith.constant 5.000000e-01 : f32
    %2165 = vector.broadcast %cst_718 : f32 to vector<2x8xf32>
    %2166 = arith.mulf %2165, %2164 : vector<2x8xf32>
    %2167 = vector.extract_strided_slice %2158 {offsets = [0, 8], sizes = [2, 8], strides = [1, 1]} : vector<2x32xf32> to vector<2x8xf32>
    %cst_719 = arith.constant 5.000000e-01 : f32
    %2168 = vector.broadcast %cst_719 : f32 to vector<2x8xf32>
    %2169 = arith.mulf %2168, %2167 : vector<2x8xf32>
    %2170 = math.tanh %2169 : vector<2x8xf32>
    %cst_720 = arith.constant 1.000000e+00 : f32
    %2171 = vector.broadcast %cst_720 : f32 to vector<2x8xf32>
    %2172 = arith.addf %2170, %2171 : vector<2x8xf32>
    %cst_721 = arith.constant 5.000000e-01 : f32
    %2173 = vector.broadcast %cst_721 : f32 to vector<2x8xf32>
    %2174 = arith.mulf %2173, %2172 : vector<2x8xf32>
    %2175 = vector.extract_strided_slice %2158 {offsets = [0, 16], sizes = [2, 8], strides = [1, 1]} : vector<2x32xf32> to vector<2x8xf32>
    %2176 = math.tanh %2175 : vector<2x8xf32>
    %2177 = vector.extract_strided_slice %2158 {offsets = [0, 24], sizes = [2, 8], strides = [1, 1]} : vector<2x32xf32> to vector<2x8xf32>
    %cst_722 = arith.constant 5.000000e-01 : f32
    %2178 = vector.broadcast %cst_722 : f32 to vector<2x8xf32>
    %2179 = arith.mulf %2178, %2177 : vector<2x8xf32>
    %2180 = math.tanh %2179 : vector<2x8xf32>
    %cst_723 = arith.constant 1.000000e+00 : f32
    %2181 = vector.broadcast %cst_723 : f32 to vector<2x8xf32>
    %2182 = arith.addf %2180, %2181 : vector<2x8xf32>
    %cst_724 = arith.constant 5.000000e-01 : f32
    %2183 = vector.broadcast %cst_724 : f32 to vector<2x8xf32>
    %2184 = arith.mulf %2183, %2182 : vector<2x8xf32>
    %2185 = arith.mulf %2174, %2114 : vector<2x8xf32>
    %2186 = arith.mulf %2166, %2176 : vector<2x8xf32>
    %2187 = arith.addf %2185, %2186 : vector<2x8xf32>
    %2188 = math.tanh %2187 : vector<2x8xf32>
    %2189 = arith.mulf %2184, %2188 : vector<2x8xf32>
    %2190 = vector.extract_strided_slice %1346 {offsets = [10, 32], sizes = [2, 32], strides = [1, 1]} : vector<34x64xf32> to vector<2x32xf32>
    %2191 = vector.extract_strided_slice %2155 {offsets = [0, 32], sizes = [2, 32], strides = [1, 1]} : vector<2x64xf32> to vector<2x32xf32>
    %2192 = arith.addf %2190, %2191 : vector<2x32xf32>
    %2193 = vector.extract_strided_slice %2192 {offsets = [0, 0], sizes = [2, 8], strides = [1, 1]} : vector<2x32xf32> to vector<2x8xf32>
    %cst_725 = arith.constant 5.000000e-01 : f32
    %2194 = vector.broadcast %cst_725 : f32 to vector<2x8xf32>
    %2195 = arith.mulf %2194, %2193 : vector<2x8xf32>
    %2196 = math.tanh %2195 : vector<2x8xf32>
    %cst_726 = arith.constant 1.000000e+00 : f32
    %2197 = vector.broadcast %cst_726 : f32 to vector<2x8xf32>
    %2198 = arith.addf %2196, %2197 : vector<2x8xf32>
    %cst_727 = arith.constant 5.000000e-01 : f32
    %2199 = vector.broadcast %cst_727 : f32 to vector<2x8xf32>
    %2200 = arith.mulf %2199, %2198 : vector<2x8xf32>
    %2201 = vector.extract_strided_slice %2192 {offsets = [0, 8], sizes = [2, 8], strides = [1, 1]} : vector<2x32xf32> to vector<2x8xf32>
    %cst_728 = arith.constant 5.000000e-01 : f32
    %2202 = vector.broadcast %cst_728 : f32 to vector<2x8xf32>
    %2203 = arith.mulf %2202, %2201 : vector<2x8xf32>
    %2204 = math.tanh %2203 : vector<2x8xf32>
    %cst_729 = arith.constant 1.000000e+00 : f32
    %2205 = vector.broadcast %cst_729 : f32 to vector<2x8xf32>
    %2206 = arith.addf %2204, %2205 : vector<2x8xf32>
    %cst_730 = arith.constant 5.000000e-01 : f32
    %2207 = vector.broadcast %cst_730 : f32 to vector<2x8xf32>
    %2208 = arith.mulf %2207, %2206 : vector<2x8xf32>
    %2209 = vector.extract_strided_slice %2192 {offsets = [0, 16], sizes = [2, 8], strides = [1, 1]} : vector<2x32xf32> to vector<2x8xf32>
    %2210 = math.tanh %2209 : vector<2x8xf32>
    %2211 = vector.extract_strided_slice %2192 {offsets = [0, 24], sizes = [2, 8], strides = [1, 1]} : vector<2x32xf32> to vector<2x8xf32>
    %cst_731 = arith.constant 5.000000e-01 : f32
    %2212 = vector.broadcast %cst_731 : f32 to vector<2x8xf32>
    %2213 = arith.mulf %2212, %2211 : vector<2x8xf32>
    %2214 = math.tanh %2213 : vector<2x8xf32>
    %cst_732 = arith.constant 1.000000e+00 : f32
    %2215 = vector.broadcast %cst_732 : f32 to vector<2x8xf32>
    %2216 = arith.addf %2214, %2215 : vector<2x8xf32>
    %cst_733 = arith.constant 5.000000e-01 : f32
    %2217 = vector.broadcast %cst_733 : f32 to vector<2x8xf32>
    %2218 = arith.mulf %2217, %2216 : vector<2x8xf32>
    %2219 = arith.mulf %2208, %2148 : vector<2x8xf32>
    %2220 = arith.mulf %2200, %2210 : vector<2x8xf32>
    %2221 = arith.addf %2219, %2220 : vector<2x8xf32>
    %2222 = math.tanh %2221 : vector<2x8xf32>
    %2223 = arith.mulf %2218, %2222 : vector<2x8xf32>
    %c22_734 = arith.constant 22 : index
    %c0_735 = arith.constant 0 : index
    %2224 = vector.load %arg19[%c22_734, %c0_735] : memref<34x16xf32, #tpu.memory_space<vmem>>, vector<2x8xf32>
    tpu.vector_store %arg19[%c22_734, %c0_735], %2189 {strides = array<i32>} : memref<34x16xf32, #tpu.memory_space<vmem>>, vector<2x8xf32>,
    %c10_736 = arith.constant 10 : index
    %c8_737 = arith.constant 8 : index
    %2225 = vector.load %arg19[%c10_736, %c8_737] : memref<34x16xf32, #tpu.memory_space<vmem>>, vector<2x8xf32>
    tpu.vector_store %arg19[%c10_736, %c8_737], %2223 {strides = array<i32>} : memref<34x16xf32, #tpu.memory_space<vmem>>, vector<2x8xf32>,
    %2226 = tpu.concatenate %2189, %2223 in 1 : vector<2x8xf32>, vector<2x8xf32> -> vector<2x16xf32>
    %2227 = arith.truncf %2226 : vector<2x16xf32> to vector<2x16xbf16>
    %cst_738 = arith.constant dense<0.000000e+00> : vector<2x64xf32>
    %2228 = tpu.matmul %2227, %1347, %cst_738 {dimension_numbers = #tpu.dot_dimension_numbers<[1], [0], [0], [1], [0, 0, 1, 1], [], []>} : vector<2x16xbf16>, vector<16x64xbf16>, vector<2x64xf32> -> vector<2x64xf32>
    %2229 = vector.extract_strided_slice %1346 {offsets = [24, 0], sizes = [2, 32], strides = [1, 1]} : vector<34x64xf32> to vector<2x32xf32>
    %2230 = vector.extract_strided_slice %2228 {offsets = [0, 0], sizes = [2, 32], strides = [1, 1]} : vector<2x64xf32> to vector<2x32xf32>
    %2231 = arith.addf %2229, %2230 : vector<2x32xf32>
    %2232 = vector.extract_strided_slice %2231 {offsets = [0, 0], sizes = [2, 8], strides = [1, 1]} : vector<2x32xf32> to vector<2x8xf32>
    %cst_739 = arith.constant 5.000000e-01 : f32
    %2233 = vector.broadcast %cst_739 : f32 to vector<2x8xf32>
    %2234 = arith.mulf %2233, %2232 : vector<2x8xf32>
    %2235 = math.tanh %2234 : vector<2x8xf32>
    %cst_740 = arith.constant 1.000000e+00 : f32
    %2236 = vector.broadcast %cst_740 : f32 to vector<2x8xf32>
    %2237 = arith.addf %2235, %2236 : vector<2x8xf32>
    %cst_741 = arith.constant 5.000000e-01 : f32
    %2238 = vector.broadcast %cst_741 : f32 to vector<2x8xf32>
    %2239 = arith.mulf %2238, %2237 : vector<2x8xf32>
    %2240 = vector.extract_strided_slice %2231 {offsets = [0, 8], sizes = [2, 8], strides = [1, 1]} : vector<2x32xf32> to vector<2x8xf32>
    %cst_742 = arith.constant 5.000000e-01 : f32
    %2241 = vector.broadcast %cst_742 : f32 to vector<2x8xf32>
    %2242 = arith.mulf %2241, %2240 : vector<2x8xf32>
    %2243 = math.tanh %2242 : vector<2x8xf32>
    %cst_743 = arith.constant 1.000000e+00 : f32
    %2244 = vector.broadcast %cst_743 : f32 to vector<2x8xf32>
    %2245 = arith.addf %2243, %2244 : vector<2x8xf32>
    %cst_744 = arith.constant 5.000000e-01 : f32
    %2246 = vector.broadcast %cst_744 : f32 to vector<2x8xf32>
    %2247 = arith.mulf %2246, %2245 : vector<2x8xf32>
    %2248 = vector.extract_strided_slice %2231 {offsets = [0, 16], sizes = [2, 8], strides = [1, 1]} : vector<2x32xf32> to vector<2x8xf32>
    %2249 = math.tanh %2248 : vector<2x8xf32>
    %2250 = vector.extract_strided_slice %2231 {offsets = [0, 24], sizes = [2, 8], strides = [1, 1]} : vector<2x32xf32> to vector<2x8xf32>
    %cst_745 = arith.constant 5.000000e-01 : f32
    %2251 = vector.broadcast %cst_745 : f32 to vector<2x8xf32>
    %2252 = arith.mulf %2251, %2250 : vector<2x8xf32>
    %2253 = math.tanh %2252 : vector<2x8xf32>
    %cst_746 = arith.constant 1.000000e+00 : f32
    %2254 = vector.broadcast %cst_746 : f32 to vector<2x8xf32>
    %2255 = arith.addf %2253, %2254 : vector<2x8xf32>
    %cst_747 = arith.constant 5.000000e-01 : f32
    %2256 = vector.broadcast %cst_747 : f32 to vector<2x8xf32>
    %2257 = arith.mulf %2256, %2255 : vector<2x8xf32>
    %2258 = arith.mulf %2247, %2187 : vector<2x8xf32>
    %2259 = arith.mulf %2239, %2249 : vector<2x8xf32>
    %2260 = arith.addf %2258, %2259 : vector<2x8xf32>
    %2261 = math.tanh %2260 : vector<2x8xf32>
    %2262 = arith.mulf %2257, %2261 : vector<2x8xf32>
    %2263 = vector.extract_strided_slice %1346 {offsets = [8, 32], sizes = [2, 32], strides = [1, 1]} : vector<34x64xf32> to vector<2x32xf32>
    %2264 = vector.extract_strided_slice %2228 {offsets = [0, 32], sizes = [2, 32], strides = [1, 1]} : vector<2x64xf32> to vector<2x32xf32>
    %2265 = arith.addf %2263, %2264 : vector<2x32xf32>
    %2266 = vector.extract_strided_slice %2265 {offsets = [0, 0], sizes = [2, 8], strides = [1, 1]} : vector<2x32xf32> to vector<2x8xf32>
    %cst_748 = arith.constant 5.000000e-01 : f32
    %2267 = vector.broadcast %cst_748 : f32 to vector<2x8xf32>
    %2268 = arith.mulf %2267, %2266 : vector<2x8xf32>
    %2269 = math.tanh %2268 : vector<2x8xf32>
    %cst_749 = arith.constant 1.000000e+00 : f32
    %2270 = vector.broadcast %cst_749 : f32 to vector<2x8xf32>
    %2271 = arith.addf %2269, %2270 : vector<2x8xf32>
    %cst_750 = arith.constant 5.000000e-01 : f32
    %2272 = vector.broadcast %cst_750 : f32 to vector<2x8xf32>
    %2273 = arith.mulf %2272, %2271 : vector<2x8xf32>
    %2274 = vector.extract_strided_slice %2265 {offsets = [0, 8], sizes = [2, 8], strides = [1, 1]} : vector<2x32xf32> to vector<2x8xf32>
    %cst_751 = arith.constant 5.000000e-01 : f32
    %2275 = vector.broadcast %cst_751 : f32 to vector<2x8xf32>
    %2276 = arith.mulf %2275, %2274 : vector<2x8xf32>
    %2277 = math.tanh %2276 : vector<2x8xf32>
    %cst_752 = arith.constant 1.000000e+00 : f32
    %2278 = vector.broadcast %cst_752 : f32 to vector<2x8xf32>
    %2279 = arith.addf %2277, %2278 : vector<2x8xf32>
    %cst_753 = arith.constant 5.000000e-01 : f32
    %2280 = vector.broadcast %cst_753 : f32 to vector<2x8xf32>
    %2281 = arith.mulf %2280, %2279 : vector<2x8xf32>
    %2282 = vector.extract_strided_slice %2265 {offsets = [0, 16], sizes = [2, 8], strides = [1, 1]} : vector<2x32xf32> to vector<2x8xf32>
    %2283 = math.tanh %2282 : vector<2x8xf32>
    %2284 = vector.extract_strided_slice %2265 {offsets = [0, 24], sizes = [2, 8], strides = [1, 1]} : vector<2x32xf32> to vector<2x8xf32>
    %cst_754 = arith.constant 5.000000e-01 : f32
    %2285 = vector.broadcast %cst_754 : f32 to vector<2x8xf32>
    %2286 = arith.mulf %2285, %2284 : vector<2x8xf32>
    %2287 = math.tanh %2286 : vector<2x8xf32>
    %cst_755 = arith.constant 1.000000e+00 : f32
    %2288 = vector.broadcast %cst_755 : f32 to vector<2x8xf32>
    %2289 = arith.addf %2287, %2288 : vector<2x8xf32>
    %cst_756 = arith.constant 5.000000e-01 : f32
    %2290 = vector.broadcast %cst_756 : f32 to vector<2x8xf32>
    %2291 = arith.mulf %2290, %2289 : vector<2x8xf32>
    %2292 = arith.mulf %2281, %2221 : vector<2x8xf32>
    %2293 = arith.mulf %2273, %2283 : vector<2x8xf32>
    %2294 = arith.addf %2292, %2293 : vector<2x8xf32>
    %2295 = math.tanh %2294 : vector<2x8xf32>
    %2296 = arith.mulf %2291, %2295 : vector<2x8xf32>
    %c24_757 = arith.constant 24 : index
    %c0_758 = arith.constant 0 : index
    %2297 = vector.load %arg19[%c24_757, %c0_758] : memref<34x16xf32, #tpu.memory_space<vmem>>, vector<2x8xf32>
    tpu.vector_store %arg19[%c24_757, %c0_758], %2262 {strides = array<i32>} : memref<34x16xf32, #tpu.memory_space<vmem>>, vector<2x8xf32>,
    %c8_759 = arith.constant 8 : index
    %c8_760 = arith.constant 8 : index
    %2298 = vector.load %arg19[%c8_759, %c8_760] : memref<34x16xf32, #tpu.memory_space<vmem>>, vector<2x8xf32>
    tpu.vector_store %arg19[%c8_759, %c8_760], %2296 {strides = array<i32>} : memref<34x16xf32, #tpu.memory_space<vmem>>, vector<2x8xf32>,
    %2299 = tpu.concatenate %2262, %2296 in 1 : vector<2x8xf32>, vector<2x8xf32> -> vector<2x16xf32>
    %2300 = arith.truncf %2299 : vector<2x16xf32> to vector<2x16xbf16>
    %cst_761 = arith.constant dense<0.000000e+00> : vector<2x64xf32>
    %2301 = tpu.matmul %2300, %1347, %cst_761 {dimension_numbers = #tpu.dot_dimension_numbers<[1], [0], [0], [1], [0, 0, 1, 1], [], []>} : vector<2x16xbf16>, vector<16x64xbf16>, vector<2x64xf32> -> vector<2x64xf32>
    %2302 = vector.extract_strided_slice %1346 {offsets = [26, 0], sizes = [2, 32], strides = [1, 1]} : vector<34x64xf32> to vector<2x32xf32>
    %2303 = vector.extract_strided_slice %2301 {offsets = [0, 0], sizes = [2, 32], strides = [1, 1]} : vector<2x64xf32> to vector<2x32xf32>
    %2304 = arith.addf %2302, %2303 : vector<2x32xf32>
    %2305 = vector.extract_strided_slice %2304 {offsets = [0, 0], sizes = [2, 8], strides = [1, 1]} : vector<2x32xf32> to vector<2x8xf32>
    %cst_762 = arith.constant 5.000000e-01 : f32
    %2306 = vector.broadcast %cst_762 : f32 to vector<2x8xf32>
    %2307 = arith.mulf %2306, %2305 : vector<2x8xf32>
    %2308 = math.tanh %2307 : vector<2x8xf32>
    %cst_763 = arith.constant 1.000000e+00 : f32
    %2309 = vector.broadcast %cst_763 : f32 to vector<2x8xf32>
    %2310 = arith.addf %2308, %2309 : vector<2x8xf32>
    %cst_764 = arith.constant 5.000000e-01 : f32
    %2311 = vector.broadcast %cst_764 : f32 to vector<2x8xf32>
    %2312 = arith.mulf %2311, %2310 : vector<2x8xf32>
    %2313 = vector.extract_strided_slice %2304 {offsets = [0, 8], sizes = [2, 8], strides = [1, 1]} : vector<2x32xf32> to vector<2x8xf32>
    %cst_765 = arith.constant 5.000000e-01 : f32
    %2314 = vector.broadcast %cst_765 : f32 to vector<2x8xf32>
    %2315 = arith.mulf %2314, %2313 : vector<2x8xf32>
    %2316 = math.tanh %2315 : vector<2x8xf32>
    %cst_766 = arith.constant 1.000000e+00 : f32
    %2317 = vector.broadcast %cst_766 : f32 to vector<2x8xf32>
    %2318 = arith.addf %2316, %2317 : vector<2x8xf32>
    %cst_767 = arith.constant 5.000000e-01 : f32
    %2319 = vector.broadcast %cst_767 : f32 to vector<2x8xf32>
    %2320 = arith.mulf %2319, %2318 : vector<2x8xf32>
    %2321 = vector.extract_strided_slice %2304 {offsets = [0, 16], sizes = [2, 8], strides = [1, 1]} : vector<2x32xf32> to vector<2x8xf32>
    %2322 = math.tanh %2321 : vector<2x8xf32>
    %2323 = vector.extract_strided_slice %2304 {offsets = [0, 24], sizes = [2, 8], strides = [1, 1]} : vector<2x32xf32> to vector<2x8xf32>
    %cst_768 = arith.constant 5.000000e-01 : f32
    %2324 = vector.broadcast %cst_768 : f32 to vector<2x8xf32>
    %2325 = arith.mulf %2324, %2323 : vector<2x8xf32>
    %2326 = math.tanh %2325 : vector<2x8xf32>
    %cst_769 = arith.constant 1.000000e+00 : f32
    %2327 = vector.broadcast %cst_769 : f32 to vector<2x8xf32>
    %2328 = arith.addf %2326, %2327 : vector<2x8xf32>
    %cst_770 = arith.constant 5.000000e-01 : f32
    %2329 = vector.broadcast %cst_770 : f32 to vector<2x8xf32>
    %2330 = arith.mulf %2329, %2328 : vector<2x8xf32>
    %2331 = arith.mulf %2320, %2260 : vector<2x8xf32>
    %2332 = arith.mulf %2312, %2322 : vector<2x8xf32>
    %2333 = arith.addf %2331, %2332 : vector<2x8xf32>
    %2334 = math.tanh %2333 : vector<2x8xf32>
    %2335 = arith.mulf %2330, %2334 : vector<2x8xf32>
    %2336 = vector.extract_strided_slice %1346 {offsets = [6, 32], sizes = [2, 32], strides = [1, 1]} : vector<34x64xf32> to vector<2x32xf32>
    %2337 = vector.extract_strided_slice %2301 {offsets = [0, 32], sizes = [2, 32], strides = [1, 1]} : vector<2x64xf32> to vector<2x32xf32>
    %2338 = arith.addf %2336, %2337 : vector<2x32xf32>
    %2339 = vector.extract_strided_slice %2338 {offsets = [0, 0], sizes = [2, 8], strides = [1, 1]} : vector<2x32xf32> to vector<2x8xf32>
    %cst_771 = arith.constant 5.000000e-01 : f32
    %2340 = vector.broadcast %cst_771 : f32 to vector<2x8xf32>
    %2341 = arith.mulf %2340, %2339 : vector<2x8xf32>
    %2342 = math.tanh %2341 : vector<2x8xf32>
    %cst_772 = arith.constant 1.000000e+00 : f32
    %2343 = vector.broadcast %cst_772 : f32 to vector<2x8xf32>
    %2344 = arith.addf %2342, %2343 : vector<2x8xf32>
    %cst_773 = arith.constant 5.000000e-01 : f32
    %2345 = vector.broadcast %cst_773 : f32 to vector<2x8xf32>
    %2346 = arith.mulf %2345, %2344 : vector<2x8xf32>
    %2347 = vector.extract_strided_slice %2338 {offsets = [0, 8], sizes = [2, 8], strides = [1, 1]} : vector<2x32xf32> to vector<2x8xf32>
    %cst_774 = arith.constant 5.000000e-01 : f32
    %2348 = vector.broadcast %cst_774 : f32 to vector<2x8xf32>
    %2349 = arith.mulf %2348, %2347 : vector<2x8xf32>
    %2350 = math.tanh %2349 : vector<2x8xf32>
    %cst_775 = arith.constant 1.000000e+00 : f32
    %2351 = vector.broadcast %cst_775 : f32 to vector<2x8xf32>
    %2352 = arith.addf %2350, %2351 : vector<2x8xf32>
    %cst_776 = arith.constant 5.000000e-01 : f32
    %2353 = vector.broadcast %cst_776 : f32 to vector<2x8xf32>
    %2354 = arith.mulf %2353, %2352 : vector<2x8xf32>
    %2355 = vector.extract_strided_slice %2338 {offsets = [0, 16], sizes = [2, 8], strides = [1, 1]} : vector<2x32xf32> to vector<2x8xf32>
    %2356 = math.tanh %2355 : vector<2x8xf32>
    %2357 = vector.extract_strided_slice %2338 {offsets = [0, 24], sizes = [2, 8], strides = [1, 1]} : vector<2x32xf32> to vector<2x8xf32>
    %cst_777 = arith.constant 5.000000e-01 : f32
    %2358 = vector.broadcast %cst_777 : f32 to vector<2x8xf32>
    %2359 = arith.mulf %2358, %2357 : vector<2x8xf32>
    %2360 = math.tanh %2359 : vector<2x8xf32>
    %cst_778 = arith.constant 1.000000e+00 : f32
    %2361 = vector.broadcast %cst_778 : f32 to vector<2x8xf32>
    %2362 = arith.addf %2360, %2361 : vector<2x8xf32>
    %cst_779 = arith.constant 5.000000e-01 : f32
    %2363 = vector.broadcast %cst_779 : f32 to vector<2x8xf32>
    %2364 = arith.mulf %2363, %2362 : vector<2x8xf32>
    %2365 = arith.mulf %2354, %2294 : vector<2x8xf32>
    %2366 = arith.mulf %2346, %2356 : vector<2x8xf32>
    %2367 = arith.addf %2365, %2366 : vector<2x8xf32>
    %2368 = math.tanh %2367 : vector<2x8xf32>
    %2369 = arith.mulf %2364, %2368 : vector<2x8xf32>
    %c26_780 = arith.constant 26 : index
    %c0_781 = arith.constant 0 : index
    %2370 = vector.load %arg19[%c26_780, %c0_781] : memref<34x16xf32, #tpu.memory_space<vmem>>, vector<2x8xf32>
    tpu.vector_store %arg19[%c26_780, %c0_781], %2335 {strides = array<i32>} : memref<34x16xf32, #tpu.memory_space<vmem>>, vector<2x8xf32>,
    %c6_782 = arith.constant 6 : index
    %c8_783 = arith.constant 8 : index
    %2371 = vector.load %arg19[%c6_782, %c8_783] : memref<34x16xf32, #tpu.memory_space<vmem>>, vector<2x8xf32>
    tpu.vector_store %arg19[%c6_782, %c8_783], %2369 {strides = array<i32>} : memref<34x16xf32, #tpu.memory_space<vmem>>, vector<2x8xf32>,
    %2372 = tpu.concatenate %2335, %2369 in 1 : vector<2x8xf32>, vector<2x8xf32> -> vector<2x16xf32>
    %2373 = arith.truncf %2372 : vector<2x16xf32> to vector<2x16xbf16>
    %cst_784 = arith.constant dense<0.000000e+00> : vector<2x64xf32>
    %2374 = tpu.matmul %2373, %1347, %cst_784 {dimension_numbers = #tpu.dot_dimension_numbers<[1], [0], [0], [1], [0, 0, 1, 1], [], []>} : vector<2x16xbf16>, vector<16x64xbf16>, vector<2x64xf32> -> vector<2x64xf32>
    %2375 = vector.extract_strided_slice %1346 {offsets = [28, 0], sizes = [2, 32], strides = [1, 1]} : vector<34x64xf32> to vector<2x32xf32>
    %2376 = vector.extract_strided_slice %2374 {offsets = [0, 0], sizes = [2, 32], strides = [1, 1]} : vector<2x64xf32> to vector<2x32xf32>
    %2377 = arith.addf %2375, %2376 : vector<2x32xf32>
    %2378 = vector.extract_strided_slice %2377 {offsets = [0, 0], sizes = [2, 8], strides = [1, 1]} : vector<2x32xf32> to vector<2x8xf32>
    %cst_785 = arith.constant 5.000000e-01 : f32
    %2379 = vector.broadcast %cst_785 : f32 to vector<2x8xf32>
    %2380 = arith.mulf %2379, %2378 : vector<2x8xf32>
    %2381 = math.tanh %2380 : vector<2x8xf32>
    %cst_786 = arith.constant 1.000000e+00 : f32
    %2382 = vector.broadcast %cst_786 : f32 to vector<2x8xf32>
    %2383 = arith.addf %2381, %2382 : vector<2x8xf32>
    %cst_787 = arith.constant 5.000000e-01 : f32
    %2384 = vector.broadcast %cst_787 : f32 to vector<2x8xf32>
    %2385 = arith.mulf %2384, %2383 : vector<2x8xf32>
    %2386 = vector.extract_strided_slice %2377 {offsets = [0, 8], sizes = [2, 8], strides = [1, 1]} : vector<2x32xf32> to vector<2x8xf32>
    %cst_788 = arith.constant 5.000000e-01 : f32
    %2387 = vector.broadcast %cst_788 : f32 to vector<2x8xf32>
    %2388 = arith.mulf %2387, %2386 : vector<2x8xf32>
    %2389 = math.tanh %2388 : vector<2x8xf32>
    %cst_789 = arith.constant 1.000000e+00 : f32
    %2390 = vector.broadcast %cst_789 : f32 to vector<2x8xf32>
    %2391 = arith.addf %2389, %2390 : vector<2x8xf32>
    %cst_790 = arith.constant 5.000000e-01 : f32
    %2392 = vector.broadcast %cst_790 : f32 to vector<2x8xf32>
    %2393 = arith.mulf %2392, %2391 : vector<2x8xf32>
    %2394 = vector.extract_strided_slice %2377 {offsets = [0, 16], sizes = [2, 8], strides = [1, 1]} : vector<2x32xf32> to vector<2x8xf32>
    %2395 = math.tanh %2394 : vector<2x8xf32>
    %2396 = vector.extract_strided_slice %2377 {offsets = [0, 24], sizes = [2, 8], strides = [1, 1]} : vector<2x32xf32> to vector<2x8xf32>
    %cst_791 = arith.constant 5.000000e-01 : f32
    %2397 = vector.broadcast %cst_791 : f32 to vector<2x8xf32>
    %2398 = arith.mulf %2397, %2396 : vector<2x8xf32>
    %2399 = math.tanh %2398 : vector<2x8xf32>
    %cst_792 = arith.constant 1.000000e+00 : f32
    %2400 = vector.broadcast %cst_792 : f32 to vector<2x8xf32>
    %2401 = arith.addf %2399, %2400 : vector<2x8xf32>
    %cst_793 = arith.constant 5.000000e-01 : f32
    %2402 = vector.broadcast %cst_793 : f32 to vector<2x8xf32>
    %2403 = arith.mulf %2402, %2401 : vector<2x8xf32>
    %2404 = arith.mulf %2393, %2333 : vector<2x8xf32>
    %2405 = arith.mulf %2385, %2395 : vector<2x8xf32>
    %2406 = arith.addf %2404, %2405 : vector<2x8xf32>
    %2407 = math.tanh %2406 : vector<2x8xf32>
    %2408 = arith.mulf %2403, %2407 : vector<2x8xf32>
    %2409 = vector.extract_strided_slice %1346 {offsets = [4, 32], sizes = [2, 32], strides = [1, 1]} : vector<34x64xf32> to vector<2x32xf32>
    %2410 = vector.extract_strided_slice %2374 {offsets = [0, 32], sizes = [2, 32], strides = [1, 1]} : vector<2x64xf32> to vector<2x32xf32>
    %2411 = arith.addf %2409, %2410 : vector<2x32xf32>
    %2412 = vector.extract_strided_slice %2411 {offsets = [0, 0], sizes = [2, 8], strides = [1, 1]} : vector<2x32xf32> to vector<2x8xf32>
    %cst_794 = arith.constant 5.000000e-01 : f32
    %2413 = vector.broadcast %cst_794 : f32 to vector<2x8xf32>
    %2414 = arith.mulf %2413, %2412 : vector<2x8xf32>
    %2415 = math.tanh %2414 : vector<2x8xf32>
    %cst_795 = arith.constant 1.000000e+00 : f32
    %2416 = vector.broadcast %cst_795 : f32 to vector<2x8xf32>
    %2417 = arith.addf %2415, %2416 : vector<2x8xf32>
    %cst_796 = arith.constant 5.000000e-01 : f32
    %2418 = vector.broadcast %cst_796 : f32 to vector<2x8xf32>
    %2419 = arith.mulf %2418, %2417 : vector<2x8xf32>
    %2420 = vector.extract_strided_slice %2411 {offsets = [0, 8], sizes = [2, 8], strides = [1, 1]} : vector<2x32xf32> to vector<2x8xf32>
    %cst_797 = arith.constant 5.000000e-01 : f32
    %2421 = vector.broadcast %cst_797 : f32 to vector<2x8xf32>
    %2422 = arith.mulf %2421, %2420 : vector<2x8xf32>
    %2423 = math.tanh %2422 : vector<2x8xf32>
    %cst_798 = arith.constant 1.000000e+00 : f32
    %2424 = vector.broadcast %cst_798 : f32 to vector<2x8xf32>
    %2425 = arith.addf %2423, %2424 : vector<2x8xf32>
    %cst_799 = arith.constant 5.000000e-01 : f32
    %2426 = vector.broadcast %cst_799 : f32 to vector<2x8xf32>
    %2427 = arith.mulf %2426, %2425 : vector<2x8xf32>
    %2428 = vector.extract_strided_slice %2411 {offsets = [0, 16], sizes = [2, 8], strides = [1, 1]} : vector<2x32xf32> to vector<2x8xf32>
    %2429 = math.tanh %2428 : vector<2x8xf32>
    %2430 = vector.extract_strided_slice %2411 {offsets = [0, 24], sizes = [2, 8], strides = [1, 1]} : vector<2x32xf32> to vector<2x8xf32>
    %cst_800 = arith.constant 5.000000e-01 : f32
    %2431 = vector.broadcast %cst_800 : f32 to vector<2x8xf32>
    %2432 = arith.mulf %2431, %2430 : vector<2x8xf32>
    %2433 = math.tanh %2432 : vector<2x8xf32>
    %cst_801 = arith.constant 1.000000e+00 : f32
    %2434 = vector.broadcast %cst_801 : f32 to vector<2x8xf32>
    %2435 = arith.addf %2433, %2434 : vector<2x8xf32>
    %cst_802 = arith.constant 5.000000e-01 : f32
    %2436 = vector.broadcast %cst_802 : f32 to vector<2x8xf32>
    %2437 = arith.mulf %2436, %2435 : vector<2x8xf32>
    %2438 = arith.mulf %2427, %2367 : vector<2x8xf32>
    %2439 = arith.mulf %2419, %2429 : vector<2x8xf32>
    %2440 = arith.addf %2438, %2439 : vector<2x8xf32>
    %2441 = math.tanh %2440 : vector<2x8xf32>
    %2442 = arith.mulf %2437, %2441 : vector<2x8xf32>
    %c28_803 = arith.constant 28 : index
    %c0_804 = arith.constant 0 : index
    %2443 = vector.load %arg19[%c28_803, %c0_804] : memref<34x16xf32, #tpu.memory_space<vmem>>, vector<2x8xf32>
    tpu.vector_store %arg19[%c28_803, %c0_804], %2408 {strides = array<i32>} : memref<34x16xf32, #tpu.memory_space<vmem>>, vector<2x8xf32>,
    %c4_805 = arith.constant 4 : index
    %c8_806 = arith.constant 8 : index
    %2444 = vector.load %arg19[%c4_805, %c8_806] : memref<34x16xf32, #tpu.memory_space<vmem>>, vector<2x8xf32>
    tpu.vector_store %arg19[%c4_805, %c8_806], %2442 {strides = array<i32>} : memref<34x16xf32, #tpu.memory_space<vmem>>, vector<2x8xf32>,
    %2445 = tpu.concatenate %2408, %2442 in 1 : vector<2x8xf32>, vector<2x8xf32> -> vector<2x16xf32>
    %2446 = arith.truncf %2445 : vector<2x16xf32> to vector<2x16xbf16>
    %cst_807 = arith.constant dense<0.000000e+00> : vector<2x64xf32>
    %2447 = tpu.matmul %2446, %1347, %cst_807 {dimension_numbers = #tpu.dot_dimension_numbers<[1], [0], [0], [1], [0, 0, 1, 1], [], []>} : vector<2x16xbf16>, vector<16x64xbf16>, vector<2x64xf32> -> vector<2x64xf32>
    %2448 = vector.extract_strided_slice %1346 {offsets = [30, 0], sizes = [2, 32], strides = [1, 1]} : vector<34x64xf32> to vector<2x32xf32>
    %2449 = vector.extract_strided_slice %2447 {offsets = [0, 0], sizes = [2, 32], strides = [1, 1]} : vector<2x64xf32> to vector<2x32xf32>
    %2450 = arith.addf %2448, %2449 : vector<2x32xf32>
    %2451 = vector.extract_strided_slice %2450 {offsets = [0, 0], sizes = [2, 8], strides = [1, 1]} : vector<2x32xf32> to vector<2x8xf32>
    %cst_808 = arith.constant 5.000000e-01 : f32
    %2452 = vector.broadcast %cst_808 : f32 to vector<2x8xf32>
    %2453 = arith.mulf %2452, %2451 : vector<2x8xf32>
    %2454 = math.tanh %2453 : vector<2x8xf32>
    %cst_809 = arith.constant 1.000000e+00 : f32
    %2455 = vector.broadcast %cst_809 : f32 to vector<2x8xf32>
    %2456 = arith.addf %2454, %2455 : vector<2x8xf32>
    %cst_810 = arith.constant 5.000000e-01 : f32
    %2457 = vector.broadcast %cst_810 : f32 to vector<2x8xf32>
    %2458 = arith.mulf %2457, %2456 : vector<2x8xf32>
    %2459 = vector.extract_strided_slice %2450 {offsets = [0, 8], sizes = [2, 8], strides = [1, 1]} : vector<2x32xf32> to vector<2x8xf32>
    %cst_811 = arith.constant 5.000000e-01 : f32
    %2460 = vector.broadcast %cst_811 : f32 to vector<2x8xf32>
    %2461 = arith.mulf %2460, %2459 : vector<2x8xf32>
    %2462 = math.tanh %2461 : vector<2x8xf32>
    %cst_812 = arith.constant 1.000000e+00 : f32
    %2463 = vector.broadcast %cst_812 : f32 to vector<2x8xf32>
    %2464 = arith.addf %2462, %2463 : vector<2x8xf32>
    %cst_813 = arith.constant 5.000000e-01 : f32
    %2465 = vector.broadcast %cst_813 : f32 to vector<2x8xf32>
    %2466 = arith.mulf %2465, %2464 : vector<2x8xf32>
    %2467 = vector.extract_strided_slice %2450 {offsets = [0, 16], sizes = [2, 8], strides = [1, 1]} : vector<2x32xf32> to vector<2x8xf32>
    %2468 = math.tanh %2467 : vector<2x8xf32>
    %2469 = vector.extract_strided_slice %2450 {offsets = [0, 24], sizes = [2, 8], strides = [1, 1]} : vector<2x32xf32> to vector<2x8xf32>
    %cst_814 = arith.constant 5.000000e-01 : f32
    %2470 = vector.broadcast %cst_814 : f32 to vector<2x8xf32>
    %2471 = arith.mulf %2470, %2469 : vector<2x8xf32>
    %2472 = math.tanh %2471 : vector<2x8xf32>
    %cst_815 = arith.constant 1.000000e+00 : f32
    %2473 = vector.broadcast %cst_815 : f32 to vector<2x8xf32>
    %2474 = arith.addf %2472, %2473 : vector<2x8xf32>
    %cst_816 = arith.constant 5.000000e-01 : f32
    %2475 = vector.broadcast %cst_816 : f32 to vector<2x8xf32>
    %2476 = arith.mulf %2475, %2474 : vector<2x8xf32>
    %2477 = arith.mulf %2466, %2406 : vector<2x8xf32>
    %2478 = arith.mulf %2458, %2468 : vector<2x8xf32>
    %2479 = arith.addf %2477, %2478 : vector<2x8xf32>
    %2480 = math.tanh %2479 : vector<2x8xf32>
    %2481 = arith.mulf %2476, %2480 : vector<2x8xf32>
    %2482 = vector.extract_strided_slice %1346 {offsets = [2, 32], sizes = [2, 32], strides = [1, 1]} : vector<34x64xf32> to vector<2x32xf32>
    %2483 = vector.extract_strided_slice %2447 {offsets = [0, 32], sizes = [2, 32], strides = [1, 1]} : vector<2x64xf32> to vector<2x32xf32>
    %2484 = arith.addf %2482, %2483 : vector<2x32xf32>
    %2485 = vector.extract_strided_slice %2484 {offsets = [0, 0], sizes = [2, 8], strides = [1, 1]} : vector<2x32xf32> to vector<2x8xf32>
    %cst_817 = arith.constant 5.000000e-01 : f32
    %2486 = vector.broadcast %cst_817 : f32 to vector<2x8xf32>
    %2487 = arith.mulf %2486, %2485 : vector<2x8xf32>
    %2488 = math.tanh %2487 : vector<2x8xf32>
    %cst_818 = arith.constant 1.000000e+00 : f32
    %2489 = vector.broadcast %cst_818 : f32 to vector<2x8xf32>
    %2490 = arith.addf %2488, %2489 : vector<2x8xf32>
    %cst_819 = arith.constant 5.000000e-01 : f32
    %2491 = vector.broadcast %cst_819 : f32 to vector<2x8xf32>
    %2492 = arith.mulf %2491, %2490 : vector<2x8xf32>
    %2493 = vector.extract_strided_slice %2484 {offsets = [0, 8], sizes = [2, 8], strides = [1, 1]} : vector<2x32xf32> to vector<2x8xf32>
    %cst_820 = arith.constant 5.000000e-01 : f32
    %2494 = vector.broadcast %cst_820 : f32 to vector<2x8xf32>
    %2495 = arith.mulf %2494, %2493 : vector<2x8xf32>
    %2496 = math.tanh %2495 : vector<2x8xf32>
    %cst_821 = arith.constant 1.000000e+00 : f32
    %2497 = vector.broadcast %cst_821 : f32 to vector<2x8xf32>
    %2498 = arith.addf %2496, %2497 : vector<2x8xf32>
    %cst_822 = arith.constant 5.000000e-01 : f32
    %2499 = vector.broadcast %cst_822 : f32 to vector<2x8xf32>
    %2500 = arith.mulf %2499, %2498 : vector<2x8xf32>
    %2501 = vector.extract_strided_slice %2484 {offsets = [0, 16], sizes = [2, 8], strides = [1, 1]} : vector<2x32xf32> to vector<2x8xf32>
    %2502 = math.tanh %2501 : vector<2x8xf32>
    %2503 = vector.extract_strided_slice %2484 {offsets = [0, 24], sizes = [2, 8], strides = [1, 1]} : vector<2x32xf32> to vector<2x8xf32>
    %cst_823 = arith.constant 5.000000e-01 : f32
    %2504 = vector.broadcast %cst_823 : f32 to vector<2x8xf32>
    %2505 = arith.mulf %2504, %2503 : vector<2x8xf32>
    %2506 = math.tanh %2505 : vector<2x8xf32>
    %cst_824 = arith.constant 1.000000e+00 : f32
    %2507 = vector.broadcast %cst_824 : f32 to vector<2x8xf32>
    %2508 = arith.addf %2506, %2507 : vector<2x8xf32>
    %cst_825 = arith.constant 5.000000e-01 : f32
    %2509 = vector.broadcast %cst_825 : f32 to vector<2x8xf32>
    %2510 = arith.mulf %2509, %2508 : vector<2x8xf32>
    %2511 = arith.mulf %2500, %2440 : vector<2x8xf32>
    %2512 = arith.mulf %2492, %2502 : vector<2x8xf32>
    %2513 = arith.addf %2511, %2512 : vector<2x8xf32>
    %2514 = math.tanh %2513 : vector<2x8xf32>
    %2515 = arith.mulf %2510, %2514 : vector<2x8xf32>
    %c30_826 = arith.constant 30 : index
    %c0_827 = arith.constant 0 : index
    %2516 = vector.load %arg19[%c30_826, %c0_827] : memref<34x16xf32, #tpu.memory_space<vmem>>, vector<2x8xf32>
    tpu.vector_store %arg19[%c30_826, %c0_827], %2481 {strides = array<i32>} : memref<34x16xf32, #tpu.memory_space<vmem>>, vector<2x8xf32>,
    %c2_828 = arith.constant 2 : index
    %c8_829 = arith.constant 8 : index
    %2517 = vector.load %arg19[%c2_828, %c8_829] : memref<34x16xf32, #tpu.memory_space<vmem>>, vector<2x8xf32>
    tpu.vector_store %arg19[%c2_828, %c8_829], %2515 {strides = array<i32>} : memref<34x16xf32, #tpu.memory_space<vmem>>, vector<2x8xf32>,
    %2518 = tpu.concatenate %2481, %2515 in 1 : vector<2x8xf32>, vector<2x8xf32> -> vector<2x16xf32>
    %2519 = arith.truncf %2518 : vector<2x16xf32> to vector<2x16xbf16>
    %cst_830 = arith.constant dense<0.000000e+00> : vector<2x64xf32>
    %2520 = tpu.matmul %2519, %1347, %cst_830 {dimension_numbers = #tpu.dot_dimension_numbers<[1], [0], [0], [1], [0, 0, 1, 1], [], []>} : vector<2x16xbf16>, vector<16x64xbf16>, vector<2x64xf32> -> vector<2x64xf32>
    %2521 = vector.extract_strided_slice %1346 {offsets = [32, 0], sizes = [2, 32], strides = [1, 1]} : vector<34x64xf32> to vector<2x32xf32>
    %2522 = vector.extract_strided_slice %2520 {offsets = [0, 0], sizes = [2, 32], strides = [1, 1]} : vector<2x64xf32> to vector<2x32xf32>
    %2523 = arith.addf %2521, %2522 : vector<2x32xf32>
    %2524 = vector.extract_strided_slice %2523 {offsets = [0, 0], sizes = [2, 8], strides = [1, 1]} : vector<2x32xf32> to vector<2x8xf32>
    %cst_831 = arith.constant 5.000000e-01 : f32
    %2525 = vector.broadcast %cst_831 : f32 to vector<2x8xf32>
    %2526 = arith.mulf %2525, %2524 : vector<2x8xf32>
    %2527 = math.tanh %2526 : vector<2x8xf32>
    %cst_832 = arith.constant 1.000000e+00 : f32
    %2528 = vector.broadcast %cst_832 : f32 to vector<2x8xf32>
    %2529 = arith.addf %2527, %2528 : vector<2x8xf32>
    %cst_833 = arith.constant 5.000000e-01 : f32
    %2530 = vector.broadcast %cst_833 : f32 to vector<2x8xf32>
    %2531 = arith.mulf %2530, %2529 : vector<2x8xf32>
    %2532 = vector.extract_strided_slice %2523 {offsets = [0, 8], sizes = [2, 8], strides = [1, 1]} : vector<2x32xf32> to vector<2x8xf32>
    %cst_834 = arith.constant 5.000000e-01 : f32
    %2533 = vector.broadcast %cst_834 : f32 to vector<2x8xf32>
    %2534 = arith.mulf %2533, %2532 : vector<2x8xf32>
    %2535 = math.tanh %2534 : vector<2x8xf32>
    %cst_835 = arith.constant 1.000000e+00 : f32
    %2536 = vector.broadcast %cst_835 : f32 to vector<2x8xf32>
    %2537 = arith.addf %2535, %2536 : vector<2x8xf32>
    %cst_836 = arith.constant 5.000000e-01 : f32
    %2538 = vector.broadcast %cst_836 : f32 to vector<2x8xf32>
    %2539 = arith.mulf %2538, %2537 : vector<2x8xf32>
    %2540 = vector.extract_strided_slice %2523 {offsets = [0, 16], sizes = [2, 8], strides = [1, 1]} : vector<2x32xf32> to vector<2x8xf32>
    %2541 = math.tanh %2540 : vector<2x8xf32>
    %2542 = vector.extract_strided_slice %2523 {offsets = [0, 24], sizes = [2, 8], strides = [1, 1]} : vector<2x32xf32> to vector<2x8xf32>
    %cst_837 = arith.constant 5.000000e-01 : f32
    %2543 = vector.broadcast %cst_837 : f32 to vector<2x8xf32>
    %2544 = arith.mulf %2543, %2542 : vector<2x8xf32>
    %2545 = math.tanh %2544 : vector<2x8xf32>
    %cst_838 = arith.constant 1.000000e+00 : f32
    %2546 = vector.broadcast %cst_838 : f32 to vector<2x8xf32>
    %2547 = arith.addf %2545, %2546 : vector<2x8xf32>
    %cst_839 = arith.constant 5.000000e-01 : f32
    %2548 = vector.broadcast %cst_839 : f32 to vector<2x8xf32>
    %2549 = arith.mulf %2548, %2547 : vector<2x8xf32>
    %2550 = arith.mulf %2539, %2479 : vector<2x8xf32>
    %2551 = arith.mulf %2531, %2541 : vector<2x8xf32>
    %2552 = arith.addf %2550, %2551 : vector<2x8xf32>
    %2553 = math.tanh %2552 : vector<2x8xf32>
    %2554 = arith.mulf %2549, %2553 : vector<2x8xf32>
    %2555 = vector.extract_strided_slice %1346 {offsets = [0, 32], sizes = [2, 32], strides = [1, 1]} : vector<34x64xf32> to vector<2x32xf32>
    %2556 = vector.extract_strided_slice %2520 {offsets = [0, 32], sizes = [2, 32], strides = [1, 1]} : vector<2x64xf32> to vector<2x32xf32>
    %2557 = arith.addf %2555, %2556 : vector<2x32xf32>
    %2558 = vector.extract_strided_slice %2557 {offsets = [0, 0], sizes = [2, 8], strides = [1, 1]} : vector<2x32xf32> to vector<2x8xf32>
    %cst_840 = arith.constant 5.000000e-01 : f32
    %2559 = vector.broadcast %cst_840 : f32 to vector<2x8xf32>
    %2560 = arith.mulf %2559, %2558 : vector<2x8xf32>
    %2561 = math.tanh %2560 : vector<2x8xf32>
    %cst_841 = arith.constant 1.000000e+00 : f32
    %2562 = vector.broadcast %cst_841 : f32 to vector<2x8xf32>
    %2563 = arith.addf %2561, %2562 : vector<2x8xf32>
    %cst_842 = arith.constant 5.000000e-01 : f32
    %2564 = vector.broadcast %cst_842 : f32 to vector<2x8xf32>
    %2565 = arith.mulf %2564, %2563 : vector<2x8xf32>
    %2566 = vector.extract_strided_slice %2557 {offsets = [0, 8], sizes = [2, 8], strides = [1, 1]} : vector<2x32xf32> to vector<2x8xf32>
    %cst_843 = arith.constant 5.000000e-01 : f32
    %2567 = vector.broadcast %cst_843 : f32 to vector<2x8xf32>
    %2568 = arith.mulf %2567, %2566 : vector<2x8xf32>
    %2569 = math.tanh %2568 : vector<2x8xf32>
    %cst_844 = arith.constant 1.000000e+00 : f32
    %2570 = vector.broadcast %cst_844 : f32 to vector<2x8xf32>
    %2571 = arith.addf %2569, %2570 : vector<2x8xf32>
    %cst_845 = arith.constant 5.000000e-01 : f32
    %2572 = vector.broadcast %cst_845 : f32 to vector<2x8xf32>
    %2573 = arith.mulf %2572, %2571 : vector<2x8xf32>
    %2574 = vector.extract_strided_slice %2557 {offsets = [0, 16], sizes = [2, 8], strides = [1, 1]} : vector<2x32xf32> to vector<2x8xf32>
    %2575 = math.tanh %2574 : vector<2x8xf32>
    %2576 = vector.extract_strided_slice %2557 {offsets = [0, 24], sizes = [2, 8], strides = [1, 1]} : vector<2x32xf32> to vector<2x8xf32>
    %cst_846 = arith.constant 5.000000e-01 : f32
    %2577 = vector.broadcast %cst_846 : f32 to vector<2x8xf32>
    %2578 = arith.mulf %2577, %2576 : vector<2x8xf32>
    %2579 = math.tanh %2578 : vector<2x8xf32>
    %cst_847 = arith.constant 1.000000e+00 : f32
    %2580 = vector.broadcast %cst_847 : f32 to vector<2x8xf32>
    %2581 = arith.addf %2579, %2580 : vector<2x8xf32>
    %cst_848 = arith.constant 5.000000e-01 : f32
    %2582 = vector.broadcast %cst_848 : f32 to vector<2x8xf32>
    %2583 = arith.mulf %2582, %2581 : vector<2x8xf32>
    %2584 = arith.mulf %2573, %2513 : vector<2x8xf32>
    %2585 = arith.mulf %2565, %2575 : vector<2x8xf32>
    %2586 = arith.addf %2584, %2585 : vector<2x8xf32>
    %2587 = math.tanh %2586 : vector<2x8xf32>
    %2588 = arith.mulf %2583, %2587 : vector<2x8xf32>
    %c32_849 = arith.constant 32 : index
    %c0_850 = arith.constant 0 : index
    %2589 = vector.load %arg19[%c32_849, %c0_850] : memref<34x16xf32, #tpu.memory_space<vmem>>, vector<2x8xf32>
    tpu.vector_store %arg19[%c32_849, %c0_850], %2554 {strides = array<i32>} : memref<34x16xf32, #tpu.memory_space<vmem>>, vector<2x8xf32>,
    %c0_851 = arith.constant 0 : index
    %c8_852 = arith.constant 8 : index
    %2590 = vector.load %arg19[%c0_851, %c8_852] : memref<34x16xf32, #tpu.memory_space<vmem>>, vector<2x8xf32>
    tpu.vector_store %arg19[%c0_851, %c8_852], %2588 {strides = array<i32>} : memref<34x16xf32, #tpu.memory_space<vmem>>, vector<2x8xf32>,
    %c0_853 = arith.constant 0 : index
    %c0_854 = arith.constant 0 : index
    %2591 = vector.load %arg19[%c0_853, %c0_854] : memref<34x16xf32, #tpu.memory_space<vmem>>, vector<34x16xf32>
    %2592 = arith.truncf %2591 : vector<34x16xf32> to vector<34x16xbf16>
    %c0_855 = arith.constant 0 : index
    %c0_856 = arith.constant 0 : index
    %2593 = vector.load %arg9[%c0_855, %c0_856] : memref<16x32xf32, #tpu.memory_space<vmem>>, vector<16x32xf32>
    %2594 = arith.truncf %2593 : vector<16x32xf32> to vector<16x32xbf16>
    %cst_857 = arith.constant dense<0.000000e+00> : vector<34x32xf32>
    %2595 = tpu.matmul %2592, %2594, %cst_857 {dimension_numbers = #tpu.dot_dimension_numbers<[1], [0], [0], [1], [0, 0, 1, 1], [], []>} : vector<34x16xbf16>, vector<16x32xbf16>, vector<34x32xf32> -> vector<34x32xf32>
    %c0_858 = arith.constant 0 : index
    %c0_859 = arith.constant 0 : index
    %2596 = vector.load %arg10[%c0_858, %c0_859] : memref<1x32xf32, #tpu.memory_space<vmem>>, vector<1x32xf32>
    %2597 = vector.broadcast %2596 : vector<1x32xf32> to vector<34x32xf32>
    %2598 = arith.addf %2595, %2597 : vector<34x32xf32>
    %cst_860 = arith.constant 0.000000e+00 : f32
    %2599 = vector.broadcast %cst_860 : f32 to vector<34x32xf32>
    %2600 = arith.maximumf %2598, %2599 : vector<34x32xf32>
    %c0_861 = arith.constant 0 : index
    %c0_862 = arith.constant 0 : index
    %2601 = vector.load %arg11[%c0_861, %c0_862] : memref<1x32xf32, #tpu.memory_space<vmem>>, vector<1x32xf32>
    %2602 = vector.broadcast %2601 : vector<1x32xf32> to vector<34x32xf32>
    %2603 = arith.mulf %2600, %2602 : vector<34x32xf32>
    %cst_863 = arith.constant dense<0.000000e+00> : vector<34xf32>
    %2604 = vector.multi_reduction <add>, %2603, %cst_863 [1] : vector<34x32xf32> to vector<34xf32>
    %2605 = vector.shape_cast %2604 : vector<34xf32> to vector<34x1xf32>
    %c0_864 = arith.constant 0 : index
    %c0_865 = arith.constant 0 : index
    %2606 = vector.load %arg12[%c0_864, %c0_865] : memref<1x1xf32, #tpu.memory_space<vmem>>, vector<1x1xf32>
    %2607 = vector.broadcast %2606 : vector<1x1xf32> to vector<34x1xf32>
    %2608 = arith.addf %2605, %2607 : vector<34x1xf32>
    %2609 = tpu.iota {dimensions = array<i32: 0>} : vector<34x1xi32>
    %c2_i32 = arith.constant 2 : i32
    %c0_i32 = arith.constant 0 : i32
    %2610 = arith.cmpi eq, %c2_i32, %c0_i32 : i32
    %c1_i32 = arith.constant 1 : i32
    %2611 = arith.select %2610, %c1_i32, %c2_i32 : i32
    %2612 = vector.broadcast %2611 : i32 to vector<34x1xi32>
    %2613 = arith.remsi %2609, %2612 : vector<34x1xi32>
    %c0_i32_866 = arith.constant 0 : i32
    %2614 = vector.broadcast %c0_i32_866 : i32 to vector<34x1xi32>
    %2615 = arith.cmpi ne, %2613, %2614 : vector<34x1xi32>
    %c0_i32_867 = arith.constant 0 : i32
    %2616 = vector.broadcast %c0_i32_867 : i32 to vector<34x1xi32>
    %2617 = arith.cmpi slt, %2613, %2616 : vector<34x1xi32>
    %c0_i32_868 = arith.constant 0 : i32
    %2618 = arith.cmpi slt, %2611, %c0_i32_868 : i32
    %2619 = vector.broadcast %2618 : i1 to vector<34x1xi1>
    %2620 = vector.broadcast %2619 : vector<34x1xi1> to vector<34x1xi1>
    %2621 = arith.xori %2617, %2620 : vector<34x1xi1>
    %2622 = arith.andi %2621, %2615 : vector<34x1xi1>
    %2623 = vector.broadcast %2611 : i32 to vector<34x1xi32>
    %2624 = arith.addi %2613, %2623 : vector<34x1xi32>
    %2625 = arith.select %2622, %2624, %2613 : vector<34x1xi1>, vector<34x1xi32>
    %c0_i32_869 = arith.constant 0 : i32
    %2626 = vector.broadcast %c0_i32_869 : i32 to vector<34x1xi32>
    %2627 = arith.cmpi eq, %2625, %2626 : vector<34x1xi32>
    %cst_870 = arith.constant -1.000000e+30 : f32
    %2628 = vector.broadcast %cst_870 : f32 to vector<34x1xf32>
    %2629 = arith.select %2627, %2608, %2628 : vector<34x1xi1>, vector<34x1xf32>
    %cst_871 = arith.constant dense<0xFF800000> : vector<1xf32>
    %2630 = vector.multi_reduction <maximumf>, %2629, %cst_871 [0] : vector<34x1xf32> to vector<1xf32>
    %2631 = vector.shape_cast %2630 : vector<1xf32> to vector<1x1xf32>
    %2632 = vector.broadcast %2631 : vector<1x1xf32> to vector<34x1xf32>
    %2633 = arith.subf %2629, %2632 : vector<34x1xf32>
    %2634 = math.exp %2633 : vector<34x1xf32>
    %cst_872 = arith.constant dense<0.000000e+00> : vector<1xf32>
    %2635 = vector.multi_reduction <add>, %2634, %cst_872 [0] : vector<34x1xf32> to vector<1xf32>
    %2636 = vector.shape_cast %2635 : vector<1xf32> to vector<1x1xf32>
    %2637 = vector.broadcast %2636 : vector<1x1xf32> to vector<34x1xf32>
    %2638 = arith.divf %2634, %2637 : vector<34x1xf32>
    %2639 = vector.broadcast %2638 : vector<34x1xf32> to vector<34x16xf32>
    %2640 = arith.mulf %2639, %2591 : vector<34x16xf32>
    %cst_873 = arith.constant dense<0.000000e+00> : vector<16xf32>
    %2641 = vector.multi_reduction <add>, %2640, %cst_873 [0] : vector<34x16xf32> to vector<16xf32>
    %2642 = vector.shape_cast %2641 : vector<16xf32> to vector<1x16xf32>
    %c1_i32_874 = arith.constant 1 : i32
    %2643 = vector.broadcast %c1_i32_874 : i32 to vector<34x1xi32>
    %2644 = arith.cmpi eq, %2625, %2643 : vector<34x1xi32>
    %cst_875 = arith.constant -1.000000e+30 : f32
    %2645 = vector.broadcast %cst_875 : f32 to vector<34x1xf32>
    %2646 = arith.select %2644, %2608, %2645 : vector<34x1xi1>, vector<34x1xf32>
    %cst_876 = arith.constant dense<0xFF800000> : vector<1xf32>
    %2647 = vector.multi_reduction <maximumf>, %2646, %cst_876 [0] : vector<34x1xf32> to vector<1xf32>
    %2648 = vector.shape_cast %2647 : vector<1xf32> to vector<1x1xf32>
    %2649 = vector.broadcast %2648 : vector<1x1xf32> to vector<34x1xf32>
    %2650 = arith.subf %2646, %2649 : vector<34x1xf32>
    %2651 = math.exp %2650 : vector<34x1xf32>
    %cst_877 = arith.constant dense<0.000000e+00> : vector<1xf32>
    %2652 = vector.multi_reduction <add>, %2651, %cst_877 [0] : vector<34x1xf32> to vector<1xf32>
    %2653 = vector.shape_cast %2652 : vector<1xf32> to vector<1x1xf32>
    %2654 = vector.broadcast %2653 : vector<1x1xf32> to vector<34x1xf32>
    %2655 = arith.divf %2651, %2654 : vector<34x1xf32>
    %2656 = vector.broadcast %2655 : vector<34x1xf32> to vector<34x16xf32>
    %2657 = arith.mulf %2656, %2591 : vector<34x16xf32>
    %cst_878 = arith.constant dense<0.000000e+00> : vector<16xf32>
    %2658 = vector.multi_reduction <add>, %2657, %cst_878 [0] : vector<34x16xf32> to vector<16xf32>
    %2659 = vector.shape_cast %2658 : vector<16xf32> to vector<1x16xf32>
    %2660 = tpu.concatenate %2642, %2659 in 0 : vector<1x16xf32>, vector<1x16xf32> -> vector<2x16xf32>
    %c0_879 = arith.constant 0 : index
    %c0_880 = arith.constant 0 : index
    %2661 = vector.load %arg13[%c0_879, %c0_880] : memref<1x16xf32, #tpu.memory_space<vmem>>, vector<1x16xf32>
    %2662 = vector.broadcast %2661 : vector<1x16xf32> to vector<2x16xf32>
    %2663 = arith.mulf %2660, %2662 : vector<2x16xf32>
    %cst_881 = arith.constant dense<0.000000e+00> : vector<2xf32>
    %2664 = vector.multi_reduction <add>, %2663, %cst_881 [1] : vector<2x16xf32> to vector<2xf32>
    %2665 = vector.shape_cast %2664 : vector<2xf32> to vector<2x1xf32>
    %c0_882 = arith.constant 0 : index
    %c0_883 = arith.constant 0 : index
    %2666 = vector.load %arg14[%c0_882, %c0_883] : memref<1x1xf32, #tpu.memory_space<vmem>>, vector<1x1xf32>
    %2667 = vector.broadcast %2666 : vector<1x1xf32> to vector<2x1xf32>
    %2668 = arith.addf %2665, %2667 : vector<2x1xf32>
    %cst_884 = arith.constant 5.000000e-01 : f32
    %2669 = vector.broadcast %cst_884 : f32 to vector<2x1xf32>
    %2670 = arith.mulf %2669, %2668 : vector<2x1xf32>
    %2671 = math.tanh %2670 : vector<2x1xf32>
    %cst_885 = arith.constant 1.000000e+00 : f32
    %2672 = vector.broadcast %cst_885 : f32 to vector<2x1xf32>
    %2673 = arith.addf %2671, %2672 : vector<2x1xf32>
    %cst_886 = arith.constant 5.000000e-01 : f32
    %2674 = vector.broadcast %cst_886 : f32 to vector<2x1xf32>
    %2675 = arith.mulf %2674, %2673 : vector<2x1xf32>
    %c0_887 = arith.constant 0 : index
    %c0_888 = arith.constant 0 : index
    %2676 = vector.load %arg15[%c0_887, %c0_888] : memref<2x1xf32, #tpu.memory_space<vmem>>, vector<2x1xf32>
    tpu.vector_store %arg15[%c0_887, %c0_888], %2675 {strides = array<i32>} : memref<2x1xf32, #tpu.memory_space<vmem>>, vector<2x1xf32>,
    return
  }
}

</mosaic_0001>

<llo_original>
// kernel: forward.1
$region0: #{forward.1}
  #allocation0 [shape = 'u32[]', space=smem, size = 0x4, offset = 0x4, fixed_abs, tag = 'smem constant byte address 0x4 - core index']
  #allocation1 [shape = 'u32[144,128]{1,0:T(1,128)}', space=vmem, size = 0x12000, scoped, tag = 'internal scratch']
  #allocation2 [shape = 'f32[34,32]{1,0:T(8,128)}', space=vmem, size = 0x5000, scoped, tag = 'scratch operand']
  #allocation3 [shape = 'f32[34,16]{1,0:T(8,128)}', space=vmem, size = 0x5000, scoped, tag = 'scratch operand']
  #allocation4 [shape = 'f32[34,16]{1,0:T(8,128)}', space=vmem, size = 0x5000, scoped, tag = 'scratch operand']
  #allocation5 [shape = 'f32[1,1]{1,0:T(1,128)S(1)}', space=vmem, size = 0x200, scoped, tag = 'scoped memory for forward.1']
  #allocation6 [shape = 'f32[1,1]{1,0:T(1,128)S(1)}', space=vmem, size = 0x200, scoped, tag = 'scoped memory for forward.1']
  %s0 = inlined_call_operand.vmem [shape: f32[2,160], index: 0, kind: input, shape index: {}]
  %s1 = inlined_call_operand.vmem [shape: f32[1,32], index: 1, kind: input, shape index: {}]
  %s2 = inlined_call_operand.vmem [shape: f32[32,34], index: 2, kind: input, shape index: {}]
  %s3 = inlined_call_operand.vmem [shape: f32[17,64], index: 3, kind: input, shape index: {}]
  %s4 = inlined_call_operand.hbm [shape: f32[16,64], index: 4, kind: input, shape index: {}]
  %s5 = inlined_call_operand.hbm [shape: f32[1,64], index: 5, kind: input, shape index: {}]
  %s6 = inlined_call_operand.vmem [shape: f32[16,64], index: 6, kind: input, shape index: {}]
  %s7 = inlined_call_operand.hbm [shape: f32[16,64], index: 7, kind: input, shape index: {}]
  %s8 = inlined_call_operand.hbm [shape: f32[1,64], index: 8, kind: input, shape index: {}]
  %s9 = inlined_call_operand.hbm [shape: f32[16,32], index: 9, kind: input, shape index: {}]
  %s10 = inlined_call_operand.hbm [shape: f32[1,32], index: 10, kind: input, shape index: {}]
  %s11 = inlined_call_operand.hbm [shape: f32[1,32], index: 11, kind: input, shape index: {}]
  %s12 = inlined_call_operand.<no memory space> [shape: f32[1,1], index: 12, kind: input, shape index: {}]
  %s13 = inlined_call_operand.hbm [shape: f32[1,16], index: 13, kind: input, shape index: {}]
  %s14 = inlined_call_operand.<no memory space> [shape: f32[1,1], index: 14, kind: input, shape index: {}]
  %s15 = inlined_call_operand.vmem [shape: f32[2,1], index: 15, kind: output, shape index: {0}]
  %s16 = inlined_call_operand.vmem [shape: f32[34,17], index: 16, kind: output, shape index: {1}]
  %17 = xla_tuple %s15, %s16
  %s18 = sld [smem:[#allocation0]]
  $region110: #{forward.1} parent=0
    _
  %s20 = ssub.s32 1, %s18
  %s21 = scalar_select 0, %s20, %s18
  %v22 = vstv %s12
  %23 = vst [vmem:[#allocation5] sm:$0x1] %v22
  %v24 = vstv %s14
  %25 = vst [vmem:[#allocation6] sm:$0x1] %v24
  $region1: #{forward.1} parent=0
    #allocation7 [shape = 'u8[8192]{0}', space=vmem, size = 0x2000, scoped, tag = 'input window, operand 4, single buffered']
    #allocation8 [shape = 's32[1]{0}', space=sflag, size = 0x4, scoped, tag = 'scoped memory for forward.1']
    #allocation9 [shape = 'u8[512]{0}', space=vmem, size = 0x400, scoped, tag = 'input window, operand 5, single buffered']
    #allocation10 [shape = 's32[1]{0}', space=sflag, size = 0x4, scoped, tag = 'scoped memory for forward.1']
    #allocation11 [shape = 'u8[8192]{0}', space=vmem, size = 0x2000, scoped, tag = 'input window, operand 7, single buffered']
    #allocation12 [shape = 'u8[512]{0}', space=vmem, size = 0x400, scoped, tag = 'input window, operand 8, single buffered']
    #allocation13 [shape = 's32[1]{0}', space=sflag, size = 0x4, scoped, tag = 'scoped memory for forward.1']
    #allocation14 [shape = 'u8[8192]{0}', space=vmem, size = 0x2000, scoped, tag = 'input window, operand 9, single buffered']
    #allocation15 [shape = 'u8[512]{0}', space=vmem, size = 0x400, scoped, tag = 'input window, operand 10, single buffered']
    #allocation16 [shape = 's32[1]{0}', space=sflag, size = 0x4, scoped, tag = 'scoped memory for forward.1']
    #allocation17 [shape = 'u8[512]{0}', space=vmem, size = 0x400, scoped, tag = 'input window, operand 11, single buffered']
    #allocation18 [shape = 'u8[512]{0}', space=vmem, size = 0x400, scoped, tag = 'input window, operand 13, single buffered']
    #allocation19 [shape = 's32[1]{0}', space=sflag, size = 0x4, scoped, tag = 'scoped memory for forward.1']
    %26 = vsyncpa [#allocation8], 0
    %27 = vsyncpa [#allocation10], 0
    %28 = vsyncpa [#allocation13], 0
    %29 = vsyncpa [#allocation16], 0
    %30 = vsyncpa [#allocation19], 0
    // Predicated region
    $region2: #{forward.1} parent=1 // pred_check
      _
    $region3: #{forward.1} parent=1 // pred_check_branch
      %32 = sbr.rel (0) target = $region5
    $region4: #{forward.1} parent=1 // pred_region
      _
    $region5: #{forward.1} parent=1 // pred_fallthru
      _
    // Predicated region
    $region6: #{forward.1} parent=1 // pred_check
      _
    $region7: #{forward.1} parent=1 // pred_check_branch
      %34 = sbr.rel (0) target = $region9
    $region8: #{forward.1} parent=1 // pred_region
      _
    $region9: #{forward.1} parent=1 // pred_fallthru
      _
    // Predicated region
    $region10: #{forward.1} parent=1 // pred_check
      _
    $region11: #{forward.1} parent=1 // pred_check_branch
      %36 = sbr.rel (0) target = $region13
    $region12: #{forward.1} parent=1 // pred_region
      _
    $region13: #{forward.1} parent=1 // pred_fallthru
      _
    // Predicated region
    $region14: #{forward.1} parent=1 // pred_check
      _
    $region15: #{forward.1} parent=1 // pred_check_branch
      %38 = sbr.rel (0) target = $region17
    $region16: #{forward.1} parent=1 // pred_region
      _
    $region17: #{forward.1} parent=1 // pred_fallthru
      _
    // Predicated region
    $region18: #{forward.1} parent=1 // pred_check
      _
    $region19: #{forward.1} parent=1 // pred_check_branch
      %40 = sbr.rel (0) target = $region21
    $region20: #{forward.1} parent=1 // pred_region
      %s42 = ssub.s32 256, 256
      %43 = vsyncadd [#allocation8], %s42
      %s44 = sshll.u32 [#allocation7], 4
      %s45 = int_to_ptr.vmem [resolvable:$true] %s44
      %50 = dma.hbm_to_vmem [thread:$0]  %s4, 256, %s45, [#allocation8], 128, 128, 8
    $region21: #{forward.1} parent=1 // pred_fallthru
      _
    // Predicated region
    $region22: #{forward.1} parent=1 // pred_check
      _
    $region23: #{forward.1} parent=1 // pred_check_branch
      %52 = sbr.rel (0) target = $region25
    $region24: #{forward.1} parent=1 // pred_region
      %s54 = ssub.s32 16, 16
      %55 = vsyncadd [#allocation10], %s54
      %s57 = sshll.u32 [#allocation9], 4
      %s58 = int_to_ptr.vmem [resolvable:$true] %s57
      %60 = dma.hbm_to_vmem [thread:$0]  %s5, 16, %s58, [#allocation10]
    $region25: #{forward.1} parent=1 // pred_fallthru
      _
    // Predicated region
    $region26: #{forward.1} parent=1 // pred_check
      _
    $region27: #{forward.1} parent=1 // pred_check_branch
      %62 = sbr.rel (0) target = $region29
    $region28: #{forward.1} parent=1 // pred_region
      _
    $region29: #{forward.1} parent=1 // pred_fallthru
      _
    // Predicated region
    $region30: #{forward.1} parent=1 // pred_check
      _
    $region31: #{forward.1} parent=1 // pred_check_branch
      %64 = sbr.rel (0) target = $region33
    $region32: #{forward.1} parent=1 // pred_region
      %s66 = ssub.s32 256, 256
      %67 = vsyncadd [#allocation10], %s66
      %s68 = sshll.u32 [#allocation11], 4
      %s69 = int_to_ptr.vmem [resolvable:$true] %s68
      %74 = dma.hbm_to_vmem [thread:$0]  %s7, 256, %s69, [#allocation10], 128, 128, 8
    $region33: #{forward.1} parent=1 // pred_fallthru
      _
    // Predicated region
    $region34: #{forward.1} parent=1 // pred_check
      _
    $region35: #{forward.1} parent=1 // pred_check_branch
      %76 = sbr.rel (0) target = $region37
    $region36: #{forward.1} parent=1 // pred_region
      %s78 = ssub.s32 16, 16
      %79 = vsyncadd [#allocation13], %s78
      %s81 = sshll.u32 [#allocation12], 4
      %s82 = int_to_ptr.vmem [resolvable:$true] %s81
      %84 = dma.hbm_to_vmem [thread:$0]  %s8, 16, %s82, [#allocation13]
    $region37: #{forward.1} parent=1 // pred_fallthru
      _
    // Predicated region
    $region38: #{forward.1} parent=1 // pred_check
      _
    $region39: #{forward.1} parent=1 // pred_check_branch
      %86 = sbr.rel (0) target = $region41
    $region40: #{forward.1} parent=1 // pred_region
      %s88 = ssub.s32 256, 256
      %89 = vsyncadd [#allocation13], %s88
      %s90 = sshll.u32 [#allocation14], 4
      %s91 = int_to_ptr.vmem [resolvable:$true] %s90
      %96 = dma.hbm_to_vmem [thread:$0]  %s9, 256, %s91, [#allocation13], 128, 128, 8
    $region41: #{forward.1} parent=1 // pred_fallthru
      _
    // Predicated region
    $region42: #{forward.1} parent=1 // pred_check
      _
    $region43: #{forward.1} parent=1 // pred_check_branch
      %98 = sbr.rel (0) target = $region45
    $region44: #{forward.1} parent=1 // pred_region
      %s100 = ssub.s32 16, 16
      %101 = vsyncadd [#allocation16], %s100
      %s103 = sshll.u32 [#allocation15], 4
      %s104 = int_to_ptr.vmem [resolvable:$true] %s103
      %106 = dma.hbm_to_vmem [thread:$0]  %s10, 16, %s104, [#allocation16]
    $region45: #{forward.1} parent=1 // pred_fallthru
      _
    // Predicated region
    $region46: #{forward.1} parent=1 // pred_check
      _
    $region47: #{forward.1} parent=1 // pred_check_branch
      %108 = sbr.rel (0) target = $region49
    $region48: #{forward.1} parent=1 // pred_region
      %s110 = ssub.s32 16, 16
      %111 = vsyncadd [#allocation16], %s110
      %s113 = sshll.u32 [#allocation17], 4
      %s114 = int_to_ptr.vmem [resolvable:$true] %s113
      %116 = dma.hbm_to_vmem [thread:$0]  %s11, 16, %s114, [#allocation16]
    $region49: #{forward.1} parent=1 // pred_fallthru
      _
    // Predicated region
    $region50: #{forward.1} parent=1 // pred_check
      _
    $region51: #{forward.1} parent=1 // pred_check_branch
      %118 = sbr.rel (0) target = $region53
    $region52: #{forward.1} parent=1 // pred_region
      _
    $region53: #{forward.1} parent=1 // pred_fallthru
      _
    // Predicated region
    $region54: #{forward.1} parent=1 // pred_check
      _
    $region55: #{forward.1} parent=1 // pred_check_branch
      %120 = sbr.rel (0) target = $region57
    $region56: #{forward.1} parent=1 // pred_region
      %s122 = ssub.s32 16, 16
      %123 = vsyncadd [#allocation19], %s122
      %s125 = sshll.u32 [#allocation18], 4
      %s126 = int_to_ptr.vmem [resolvable:$true] %s125
      %128 = dma.hbm_to_vmem [thread:$0]  %s13, 16, %s126, [#allocation19]
    $region57: #{forward.1} parent=1 // pred_fallthru
      _
    // Predicated region
    $region58: #{forward.1} parent=1 // pred_check
      _
    $region59: #{forward.1} parent=1 // pred_check_branch
      %130 = sbr.rel (0) target = $region61
    $region60: #{forward.1} parent=1 // pred_region
      _
    $region61: #{forward.1} parent=1 // pred_fallthru
      _
    // Predicated region
    $region62: #{forward.1} parent=1 // pred_check
      _
    $region63: #{forward.1} parent=1 // pred_check_branch
      %132 = sbr.rel (0) target = $region65
    $region64: #{forward.1} parent=1 // pred_region
      %133 = dma.done [#allocation8], 256
    $region65: #{forward.1} parent=1 // pred_fallthru
      _
    // Predicated region
    $region66: #{forward.1} parent=1 // pred_check
      _
    $region67: #{forward.1} parent=1 // pred_check_branch
      %135 = sbr.rel (0) target = $region69
    $region68: #{forward.1} parent=1 // pred_region
      %136 = dma.done [#allocation10], 16
    $region69: #{forward.1} parent=1 // pred_fallthru
      _
    // Predicated region
    $region70: #{forward.1} parent=1 // pred_check
      _
    $region71: #{forward.1} parent=1 // pred_check_branch
      %138 = sbr.rel (0) target = $region73
    $region72: #{forward.1} parent=1 // pred_region
      %139 = dma.done [#allocation10], 256
    $region73: #{forward.1} parent=1 // pred_fallthru
      _
    // Predicated region
    $region74: #{forward.1} parent=1 // pred_check
      _
    $region75: #{forward.1} parent=1 // pred_check_branch
      %141 = sbr.rel (0) target = $region77
    $region76: #{forward.1} parent=1 // pred_region
      %142 = dma.done [#allocation13], 16
    $region77: #{forward.1} parent=1 // pred_fallthru
      _
    // Predicated region
    $region78: #{forward.1} parent=1 // pred_check
      _
    $region79: #{forward.1} parent=1 // pred_check_branch
      %144 = sbr.rel (0) target = $region81
    $region80: #{forward.1} parent=1 // pred_region
      %145 = dma.done [#allocation13], 256
    $region81: #{forward.1} parent=1 // pred_fallthru
      _
    // Predicated region
    $region82: #{forward.1} parent=1 // pred_check
      _
    $region83: #{forward.1} parent=1 // pred_check_branch
      %147 = sbr.rel (0) target = $region85
    $region84: #{forward.1} parent=1 // pred_region
      %148 = dma.done [#allocation16], 16
    $region85: #{forward.1} parent=1 // pred_fallthru
      _
    // Predicated region
    $region86: #{forward.1} parent=1 // pred_check
      _
    $region87: #{forward.1} parent=1 // pred_check_branch
      %150 = sbr.rel (0) target = $region89
    $region88: #{forward.1} parent=1 // pred_region
      %151 = dma.done [#allocation16], 16
    $region89: #{forward.1} parent=1 // pred_fallthru
      _
    // Predicated region
    $region90: #{forward.1} parent=1 // pred_check
      _
    $region91: #{forward.1} parent=1 // pred_check_branch
      %153 = sbr.rel (0) target = $region93
    $region92: #{forward.1} parent=1 // pred_region
      %154 = dma.done [#allocation19], 16
    $region93: #{forward.1} parent=1 // pred_fallthru
      _
    %v156 = vld [vmem:[%s1] sm:$0x1]
    %v157 = vld [vmem:[%s0] sm:$0x3]
    %v159 = vlaneseq
    %v160 = vshrl.u32 %v159, 7
    %v161 = vsub.s32 0, %v160
    %v162 = vrot.slane %v156, %v161
    %v164 = vmul.f32 %v157, %v162
    %vm165 = vcmask 254976
    %166 = vst.msk [vmem:[#allocation2] sm:$0x3] %vm165, %v164
    %v167 = vld [vmem:[%s0] sm:$0x3]
    %v169 = vunpack.c.l.s4 1983009808
    %v170 = vunpack.c.0.s8 %v169
    %v171 = vlaneseq
    %v172 = vshrl.u32 %v171, 7
    %v173 = vsub.s32 %v170, %v172
    %v174 = vrot.slane %v162, %v173
    %175 = vrot.lane.b32.xlu0 %v174, 8
    %v176 = vpop.permute.xlu0 %175
    %v178 = vmul.f32 %v167, %v176
    %v181 = vunpack.c.l.s4 1983009808
    %v182 = vunpack.c.0.s8 %v181
    %v183 = vlaneseq
    %v184 = vshrl.u32 %v183, 7
    %v185 = vsub.s32 %v182, %v184
    %v186 = vrot.slane %v178, %v185
    %187 = vrot.lane.b32.xlu0 %v186, 120
    %v188 = vpop.permute.xlu0 %187
    %190 = vst.msk [vmem:[#allocation2 + $0x2] sm:$0x3] %vm165, %v188
    %v191 = vld [vmem:[%s0] sm:$0x3]
    %192 = vrot.lane.b32.xlu0 %v174, 16
    %v193 = vpop.permute.xlu0 %192
    %v195 = vmul.f32 %v191, %v193
    %v198 = vunpack.c.l.s4 1983009808
    %v199 = vunpack.c.0.s8 %v198
    %v200 = vlaneseq
    %v201 = vshrl.u32 %v200, 7
    %v202 = vsub.s32 %v199, %v201
    %v203 = vrot.slane %v195, %v202
    %204 = vrot.lane.b32.xlu0 %v203, 112
    %v205 = vpop.permute.xlu0 %204
    %207 = vst.msk [vmem:[#allocation2 + $0x4] sm:$0x3] %vm165, %v205
    %v208 = vld [vmem:[%s0] sm:$0x3]
    %209 = vrot.lane.b32.xlu0 %v174, 24
    %v210 = vpop.permute.xlu0 %209
    %v212 = vmul.f32 %v208, %v210
    %v215 = vunpack.c.l.s4 1983009808
    %v216 = vunpack.c.0.s8 %v215
    %v217 = vlaneseq
    %v218 = vshrl.u32 %v217, 7
    %v219 = vsub.s32 %v216, %v218
    %v220 = vrot.slane %v212, %v219
    %221 = vrot.lane.b32.xlu0 %v220, 104
    %v222 = vpop.permute.xlu0 %221
    %224 = vst.msk [vmem:[#allocation2 + $0x6] sm:$0x3] %vm165, %v222
    %v225 = vld [vmem:[%s0] sm:$0x3]
    %226 = vrot.lane.b32.xlu0 %v174, 32
    %v227 = vpop.permute.xlu0 %226
    %v229 = vmul.f32 %v225, %v227
    %v232 = vunpack.c.l.s4 1983009808
    %v233 = vunpack.c.0.s8 %v232
    %v234 = vlaneseq
    %v235 = vshrl.u32 %v234, 7
    %v236 = vsub.s32 %v233, %v235
    %v237 = vrot.slane %v229, %v236
    %238 = vrot.lane.b32.xlu0 %v237, 96
    %v239 = vpop.permute.xlu0 %238
    %241 = vst.msk [vmem:[#allocation2 + $0x8] sm:$0x3] %vm165, %v239
    %v242 = vld [vmem:[%s0] sm:$0x3]
    %243 = vrot.lane.b32.xlu0 %v174, 40
    %v244 = vpop.permute.xlu0 %243
    %v246 = vmul.f32 %v242, %v244
    %v249 = vunpack.c.l.s4 1983009808
    %v250 = vunpack.c.0.s8 %v249
    %v251 = vlaneseq
    %v252 = vshrl.u32 %v251, 7
    %v253 = vsub.s32 %v250, %v252
    %v254 = vrot.slane %v246, %v253
    %255 = vrot.lane.b32.xlu0 %v254, 88
    %v256 = vpop.permute.xlu0 %255
    %258 = vst.msk [vmem:[#allocation2 + $0xa] sm:$0x3] %vm165, %v256
    %v259 = vld [vmem:[%s0] sm:$0x3]
    %260 = vrot.lane.b32.xlu0 %v174, 48
    %v261 = vpop.permute.xlu0 %260
    %v263 = vmul.f32 %v259, %v261
    %v266 = vunpack.c.l.s4 1983009808
    %v267 = vunpack.c.0.s8 %v266
    %v268 = vlaneseq
    %v269 = vshrl.u32 %v268, 7
    %v270 = vsub.s32 %v267, %v269
    %v271 = vrot.slane %v263, %v270
    %272 = vrot.lane.b32.xlu0 %v271, 80
    %v273 = vpop.permute.xlu0 %272
    %275 = vst.msk [vmem:[#allocation2 + $0xc] sm:$0x3] %vm165, %v273
    %v276 = vld [vmem:[%s0] sm:$0x3]
    %277 = vrot.lane.b32.xlu0 %v174, 56
    %v278 = vpop.permute.xlu0 %277
    %v280 = vmul.f32 %v276, %v278
    %v283 = vunpack.c.l.s4 1983009808
    %v284 = vunpack.c.0.s8 %v283
    %v285 = vlaneseq
    %v286 = vshrl.u32 %v285, 7
    %v287 = vsub.s32 %v284, %v286
    %v288 = vrot.slane %v280, %v287
    %289 = vrot.lane.b32.xlu0 %v288, 72
    %v290 = vpop.permute.xlu0 %289
    %292 = vst.msk [vmem:[#allocation2 + $0xe] sm:$0x3] %vm165, %v290
    %v293 = vld [vmem:[%s0] sm:$0x3]
    %294 = vrot.lane.b32.xlu0 %v174, 64
    %v295 = vpop.permute.xlu0 %294
    %v297 = vmul.f32 %v293, %v295
    %v300 = vunpack.c.l.s4 1983009808
    %v301 = vunpack.c.0.s8 %v300
    %v302 = vlaneseq
    %v303 = vshrl.u32 %v302, 7
    %v304 = vsub.s32 %v301, %v303
    %v305 = vrot.slane %v297, %v304
    %306 = vrot.lane.b32.xlu0 %v305, 64
    %v307 = vpop.permute.xlu0 %306
    %309 = vst.msk [vmem:[#allocation2 + $0x10] sm:$0x3] %vm165, %v307
    %v310 = vld [vmem:[%s0] sm:$0x3]
    %311 = vrot.lane.b32.xlu0 %v174, 72
    %v312 = vpop.permute.xlu0 %311
    %v314 = vmul.f32 %v310, %v312
    %v317 = vunpack.c.l.s4 1983009808
    %v318 = vunpack.c.0.s8 %v317
    %v319 = vlaneseq
    %v320 = vshrl.u32 %v319, 7
    %v321 = vsub.s32 %v318, %v320
    %v322 = vrot.slane %v314, %v321
    %323 = vrot.lane.b32.xlu0 %v322, 56
    %v324 = vpop.permute.xlu0 %323
    %326 = vst.msk [vmem:[#allocation2 + $0x12] sm:$0x3] %vm165, %v324
    %v327 = vld [vmem:[%s0] sm:$0x3]
    %328 = vrot.lane.b32.xlu0 %v174, 80
    %v329 = vpop.permute.xlu0 %328
    %v331 = vmul.f32 %v327, %v329
    %v334 = vunpack.c.l.s4 1983009808
    %v335 = vunpack.c.0.s8 %v334
    %v336 = vlaneseq
    %v337 = vshrl.u32 %v336, 7
    %v338 = vsub.s32 %v335, %v337
    %v339 = vrot.slane %v331, %v338
    %340 = vrot.lane.b32.xlu0 %v339, 48
    %v341 = vpop.permute.xlu0 %340
    %343 = vst.msk [vmem:[#allocation2 + $0x14] sm:$0x3] %vm165, %v341
    %v344 = vld [vmem:[%s0] sm:$0x3]
    %345 = vrot.lane.b32.xlu0 %v174, 88
    %v346 = vpop.permute.xlu0 %345
    %v348 = vmul.f32 %v344, %v346
    %v351 = vunpack.c.l.s4 1983009808
    %v352 = vunpack.c.0.s8 %v351
    %v353 = vlaneseq
    %v354 = vshrl.u32 %v353, 7
    %v355 = vsub.s32 %v352, %v354
    %v356 = vrot.slane %v348, %v355
    %357 = vrot.lane.b32.xlu0 %v356, 40
    %v358 = vpop.permute.xlu0 %357
    %360 = vst.msk [vmem:[#allocation2 + $0x16] sm:$0x3] %vm165, %v358
    %v361 = vld [vmem:[%s0] sm:$0x3]
    %362 = vrot.lane.b32.xlu0 %v174, 96
    %v363 = vpop.permute.xlu0 %362
    %v365 = vmul.f32 %v361, %v363
    %v368 = vunpack.c.l.s4 1983009808
    %v369 = vunpack.c.0.s8 %v368
    %v370 = vlaneseq
    %v371 = vshrl.u32 %v370, 7
    %v372 = vsub.s32 %v369, %v371
    %v373 = vrot.slane %v365, %v372
    %374 = vrot.lane.b32.xlu0 %v373, 32
    %v375 = vpop.permute.xlu0 %374
    %377 = vst.msk [vmem:[#allocation2 + $0x18] sm:$0x3] %vm165, %v375
    %v378 = vld [vmem:[%s0] sm:$0xf]
    %379 = vrot.lane.b32.xlu0 %v174, 104
    %v380 = vpop.permute.xlu0 %379
    %v381 = vrot.slane %v380, 6
    %vm382 = vcmask 850944
    %v383 = vsel %vm382, %v381, %v380
    %v385 = vmul.f32 %v378, %v383
    %v388 = vunpack.c.l.s4 1983009808
    %v389 = vunpack.c.0.s8 %v388
    %v390 = vlaneseq
    %v391 = vshrl.u32 %v390, 7
    %v392 = vsub.s32 %v389, %v391
    %v393 = vrot.slane %v385, %v392
    %v394 = vcombine.high %v393, %v393
    %395 = vrot.lane.b32.xlu0 %v393, 24
    %v396 = vpop.permute.xlu0 %395
    %397 = vrot.lane.b32.xlu0 %v394, 24
    %v398 = vpop.permute.xlu0 %397
    %vm399 = vcmask 195584
    %v400 = vsel %vm399, %v396, %v398
    %402 = vst.msk [vmem:[#allocation2 + $0x1a] sm:$0x3] %vm165, %v400
    %v403 = vld [vmem:[%s0] sm:$0xf]
    %404 = vrot.lane.b32.xlu0 %v174, 112
    %v405 = vpop.permute.xlu0 %404
    %v406 = vrot.slane %v405, 6
    %vm407 = vcmask 916480
    %v408 = vsel %vm407, %v406, %v405
    %v410 = vmul.f32 %v403, %v408
    %v413 = vunpack.c.l.s4 1983009808
    %v414 = vunpack.c.0.s8 %v413
    %v415 = vlaneseq
    %v416 = vshrl.u32 %v415, 7
    %v417 = vsub.s32 %v414, %v416
    %v418 = vrot.slane %v410, %v417
    %v419 = vcombine.high %v418, %v418
    %420 = vrot.lane.b32.xlu0 %v418, 16
    %v421 = vpop.permute.xlu0 %420
    %422 = vrot.lane.b32.xlu0 %v419, 16
    %v423 = vpop.permute.xlu0 %422
    %vm424 = vcmask 130048
    %v425 = vsel %vm424, %v421, %v423
    %427 = vst.msk [vmem:[#allocation2 + $0x1c] sm:$0x3] %vm165, %v425
    %v428 = vld [vmem:[%s0] sm:$0xf]
    %429 = vrot.lane.b32.xlu0 %v174, 120
    %v430 = vpop.permute.xlu0 %429
    %v431 = vrot.slane %v430, 6
    %vm432 = vcmask 982016
    %v433 = vsel %vm432, %v431, %v430
    %v435 = vmul.f32 %v428, %v433
    %v438 = vunpack.c.l.s4 1983009808
    %v439 = vunpack.c.0.s8 %v438
    %v440 = vlaneseq
    %v441 = vshrl.u32 %v440, 7
    %v442 = vsub.s32 %v439, %v441
    %v443 = vrot.slane %v435, %v442
    %v444 = vcombine.high %v443, %v443
    %445 = vrot.lane.b32.xlu0 %v443, 8
    %v446 = vpop.permute.xlu0 %445
    %447 = vrot.lane.b32.xlu0 %v444, 8
    %v448 = vpop.permute.xlu0 %447
    %vm449 = vcmask 64512
    %v450 = vsel %vm449, %v446, %v448
    %452 = vst.msk [vmem:[#allocation2 + $0x1e] sm:$0x3] %vm165, %v450
    %v453 = vld [vmem:[%s0 + $0x2] sm:$0x3]
    %v454 = vmul.f32 %v453, %v162
    %455 = vst.msk [vmem:[#allocation2 + $0x20] sm:$0x3] %vm165, %v454
    %v456 = vld [vmem:[#allocation2] sm:$0xff]
    %v457 = vld [vmem:[#allocation2 + $0x8] sm:$0xff]
    %v458 = vld [vmem:[#allocation2 + $0x10] sm:$0xff]
    %v459 = vld [vmem:[#allocation2 + $0x18] sm:$0xff]
    %v460 = vld [vmem:[#allocation2 + $0x20] sm:$0x3]
    %v461 = vpack.c.bf16 %v457, %v456
    %v462 = vpack.c.bf16 %v459, %v458
    %v463 = vpack.c.bf16 %v460, %v460
    %v464 = vld [vmem:[%s2] sm:$0xff]
    %v465 = vld [vmem:[%s2 + $0x8] sm:$0xff]
    %v466 = vld [vmem:[%s2 + $0x10] sm:$0xff]
    %v467 = vld [vmem:[%s2 + $0x18] sm:$0xff]
    %v468 = vpack.c.bf16 %v465, %v464
    %v469 = vpack.c.bf16 %v467, %v466
    %vm470 = vcmask 261120
    %v472 = vsel %vm470, %v461, 0
    %v475 = vsel %vm470, %v462, 0
    %v478 = vsel %vm470, %v463, 0
    %480 = vmatprep.subr.bf16.mxu0 0
    %481 = vmatpush1.bf16.msra.mxu0 %v468
    %482 = vmatprep.subr.bf16.mxu0 0
    %483 = vmatpush1.bf16.msra.mxu0 %v469
    %484 = vmatprep.subr.bf16.mxu0 0
    %485 = vmatpush1.bf16.msra.mxu0 0
    %486 = vmatprep.subr.bf16.mxu0 0
    %487 = vmatpush1.bf16.msra.mxu0 0
    %488 = vmatprep.subr.bf16.mxu0 0
    %489 = vmatpush1.bf16.msra.mxu0 0
    %490 = vmatprep.subr.bf16.mxu0 0
    %491 = vmatpush1.bf16.msra.mxu0 0
    %492 = vmatprep.subr.bf16.mxu0 0
    %493 = vmatpush1.bf16.msra.mxu0 0
    %494 = vmatprep.subr.bf16.mxu0 0
    %495 = vmatpush1.bf16.msra.mxu0 0
    %496 = vmatprep.subr.bf16.mxu0 0
    %497 = vmatpush1.bf16.msra.mxu0 0
    %498 = vmatprep.subr.bf16.mxu0 0
    %499 = vmatpush1.bf16.msra.mxu0 0
    %500 = vmatprep.subr.bf16.mxu0 0
    %501 = vmatpush1.bf16.msra.mxu0 0
    %502 = vmatprep.subr.bf16.mxu0 0
    %503 = vmatpush1.bf16.msra.mxu0 0
    %504 = vmatprep.subr.bf16.mxu0 0
    %505 = vmatpush1.bf16.msra.mxu0 0
    %506 = vmatprep.subr.bf16.mxu0 0
    %507 = vmatpush1.bf16.msra.mxu0 0
    %508 = vmatprep.subr.bf16.mxu0 0
    %509 = vmatpush1.bf16.msra.mxu0 0
    %510 = vmatprep.subr.bf16.mxu0 0
    %511 = vmatpush1.bf16.msra.mxu0 0
    %512 = vmatprep.mubr.bf16.mxu0 0
    %513 = vmatmul.mubr.bf16.gmra.mrb[0].mxu0 %v472
    %v514 = vpop.f32.mrb[0].mxu0
    %v515 = vadd.f32 0.0, %v514
    %v516 = vpop.f32.mrb[0].mxu0
    %v517 = vpop.f32.mrb[0].mxu0
    %v518 = vadd.f32 0.0, %v517
    %v519 = vpop.f32.mrb[0].mxu0
    %520 = vmatprep.mubr.bf16.mxu0 0
    %521 = vmatmul.mubr.bf16.gmra.mrb[0].mxu0 %v475
    %v522 = vpop.f32.mrb[0].mxu0
    %v523 = vadd.f32 0.0, %v522
    %v524 = vpop.f32.mrb[0].mxu0
    %v525 = vpop.f32.mrb[0].mxu0
    %v526 = vadd.f32 0.0, %v525
    %v527 = vpop.f32.mrb[0].mxu0
    %528 = vmatprep.mubr.bf16.mxu0 0
    %529 = vmatmul.mubr.bf16.gmra.mrb[0].mxu0 %v478
    %v530 = vpop.f32.mrb[0].mxu0
    %v531 = vadd.f32 0.0, %v530
    %v532 = vpop.f32.mrb[0].mxu0
    %v533 = vpop.f32.mrb[0].mxu0
    %v534 = vpop.f32.mrb[0].mxu0
    %535 = vdwg.mxu0
    %v536 = vmul.f32 %v515, %v515
    %v537 = vmul.f32 %v518, %v518
    %v538 = vmul.f32 %v523, %v523
    %v539 = vmul.f32 %v526, %v526
    %v540 = vmul.f32 %v531, %v531
    %546 = vrot.lane.b32.xlu0 %v536, 111
    %v547 = vpop.permute.xlu0 %546
    %548 = vrot.lane.b32.xlu0 %v537, 111
    %v549 = vpop.permute.xlu0 %548
    %550 = vrot.lane.b32.xlu0 %v538, 111
    %v551 = vpop.permute.xlu0 %550
    %552 = vrot.lane.b32.xlu0 %v539, 111
    %v553 = vpop.permute.xlu0 %552
    %554 = vrot.lane.b32.xlu0 %v540, 111
    %v555 = vpop.permute.xlu0 %554
    %v561 = vadd.f32 %v536, %v547
    %v562 = vadd.f32 %v537, %v549
    %v563 = vadd.f32 %v538, %v551
    %v564 = vadd.f32 %v539, %v553
    %v565 = vadd.f32 %v540, %v555
    %v566 = vadd.f32 %v561, 1e-14
    %v567 = vadd.f32 %v562, 1e-14
    %v568 = vadd.f32 %v563, 1e-14
    %v569 = vadd.f32 %v564, 1e-14
    %v570 = vadd.f32 %v565, 1e-14
    %v571 = vrsqrt.pop %v566
    %v572 = vmul.f32 %v566, %v571
    %vm573 = vcmp.eq.f32.partialorder %v566, inf
    %v574 = vsel %vm573, %v566, %v572
    %vm575 = vcmp.eq.f32.partialorder %v566, 0.0
    %v576 = vand.u32 %v566, 2147483648
    %v577 = vsel %vm575, %v576, %v574
    %v578 = vrsqrt.pop %v567
    %v579 = vmul.f32 %v567, %v578
    %vm580 = vcmp.eq.f32.partialorder %v567, inf
    %v581 = vsel %vm580, %v567, %v579
    %vm582 = vcmp.eq.f32.partialorder %v567, 0.0
    %v583 = vand.u32 %v567, 2147483648
    %v584 = vsel %vm582, %v583, %v581
    %v585 = vrsqrt.pop %v568
    %v586 = vmul.f32 %v568, %v585
    %vm587 = vcmp.eq.f32.partialorder %v568, inf
    %v588 = vsel %vm587, %v568, %v586
    %vm589 = vcmp.eq.f32.partialorder %v568, 0.0
    %v590 = vand.u32 %v568, 2147483648
    %v591 = vsel %vm589, %v590, %v588
    %v592 = vrsqrt.pop %v569
    %v593 = vmul.f32 %v569, %v592
    %vm594 = vcmp.eq.f32.partialorder %v569, inf
    %v595 = vsel %vm594, %v569, %v593
    %vm596 = vcmp.eq.f32.partialorder %v569, 0.0
    %v597 = vand.u32 %v569, 2147483648
    %v598 = vsel %vm596, %v597, %v595
    %v599 = vrsqrt.pop %v570
    %v600 = vmul.f32 %v570, %v599
    %vm601 = vcmp.eq.f32.partialorder %v570, inf
    %v602 = vsel %vm601, %v570, %v600
    %vm603 = vcmp.eq.f32.partialorder %v570, 0.0
    %v604 = vand.u32 %v570, 2147483648
    %v605 = vsel %vm603, %v604, %v602
    %v606 = vadd.f32 %v577, 1.0
    %v607 = vadd.f32 %v584, 1.0
    %v608 = vadd.f32 %v591, 1.0
    %v609 = vadd.f32 %v598, 1.0
    %v610 = vadd.f32 %v605, 1.0
    %v611 = vlog2.pop %v606
    %v612 = vmul.f32 %v611, 0.6931472
    %v613 = vlog2.pop %v607
    %v614 = vmul.f32 %v613, 0.6931472
    %v615 = vlog2.pop %v608
    %v616 = vmul.f32 %v615, 0.6931472
    %v617 = vlog2.pop %v609
    %v618 = vmul.f32 %v617, 0.6931472
    %v619 = vlog2.pop %v610
    %v620 = vmul.f32 %v619, 0.6931472
    %vm621 = vcmask 138240
    %622 = vst.msk [vmem:[%s16] sm:$0xff] %vm621, %v612
    %623 = vst.msk [vmem:[%s16 + $0x8] sm:$0xff] %vm621, %v614
    %624 = vst.msk [vmem:[%s16 + $0x10] sm:$0xff] %vm621, %v616
    %625 = vst.msk [vmem:[%s16 + $0x18] sm:$0xff] %vm621, %v618
    %vm626 = vcmask 132096
    %627 = vst.msk [vmem:[%s16 + $0x20] sm:$0x3] %vm626, %v620
    %v628 = vld [vmem:[%s3] sm:$0xff]
    %v629 = vld [vmem:[%s3 + $0x8] sm:$0xff]
    %v630 = vld [vmem:[%s3 + $0x10] sm:$0x1]
    %v631 = vld [vmem:[#allocation7] sm:$0xff]
    %v632 = vld [vmem:[#allocation7 + $0x8] sm:$0xff]
    %v633 = vld [vmem:[#allocation9] sm:$0x1]
    %v634 = vpack.c.bf16 %v614, %v612
    %v635 = vpack.c.bf16 %v618, %v616
    %v636 = vpack.c.bf16 %v620, %v620
    %v637 = vpack.c.bf16 %v629, %v628
    %v638 = vpack.c.bf16 %v630, %v630
    %v640 = vlaneseq
    %v641 = vshrl.u32 %v640, 7
    %v642 = vsub.s32 0, %v641
    %v643 = vrot.slane %v633, %v642
    %v646 = vsel %vm621, %v634, 0
    %v649 = vsel %vm621, %v635, 0
    %v652 = vsel %vm621, %v636, 0
    %vm654 = vcmask 1040384
    %v655 = vsel 0, 4294967295, 65535
    %v656 = vsel %vm654, %v655, 0
    %v658 = vand.u32 %v638, %v656
    %660 = vmatprep.subr.bf16.mxu0 0
    %661 = vmatpush1.bf16.msra.mxu0 %v637
    %662 = vmatprep.subr.bf16.mxu0 0
    %663 = vmatpush1.bf16.msra.mxu0 %v658
    %664 = vmatprep.subr.bf16.mxu0 0
    %665 = vmatpush1.bf16.msra.mxu0 0
    %666 = vmatprep.subr.bf16.mxu0 0
    %667 = vmatpush1.bf16.msra.mxu0 0
    %668 = vmatprep.subr.bf16.mxu0 0
    %669 = vmatpush1.bf16.msra.mxu0 0
    %670 = vmatprep.subr.bf16.mxu0 0
    %671 = vmatpush1.bf16.msra.mxu0 0
    %672 = vmatprep.subr.bf16.mxu0 0
    %673 = vmatpush1.bf16.msra.mxu0 0
    %674 = vmatprep.subr.bf16.mxu0 0
    %675 = vmatpush1.bf16.msra.mxu0 0
    %676 = vmatprep.subr.bf16.mxu0 0
    %677 = vmatpush1.bf16.msra.mxu0 0
    %678 = vmatprep.subr.bf16.mxu0 0
    %679 = vmatpush1.bf16.msra.mxu0 0
    %680 = vmatprep.subr.bf16.mxu0 0
    %681 = vmatpush1.bf16.msra.mxu0 0
    %682 = vmatprep.subr.bf16.mxu0 0
    %683 = vmatpush1.bf16.msra.mxu0 0
    %684 = vmatprep.subr.bf16.mxu0 0
    %685 = vmatpush1.bf16.msra.mxu0 0
    %686 = vmatprep.subr.bf16.mxu0 0
    %687 = vmatpush1.bf16.msra.mxu0 0
    %688 = vmatprep.subr.bf16.mxu0 0
    %689 = vmatpush1.bf16.msra.mxu0 0
    %690 = vmatprep.subr.bf16.mxu0 0
    %691 = vmatpush1.bf16.msra.mxu0 0
    %692 = vmatprep.mubr.bf16.mxu0 0
    %693 = vmatmul.mubr.bf16.gmra.mrb[0].mxu0 %v646
    %v694 = vpop.f32.mrb[0].mxu0
    %v695 = vadd.f32 %v643, %v694
    %v696 = vpop.f32.mrb[0].mxu0
    %v697 = vpop.f32.mrb[0].mxu0
    %v698 = vadd.f32 %v643, %v697
    %v699 = vpop.f32.mrb[0].mxu0
    %700 = vmatprep.mubr.bf16.mxu0 0
    %701 = vmatmul.mubr.bf16.gmra.mrb[0].mxu0 %v649
    %v702 = vpop.f32.mrb[0].mxu0
    %v703 = vadd.f32 %v643, %v702
    %v704 = vpop.f32.mrb[0].mxu0
    %v705 = vpop.f32.mrb[0].mxu0
    %v706 = vadd.f32 %v643, %v705
    %v707 = vpop.f32.mrb[0].mxu0
    %708 = vmatprep.mubr.bf16.mxu0 0
    %709 = vmatmul.mubr.bf16.gmra.mrb[0].mxu0 %v652
    %v710 = vpop.f32.mrb[0].mxu0
    %v711 = vadd.f32 %v643, %v710
    %v712 = vpop.f32.mrb[0].mxu0
    %v713 = vpop.f32.mrb[0].mxu0
    %v714 = vpop.f32.mrb[0].mxu0
    %715 = vdwg.mxu0
    %v716 = vpack.c.bf16 %v632, %v631
    %v718 = vsel %vm424, 0, 0
    %720 = vmatprep.subr.bf16.mxu0 0
    %721 = vmatpush1.bf16.msra.mxu0 %v716
    %722 = vmatprep.subr.bf16.mxu0 0
    %723 = vmatpush1.bf16.msra.mxu0 0
    %724 = vmatprep.subr.bf16.mxu0 0
    %725 = vmatpush1.bf16.msra.mxu0 0
    %726 = vmatprep.subr.bf16.mxu0 0
    %727 = vmatpush1.bf16.msra.mxu0 0
    %728 = vmatprep.subr.bf16.mxu0 0
    %729 = vmatpush1.bf16.msra.mxu0 0
    %730 = vmatprep.subr.bf16.mxu0 0
    %731 = vmatpush1.bf16.msra.mxu0 0
    %732 = vmatprep.subr.bf16.mxu0 0
    %733 = vmatpush1.bf16.msra.mxu0 0
    %734 = vmatprep.subr.bf16.mxu0 0
    %735 = vmatpush1.bf16.msra.mxu0 0
    %736 = vmatprep.subr.bf16.mxu0 0
    %737 = vmatpush1.bf16.msra.mxu0 0
    %738 = vmatprep.subr.bf16.mxu0 0
    %739 = vmatpush1.bf16.msra.mxu0 0
    %740 = vmatprep.subr.bf16.mxu0 0
    %741 = vmatpush1.bf16.msra.mxu0 0
    %742 = vmatprep.subr.bf16.mxu0 0
    %743 = vmatpush1.bf16.msra.mxu0 0
    %744 = vmatprep.subr.bf16.mxu0 0
    %745 = vmatpush1.bf16.msra.mxu0 0
    %746 = vmatprep.subr.bf16.mxu0 0
    %747 = vmatpush1.bf16.msra.mxu0 0
    %748 = vmatprep.subr.bf16.mxu0 0
    %749 = vmatpush1.bf16.msra.mxu0 0
    %750 = vmatprep.subr.bf16.mxu0 0
    %751 = vmatpush1.bf16.msra.mxu0 0
    %752 = vmatprep.mubr.bf16.mxu0 0
    %753 = vmatmul.mubr.bf16.gmra.mrb[0].mxu0 %v718
    %v754 = vpop.f32.mrb[0].mxu0
    %v755 = vadd.f32 0.0, %v754
    %v756 = vpop.f32.mrb[0].mxu0
    %v757 = vpop.f32.mrb[0].mxu0
    %v758 = vpop.f32.mrb[0].mxu0
    %759 = vdwg.mxu0
    %v760 = vadd.f32 %v695, %v755
    %v761 = vmul.f32 %v760, 0.5
    %v762 = vtanh.pop %v761
    %v763 = vadd.f32 %v762, 1.0
    %v764 = vmul.f32 %v763, 0.5
    %v765 = vtanh.pop %v760
    %v766 = vmul.f32 %v764, 0.0
    %768 = vrot.lane.b32.xlu0 %v765, 112
    %v769 = vpop.permute.xlu0 %768
    %v771 = vmul.f32 %v764, %v769
    %773 = vrot.lane.b32.xlu0 %v771, 8
    %v774 = vpop.permute.xlu0 %773
    %v776 = vadd.f32 %v766, %v774
    %v777 = vtanh.pop %v776
    %779 = vrot.lane.b32.xlu0 %v777, 16
    %v780 = vpop.permute.xlu0 %779
    %v782 = vmul.f32 %v764, %v780
    %v783 = vadd.f32 %v711, %v755
    %v784 = vmul.f32 %v783, 0.5
    %v785 = vtanh.pop %v784
    %v786 = vadd.f32 %v785, 1.0
    %v787 = vmul.f32 %v786, 0.5
    %v788 = vtanh.pop %v783
    %v789 = vmul.f32 %v787, 0.0
    %791 = vrot.lane.b32.xlu0 %v788, 112
    %v792 = vpop.permute.xlu0 %791
    %v794 = vmul.f32 %v787, %v792
    %796 = vrot.lane.b32.xlu0 %v794, 8
    %v797 = vpop.permute.xlu0 %796
    %v799 = vadd.f32 %v789, %v797
    %v800 = vtanh.pop %v799
    %802 = vrot.lane.b32.xlu0 %v800, 16
    %v803 = vpop.permute.xlu0 %802
    %v805 = vmul.f32 %v787, %v803
    %807 = vrot.lane.b32.xlu0 %v782, 104
    %v808 = vpop.permute.xlu0 %807
    %vm810 = vcmask 58368
    %811 = vst.msk [vmem:[#allocation3] sm:$0x3] %vm810, %v808
    %813 = vrot.lane.b32.xlu0 %v805, 80
    %v814 = vpop.permute.xlu0 %813
    %vm816 = vcmask 123968
    %817 = vst.msk [vmem:[#allocation3 + $0x20] sm:$0x3] %vm816, %v814
    %v818 = vsel %vm449, %v808, %v814
    %v819 = vpack.c.bf16 %v818, %v818
    %v821 = vsel %vm424, %v819, 0
    %823 = vmatprep.subr.bf16.mxu0 0
    %824 = vmatpush1.bf16.msra.mxu0 %v716
    %825 = vmatprep.subr.bf16.mxu0 0
    %826 = vmatpush1.bf16.msra.mxu0 0
    %827 = vmatprep.subr.bf16.mxu0 0
    %828 = vmatpush1.bf16.msra.mxu0 0
    %829 = vmatprep.subr.bf16.mxu0 0
    %830 = vmatpush1.bf16.msra.mxu0 0
    %831 = vmatprep.subr.bf16.mxu0 0
    %832 = vmatpush1.bf16.msra.mxu0 0
    %833 = vmatprep.subr.bf16.mxu0 0
    %834 = vmatpush1.bf16.msra.mxu0 0
    %835 = vmatprep.subr.bf16.mxu0 0
    %836 = vmatpush1.bf16.msra.mxu0 0
    %837 = vmatprep.subr.bf16.mxu0 0
    %838 = vmatpush1.bf16.msra.mxu0 0
    %839 = vmatprep.subr.bf16.mxu0 0
    %840 = vmatpush1.bf16.msra.mxu0 0
    %841 = vmatprep.subr.bf16.mxu0 0
    %842 = vmatpush1.bf16.msra.mxu0 0
    %843 = vmatprep.subr.bf16.mxu0 0
    %844 = vmatpush1.bf16.msra.mxu0 0
    %845 = vmatprep.subr.bf16.mxu0 0
    %846 = vmatpush1.bf16.msra.mxu0 0
    %847 = vmatprep.subr.bf16.mxu0 0
    %848 = vmatpush1.bf16.msra.mxu0 0
    %849 = vmatprep.subr.bf16.mxu0 0
    %850 = vmatpush1.bf16.msra.mxu0 0
    %851 = vmatprep.subr.bf16.mxu0 0
    %852 = vmatpush1.bf16.msra.mxu0 0
    %853 = vmatprep.subr.bf16.mxu0 0
    %854 = vmatpush1.bf16.msra.mxu0 0
    %855 = vmatprep.mubr.bf16.mxu0 0
    %856 = vmatmul.mubr.bf16.gmra.mrb[0].mxu0 %v821
    %v857 = vpop.f32.mrb[0].mxu0
    %v858 = vadd.f32 0.0, %v857
    %v859 = vpop.f32.mrb[0].mxu0
    %v860 = vpop.f32.mrb[0].mxu0
    %v861 = vpop.f32.mrb[0].mxu0
    %862 = vdwg.mxu0
    %v864 = vrot.slane %v858, 6
    %v866 = vadd.f32 %v695, %v864
    %v867 = vmul.f32 %v866, 0.5
    %v868 = vtanh.pop %v867
    %v869 = vadd.f32 %v868, 1.0
    %v870 = vmul.f32 %v869, 0.5
    %v871 = vtanh.pop %v866
    %v873 = vrot.slane %v776, 6
    %v875 = vmul.f32 %v870, %v873
    %877 = vrot.lane.b32.xlu0 %v871, 112
    %v878 = vpop.permute.xlu0 %877
    %v880 = vmul.f32 %v870, %v878
    %882 = vrot.lane.b32.xlu0 %v880, 8
    %v883 = vpop.permute.xlu0 %882
    %v885 = vadd.f32 %v875, %v883
    %v886 = vtanh.pop %v885
    %888 = vrot.lane.b32.xlu0 %v886, 16
    %v889 = vpop.permute.xlu0 %888
    %v891 = vmul.f32 %v870, %v889
    %v892 = vrot.slane %v858, 2
    %v894 = vadd.f32 %v706, %v892
    %v895 = vmul.f32 %v894, 0.5
    %v896 = vtanh.pop %v895
    %v897 = vadd.f32 %v896, 1.0
    %v898 = vmul.f32 %v897, 0.5
    %v899 = vtanh.pop %v894
    %v901 = vrot.slane %v799, 2
    %v903 = vmul.f32 %v898, %v901
    %905 = vrot.lane.b32.xlu0 %v899, 112
    %v906 = vpop.permute.xlu0 %905
    %v908 = vmul.f32 %v898, %v906
    %910 = vrot.lane.b32.xlu0 %v908, 8
    %v911 = vpop.permute.xlu0 %910
    %v913 = vadd.f32 %v903, %v911
    %v914 = vtanh.pop %v913
    %916 = vrot.lane.b32.xlu0 %v914, 16
    %v917 = vpop.permute.xlu0 %916
    %v919 = vmul.f32 %v898, %v917
    %921 = vrot.lane.b32.xlu0 %v891, 104
    %v922 = vpop.permute.xlu0 %921
    %vm924 = vcmask 60418
    %925 = vst.msk [vmem:[#allocation3] sm:$0xc] %vm924, %v922
    %927 = vrot.lane.b32.xlu0 %v919, 80
    %v928 = vpop.permute.xlu0 %927
    %vm930 = vcmask 130118
    %931 = vst.msk [vmem:[#allocation3 + $0x18] sm:$0xc0] %vm930, %v928
    %v932 = vrot.slane %v919, 4
    %933 = vrot.lane.b32.xlu0 %v932, 80
    %v934 = vpop.permute.xlu0 %933
    %v936 = vsel %vm449, %v922, %v934
    %v937 = vpack.c.bf16 %v936, %v936
    %v939 = vrot.slane %v937, 1
    %v941 = vsel %vm424, %v939, 0
    %943 = vmatprep.subr.bf16.mxu0 0
    %944 = vmatpush1.bf16.msra.mxu0 %v716
    %945 = vmatprep.subr.bf16.mxu0 0
    %946 = vmatpush1.bf16.msra.mxu0 0
    %947 = vmatprep.subr.bf16.mxu0 0
    %948 = vmatpush1.bf16.msra.mxu0 0
    %949 = vmatprep.subr.bf16.mxu0 0
    %950 = vmatpush1.bf16.msra.mxu0 0
    %951 = vmatprep.subr.bf16.mxu0 0
    %952 = vmatpush1.bf16.msra.mxu0 0
    %953 = vmatprep.subr.bf16.mxu0 0
    %954 = vmatpush1.bf16.msra.mxu0 0
    %955 = vmatprep.subr.bf16.mxu0 0
    %956 = vmatpush1.bf16.msra.mxu0 0
    %957 = vmatprep.subr.bf16.mxu0 0
    %958 = vmatpush1.bf16.msra.mxu0 0
    %959 = vmatprep.subr.bf16.mxu0 0
    %960 = vmatpush1.bf16.msra.mxu0 0
    %961 = vmatprep.subr.bf16.mxu0 0
    %962 = vmatpush1.bf16.msra.mxu0 0
    %963 = vmatprep.subr.bf16.mxu0 0
    %964 = vmatpush1.bf16.msra.mxu0 0
    %965 = vmatprep.subr.bf16.mxu0 0
    %966 = vmatpush1.bf16.msra.mxu0 0
    %967 = vmatprep.subr.bf16.mxu0 0
    %968 = vmatpush1.bf16.msra.mxu0 0
    %969 = vmatprep.subr.bf16.mxu0 0
    %970 = vmatpush1.bf16.msra.mxu0 0
    %971 = vmatprep.subr.bf16.mxu0 0
    %972 = vmatpush1.bf16.msra.mxu0 0
    %973 = vmatprep.subr.bf16.mxu0 0
    %974 = vmatpush1.bf16.msra.mxu0 0
    %975 = vmatprep.mubr.bf16.mxu0 0
    %976 = vmatmul.mubr.bf16.gmra.mrb[0].mxu0 %v941
    %v977 = vpop.f32.mrb[0].mxu0
    %v978 = vadd.f32 0.0, %v977
    %v979 = vpop.f32.mrb[0].mxu0
    %v980 = vpop.f32.mrb[0].mxu0
    %v981 = vpop.f32.mrb[0].mxu0
    %982 = vdwg.mxu0
    %v984 = vrot.slane %v978, 4
    %v986 = vadd.f32 %v695, %v984
    %v987 = vmul.f32 %v986, 0.5
    %v988 = vtanh.pop %v987
    %v989 = vadd.f32 %v988, 1.0
    %v990 = vmul.f32 %v989, 0.5
    %v991 = vtanh.pop %v986
    %v993 = vrot.slane %v885, 6
    %v995 = vmul.f32 %v990, %v993
    %997 = vrot.lane.b32.xlu0 %v991, 112
    %v998 = vpop.permute.xlu0 %997
    %v1000 = vmul.f32 %v990, %v998
    %1002 = vrot.lane.b32.xlu0 %v1000, 8
    %v1003 = vpop.permute.xlu0 %1002
    %v1005 = vadd.f32 %v995, %v1003
    %v1006 = vtanh.pop %v1005
    %1008 = vrot.lane.b32.xlu0 %v1006, 16
    %v1009 = vpop.permute.xlu0 %1008
    %v1011 = vmul.f32 %v990, %v1009
    %v1012 = vadd.f32 %v706, %v984
    %v1013 = vmul.f32 %v1012, 0.5
    %v1014 = vtanh.pop %v1013
    %v1015 = vadd.f32 %v1014, 1.0
    %v1016 = vmul.f32 %v1015, 0.5
    %v1017 = vtanh.pop %v1012
    %v1019 = vrot.slane %v913, 2
    %v1021 = vmul.f32 %v1016, %v1019
    %1023 = vrot.lane.b32.xlu0 %v1017, 112
    %v1024 = vpop.permute.xlu0 %1023
    %v1026 = vmul.f32 %v1016, %v1024
    %1028 = vrot.lane.b32.xlu0 %v1026, 8
    %v1029 = vpop.permute.xlu0 %1028
    %v1031 = vadd.f32 %v1021, %v1029
    %v1032 = vtanh.pop %v1031
    %1034 = vrot.lane.b32.xlu0 %v1032, 16
    %v1035 = vpop.permute.xlu0 %1034
    %v1037 = vmul.f32 %v1016, %v1035
    %1039 = vrot.lane.b32.xlu0 %v1011, 104
    %v1040 = vpop.permute.xlu0 %1039
    %vm1042 = vcmask 62468
    %1043 = vst.msk [vmem:[#allocation3] sm:$0x30] %vm1042, %v1040
    %1045 = vrot.lane.b32.xlu0 %v1037, 80
    %v1046 = vpop.permute.xlu0 %1045
    %vm1048 = vcmask 128068
    %1049 = vst.msk [vmem:[#allocation3 + $0x18] sm:$0x30] %vm1048, %v1046
    %v1050 = vsel %vm449, %v1040, %v1046
    %v1051 = vpack.c.bf16 %v1050, %v1050
    %v1053 = vrot.slane %v1051, 2
    %v1055 = vsel %vm424, %v1053, 0
    %1057 = vmatprep.subr.bf16.mxu0 0
    %1058 = vmatpush1.bf16.msra.mxu0 %v716
    %1059 = vmatprep.subr.bf16.mxu0 0
    %1060 = vmatpush1.bf16.msra.mxu0 0
    %1061 = vmatprep.subr.bf16.mxu0 0
    %1062 = vmatpush1.bf16.msra.mxu0 0
    %1063 = vmatprep.subr.bf16.mxu0 0
    %1064 = vmatpush1.bf16.msra.mxu0 0
    %1065 = vmatprep.subr.bf16.mxu0 0
    %1066 = vmatpush1.bf16.msra.mxu0 0
    %1067 = vmatprep.subr.bf16.mxu0 0
    %1068 = vmatpush1.bf16.msra.mxu0 0
    %1069 = vmatprep.subr.bf16.mxu0 0
    %1070 = vmatpush1.bf16.msra.mxu0 0
    %1071 = vmatprep.subr.bf16.mxu0 0
    %1072 = vmatpush1.bf16.msra.mxu0 0
    %1073 = vmatprep.subr.bf16.mxu0 0
    %1074 = vmatpush1.bf16.msra.mxu0 0
    %1075 = vmatprep.subr.bf16.mxu0 0
    %1076 = vmatpush1.bf16.msra.mxu0 0
    %1077 = vmatprep.subr.bf16.mxu0 0
    %1078 = vmatpush1.bf16.msra.mxu0 0
    %1079 = vmatprep.subr.bf16.mxu0 0
    %1080 = vmatpush1.bf16.msra.mxu0 0
    %1081 = vmatprep.subr.bf16.mxu0 0
    %1082 = vmatpush1.bf16.msra.mxu0 0
    %1083 = vmatprep.subr.bf16.mxu0 0
    %1084 = vmatpush1.bf16.msra.mxu0 0
    %1085 = vmatprep.subr.bf16.mxu0 0
    %1086 = vmatpush1.bf16.msra.mxu0 0
    %1087 = vmatprep.subr.bf16.mxu0 0
    %1088 = vmatpush1.bf16.msra.mxu0 0
    %1089 = vmatprep.mubr.bf16.mxu0 0
    %1090 = vmatmul.mubr.bf16.gmra.mrb[0].mxu0 %v1055
    %v1091 = vpop.f32.mrb[0].mxu0
    %v1092 = vadd.f32 0.0, %v1091
    %v1093 = vpop.f32.mrb[0].mxu0
    %v1094 = vpop.f32.mrb[0].mxu0
    %v1095 = vpop.f32.mrb[0].mxu0
    %1096 = vdwg.mxu0
    %v1098 = vrot.slane %v1092, 2
    %v1100 = vadd.f32 %v695, %v1098
    %v1101 = vmul.f32 %v1100, 0.5
    %v1102 = vtanh.pop %v1101
    %v1103 = vadd.f32 %v1102, 1.0
    %v1104 = vmul.f32 %v1103, 0.5
    %v1105 = vtanh.pop %v1100
    %v1107 = vrot.slane %v1005, 6
    %v1109 = vmul.f32 %v1104, %v1107
    %1111 = vrot.lane.b32.xlu0 %v1105, 112
    %v1112 = vpop.permute.xlu0 %1111
    %v1114 = vmul.f32 %v1104, %v1112
    %1116 = vrot.lane.b32.xlu0 %v1114, 8
    %v1117 = vpop.permute.xlu0 %1116
    %v1119 = vadd.f32 %v1109, %v1117
    %v1120 = vtanh.pop %v1119
    %1122 = vrot.lane.b32.xlu0 %v1120, 16
    %v1123 = vpop.permute.xlu0 %1122
    %v1125 = vmul.f32 %v1104, %v1123
    %v1126 = vrot.slane %v1092, 6
    %v1128 = vadd.f32 %v706, %v1126
    %v1129 = vmul.f32 %v1128, 0.5
    %v1130 = vtanh.pop %v1129
    %v1131 = vadd.f32 %v1130, 1.0
    %v1132 = vmul.f32 %v1131, 0.5
    %v1133 = vtanh.pop %v1128
    %v1135 = vrot.slane %v1031, 2
    %v1137 = vmul.f32 %v1132, %v1135
    %1139 = vrot.lane.b32.xlu0 %v1133, 112
    %v1140 = vpop.permute.xlu0 %1139
    %v1142 = vmul.f32 %v1132, %v1140
    %1144 = vrot.lane.b32.xlu0 %v1142, 8
    %v1145 = vpop.permute.xlu0 %1144
    %v1147 = vadd.f32 %v1137, %v1145
    %v1148 = vtanh.pop %v1147
    %1150 = vrot.lane.b32.xlu0 %v1148, 16
    %v1151 = vpop.permute.xlu0 %1150
    %v1153 = vmul.f32 %v1132, %v1151
    %1155 = vrot.lane.b32.xlu0 %v1125, 104
    %v1156 = vpop.permute.xlu0 %1155
    %vm1158 = vcmask 64518
    %1159 = vst.msk [vmem:[#allocation3] sm:$0xc0] %vm1158, %v1156
    %1161 = vrot.lane.b32.xlu0 %v1153, 80
    %v1162 = vpop.permute.xlu0 %1161
    %vm1164 = vcmask 126018
    %1165 = vst.msk [vmem:[#allocation3 + $0x18] sm:$0xc] %vm1164, %v1162
    %v1166 = vrot.slane %v1153, 4
    %1167 = vrot.lane.b32.xlu0 %v1166, 80
    %v1168 = vpop.permute.xlu0 %1167
    %v1170 = vsel %vm449, %v1156, %v1168
    %v1171 = vpack.c.bf16 %v1170, %v1170
    %v1173 = vrot.slane %v1171, 3
    %v1175 = vsel %vm424, %v1173, 0
    %1177 = vmatprep.subr.bf16.mxu0 0
    %1178 = vmatpush1.bf16.msra.mxu0 %v716
    %1179 = vmatprep.subr.bf16.mxu0 0
    %1180 = vmatpush1.bf16.msra.mxu0 0
    %1181 = vmatprep.subr.bf16.mxu0 0
    %1182 = vmatpush1.bf16.msra.mxu0 0
    %1183 = vmatprep.subr.bf16.mxu0 0
    %1184 = vmatpush1.bf16.msra.mxu0 0
    %1185 = vmatprep.subr.bf16.mxu0 0
    %1186 = vmatpush1.bf16.msra.mxu0 0
    %1187 = vmatprep.subr.bf16.mxu0 0
    %1188 = vmatpush1.bf16.msra.mxu0 0
    %1189 = vmatprep.subr.bf16.mxu0 0
    %1190 = vmatpush1.bf16.msra.mxu0 0
    %1191 = vmatprep.subr.bf16.mxu0 0
    %1192 = vmatpush1.bf16.msra.mxu0 0
    %1193 = vmatprep.subr.bf16.mxu0 0
    %1194 = vmatpush1.bf16.msra.mxu0 0
    %1195 = vmatprep.subr.bf16.mxu0 0
    %1196 = vmatpush1.bf16.msra.mxu0 0
    %1197 = vmatprep.subr.bf16.mxu0 0
    %1198 = vmatpush1.bf16.msra.mxu0 0
    %1199 = vmatprep.subr.bf16.mxu0 0
    %1200 = vmatpush1.bf16.msra.mxu0 0
    %1201 = vmatprep.subr.bf16.mxu0 0
    %1202 = vmatpush1.bf16.msra.mxu0 0
    %1203 = vmatprep.subr.bf16.mxu0 0
    %1204 = vmatpush1.bf16.msra.mxu0 0
    %1205 = vmatprep.subr.bf16.mxu0 0
    %1206 = vmatpush1.bf16.msra.mxu0 0
    %1207 = vmatprep.subr.bf16.mxu0 0
    %1208 = vmatpush1.bf16.msra.mxu0 0
    %1209 = vmatprep.mubr.bf16.mxu0 0
    %1210 = vmatmul.mubr.bf16.gmra.mrb[0].mxu0 %v1175
    %v1211 = vpop.f32.mrb[0].mxu0
    %v1212 = vadd.f32 0.0, %v1211
    %v1213 = vpop.f32.mrb[0].mxu0
    %v1214 = vpop.f32.mrb[0].mxu0
    %v1215 = vpop.f32.mrb[0].mxu0
    %1216 = vdwg.mxu0
    %v1217 = vadd.f32 %v698, %v1212
    %v1218 = vmul.f32 %v1217, 0.5
    %v1219 = vtanh.pop %v1218
    %v1220 = vadd.f32 %v1219, 1.0
    %v1221 = vmul.f32 %v1220, 0.5
    %v1222 = vtanh.pop %v1217
    %v1224 = vrot.slane %v1119, 6
    %v1226 = vmul.f32 %v1221, %v1224
    %1228 = vrot.lane.b32.xlu0 %v1222, 112
    %v1229 = vpop.permute.xlu0 %1228
    %v1231 = vmul.f32 %v1221, %v1229
    %1233 = vrot.lane.b32.xlu0 %v1231, 8
    %v1234 = vpop.permute.xlu0 %1233
    %v1236 = vadd.f32 %v1226, %v1234
    %v1237 = vtanh.pop %v1236
    %1239 = vrot.lane.b32.xlu0 %v1237, 16
    %v1240 = vpop.permute.xlu0 %1239
    %v1242 = vmul.f32 %v1221, %v1240
    %v1243 = vadd.f32 %v706, %v1212
    %v1244 = vmul.f32 %v1243, 0.5
    %v1245 = vtanh.pop %v1244
    %v1246 = vadd.f32 %v1245, 1.0
    %v1247 = vmul.f32 %v1246, 0.5
    %v1248 = vtanh.pop %v1243
    %v1250 = vrot.slane %v1147, 2
    %v1252 = vmul.f32 %v1247, %v1250
    %1254 = vrot.lane.b32.xlu0 %v1248, 112
    %v1255 = vpop.permute.xlu0 %1254
    %v1257 = vmul.f32 %v1247, %v1255
    %1259 = vrot.lane.b32.xlu0 %v1257, 8
    %v1260 = vpop.permute.xlu0 %1259
    %v1262 = vadd.f32 %v1252, %v1260
    %v1263 = vtanh.pop %v1262
    %1265 = vrot.lane.b32.xlu0 %v1263, 16
    %v1266 = vpop.permute.xlu0 %1265
    %v1268 = vmul.f32 %v1247, %v1266
    %1270 = vrot.lane.b32.xlu0 %v1242, 104
    %v1271 = vpop.permute.xlu0 %1270
    %1273 = vst.msk [vmem:[#allocation3 + $0x8] sm:$0x3] %vm810, %v1271
    %1275 = vrot.lane.b32.xlu0 %v1268, 80
    %v1276 = vpop.permute.xlu0 %1275
    %1278 = vst.msk [vmem:[#allocation3 + $0x18] sm:$0x3] %vm816, %v1276
    %v1279 = vsel %vm449, %v1271, %v1276
    %v1280 = vpack.c.bf16 %v1279, %v1279
    %v1282 = vsel %vm424, %v1280, 0
    %1284 = vmatprep.subr.bf16.mxu0 0
    %1285 = vmatpush1.bf16.msra.mxu0 %v716
    %1286 = vmatprep.subr.bf16.mxu0 0
    %1287 = vmatpush1.bf16.msra.mxu0 0
    %1288 = vmatprep.subr.bf16.mxu0 0
    %1289 = vmatpush1.bf16.msra.mxu0 0
    %1290 = vmatprep.subr.bf16.mxu0 0
    %1291 = vmatpush1.bf16.msra.mxu0 0
    %1292 = vmatprep.subr.bf16.mxu0 0
    %1293 = vmatpush1.bf16.msra.mxu0 0
    %1294 = vmatprep.subr.bf16.mxu0 0
    %1295 = vmatpush1.bf16.msra.mxu0 0
    %1296 = vmatprep.subr.bf16.mxu0 0
    %1297 = vmatpush1.bf16.msra.mxu0 0
    %1298 = vmatprep.subr.bf16.mxu0 0
    %1299 = vmatpush1.bf16.msra.mxu0 0
    %1300 = vmatprep.subr.bf16.mxu0 0
    %1301 = vmatpush1.bf16.msra.mxu0 0
    %1302 = vmatprep.subr.bf16.mxu0 0
    %1303 = vmatpush1.bf16.msra.mxu0 0
    %1304 = vmatprep.subr.bf16.mxu0 0
    %1305 = vmatpush1.bf16.msra.mxu0 0
    %1306 = vmatprep.subr.bf16.mxu0 0
    %1307 = vmatpush1.bf16.msra.mxu0 0
    %1308 = vmatprep.subr.bf16.mxu0 0
    %1309 = vmatpush1.bf16.msra.mxu0 0
    %1310 = vmatprep.subr.bf16.mxu0 0
    %1311 = vmatpush1.bf16.msra.mxu0 0
    %1312 = vmatprep.subr.bf16.mxu0 0
    %1313 = vmatpush1.bf16.msra.mxu0 0
    %1314 = vmatprep.subr.bf16.mxu0 0
    %1315 = vmatpush1.bf16.msra.mxu0 0
    %1316 = vmatprep.mubr.bf16.mxu0 0
    %1317 = vmatmul.mubr.bf16.gmra.mrb[0].mxu0 %v1282
    %v1318 = vpop.f32.mrb[0].mxu0
    %v1319 = vadd.f32 0.0, %v1318
    %v1320 = vpop.f32.mrb[0].mxu0
    %v1321 = vpop.f32.mrb[0].mxu0
    %v1322 = vpop.f32.mrb[0].mxu0
    %1323 = vdwg.mxu0
    %v1325 = vrot.slane %v1319, 6
    %v1327 = vadd.f32 %v698, %v1325
    %v1328 = vmul.f32 %v1327, 0.5
    %v1329 = vtanh.pop %v1328
    %v1330 = vadd.f32 %v1329, 1.0
    %v1331 = vmul.f32 %v1330, 0.5
    %v1332 = vtanh.pop %v1327
    %v1334 = vrot.slane %v1236, 6
    %v1336 = vmul.f32 %v1331, %v1334
    %1338 = vrot.lane.b32.xlu0 %v1332, 112
    %v1339 = vpop.permute.xlu0 %1338
    %v1341 = vmul.f32 %v1331, %v1339
    %1343 = vrot.lane.b32.xlu0 %v1341, 8
    %v1344 = vpop.permute.xlu0 %1343
    %v1346 = vadd.f32 %v1336, %v1344
    %v1347 = vtanh.pop %v1346
    %1349 = vrot.lane.b32.xlu0 %v1347, 16
    %v1350 = vpop.permute.xlu0 %1349
    %v1352 = vmul.f32 %v1331, %v1350
    %v1353 = vrot.slane %v1319, 2
    %v1355 = vadd.f32 %v703, %v1353
    %v1356 = vmul.f32 %v1355, 0.5
    %v1357 = vtanh.pop %v1356
    %v1358 = vadd.f32 %v1357, 1.0
    %v1359 = vmul.f32 %v1358, 0.5
    %v1360 = vtanh.pop %v1355
    %v1362 = vrot.slane %v1262, 2
    %v1364 = vmul.f32 %v1359, %v1362
    %1366 = vrot.lane.b32.xlu0 %v1360, 112
    %v1367 = vpop.permute.xlu0 %1366
    %v1369 = vmul.f32 %v1359, %v1367
    %1371 = vrot.lane.b32.xlu0 %v1369, 8
    %v1372 = vpop.permute.xlu0 %1371
    %v1374 = vadd.f32 %v1364, %v1372
    %v1375 = vtanh.pop %v1374
    %1377 = vrot.lane.b32.xlu0 %v1375, 16
    %v1378 = vpop.permute.xlu0 %1377
    %v1380 = vmul.f32 %v1359, %v1378
    %1382 = vrot.lane.b32.xlu0 %v1352, 104
    %v1383 = vpop.permute.xlu0 %1382
    %1385 = vst.msk [vmem:[#allocation3 + $0x8] sm:$0xc] %vm924, %v1383
    %1387 = vrot.lane.b32.xlu0 %v1380, 80
    %v1388 = vpop.permute.xlu0 %1387
    %1390 = vst.msk [vmem:[#allocation3 + $0x10] sm:$0xc0] %vm930, %v1388
    %v1391 = vrot.slane %v1380, 4
    %1392 = vrot.lane.b32.xlu0 %v1391, 80
    %v1393 = vpop.permute.xlu0 %1392
    %v1395 = vsel %vm449, %v1383, %v1393
    %v1396 = vpack.c.bf16 %v1395, %v1395
    %v1398 = vrot.slane %v1396, 1
    %v1400 = vsel %vm424, %v1398, 0
    %1402 = vmatprep.subr.bf16.mxu0 0
    %1403 = vmatpush1.bf16.msra.mxu0 %v716
    %1404 = vmatprep.subr.bf16.mxu0 0
    %1405 = vmatpush1.bf16.msra.mxu0 0
    %1406 = vmatprep.subr.bf16.mxu0 0
    %1407 = vmatpush1.bf16.msra.mxu0 0
    %1408 = vmatprep.subr.bf16.mxu0 0
    %1409 = vmatpush1.bf16.msra.mxu0 0
    %1410 = vmatprep.subr.bf16.mxu0 0
    %1411 = vmatpush1.bf16.msra.mxu0 0
    %1412 = vmatprep.subr.bf16.mxu0 0
    %1413 = vmatpush1.bf16.msra.mxu0 0
    %1414 = vmatprep.subr.bf16.mxu0 0
    %1415 = vmatpush1.bf16.msra.mxu0 0
    %1416 = vmatprep.subr.bf16.mxu0 0
    %1417 = vmatpush1.bf16.msra.mxu0 0
    %1418 = vmatprep.subr.bf16.mxu0 0
    %1419 = vmatpush1.bf16.msra.mxu0 0
    %1420 = vmatprep.subr.bf16.mxu0 0
    %1421 = vmatpush1.bf16.msra.mxu0 0
    %1422 = vmatprep.subr.bf16.mxu0 0
    %1423 = vmatpush1.bf16.msra.mxu0 0
    %1424 = vmatprep.subr.bf16.mxu0 0
    %1425 = vmatpush1.bf16.msra.mxu0 0
    %1426 = vmatprep.subr.bf16.mxu0 0
    %1427 = vmatpush1.bf16.msra.mxu0 0
    %1428 = vmatprep.subr.bf16.mxu0 0
    %1429 = vmatpush1.bf16.msra.mxu0 0
    %1430 = vmatprep.subr.bf16.mxu0 0
    %1431 = vmatpush1.bf16.msra.mxu0 0
    %1432 = vmatprep.subr.bf16.mxu0 0
    %1433 = vmatpush1.bf16.msra.mxu0 0
    %1434 = vmatprep.mubr.bf16.mxu0 0
    %1435 = vmatmul.mubr.bf16.gmra.mrb[0].mxu0 %v1400
    %v1436 = vpop.f32.mrb[0].mxu0
    %v1437 = vadd.f32 0.0, %v1436
    %v1438 = vpop.f32.mrb[0].mxu0
    %v1439 = vpop.f32.mrb[0].mxu0
    %v1440 = vpop.f32.mrb[0].mxu0
    %1441 = vdwg.mxu0
    %v1443 = vrot.slane %v1437, 4
    %v1445 = vadd.f32 %v698, %v1443
    %v1446 = vmul.f32 %v1445, 0.5
    %v1447 = vtanh.pop %v1446
    %v1448 = vadd.f32 %v1447, 1.0
    %v1449 = vmul.f32 %v1448, 0.5
    %v1450 = vtanh.pop %v1445
    %v1452 = vrot.slane %v1346, 6
    %v1454 = vmul.f32 %v1449, %v1452
    %1456 = vrot.lane.b32.xlu0 %v1450, 112
    %v1457 = vpop.permute.xlu0 %1456
    %v1459 = vmul.f32 %v1449, %v1457
    %1461 = vrot.lane.b32.xlu0 %v1459, 8
    %v1462 = vpop.permute.xlu0 %1461
    %v1464 = vadd.f32 %v1454, %v1462
    %v1465 = vtanh.pop %v1464
    %1467 = vrot.lane.b32.xlu0 %v1465, 16
    %v1468 = vpop.permute.xlu0 %1467
    %v1470 = vmul.f32 %v1449, %v1468
    %v1471 = vadd.f32 %v703, %v1443
    %v1472 = vmul.f32 %v1471, 0.5
    %v1473 = vtanh.pop %v1472
    %v1474 = vadd.f32 %v1473, 1.0
    %v1475 = vmul.f32 %v1474, 0.5
    %v1476 = vtanh.pop %v1471
    %v1478 = vrot.slane %v1374, 2
    %v1480 = vmul.f32 %v1475, %v1478
    %1482 = vrot.lane.b32.xlu0 %v1476, 112
    %v1483 = vpop.permute.xlu0 %1482
    %v1485 = vmul.f32 %v1475, %v1483
    %1487 = vrot.lane.b32.xlu0 %v1485, 8
    %v1488 = vpop.permute.xlu0 %1487
    %v1490 = vadd.f32 %v1480, %v1488
    %v1491 = vtanh.pop %v1490
    %1493 = vrot.lane.b32.xlu0 %v1491, 16
    %v1494 = vpop.permute.xlu0 %1493
    %v1496 = vmul.f32 %v1475, %v1494
    %1498 = vrot.lane.b32.xlu0 %v1470, 104
    %v1499 = vpop.permute.xlu0 %1498
    %1501 = vst.msk [vmem:[#allocation3 + $0x8] sm:$0x30] %vm1042, %v1499
    %1503 = vrot.lane.b32.xlu0 %v1496, 80
    %v1504 = vpop.permute.xlu0 %1503
    %1506 = vst.msk [vmem:[#allocation3 + $0x10] sm:$0x30] %vm1048, %v1504
    %v1507 = vsel %vm449, %v1499, %v1504
    %v1508 = vpack.c.bf16 %v1507, %v1507
    %v1510 = vrot.slane %v1508, 2
    %v1512 = vsel %vm424, %v1510, 0
    %1514 = vmatprep.subr.bf16.mxu0 0
    %1515 = vmatpush1.bf16.msra.mxu0 %v716
    %1516 = vmatprep.subr.bf16.mxu0 0
    %1517 = vmatpush1.bf16.msra.mxu0 0
    %1518 = vmatprep.subr.bf16.mxu0 0
    %1519 = vmatpush1.bf16.msra.mxu0 0
    %1520 = vmatprep.subr.bf16.mxu0 0
    %1521 = vmatpush1.bf16.msra.mxu0 0
    %1522 = vmatprep.subr.bf16.mxu0 0
    %1523 = vmatpush1.bf16.msra.mxu0 0
    %1524 = vmatprep.subr.bf16.mxu0 0
    %1525 = vmatpush1.bf16.msra.mxu0 0
    %1526 = vmatprep.subr.bf16.mxu0 0
    %1527 = vmatpush1.bf16.msra.mxu0 0
    %1528 = vmatprep.subr.bf16.mxu0 0
    %1529 = vmatpush1.bf16.msra.mxu0 0
    %1530 = vmatprep.subr.bf16.mxu0 0
    %1531 = vmatpush1.bf16.msra.mxu0 0
    %1532 = vmatprep.subr.bf16.mxu0 0
    %1533 = vmatpush1.bf16.msra.mxu0 0
    %1534 = vmatprep.subr.bf16.mxu0 0
    %1535 = vmatpush1.bf16.msra.mxu0 0
    %1536 = vmatprep.subr.bf16.mxu0 0
    %1537 = vmatpush1.bf16.msra.mxu0 0
    %1538 = vmatprep.subr.bf16.mxu0 0
    %1539 = vmatpush1.bf16.msra.mxu0 0
    %1540 = vmatprep.subr.bf16.mxu0 0
    %1541 = vmatpush1.bf16.msra.mxu0 0
    %1542 = vmatprep.subr.bf16.mxu0 0
    %1543 = vmatpush1.bf16.msra.mxu0 0
    %1544 = vmatprep.subr.bf16.mxu0 0
    %1545 = vmatpush1.bf16.msra.mxu0 0
    %1546 = vmatprep.mubr.bf16.mxu0 0
    %1547 = vmatmul.mubr.bf16.gmra.mrb[0].mxu0 %v1512
    %v1548 = vpop.f32.mrb[0].mxu0
    %v1549 = vadd.f32 0.0, %v1548
    %v1550 = vpop.f32.mrb[0].mxu0
    %v1551 = vpop.f32.mrb[0].mxu0
    %v1552 = vpop.f32.mrb[0].mxu0
    %1553 = vdwg.mxu0
    %v1555 = vrot.slane %v1549, 2
    %v1557 = vadd.f32 %v698, %v1555
    %v1558 = vmul.f32 %v1557, 0.5
    %v1559 = vtanh.pop %v1558
    %v1560 = vadd.f32 %v1559, 1.0
    %v1561 = vmul.f32 %v1560, 0.5
    %v1562 = vtanh.pop %v1557
    %v1564 = vrot.slane %v1464, 6
    %v1566 = vmul.f32 %v1561, %v1564
    %1568 = vrot.lane.b32.xlu0 %v1562, 112
    %v1569 = vpop.permute.xlu0 %1568
    %v1571 = vmul.f32 %v1561, %v1569
    %1573 = vrot.lane.b32.xlu0 %v1571, 8
    %v1574 = vpop.permute.xlu0 %1573
    %v1576 = vadd.f32 %v1566, %v1574
    %v1577 = vtanh.pop %v1576
    %1579 = vrot.lane.b32.xlu0 %v1577, 16
    %v1580 = vpop.permute.xlu0 %1579
    %v1582 = vmul.f32 %v1561, %v1580
    %v1583 = vrot.slane %v1549, 6
    %v1585 = vadd.f32 %v703, %v1583
    %v1586 = vmul.f32 %v1585, 0.5
    %v1587 = vtanh.pop %v1586
    %v1588 = vadd.f32 %v1587, 1.0
    %v1589 = vmul.f32 %v1588, 0.5
    %v1590 = vtanh.pop %v1585
    %v1592 = vrot.slane %v1490, 2
    %v1594 = vmul.f32 %v1589, %v1592
    %1596 = vrot.lane.b32.xlu0 %v1590, 112
    %v1597 = vpop.permute.xlu0 %1596
    %v1599 = vmul.f32 %v1589, %v1597
    %1601 = vrot.lane.b32.xlu0 %v1599, 8
    %v1602 = vpop.permute.xlu0 %1601
    %v1604 = vadd.f32 %v1594, %v1602
    %v1605 = vtanh.pop %v1604
    %1607 = vrot.lane.b32.xlu0 %v1605, 16
    %v1608 = vpop.permute.xlu0 %1607
    %v1610 = vmul.f32 %v1589, %v1608
    %1612 = vrot.lane.b32.xlu0 %v1582, 104
    %v1613 = vpop.permute.xlu0 %1612
    %1615 = vst.msk [vmem:[#allocation3 + $0x8] sm:$0xc0] %vm1158, %v1613
    %1617 = vrot.lane.b32.xlu0 %v1610, 80
    %v1618 = vpop.permute.xlu0 %1617
    %1620 = vst.msk [vmem:[#allocation3 + $0x10] sm:$0xc] %vm1164, %v1618
    %v1621 = vrot.slane %v1610, 4
    %1622 = vrot.lane.b32.xlu0 %v1621, 80
    %v1623 = vpop.permute.xlu0 %1622
    %v1625 = vsel %vm449, %v1613, %v1623
    %v1626 = vpack.c.bf16 %v1625, %v1625
    %v1628 = vrot.slane %v1626, 3
    %v1630 = vsel %vm424, %v1628, 0
    %1632 = vmatprep.subr.bf16.mxu0 0
    %1633 = vmatpush1.bf16.msra.mxu0 %v716
    %1634 = vmatprep.subr.bf16.mxu0 0
    %1635 = vmatpush1.bf16.msra.mxu0 0
    %1636 = vmatprep.subr.bf16.mxu0 0
    %1637 = vmatpush1.bf16.msra.mxu0 0
    %1638 = vmatprep.subr.bf16.mxu0 0
    %1639 = vmatpush1.bf16.msra.mxu0 0
    %1640 = vmatprep.subr.bf16.mxu0 0
    %1641 = vmatpush1.bf16.msra.mxu0 0
    %1642 = vmatprep.subr.bf16.mxu0 0
    %1643 = vmatpush1.bf16.msra.mxu0 0
    %1644 = vmatprep.subr.bf16.mxu0 0
    %1645 = vmatpush1.bf16.msra.mxu0 0
    %1646 = vmatprep.subr.bf16.mxu0 0
    %1647 = vmatpush1.bf16.msra.mxu0 0
    %1648 = vmatprep.subr.bf16.mxu0 0
    %1649 = vmatpush1.bf16.msra.mxu0 0
    %1650 = vmatprep.subr.bf16.mxu0 0
    %1651 = vmatpush1.bf16.msra.mxu0 0
    %1652 = vmatprep.subr.bf16.mxu0 0
    %1653 = vmatpush1.bf16.msra.mxu0 0
    %1654 = vmatprep.subr.bf16.mxu0 0
    %1655 = vmatpush1.bf16.msra.mxu0 0
    %1656 = vmatprep.subr.bf16.mxu0 0
    %1657 = vmatpush1.bf16.msra.mxu0 0
    %1658 = vmatprep.subr.bf16.mxu0 0
    %1659 = vmatpush1.bf16.msra.mxu0 0
    %1660 = vmatprep.subr.bf16.mxu0 0
    %1661 = vmatpush1.bf16.msra.mxu0 0
    %1662 = vmatprep.subr.bf16.mxu0 0
    %1663 = vmatpush1.bf16.msra.mxu0 0
    %1664 = vmatprep.mubr.bf16.mxu0 0
    %1665 = vmatmul.mubr.bf16.gmra.mrb[0].mxu0 %v1630
    %v1666 = vpop.f32.mrb[0].mxu0
    %v1667 = vadd.f32 0.0, %v1666
    %v1668 = vpop.f32.mrb[0].mxu0
    %v1669 = vpop.f32.mrb[0].mxu0
    %v1670 = vpop.f32.mrb[0].mxu0
    %1671 = vdwg.mxu0
    %v1672 = vadd.f32 %v703, %v1667
    %v1673 = vmul.f32 %v1672, 0.5
    %v1674 = vtanh.pop %v1673
    %v1675 = vadd.f32 %v1674, 1.0
    %v1676 = vmul.f32 %v1675, 0.5
    %v1677 = vtanh.pop %v1672
    %v1679 = vrot.slane %v1576, 6
    %v1681 = vmul.f32 %v1676, %v1679
    %1683 = vrot.lane.b32.xlu0 %v1677, 112
    %v1684 = vpop.permute.xlu0 %1683
    %v1686 = vmul.f32 %v1676, %v1684
    %1688 = vrot.lane.b32.xlu0 %v1686, 8
    %v1689 = vpop.permute.xlu0 %1688
    %v1691 = vadd.f32 %v1681, %v1689
    %v1692 = vtanh.pop %v1691
    %1694 = vrot.lane.b32.xlu0 %v1692, 16
    %v1695 = vpop.permute.xlu0 %1694
    %v1697 = vmul.f32 %v1676, %v1695
    %v1699 = vrot.slane %v1604, 2
    %v1701 = vmul.f32 %v1676, %v1699
    %v1702 = vadd.f32 %v1701, %v1689
    %v1703 = vtanh.pop %v1702
    %1705 = vrot.lane.b32.xlu0 %v1703, 16
    %v1706 = vpop.permute.xlu0 %1705
    %v1708 = vmul.f32 %v1676, %v1706
    %1710 = vrot.lane.b32.xlu0 %v1697, 104
    %v1711 = vpop.permute.xlu0 %1710
    %1713 = vst.msk [vmem:[#allocation3 + $0x10] sm:$0x3] %vm810, %v1711
    %1715 = vrot.lane.b32.xlu0 %v1708, 80
    %v1716 = vpop.permute.xlu0 %1715
    %1718 = vst.msk [vmem:[#allocation3 + $0x10] sm:$0x3] %vm816, %v1716
    %v1719 = vsel %vm449, %v1711, %v1716
    %v1720 = vpack.c.bf16 %v1719, %v1719
    %v1722 = vsel %vm424, %v1720, 0
    %1724 = vmatprep.subr.bf16.mxu0 0
    %1725 = vmatpush1.bf16.msra.mxu0 %v716
    %1726 = vmatprep.subr.bf16.mxu0 0
    %1727 = vmatpush1.bf16.msra.mxu0 0
    %1728 = vmatprep.subr.bf16.mxu0 0
    %1729 = vmatpush1.bf16.msra.mxu0 0
    %1730 = vmatprep.subr.bf16.mxu0 0
    %1731 = vmatpush1.bf16.msra.mxu0 0
    %1732 = vmatprep.subr.bf16.mxu0 0
    %1733 = vmatpush1.bf16.msra.mxu0 0
    %1734 = vmatprep.subr.bf16.mxu0 0
    %1735 = vmatpush1.bf16.msra.mxu0 0
    %1736 = vmatprep.subr.bf16.mxu0 0
    %1737 = vmatpush1.bf16.msra.mxu0 0
    %1738 = vmatprep.subr.bf16.mxu0 0
    %1739 = vmatpush1.bf16.msra.mxu0 0
    %1740 = vmatprep.subr.bf16.mxu0 0
    %1741 = vmatpush1.bf16.msra.mxu0 0
    %1742 = vmatprep.subr.bf16.mxu0 0
    %1743 = vmatpush1.bf16.msra.mxu0 0
    %1744 = vmatprep.subr.bf16.mxu0 0
    %1745 = vmatpush1.bf16.msra.mxu0 0
    %1746 = vmatprep.subr.bf16.mxu0 0
    %1747 = vmatpush1.bf16.msra.mxu0 0
    %1748 = vmatprep.subr.bf16.mxu0 0
    %1749 = vmatpush1.bf16.msra.mxu0 0
    %1750 = vmatprep.subr.bf16.mxu0 0
    %1751 = vmatpush1.bf16.msra.mxu0 0
    %1752 = vmatprep.subr.bf16.mxu0 0
    %1753 = vmatpush1.bf16.msra.mxu0 0
    %1754 = vmatprep.subr.bf16.mxu0 0
    %1755 = vmatpush1.bf16.msra.mxu0 0
    %1756 = vmatprep.mubr.bf16.mxu0 0
    %1757 = vmatmul.mubr.bf16.gmra.mrb[0].mxu0 %v1722
    %v1758 = vpop.f32.mrb[0].mxu0
    %v1759 = vadd.f32 0.0, %v1758
    %v1760 = vpop.f32.mrb[0].mxu0
    %v1761 = vpop.f32.mrb[0].mxu0
    %v1762 = vpop.f32.mrb[0].mxu0
    %1763 = vdwg.mxu0
    %v1765 = vrot.slane %v1759, 6
    %v1767 = vadd.f32 %v703, %v1765
    %v1768 = vmul.f32 %v1767, 0.5
    %v1769 = vtanh.pop %v1768
    %v1770 = vadd.f32 %v1769, 1.0
    %v1771 = vmul.f32 %v1770, 0.5
    %v1772 = vtanh.pop %v1767
    %v1774 = vrot.slane %v1691, 6
    %v1776 = vmul.f32 %v1771, %v1774
    %1778 = vrot.lane.b32.xlu0 %v1772, 112
    %v1779 = vpop.permute.xlu0 %1778
    %v1781 = vmul.f32 %v1771, %v1779
    %1783 = vrot.lane.b32.xlu0 %v1781, 8
    %v1784 = vpop.permute.xlu0 %1783
    %v1786 = vadd.f32 %v1776, %v1784
    %v1787 = vtanh.pop %v1786
    %1789 = vrot.lane.b32.xlu0 %v1787, 16
    %v1790 = vpop.permute.xlu0 %1789
    %v1792 = vmul.f32 %v1771, %v1790
    %v1793 = vrot.slane %v1759, 2
    %v1795 = vadd.f32 %v698, %v1793
    %v1796 = vmul.f32 %v1795, 0.5
    %v1797 = vtanh.pop %v1796
    %v1798 = vadd.f32 %v1797, 1.0
    %v1799 = vmul.f32 %v1798, 0.5
    %v1800 = vtanh.pop %v1795
    %v1802 = vrot.slane %v1702, 2
    %v1804 = vmul.f32 %v1799, %v1802
    %1806 = vrot.lane.b32.xlu0 %v1800, 112
    %v1807 = vpop.permute.xlu0 %1806
    %v1809 = vmul.f32 %v1799, %v1807
    %1811 = vrot.lane.b32.xlu0 %v1809, 8
    %v1812 = vpop.permute.xlu0 %1811
    %v1814 = vadd.f32 %v1804, %v1812
    %v1815 = vtanh.pop %v1814
    %1817 = vrot.lane.b32.xlu0 %v1815, 16
    %v1818 = vpop.permute.xlu0 %1817
    %v1820 = vmul.f32 %v1799, %v1818
    %1822 = vrot.lane.b32.xlu0 %v1792, 104
    %v1823 = vpop.permute.xlu0 %1822
    %1825 = vst.msk [vmem:[#allocation3 + $0x10] sm:$0xc] %vm924, %v1823
    %1827 = vrot.lane.b32.xlu0 %v1820, 80
    %v1828 = vpop.permute.xlu0 %1827
    %1830 = vst.msk [vmem:[#allocation3 + $0x8] sm:$0xc0] %vm930, %v1828
    %v1831 = vrot.slane %v1820, 4
    %1832 = vrot.lane.b32.xlu0 %v1831, 80
    %v1833 = vpop.permute.xlu0 %1832
    %v1835 = vsel %vm449, %v1823, %v1833
    %v1836 = vpack.c.bf16 %v1835, %v1835
    %v1838 = vrot.slane %v1836, 1
    %v1840 = vsel %vm424, %v1838, 0
    %1842 = vmatprep.subr.bf16.mxu0 0
    %1843 = vmatpush1.bf16.msra.mxu0 %v716
    %1844 = vmatprep.subr.bf16.mxu0 0
    %1845 = vmatpush1.bf16.msra.mxu0 0
    %1846 = vmatprep.subr.bf16.mxu0 0
    %1847 = vmatpush1.bf16.msra.mxu0 0
    %1848 = vmatprep.subr.bf16.mxu0 0
    %1849 = vmatpush1.bf16.msra.mxu0 0
    %1850 = vmatprep.subr.bf16.mxu0 0
    %1851 = vmatpush1.bf16.msra.mxu0 0
    %1852 = vmatprep.subr.bf16.mxu0 0
    %1853 = vmatpush1.bf16.msra.mxu0 0
    %1854 = vmatprep.subr.bf16.mxu0 0
    %1855 = vmatpush1.bf16.msra.mxu0 0
    %1856 = vmatprep.subr.bf16.mxu0 0
    %1857 = vmatpush1.bf16.msra.mxu0 0
    %1858 = vmatprep.subr.bf16.mxu0 0
    %1859 = vmatpush1.bf16.msra.mxu0 0
    %1860 = vmatprep.subr.bf16.mxu0 0
    %1861 = vmatpush1.bf16.msra.mxu0 0
    %1862 = vmatprep.subr.bf16.mxu0 0
    %1863 = vmatpush1.bf16.msra.mxu0 0
    %1864 = vmatprep.subr.bf16.mxu0 0
    %1865 = vmatpush1.bf16.msra.mxu0 0
    %1866 = vmatprep.subr.bf16.mxu0 0
    %1867 = vmatpush1.bf16.msra.mxu0 0
    %1868 = vmatprep.subr.bf16.mxu0 0
    %1869 = vmatpush1.bf16.msra.mxu0 0
    %1870 = vmatprep.subr.bf16.mxu0 0
    %1871 = vmatpush1.bf16.msra.mxu0 0
    %1872 = vmatprep.subr.bf16.mxu0 0
    %1873 = vmatpush1.bf16.msra.mxu0 0
    %1874 = vmatprep.mubr.bf16.mxu0 0
    %1875 = vmatmul.mubr.bf16.gmra.mrb[0].mxu0 %v1840
    %v1876 = vpop.f32.mrb[0].mxu0
    %v1877 = vadd.f32 0.0, %v1876
    %v1878 = vpop.f32.mrb[0].mxu0
    %v1879 = vpop.f32.mrb[0].mxu0
    %v1880 = vpop.f32.mrb[0].mxu0
    %1881 = vdwg.mxu0
    %v1883 = vrot.slane %v1877, 4
    %v1885 = vadd.f32 %v703, %v1883
    %v1886 = vmul.f32 %v1885, 0.5
    %v1887 = vtanh.pop %v1886
    %v1888 = vadd.f32 %v1887, 1.0
    %v1889 = vmul.f32 %v1888, 0.5
    %v1890 = vtanh.pop %v1885
    %v1892 = vrot.slane %v1786, 6
    %v1894 = vmul.f32 %v1889, %v1892
    %1896 = vrot.lane.b32.xlu0 %v1890, 112
    %v1897 = vpop.permute.xlu0 %1896
    %v1899 = vmul.f32 %v1889, %v1897
    %1901 = vrot.lane.b32.xlu0 %v1899, 8
    %v1902 = vpop.permute.xlu0 %1901
    %v1904 = vadd.f32 %v1894, %v1902
    %v1905 = vtanh.pop %v1904
    %1907 = vrot.lane.b32.xlu0 %v1905, 16
    %v1908 = vpop.permute.xlu0 %1907
    %v1910 = vmul.f32 %v1889, %v1908
    %v1911 = vadd.f32 %v698, %v1883
    %v1912 = vmul.f32 %v1911, 0.5
    %v1913 = vtanh.pop %v1912
    %v1914 = vadd.f32 %v1913, 1.0
    %v1915 = vmul.f32 %v1914, 0.5
    %v1916 = vtanh.pop %v1911
    %v1918 = vrot.slane %v1814, 2
    %v1920 = vmul.f32 %v1915, %v1918
    %1922 = vrot.lane.b32.xlu0 %v1916, 112
    %v1923 = vpop.permute.xlu0 %1922
    %v1925 = vmul.f32 %v1915, %v1923
    %1927 = vrot.lane.b32.xlu0 %v1925, 8
    %v1928 = vpop.permute.xlu0 %1927
    %v1930 = vadd.f32 %v1920, %v1928
    %v1931 = vtanh.pop %v1930
    %1933 = vrot.lane.b32.xlu0 %v1931, 16
    %v1934 = vpop.permute.xlu0 %1933
    %v1936 = vmul.f32 %v1915, %v1934
    %1938 = vrot.lane.b32.xlu0 %v1910, 104
    %v1939 = vpop.permute.xlu0 %1938
    %1941 = vst.msk [vmem:[#allocation3 + $0x10] sm:$0x30] %vm1042, %v1939
    %1943 = vrot.lane.b32.xlu0 %v1936, 80
    %v1944 = vpop.permute.xlu0 %1943
    %1946 = vst.msk [vmem:[#allocation3 + $0x8] sm:$0x30] %vm1048, %v1944
    %v1947 = vsel %vm449, %v1939, %v1944
    %v1948 = vpack.c.bf16 %v1947, %v1947
    %v1950 = vrot.slane %v1948, 2
    %v1952 = vsel %vm424, %v1950, 0
    %1954 = vmatprep.subr.bf16.mxu0 0
    %1955 = vmatpush1.bf16.msra.mxu0 %v716
    %1956 = vmatprep.subr.bf16.mxu0 0
    %1957 = vmatpush1.bf16.msra.mxu0 0
    %1958 = vmatprep.subr.bf16.mxu0 0
    %1959 = vmatpush1.bf16.msra.mxu0 0
    %1960 = vmatprep.subr.bf16.mxu0 0
    %1961 = vmatpush1.bf16.msra.mxu0 0
    %1962 = vmatprep.subr.bf16.mxu0 0
    %1963 = vmatpush1.bf16.msra.mxu0 0
    %1964 = vmatprep.subr.bf16.mxu0 0
    %1965 = vmatpush1.bf16.msra.mxu0 0
    %1966 = vmatprep.subr.bf16.mxu0 0
    %1967 = vmatpush1.bf16.msra.mxu0 0
    %1968 = vmatprep.subr.bf16.mxu0 0
    %1969 = vmatpush1.bf16.msra.mxu0 0
    %1970 = vmatprep.subr.bf16.mxu0 0
    %1971 = vmatpush1.bf16.msra.mxu0 0
    %1972 = vmatprep.subr.bf16.mxu0 0
    %1973 = vmatpush1.bf16.msra.mxu0 0
    %1974 = vmatprep.subr.bf16.mxu0 0
    %1975 = vmatpush1.bf16.msra.mxu0 0
    %1976 = vmatprep.subr.bf16.mxu0 0
    %1977 = vmatpush1.bf16.msra.mxu0 0
    %1978 = vmatprep.subr.bf16.mxu0 0
    %1979 = vmatpush1.bf16.msra.mxu0 0
    %1980 = vmatprep.subr.bf16.mxu0 0
    %1981 = vmatpush1.bf16.msra.mxu0 0
    %1982 = vmatprep.subr.bf16.mxu0 0
    %1983 = vmatpush1.bf16.msra.mxu0 0
    %1984 = vmatprep.subr.bf16.mxu0 0
    %1985 = vmatpush1.bf16.msra.mxu0 0
    %1986 = vmatprep.mubr.bf16.mxu0 0
    %1987 = vmatmul.mubr.bf16.gmra.mrb[0].mxu0 %v1952
    %v1988 = vpop.f32.mrb[0].mxu0
    %v1989 = vadd.f32 0.0, %v1988
    %v1990 = vpop.f32.mrb[0].mxu0
    %v1991 = vpop.f32.mrb[0].mxu0
    %v1992 = vpop.f32.mrb[0].mxu0
    %1993 = vdwg.mxu0
    %v1995 = vrot.slane %v1989, 2
    %v1997 = vadd.f32 %v703, %v1995
    %v1998 = vmul.f32 %v1997, 0.5
    %v1999 = vtanh.pop %v1998
    %v2000 = vadd.f32 %v1999, 1.0
    %v2001 = vmul.f32 %v2000, 0.5
    %v2002 = vtanh.pop %v1997
    %v2004 = vrot.slane %v1904, 6
    %v2006 = vmul.f32 %v2001, %v2004
    %2008 = vrot.lane.b32.xlu0 %v2002, 112
    %v2009 = vpop.permute.xlu0 %2008
    %v2011 = vmul.f32 %v2001, %v2009
    %2013 = vrot.lane.b32.xlu0 %v2011, 8
    %v2014 = vpop.permute.xlu0 %2013
    %v2016 = vadd.f32 %v2006, %v2014
    %v2017 = vtanh.pop %v2016
    %2019 = vrot.lane.b32.xlu0 %v2017, 16
    %v2020 = vpop.permute.xlu0 %2019
    %v2022 = vmul.f32 %v2001, %v2020
    %v2023 = vrot.slane %v1989, 6
    %v2025 = vadd.f32 %v698, %v2023
    %v2026 = vmul.f32 %v2025, 0.5
    %v2027 = vtanh.pop %v2026
    %v2028 = vadd.f32 %v2027, 1.0
    %v2029 = vmul.f32 %v2028, 0.5
    %v2030 = vtanh.pop %v2025
    %v2032 = vrot.slane %v1930, 2
    %v2034 = vmul.f32 %v2029, %v2032
    %2036 = vrot.lane.b32.xlu0 %v2030, 112
    %v2037 = vpop.permute.xlu0 %2036
    %v2039 = vmul.f32 %v2029, %v2037
    %2041 = vrot.lane.b32.xlu0 %v2039, 8
    %v2042 = vpop.permute.xlu0 %2041
    %v2044 = vadd.f32 %v2034, %v2042
    %v2045 = vtanh.pop %v2044
    %2047 = vrot.lane.b32.xlu0 %v2045, 16
    %v2048 = vpop.permute.xlu0 %2047
    %v2050 = vmul.f32 %v2029, %v2048
    %2052 = vrot.lane.b32.xlu0 %v2022, 104
    %v2053 = vpop.permute.xlu0 %2052
    %2055 = vst.msk [vmem:[#allocation3 + $0x10] sm:$0xc0] %vm1158, %v2053
    %2057 = vrot.lane.b32.xlu0 %v2050, 80
    %v2058 = vpop.permute.xlu0 %2057
    %2060 = vst.msk [vmem:[#allocation3 + $0x8] sm:$0xc] %vm1164, %v2058
    %v2061 = vrot.slane %v2050, 4
    %2062 = vrot.lane.b32.xlu0 %v2061, 80
    %v2063 = vpop.permute.xlu0 %2062
    %v2065 = vsel %vm449, %v2053, %v2063
    %v2066 = vpack.c.bf16 %v2065, %v2065
    %v2068 = vrot.slane %v2066, 3
    %v2070 = vsel %vm424, %v2068, 0
    %2072 = vmatprep.subr.bf16.mxu0 0
    %2073 = vmatpush1.bf16.msra.mxu0 %v716
    %2074 = vmatprep.subr.bf16.mxu0 0
    %2075 = vmatpush1.bf16.msra.mxu0 0
    %2076 = vmatprep.subr.bf16.mxu0 0
    %2077 = vmatpush1.bf16.msra.mxu0 0
    %2078 = vmatprep.subr.bf16.mxu0 0
    %2079 = vmatpush1.bf16.msra.mxu0 0
    %2080 = vmatprep.subr.bf16.mxu0 0
    %2081 = vmatpush1.bf16.msra.mxu0 0
    %2082 = vmatprep.subr.bf16.mxu0 0
    %2083 = vmatpush1.bf16.msra.mxu0 0
    %2084 = vmatprep.subr.bf16.mxu0 0
    %2085 = vmatpush1.bf16.msra.mxu0 0
    %2086 = vmatprep.subr.bf16.mxu0 0
    %2087 = vmatpush1.bf16.msra.mxu0 0
    %2088 = vmatprep.subr.bf16.mxu0 0
    %2089 = vmatpush1.bf16.msra.mxu0 0
    %2090 = vmatprep.subr.bf16.mxu0 0
    %2091 = vmatpush1.bf16.msra.mxu0 0
    %2092 = vmatprep.subr.bf16.mxu0 0
    %2093 = vmatpush1.bf16.msra.mxu0 0
    %2094 = vmatprep.subr.bf16.mxu0 0
    %2095 = vmatpush1.bf16.msra.mxu0 0
    %2096 = vmatprep.subr.bf16.mxu0 0
    %2097 = vmatpush1.bf16.msra.mxu0 0
    %2098 = vmatprep.subr.bf16.mxu0 0
    %2099 = vmatpush1.bf16.msra.mxu0 0
    %2100 = vmatprep.subr.bf16.mxu0 0
    %2101 = vmatpush1.bf16.msra.mxu0 0
    %2102 = vmatprep.subr.bf16.mxu0 0
    %2103 = vmatpush1.bf16.msra.mxu0 0
    %2104 = vmatprep.mubr.bf16.mxu0 0
    %2105 = vmatmul.mubr.bf16.gmra.mrb[0].mxu0 %v2070
    %v2106 = vpop.f32.mrb[0].mxu0
    %v2107 = vadd.f32 0.0, %v2106
    %v2108 = vpop.f32.mrb[0].mxu0
    %v2109 = vpop.f32.mrb[0].mxu0
    %v2110 = vpop.f32.mrb[0].mxu0
    %2111 = vdwg.mxu0
    %v2112 = vadd.f32 %v706, %v2107
    %v2113 = vmul.f32 %v2112, 0.5
    %v2114 = vtanh.pop %v2113
    %v2115 = vadd.f32 %v2114, 1.0
    %v2116 = vmul.f32 %v2115, 0.5
    %v2117 = vtanh.pop %v2112
    %v2119 = vrot.slane %v2016, 6
    %v2121 = vmul.f32 %v2116, %v2119
    %2123 = vrot.lane.b32.xlu0 %v2117, 112
    %v2124 = vpop.permute.xlu0 %2123
    %v2126 = vmul.f32 %v2116, %v2124
    %2128 = vrot.lane.b32.xlu0 %v2126, 8
    %v2129 = vpop.permute.xlu0 %2128
    %v2131 = vadd.f32 %v2121, %v2129
    %v2132 = vtanh.pop %v2131
    %2134 = vrot.lane.b32.xlu0 %v2132, 16
    %v2135 = vpop.permute.xlu0 %2134
    %v2137 = vmul.f32 %v2116, %v2135
    %v2138 = vadd.f32 %v698, %v2107
    %v2139 = vmul.f32 %v2138, 0.5
    %v2140 = vtanh.pop %v2139
    %v2141 = vadd.f32 %v2140, 1.0
    %v2142 = vmul.f32 %v2141, 0.5
    %v2143 = vtanh.pop %v2138
    %v2145 = vrot.slane %v2044, 2
    %v2147 = vmul.f32 %v2142, %v2145
    %2149 = vrot.lane.b32.xlu0 %v2143, 112
    %v2150 = vpop.permute.xlu0 %2149
    %v2152 = vmul.f32 %v2142, %v2150
    %2154 = vrot.lane.b32.xlu0 %v2152, 8
    %v2155 = vpop.permute.xlu0 %2154
    %v2157 = vadd.f32 %v2147, %v2155
    %v2158 = vtanh.pop %v2157
    %2160 = vrot.lane.b32.xlu0 %v2158, 16
    %v2161 = vpop.permute.xlu0 %2160
    %v2163 = vmul.f32 %v2142, %v2161
    %2165 = vrot.lane.b32.xlu0 %v2137, 104
    %v2166 = vpop.permute.xlu0 %2165
    %2168 = vst.msk [vmem:[#allocation3 + $0x18] sm:$0x3] %vm810, %v2166
    %2170 = vrot.lane.b32.xlu0 %v2163, 80
    %v2171 = vpop.permute.xlu0 %2170
    %2173 = vst.msk [vmem:[#allocation3 + $0x8] sm:$0x3] %vm816, %v2171
    %v2174 = vsel %vm449, %v2166, %v2171
    %v2175 = vpack.c.bf16 %v2174, %v2174
    %v2177 = vsel %vm424, %v2175, 0
    %2179 = vmatprep.subr.bf16.mxu0 0
    %2180 = vmatpush1.bf16.msra.mxu0 %v716
    %2181 = vmatprep.subr.bf16.mxu0 0
    %2182 = vmatpush1.bf16.msra.mxu0 0
    %2183 = vmatprep.subr.bf16.mxu0 0
    %2184 = vmatpush1.bf16.msra.mxu0 0
    %2185 = vmatprep.subr.bf16.mxu0 0
    %2186 = vmatpush1.bf16.msra.mxu0 0
    %2187 = vmatprep.subr.bf16.mxu0 0
    %2188 = vmatpush1.bf16.msra.mxu0 0
    %2189 = vmatprep.subr.bf16.mxu0 0
    %2190 = vmatpush1.bf16.msra.mxu0 0
    %2191 = vmatprep.subr.bf16.mxu0 0
    %2192 = vmatpush1.bf16.msra.mxu0 0
    %2193 = vmatprep.subr.bf16.mxu0 0
    %2194 = vmatpush1.bf16.msra.mxu0 0
    %2195 = vmatprep.subr.bf16.mxu0 0
    %2196 = vmatpush1.bf16.msra.mxu0 0
    %2197 = vmatprep.subr.bf16.mxu0 0
    %2198 = vmatpush1.bf16.msra.mxu0 0
    %2199 = vmatprep.subr.bf16.mxu0 0
    %2200 = vmatpush1.bf16.msra.mxu0 0
    %2201 = vmatprep.subr.bf16.mxu0 0
    %2202 = vmatpush1.bf16.msra.mxu0 0
    %2203 = vmatprep.subr.bf16.mxu0 0
    %2204 = vmatpush1.bf16.msra.mxu0 0
    %2205 = vmatprep.subr.bf16.mxu0 0
    %2206 = vmatpush1.bf16.msra.mxu0 0
    %2207 = vmatprep.subr.bf16.mxu0 0
    %2208 = vmatpush1.bf16.msra.mxu0 0
    %2209 = vmatprep.subr.bf16.mxu0 0
    %2210 = vmatpush1.bf16.msra.mxu0 0
    %2211 = vmatprep.mubr.bf16.mxu0 0
    %2212 = vmatmul.mubr.bf16.gmra.mrb[0].mxu0 %v2177
    %v2213 = vpop.f32.mrb[0].mxu0
    %v2214 = vadd.f32 0.0, %v2213
    %v2215 = vpop.f32.mrb[0].mxu0
    %v2216 = vpop.f32.mrb[0].mxu0
    %v2217 = vpop.f32.mrb[0].mxu0
    %2218 = vdwg.mxu0
    %v2220 = vrot.slane %v2214, 6
    %v2222 = vadd.f32 %v706, %v2220
    %v2223 = vmul.f32 %v2222, 0.5
    %v2224 = vtanh.pop %v2223
    %v2225 = vadd.f32 %v2224, 1.0
    %v2226 = vmul.f32 %v2225, 0.5
    %v2227 = vtanh.pop %v2222
    %v2229 = vrot.slane %v2131, 6
    %v2231 = vmul.f32 %v2226, %v2229
    %2233 = vrot.lane.b32.xlu0 %v2227, 112
    %v2234 = vpop.permute.xlu0 %2233
    %v2236 = vmul.f32 %v2226, %v2234
    %2238 = vrot.lane.b32.xlu0 %v2236, 8
    %v2239 = vpop.permute.xlu0 %2238
    %v2241 = vadd.f32 %v2231, %v2239
    %v2242 = vtanh.pop %v2241
    %2244 = vrot.lane.b32.xlu0 %v2242, 16
    %v2245 = vpop.permute.xlu0 %2244
    %v2247 = vmul.f32 %v2226, %v2245
    %v2248 = vrot.slane %v2214, 2
    %v2250 = vadd.f32 %v695, %v2248
    %v2251 = vmul.f32 %v2250, 0.5
    %v2252 = vtanh.pop %v2251
    %v2253 = vadd.f32 %v2252, 1.0
    %v2254 = vmul.f32 %v2253, 0.5
    %v2255 = vtanh.pop %v2250
    %v2257 = vrot.slane %v2157, 2
    %v2259 = vmul.f32 %v2254, %v2257
    %2261 = vrot.lane.b32.xlu0 %v2255, 112
    %v2262 = vpop.permute.xlu0 %2261
    %v2264 = vmul.f32 %v2254, %v2262
    %2266 = vrot.lane.b32.xlu0 %v2264, 8
    %v2267 = vpop.permute.xlu0 %2266
    %v2269 = vadd.f32 %v2259, %v2267
    %v2270 = vtanh.pop %v2269
    %2272 = vrot.lane.b32.xlu0 %v2270, 16
    %v2273 = vpop.permute.xlu0 %2272
    %v2275 = vmul.f32 %v2254, %v2273
    %2277 = vrot.lane.b32.xlu0 %v2247, 104
    %v2278 = vpop.permute.xlu0 %2277
    %2280 = vst.msk [vmem:[#allocation3 + $0x18] sm:$0xc] %vm924, %v2278
    %2282 = vrot.lane.b32.xlu0 %v2275, 80
    %v2283 = vpop.permute.xlu0 %2282
    %2285 = vst.msk [vmem:[#allocation3] sm:$0xc0] %vm930, %v2283
    %v2286 = vrot.slane %v2275, 4
    %2287 = vrot.lane.b32.xlu0 %v2286, 80
    %v2288 = vpop.permute.xlu0 %2287
    %v2290 = vsel %vm449, %v2278, %v2288
    %v2291 = vpack.c.bf16 %v2290, %v2290
    %v2293 = vrot.slane %v2291, 1
    %v2295 = vsel %vm424, %v2293, 0
    %2297 = vmatprep.subr.bf16.mxu0 0
    %2298 = vmatpush1.bf16.msra.mxu0 %v716
    %2299 = vmatprep.subr.bf16.mxu0 0
    %2300 = vmatpush1.bf16.msra.mxu0 0
    %2301 = vmatprep.subr.bf16.mxu0 0
    %2302 = vmatpush1.bf16.msra.mxu0 0
    %2303 = vmatprep.subr.bf16.mxu0 0
    %2304 = vmatpush1.bf16.msra.mxu0 0
    %2305 = vmatprep.subr.bf16.mxu0 0
    %2306 = vmatpush1.bf16.msra.mxu0 0
    %2307 = vmatprep.subr.bf16.mxu0 0
    %2308 = vmatpush1.bf16.msra.mxu0 0
    %2309 = vmatprep.subr.bf16.mxu0 0
    %2310 = vmatpush1.bf16.msra.mxu0 0
    %2311 = vmatprep.subr.bf16.mxu0 0
    %2312 = vmatpush1.bf16.msra.mxu0 0
    %2313 = vmatprep.subr.bf16.mxu0 0
    %2314 = vmatpush1.bf16.msra.mxu0 0
    %2315 = vmatprep.subr.bf16.mxu0 0
    %2316 = vmatpush1.bf16.msra.mxu0 0
    %2317 = vmatprep.subr.bf16.mxu0 0
    %2318 = vmatpush1.bf16.msra.mxu0 0
    %2319 = vmatprep.subr.bf16.mxu0 0
    %2320 = vmatpush1.bf16.msra.mxu0 0
    %2321 = vmatprep.subr.bf16.mxu0 0
    %2322 = vmatpush1.bf16.msra.mxu0 0
    %2323 = vmatprep.subr.bf16.mxu0 0
    %2324 = vmatpush1.bf16.msra.mxu0 0
    %2325 = vmatprep.subr.bf16.mxu0 0
    %2326 = vmatpush1.bf16.msra.mxu0 0
    %2327 = vmatprep.subr.bf16.mxu0 0
    %2328 = vmatpush1.bf16.msra.mxu0 0
    %2329 = vmatprep.mubr.bf16.mxu0 0
    %2330 = vmatmul.mubr.bf16.gmra.mrb[0].mxu0 %v2295
    %v2331 = vpop.f32.mrb[0].mxu0
    %v2332 = vadd.f32 0.0, %v2331
    %v2333 = vpop.f32.mrb[0].mxu0
    %v2334 = vpop.f32.mrb[0].mxu0
    %v2335 = vpop.f32.mrb[0].mxu0
    %2336 = vdwg.mxu0
    %v2338 = vrot.slane %v2332, 4
    %v2340 = vadd.f32 %v706, %v2338
    %v2341 = vmul.f32 %v2340, 0.5
    %v2342 = vtanh.pop %v2341
    %v2343 = vadd.f32 %v2342, 1.0
    %v2344 = vmul.f32 %v2343, 0.5
    %v2345 = vtanh.pop %v2340
    %v2347 = vrot.slane %v2241, 6
    %v2349 = vmul.f32 %v2344, %v2347
    %2351 = vrot.lane.b32.xlu0 %v2345, 112
    %v2352 = vpop.permute.xlu0 %2351
    %v2354 = vmul.f32 %v2344, %v2352
    %2356 = vrot.lane.b32.xlu0 %v2354, 8
    %v2357 = vpop.permute.xlu0 %2356
    %v2359 = vadd.f32 %v2349, %v2357
    %v2360 = vtanh.pop %v2359
    %2362 = vrot.lane.b32.xlu0 %v2360, 16
    %v2363 = vpop.permute.xlu0 %2362
    %v2365 = vmul.f32 %v2344, %v2363
    %v2366 = vadd.f32 %v695, %v2338
    %v2367 = vmul.f32 %v2366, 0.5
    %v2368 = vtanh.pop %v2367
    %v2369 = vadd.f32 %v2368, 1.0
    %v2370 = vmul.f32 %v2369, 0.5
    %v2371 = vtanh.pop %v2366
    %v2373 = vrot.slane %v2269, 2
    %v2375 = vmul.f32 %v2370, %v2373
    %2377 = vrot.lane.b32.xlu0 %v2371, 112
    %v2378 = vpop.permute.xlu0 %2377
    %v2380 = vmul.f32 %v2370, %v2378
    %2382 = vrot.lane.b32.xlu0 %v2380, 8
    %v2383 = vpop.permute.xlu0 %2382
    %v2385 = vadd.f32 %v2375, %v2383
    %v2386 = vtanh.pop %v2385
    %2388 = vrot.lane.b32.xlu0 %v2386, 16
    %v2389 = vpop.permute.xlu0 %2388
    %v2391 = vmul.f32 %v2370, %v2389
    %2393 = vrot.lane.b32.xlu0 %v2365, 104
    %v2394 = vpop.permute.xlu0 %2393
    %2396 = vst.msk [vmem:[#allocation3 + $0x18] sm:$0x30] %vm1042, %v2394
    %2398 = vrot.lane.b32.xlu0 %v2391, 80
    %v2399 = vpop.permute.xlu0 %2398
    %2401 = vst.msk [vmem:[#allocation3] sm:$0x30] %vm1048, %v2399
    %v2402 = vsel %vm449, %v2394, %v2399
    %v2403 = vpack.c.bf16 %v2402, %v2402
    %v2405 = vrot.slane %v2403, 2
    %v2407 = vsel %vm424, %v2405, 0
    %2409 = vmatprep.subr.bf16.mxu0 0
    %2410 = vmatpush1.bf16.msra.mxu0 %v716
    %2411 = vmatprep.subr.bf16.mxu0 0
    %2412 = vmatpush1.bf16.msra.mxu0 0
    %2413 = vmatprep.subr.bf16.mxu0 0
    %2414 = vmatpush1.bf16.msra.mxu0 0
    %2415 = vmatprep.subr.bf16.mxu0 0
    %2416 = vmatpush1.bf16.msra.mxu0 0
    %2417 = vmatprep.subr.bf16.mxu0 0
    %2418 = vmatpush1.bf16.msra.mxu0 0
    %2419 = vmatprep.subr.bf16.mxu0 0
    %2420 = vmatpush1.bf16.msra.mxu0 0
    %2421 = vmatprep.subr.bf16.mxu0 0
    %2422 = vmatpush1.bf16.msra.mxu0 0
    %2423 = vmatprep.subr.bf16.mxu0 0
    %2424 = vmatpush1.bf16.msra.mxu0 0
    %2425 = vmatprep.subr.bf16.mxu0 0
    %2426 = vmatpush1.bf16.msra.mxu0 0
    %2427 = vmatprep.subr.bf16.mxu0 0
    %2428 = vmatpush1.bf16.msra.mxu0 0
    %2429 = vmatprep.subr.bf16.mxu0 0
    %2430 = vmatpush1.bf16.msra.mxu0 0
    %2431 = vmatprep.subr.bf16.mxu0 0
    %2432 = vmatpush1.bf16.msra.mxu0 0
    %2433 = vmatprep.subr.bf16.mxu0 0
    %2434 = vmatpush1.bf16.msra.mxu0 0
    %2435 = vmatprep.subr.bf16.mxu0 0
    %2436 = vmatpush1.bf16.msra.mxu0 0
    %2437 = vmatprep.subr.bf16.mxu0 0
    %2438 = vmatpush1.bf16.msra.mxu0 0
    %2439 = vmatprep.subr.bf16.mxu0 0
    %2440 = vmatpush1.bf16.msra.mxu0 0
    %2441 = vmatprep.mubr.bf16.mxu0 0
    %2442 = vmatmul.mubr.bf16.gmra.mrb[0].mxu0 %v2407
    %v2443 = vpop.f32.mrb[0].mxu0
    %v2444 = vadd.f32 0.0, %v2443
    %v2445 = vpop.f32.mrb[0].mxu0
    %v2446 = vpop.f32.mrb[0].mxu0
    %v2447 = vpop.f32.mrb[0].mxu0
    %2448 = vdwg.mxu0
    %v2450 = vrot.slane %v2444, 2
    %v2452 = vadd.f32 %v706, %v2450
    %v2453 = vmul.f32 %v2452, 0.5
    %v2454 = vtanh.pop %v2453
    %v2455 = vadd.f32 %v2454, 1.0
    %v2456 = vmul.f32 %v2455, 0.5
    %v2457 = vtanh.pop %v2452
    %v2459 = vrot.slane %v2359, 6
    %v2461 = vmul.f32 %v2456, %v2459
    %2463 = vrot.lane.b32.xlu0 %v2457, 112
    %v2464 = vpop.permute.xlu0 %2463
    %v2466 = vmul.f32 %v2456, %v2464
    %2468 = vrot.lane.b32.xlu0 %v2466, 8
    %v2469 = vpop.permute.xlu0 %2468
    %v2471 = vadd.f32 %v2461, %v2469
    %v2472 = vtanh.pop %v2471
    %2474 = vrot.lane.b32.xlu0 %v2472, 16
    %v2475 = vpop.permute.xlu0 %2474
    %v2477 = vmul.f32 %v2456, %v2475
    %v2478 = vrot.slane %v2444, 6
    %v2480 = vadd.f32 %v695, %v2478
    %v2481 = vmul.f32 %v2480, 0.5
    %v2482 = vtanh.pop %v2481
    %v2483 = vadd.f32 %v2482, 1.0
    %v2484 = vmul.f32 %v2483, 0.5
    %v2485 = vtanh.pop %v2480
    %v2487 = vrot.slane %v2385, 2
    %v2489 = vmul.f32 %v2484, %v2487
    %2491 = vrot.lane.b32.xlu0 %v2485, 112
    %v2492 = vpop.permute.xlu0 %2491
    %v2494 = vmul.f32 %v2484, %v2492
    %2496 = vrot.lane.b32.xlu0 %v2494, 8
    %v2497 = vpop.permute.xlu0 %2496
    %v2499 = vadd.f32 %v2489, %v2497
    %v2500 = vtanh.pop %v2499
    %2502 = vrot.lane.b32.xlu0 %v2500, 16
    %v2503 = vpop.permute.xlu0 %2502
    %v2505 = vmul.f32 %v2484, %v2503
    %2507 = vrot.lane.b32.xlu0 %v2477, 104
    %v2508 = vpop.permute.xlu0 %2507
    %2510 = vst.msk [vmem:[#allocation3 + $0x18] sm:$0xc0] %vm1158, %v2508
    %2512 = vrot.lane.b32.xlu0 %v2505, 80
    %v2513 = vpop.permute.xlu0 %2512
    %2515 = vst.msk [vmem:[#allocation3] sm:$0xc] %vm1164, %v2513
    %v2516 = vrot.slane %v2505, 4
    %2517 = vrot.lane.b32.xlu0 %v2516, 80
    %v2518 = vpop.permute.xlu0 %2517
    %v2520 = vsel %vm449, %v2508, %v2518
    %v2521 = vpack.c.bf16 %v2520, %v2520
    %v2523 = vrot.slane %v2521, 3
    %v2525 = vsel %vm424, %v2523, 0
    %2527 = vmatprep.subr.bf16.mxu0 0
    %2528 = vmatpush1.bf16.msra.mxu0 %v716
    %2529 = vmatprep.subr.bf16.mxu0 0
    %2530 = vmatpush1.bf16.msra.mxu0 0
    %2531 = vmatprep.subr.bf16.mxu0 0
    %2532 = vmatpush1.bf16.msra.mxu0 0
    %2533 = vmatprep.subr.bf16.mxu0 0
    %2534 = vmatpush1.bf16.msra.mxu0 0
    %2535 = vmatprep.subr.bf16.mxu0 0
    %2536 = vmatpush1.bf16.msra.mxu0 0
    %2537 = vmatprep.subr.bf16.mxu0 0
    %2538 = vmatpush1.bf16.msra.mxu0 0
    %2539 = vmatprep.subr.bf16.mxu0 0
    %2540 = vmatpush1.bf16.msra.mxu0 0
    %2541 = vmatprep.subr.bf16.mxu0 0
    %2542 = vmatpush1.bf16.msra.mxu0 0
    %2543 = vmatprep.subr.bf16.mxu0 0
    %2544 = vmatpush1.bf16.msra.mxu0 0
    %2545 = vmatprep.subr.bf16.mxu0 0
    %2546 = vmatpush1.bf16.msra.mxu0 0
    %2547 = vmatprep.subr.bf16.mxu0 0
    %2548 = vmatpush1.bf16.msra.mxu0 0
    %2549 = vmatprep.subr.bf16.mxu0 0
    %2550 = vmatpush1.bf16.msra.mxu0 0
    %2551 = vmatprep.subr.bf16.mxu0 0
    %2552 = vmatpush1.bf16.msra.mxu0 0
    %2553 = vmatprep.subr.bf16.mxu0 0
    %2554 = vmatpush1.bf16.msra.mxu0 0
    %2555 = vmatprep.subr.bf16.mxu0 0
    %2556 = vmatpush1.bf16.msra.mxu0 0
    %2557 = vmatprep.subr.bf16.mxu0 0
    %2558 = vmatpush1.bf16.msra.mxu0 0
    %2559 = vmatprep.mubr.bf16.mxu0 0
    %2560 = vmatmul.mubr.bf16.gmra.mrb[0].mxu0 %v2525
    %v2561 = vpop.f32.mrb[0].mxu0
    %v2562 = vadd.f32 0.0, %v2561
    %v2563 = vpop.f32.mrb[0].mxu0
    %v2564 = vpop.f32.mrb[0].mxu0
    %v2565 = vpop.f32.mrb[0].mxu0
    %2566 = vdwg.mxu0
    %v2567 = vadd.f32 %v711, %v2562
    %v2568 = vmul.f32 %v2567, 0.5
    %v2569 = vtanh.pop %v2568
    %v2570 = vadd.f32 %v2569, 1.0
    %v2571 = vmul.f32 %v2570, 0.5
    %v2572 = vtanh.pop %v2567
    %v2574 = vrot.slane %v2471, 6
    %v2576 = vmul.f32 %v2571, %v2574
    %2578 = vrot.lane.b32.xlu0 %v2572, 112
    %v2579 = vpop.permute.xlu0 %2578
    %v2581 = vmul.f32 %v2571, %v2579
    %2583 = vrot.lane.b32.xlu0 %v2581, 8
    %v2584 = vpop.permute.xlu0 %2583
    %v2586 = vadd.f32 %v2576, %v2584
    %v2587 = vtanh.pop %v2586
    %2589 = vrot.lane.b32.xlu0 %v2587, 16
    %v2590 = vpop.permute.xlu0 %2589
    %v2592 = vmul.f32 %v2571, %v2590
    %v2593 = vadd.f32 %v695, %v2562
    %v2594 = vmul.f32 %v2593, 0.5
    %v2595 = vtanh.pop %v2594
    %v2596 = vadd.f32 %v2595, 1.0
    %v2597 = vmul.f32 %v2596, 0.5
    %v2598 = vtanh.pop %v2593
    %v2600 = vrot.slane %v2499, 2
    %v2602 = vmul.f32 %v2597, %v2600
    %2604 = vrot.lane.b32.xlu0 %v2598, 112
    %v2605 = vpop.permute.xlu0 %2604
    %v2607 = vmul.f32 %v2597, %v2605
    %2609 = vrot.lane.b32.xlu0 %v2607, 8
    %v2610 = vpop.permute.xlu0 %2609
    %v2612 = vadd.f32 %v2602, %v2610
    %v2613 = vtanh.pop %v2612
    %2615 = vrot.lane.b32.xlu0 %v2613, 16
    %v2616 = vpop.permute.xlu0 %2615
    %v2618 = vmul.f32 %v2597, %v2616
    %2620 = vrot.lane.b32.xlu0 %v2592, 104
    %v2621 = vpop.permute.xlu0 %2620
    %2623 = vst.msk [vmem:[#allocation3 + $0x20] sm:$0x3] %vm810, %v2621
    %2625 = vrot.lane.b32.xlu0 %v2618, 80
    %v2626 = vpop.permute.xlu0 %2625
    %2628 = vst.msk [vmem:[#allocation3] sm:$0x3] %vm816, %v2626
    %v2629 = vld [vmem:[#allocation3] sm:$0xff]
    %v2630 = vld [vmem:[#allocation3 + $0x8] sm:$0xff]
    %v2631 = vld [vmem:[#allocation3 + $0x10] sm:$0xff]
    %v2632 = vld [vmem:[#allocation3 + $0x18] sm:$0xff]
    %v2633 = vld [vmem:[#allocation3 + $0x20] sm:$0x3]
    %v2634 = vld [vmem:[%s6] sm:$0xff]
    %v2635 = vld [vmem:[%s6 + $0x8] sm:$0xff]
    %v2636 = vld [vmem:[#allocation11] sm:$0xff]
    %v2637 = vld [vmem:[#allocation11 + $0x8] sm:$0xff]
    %v2638 = vld [vmem:[#allocation12] sm:$0x1]
    %v2639 = vpack.c.bf16 %v2630, %v2629
    %v2640 = vpack.c.bf16 %v2632, %v2631
    %v2641 = vpack.c.bf16 %v2633, %v2633
    %v2642 = vpack.c.bf16 %v2635, %v2634
    %v2644 = vlaneseq
    %v2645 = vshrl.u32 %v2644, 7
    %v2646 = vsub.s32 0, %v2645
    %v2647 = vrot.slane %v2638, %v2646
    %v2650 = vsel %vm424, %v2639, 0
    %v2653 = vsel %vm424, %v2640, 0
    %v2656 = vsel %vm424, %v2641, 0
    %2658 = vmatprep.subr.bf16.mxu0 0
    %2659 = vmatpush1.bf16.msra.mxu0 %v2642
    %2660 = vmatprep.subr.bf16.mxu0 0
    %2661 = vmatpush1.bf16.msra.mxu0 0
    %2662 = vmatprep.subr.bf16.mxu0 0
    %2663 = vmatpush1.bf16.msra.mxu0 0
    %2664 = vmatprep.subr.bf16.mxu0 0
    %2665 = vmatpush1.bf16.msra.mxu0 0
    %2666 = vmatprep.subr.bf16.mxu0 0
    %2667 = vmatpush1.bf16.msra.mxu0 0
    %2668 = vmatprep.subr.bf16.mxu0 0
    %2669 = vmatpush1.bf16.msra.mxu0 0
    %2670 = vmatprep.subr.bf16.mxu0 0
    %2671 = vmatpush1.bf16.msra.mxu0 0
    %2672 = vmatprep.subr.bf16.mxu0 0
    %2673 = vmatpush1.bf16.msra.mxu0 0
    %2674 = vmatprep.subr.bf16.mxu0 0
    %2675 = vmatpush1.bf16.msra.mxu0 0
    %2676 = vmatprep.subr.bf16.mxu0 0
    %2677 = vmatpush1.bf16.msra.mxu0 0
    %2678 = vmatprep.subr.bf16.mxu0 0
    %2679 = vmatpush1.bf16.msra.mxu0 0
    %2680 = vmatprep.subr.bf16.mxu0 0
    %2681 = vmatpush1.bf16.msra.mxu0 0
    %2682 = vmatprep.subr.bf16.mxu0 0
    %2683 = vmatpush1.bf16.msra.mxu0 0
    %2684 = vmatprep.subr.bf16.mxu0 0
    %2685 = vmatpush1.bf16.msra.mxu0 0
    %2686 = vmatprep.subr.bf16.mxu0 0
    %2687 = vmatpush1.bf16.msra.mxu0 0
    %2688 = vmatprep.subr.bf16.mxu0 0
    %2689 = vmatpush1.bf16.msra.mxu0 0
    %2690 = vmatprep.mubr.bf16.mxu0 0
    %2691 = vmatmul.mubr.bf16.gmra.mrb[0].mxu0 %v2650
    %v2692 = vpop.f32.mrb[0].mxu0
    %v2693 = vadd.f32 %v2647, %v2692
    %v2694 = vpop.f32.mrb[0].mxu0
    %v2695 = vpop.f32.mrb[0].mxu0
    %v2696 = vadd.f32 %v2647, %v2695
    %v2697 = vpop.f32.mrb[0].mxu0
    %2698 = vmatprep.mubr.bf16.mxu0 0
    %2699 = vmatmul.mubr.bf16.gmra.mrb[0].mxu0 %v2653
    %v2700 = vpop.f32.mrb[0].mxu0
    %v2701 = vadd.f32 %v2647, %v2700
    %v2702 = vpop.f32.mrb[0].mxu0
    %v2703 = vpop.f32.mrb[0].mxu0
    %v2704 = vadd.f32 %v2647, %v2703
    %v2705 = vpop.f32.mrb[0].mxu0
    %2706 = vmatprep.mubr.bf16.mxu0 0
    %2707 = vmatmul.mubr.bf16.gmra.mrb[0].mxu0 %v2656
    %v2708 = vpop.f32.mrb[0].mxu0
    %v2709 = vadd.f32 %v2647, %v2708
    %v2710 = vpop.f32.mrb[0].mxu0
    %v2711 = vpop.f32.mrb[0].mxu0
    %v2712 = vpop.f32.mrb[0].mxu0
    %2713 = vdwg.mxu0
    %v2714 = vpack.c.bf16 %v2637, %v2636
    %2715 = vmatprep.subr.bf16.mxu0 0
    %2716 = vmatpush1.bf16.msra.mxu0 %v2714
    %2717 = vmatprep.subr.bf16.mxu0 0
    %2718 = vmatpush1.bf16.msra.mxu0 0
    %2719 = vmatprep.subr.bf16.mxu0 0
    %2720 = vmatpush1.bf16.msra.mxu0 0
    %2721 = vmatprep.subr.bf16.mxu0 0
    %2722 = vmatpush1.bf16.msra.mxu0 0
    %2723 = vmatprep.subr.bf16.mxu0 0
    %2724 = vmatpush1.bf16.msra.mxu0 0
    %2725 = vmatprep.subr.bf16.mxu0 0
    %2726 = vmatpush1.bf16.msra.mxu0 0
    %2727 = vmatprep.subr.bf16.mxu0 0
    %2728 = vmatpush1.bf16.msra.mxu0 0
    %2729 = vmatprep.subr.bf16.mxu0 0
    %2730 = vmatpush1.bf16.msra.mxu0 0
    %2731 = vmatprep.subr.bf16.mxu0 0
    %2732 = vmatpush1.bf16.msra.mxu0 0
    %2733 = vmatprep.subr.bf16.mxu0 0
    %2734 = vmatpush1.bf16.msra.mxu0 0
    %2735 = vmatprep.subr.bf16.mxu0 0
    %2736 = vmatpush1.bf16.msra.mxu0 0
    %2737 = vmatprep.subr.bf16.mxu0 0
    %2738 = vmatpush1.bf16.msra.mxu0 0
    %2739 = vmatprep.subr.bf16.mxu0 0
    %2740 = vmatpush1.bf16.msra.mxu0 0
    %2741 = vmatprep.subr.bf16.mxu0 0
    %2742 = vmatpush1.bf16.msra.mxu0 0
    %2743 = vmatprep.subr.bf16.mxu0 0
    %2744 = vmatpush1.bf16.msra.mxu0 0
    %2745 = vmatprep.subr.bf16.mxu0 0
    %2746 = vmatpush1.bf16.msra.mxu0 0
    %2747 = vmatprep.mubr.bf16.mxu0 0
    %2748 = vmatmul.mubr.bf16.gmra.mrb[0].mxu0 %v718
    %v2749 = vpop.f32.mrb[0].mxu0
    %v2750 = vadd.f32 0.0, %v2749
    %v2751 = vpop.f32.mrb[0].mxu0
    %v2752 = vpop.f32.mrb[0].mxu0
    %v2753 = vpop.f32.mrb[0].mxu0
    %2754 = vdwg.mxu0
    %v2755 = vadd.f32 %v2693, %v2750
    %v2756 = vmul.f32 %v2755, 0.5
    %v2757 = vtanh.pop %v2756
    %v2758 = vadd.f32 %v2757, 1.0
    %v2759 = vmul.f32 %v2758, 0.5
    %v2760 = vtanh.pop %v2755
    %v2761 = vmul.f32 %v2759, 0.0
    %2763 = vrot.lane.b32.xlu0 %v2760, 112
    %v2764 = vpop.permute.xlu0 %2763
    %v2766 = vmul.f32 %v2759, %v2764
    %2768 = vrot.lane.b32.xlu0 %v2766, 8
    %v2769 = vpop.permute.xlu0 %2768
    %v2771 = vadd.f32 %v2761, %v2769
    %v2772 = vtanh.pop %v2771
    %2774 = vrot.lane.b32.xlu0 %v2772, 16
    %v2775 = vpop.permute.xlu0 %2774
    %v2777 = vmul.f32 %v2759, %v2775
    %v2778 = vadd.f32 %v2709, %v2750
    %v2779 = vmul.f32 %v2778, 0.5
    %v2780 = vtanh.pop %v2779
    %v2781 = vadd.f32 %v2780, 1.0
    %v2782 = vmul.f32 %v2781, 0.5
    %v2783 = vtanh.pop %v2778
    %v2784 = vmul.f32 %v2782, 0.0
    %2786 = vrot.lane.b32.xlu0 %v2783, 112
    %v2787 = vpop.permute.xlu0 %2786
    %v2789 = vmul.f32 %v2782, %v2787
    %2791 = vrot.lane.b32.xlu0 %v2789, 8
    %v2792 = vpop.permute.xlu0 %2791
    %v2794 = vadd.f32 %v2784, %v2792
    %v2795 = vtanh.pop %v2794
    %2797 = vrot.lane.b32.xlu0 %v2795, 16
    %v2798 = vpop.permute.xlu0 %2797
    %v2800 = vmul.f32 %v2782, %v2798
    %2802 = vrot.lane.b32.xlu0 %v2777, 104
    %v2803 = vpop.permute.xlu0 %2802
    %2805 = vst.msk [vmem:[#allocation4] sm:$0x3] %vm810, %v2803
    %2807 = vrot.lane.b32.xlu0 %v2800, 80
    %v2808 = vpop.permute.xlu0 %2807
    %2810 = vst.msk [vmem:[#allocation4 + $0x20] sm:$0x3] %vm816, %v2808
    %v2811 = vsel %vm449, %v2803, %v2808
    %v2812 = vpack.c.bf16 %v2811, %v2811
    %v2814 = vsel %vm424, %v2812, 0
    %2816 = vmatprep.subr.bf16.mxu0 0
    %2817 = vmatpush1.bf16.msra.mxu0 %v2714
    %2818 = vmatprep.subr.bf16.mxu0 0
    %2819 = vmatpush1.bf16.msra.mxu0 0
    %2820 = vmatprep.subr.bf16.mxu0 0
    %2821 = vmatpush1.bf16.msra.mxu0 0
    %2822 = vmatprep.subr.bf16.mxu0 0
    %2823 = vmatpush1.bf16.msra.mxu0 0
    %2824 = vmatprep.subr.bf16.mxu0 0
    %2825 = vmatpush1.bf16.msra.mxu0 0
    %2826 = vmatprep.subr.bf16.mxu0 0
    %2827 = vmatpush1.bf16.msra.mxu0 0
    %2828 = vmatprep.subr.bf16.mxu0 0
    %2829 = vmatpush1.bf16.msra.mxu0 0
    %2830 = vmatprep.subr.bf16.mxu0 0
    %2831 = vmatpush1.bf16.msra.mxu0 0
    %2832 = vmatprep.subr.bf16.mxu0 0
    %2833 = vmatpush1.bf16.msra.mxu0 0
    %2834 = vmatprep.subr.bf16.mxu0 0
    %2835 = vmatpush1.bf16.msra.mxu0 0
    %2836 = vmatprep.subr.bf16.mxu0 0
    %2837 = vmatpush1.bf16.msra.mxu0 0
    %2838 = vmatprep.subr.bf16.mxu0 0
    %2839 = vmatpush1.bf16.msra.mxu0 0
    %2840 = vmatprep.subr.bf16.mxu0 0
    %2841 = vmatpush1.bf16.msra.mxu0 0
    %2842 = vmatprep.subr.bf16.mxu0 0
    %2843 = vmatpush1.bf16.msra.mxu0 0
    %2844 = vmatprep.subr.bf16.mxu0 0
    %2845 = vmatpush1.bf16.msra.mxu0 0
    %2846 = vmatprep.subr.bf16.mxu0 0
    %2847 = vmatpush1.bf16.msra.mxu0 0
    %2848 = vmatprep.mubr.bf16.mxu0 0
    %2849 = vmatmul.mubr.bf16.gmra.mrb[0].mxu0 %v2814
    %v2850 = vpop.f32.mrb[0].mxu0
    %v2851 = vadd.f32 0.0, %v2850
    %v2852 = vpop.f32.mrb[0].mxu0
    %v2853 = vpop.f32.mrb[0].mxu0
    %v2854 = vpop.f32.mrb[0].mxu0
    %2855 = vdwg.mxu0
    %v2857 = vrot.slane %v2851, 6
    %v2859 = vadd.f32 %v2693, %v2857
    %v2860 = vmul.f32 %v2859, 0.5
    %v2861 = vtanh.pop %v2860
    %v2862 = vadd.f32 %v2861, 1.0
    %v2863 = vmul.f32 %v2862, 0.5
    %v2864 = vtanh.pop %v2859
    %v2866 = vrot.slane %v2771, 6
    %v2868 = vmul.f32 %v2863, %v2866
    %2870 = vrot.lane.b32.xlu0 %v2864, 112
    %v2871 = vpop.permute.xlu0 %2870
    %v2873 = vmul.f32 %v2863, %v2871
    %2875 = vrot.lane.b32.xlu0 %v2873, 8
    %v2876 = vpop.permute.xlu0 %2875
    %v2878 = vadd.f32 %v2868, %v2876
    %v2879 = vtanh.pop %v2878
    %2881 = vrot.lane.b32.xlu0 %v2879, 16
    %v2882 = vpop.permute.xlu0 %2881
    %v2884 = vmul.f32 %v2863, %v2882
    %v2885 = vrot.slane %v2851, 2
    %v2887 = vadd.f32 %v2704, %v2885
    %v2888 = vmul.f32 %v2887, 0.5
    %v2889 = vtanh.pop %v2888
    %v2890 = vadd.f32 %v2889, 1.0
    %v2891 = vmul.f32 %v2890, 0.5
    %v2892 = vtanh.pop %v2887
    %v2894 = vrot.slane %v2794, 2
    %v2896 = vmul.f32 %v2891, %v2894
    %2898 = vrot.lane.b32.xlu0 %v2892, 112
    %v2899 = vpop.permute.xlu0 %2898
    %v2901 = vmul.f32 %v2891, %v2899
    %2903 = vrot.lane.b32.xlu0 %v2901, 8
    %v2904 = vpop.permute.xlu0 %2903
    %v2906 = vadd.f32 %v2896, %v2904
    %v2907 = vtanh.pop %v2906
    %2909 = vrot.lane.b32.xlu0 %v2907, 16
    %v2910 = vpop.permute.xlu0 %2909
    %v2912 = vmul.f32 %v2891, %v2910
    %2914 = vrot.lane.b32.xlu0 %v2884, 104
    %v2915 = vpop.permute.xlu0 %2914
    %2917 = vst.msk [vmem:[#allocation4] sm:$0xc] %vm924, %v2915
    %2919 = vrot.lane.b32.xlu0 %v2912, 80
    %v2920 = vpop.permute.xlu0 %2919
    %2922 = vst.msk [vmem:[#allocation4 + $0x18] sm:$0xc0] %vm930, %v2920
    %v2923 = vrot.slane %v2912, 4
    %2924 = vrot.lane.b32.xlu0 %v2923, 80
    %v2925 = vpop.permute.xlu0 %2924
    %v2927 = vsel %vm449, %v2915, %v2925
    %v2928 = vpack.c.bf16 %v2927, %v2927
    %v2930 = vrot.slane %v2928, 1
    %v2932 = vsel %vm424, %v2930, 0
    %2934 = vmatprep.subr.bf16.mxu0 0
    %2935 = vmatpush1.bf16.msra.mxu0 %v2714
    %2936 = vmatprep.subr.bf16.mxu0 0
    %2937 = vmatpush1.bf16.msra.mxu0 0
    %2938 = vmatprep.subr.bf16.mxu0 0
    %2939 = vmatpush1.bf16.msra.mxu0 0
    %2940 = vmatprep.subr.bf16.mxu0 0
    %2941 = vmatpush1.bf16.msra.mxu0 0
    %2942 = vmatprep.subr.bf16.mxu0 0
    %2943 = vmatpush1.bf16.msra.mxu0 0
    %2944 = vmatprep.subr.bf16.mxu0 0
    %2945 = vmatpush1.bf16.msra.mxu0 0
    %2946 = vmatprep.subr.bf16.mxu0 0
    %2947 = vmatpush1.bf16.msra.mxu0 0
    %2948 = vmatprep.subr.bf16.mxu0 0
    %2949 = vmatpush1.bf16.msra.mxu0 0
    %2950 = vmatprep.subr.bf16.mxu0 0
    %2951 = vmatpush1.bf16.msra.mxu0 0
    %2952 = vmatprep.subr.bf16.mxu0 0
    %2953 = vmatpush1.bf16.msra.mxu0 0
    %2954 = vmatprep.subr.bf16.mxu0 0
    %2955 = vmatpush1.bf16.msra.mxu0 0
    %2956 = vmatprep.subr.bf16.mxu0 0
    %2957 = vmatpush1.bf16.msra.mxu0 0
    %2958 = vmatprep.subr.bf16.mxu0 0
    %2959 = vmatpush1.bf16.msra.mxu0 0
    %2960 = vmatprep.subr.bf16.mxu0 0
    %2961 = vmatpush1.bf16.msra.mxu0 0
    %2962 = vmatprep.subr.bf16.mxu0 0
    %2963 = vmatpush1.bf16.msra.mxu0 0
    %2964 = vmatprep.subr.bf16.mxu0 0
    %2965 = vmatpush1.bf16.msra.mxu0 0
    %2966 = vmatprep.mubr.bf16.mxu0 0
    %2967 = vmatmul.mubr.bf16.gmra.mrb[0].mxu0 %v2932
    %v2968 = vpop.f32.mrb[0].mxu0
    %v2969 = vadd.f32 0.0, %v2968
    %v2970 = vpop.f32.mrb[0].mxu0
    %v2971 = vpop.f32.mrb[0].mxu0
    %v2972 = vpop.f32.mrb[0].mxu0
    %2973 = vdwg.mxu0
    %v2975 = vrot.slane %v2969, 4
    %v2977 = vadd.f32 %v2693, %v2975
    %v2978 = vmul.f32 %v2977, 0.5
    %v2979 = vtanh.pop %v2978
    %v2980 = vadd.f32 %v2979, 1.0
    %v2981 = vmul.f32 %v2980, 0.5
    %v2982 = vtanh.pop %v2977
    %v2984 = vrot.slane %v2878, 6
    %v2986 = vmul.f32 %v2981, %v2984
    %2988 = vrot.lane.b32.xlu0 %v2982, 112
    %v2989 = vpop.permute.xlu0 %2988
    %v2991 = vmul.f32 %v2981, %v2989
    %2993 = vrot.lane.b32.xlu0 %v2991, 8
    %v2994 = vpop.permute.xlu0 %2993
    %v2996 = vadd.f32 %v2986, %v2994
    %v2997 = vtanh.pop %v2996
    %2999 = vrot.lane.b32.xlu0 %v2997, 16
    %v3000 = vpop.permute.xlu0 %2999
    %v3002 = vmul.f32 %v2981, %v3000
    %v3003 = vadd.f32 %v2704, %v2975
    %v3004 = vmul.f32 %v3003, 0.5
    %v3005 = vtanh.pop %v3004
    %v3006 = vadd.f32 %v3005, 1.0
    %v3007 = vmul.f32 %v3006, 0.5
    %v3008 = vtanh.pop %v3003
    %v3010 = vrot.slane %v2906, 2
    %v3012 = vmul.f32 %v3007, %v3010
    %3014 = vrot.lane.b32.xlu0 %v3008, 112
    %v3015 = vpop.permute.xlu0 %3014
    %v3017 = vmul.f32 %v3007, %v3015
    %3019 = vrot.lane.b32.xlu0 %v3017, 8
    %v3020 = vpop.permute.xlu0 %3019
    %v3022 = vadd.f32 %v3012, %v3020
    %v3023 = vtanh.pop %v3022
    %3025 = vrot.lane.b32.xlu0 %v3023, 16
    %v3026 = vpop.permute.xlu0 %3025
    %v3028 = vmul.f32 %v3007, %v3026
    %3030 = vrot.lane.b32.xlu0 %v3002, 104
    %v3031 = vpop.permute.xlu0 %3030
    %3033 = vst.msk [vmem:[#allocation4] sm:$0x30] %vm1042, %v3031
    %3035 = vrot.lane.b32.xlu0 %v3028, 80
    %v3036 = vpop.permute.xlu0 %3035
    %3038 = vst.msk [vmem:[#allocation4 + $0x18] sm:$0x30] %vm1048, %v3036
    %v3039 = vsel %vm449, %v3031, %v3036
    %v3040 = vpack.c.bf16 %v3039, %v3039
    %v3042 = vrot.slane %v3040, 2
    %v3044 = vsel %vm424, %v3042, 0
    %3046 = vmatprep.subr.bf16.mxu0 0
    %3047 = vmatpush1.bf16.msra.mxu0 %v2714
    %3048 = vmatprep.subr.bf16.mxu0 0
    %3049 = vmatpush1.bf16.msra.mxu0 0
    %3050 = vmatprep.subr.bf16.mxu0 0
    %3051 = vmatpush1.bf16.msra.mxu0 0
    %3052 = vmatprep.subr.bf16.mxu0 0
    %3053 = vmatpush1.bf16.msra.mxu0 0
    %3054 = vmatprep.subr.bf16.mxu0 0
    %3055 = vmatpush1.bf16.msra.mxu0 0
    %3056 = vmatprep.subr.bf16.mxu0 0
    %3057 = vmatpush1.bf16.msra.mxu0 0
    %3058 = vmatprep.subr.bf16.mxu0 0
    %3059 = vmatpush1.bf16.msra.mxu0 0
    %3060 = vmatprep.subr.bf16.mxu0 0
    %3061 = vmatpush1.bf16.msra.mxu0 0
    %3062 = vmatprep.subr.bf16.mxu0 0
    %3063 = vmatpush1.bf16.msra.mxu0 0
    %3064 = vmatprep.subr.bf16.mxu0 0
    %3065 = vmatpush1.bf16.msra.mxu0 0
    %3066 = vmatprep.subr.bf16.mxu0 0
    %3067 = vmatpush1.bf16.msra.mxu0 0
    %3068 = vmatprep.subr.bf16.mxu0 0
    %3069 = vmatpush1.bf16.msra.mxu0 0
    %3070 = vmatprep.subr.bf16.mxu0 0
    %3071 = vmatpush1.bf16.msra.mxu0 0
    %3072 = vmatprep.subr.bf16.mxu0 0
    %3073 = vmatpush1.bf16.msra.mxu0 0
    %3074 = vmatprep.subr.bf16.mxu0 0
    %3075 = vmatpush1.bf16.msra.mxu0 0
    %3076 = vmatprep.subr.bf16.mxu0 0
    %3077 = vmatpush1.bf16.msra.mxu0 0
    %3078 = vmatprep.mubr.bf16.mxu0 0
    %3079 = vmatmul.mubr.bf16.gmra.mrb[0].mxu0 %v3044
    %v3080 = vpop.f32.mrb[0].mxu0
    %v3081 = vadd.f32 0.0, %v3080
    %v3082 = vpop.f32.mrb[0].mxu0
    %v3083 = vpop.f32.mrb[0].mxu0
    %v3084 = vpop.f32.mrb[0].mxu0
    %3085 = vdwg.mxu0
    %v3087 = vrot.slane %v3081, 2
    %v3089 = vadd.f32 %v2693, %v3087
    %v3090 = vmul.f32 %v3089, 0.5
    %v3091 = vtanh.pop %v3090
    %v3092 = vadd.f32 %v3091, 1.0
    %v3093 = vmul.f32 %v3092, 0.5
    %v3094 = vtanh.pop %v3089
    %v3096 = vrot.slane %v2996, 6
    %v3098 = vmul.f32 %v3093, %v3096
    %3100 = vrot.lane.b32.xlu0 %v3094, 112
    %v3101 = vpop.permute.xlu0 %3100
    %v3103 = vmul.f32 %v3093, %v3101
    %3105 = vrot.lane.b32.xlu0 %v3103, 8
    %v3106 = vpop.permute.xlu0 %3105
    %v3108 = vadd.f32 %v3098, %v3106
    %v3109 = vtanh.pop %v3108
    %3111 = vrot.lane.b32.xlu0 %v3109, 16
    %v3112 = vpop.permute.xlu0 %3111
    %v3114 = vmul.f32 %v3093, %v3112
    %v3115 = vrot.slane %v3081, 6
    %v3117 = vadd.f32 %v2704, %v3115
    %v3118 = vmul.f32 %v3117, 0.5
    %v3119 = vtanh.pop %v3118
    %v3120 = vadd.f32 %v3119, 1.0
    %v3121 = vmul.f32 %v3120, 0.5
    %v3122 = vtanh.pop %v3117
    %v3124 = vrot.slane %v3022, 2
    %v3126 = vmul.f32 %v3121, %v3124
    %3128 = vrot.lane.b32.xlu0 %v3122, 112
    %v3129 = vpop.permute.xlu0 %3128
    %v3131 = vmul.f32 %v3121, %v3129
    %3133 = vrot.lane.b32.xlu0 %v3131, 8
    %v3134 = vpop.permute.xlu0 %3133
    %v3136 = vadd.f32 %v3126, %v3134
    %v3137 = vtanh.pop %v3136
    %3139 = vrot.lane.b32.xlu0 %v3137, 16
    %v3140 = vpop.permute.xlu0 %3139
    %v3142 = vmul.f32 %v3121, %v3140
    %3144 = vrot.lane.b32.xlu0 %v3114, 104
    %v3145 = vpop.permute.xlu0 %3144
    %3147 = vst.msk [vmem:[#allocation4] sm:$0xc0] %vm1158, %v3145
    %3149 = vrot.lane.b32.xlu0 %v3142, 80
    %v3150 = vpop.permute.xlu0 %3149
    %3152 = vst.msk [vmem:[#allocation4 + $0x18] sm:$0xc] %vm1164, %v3150
    %v3153 = vrot.slane %v3142, 4
    %3154 = vrot.lane.b32.xlu0 %v3153, 80
    %v3155 = vpop.permute.xlu0 %3154
    %v3157 = vsel %vm449, %v3145, %v3155
    %v3158 = vpack.c.bf16 %v3157, %v3157
    %v3160 = vrot.slane %v3158, 3
    %v3162 = vsel %vm424, %v3160, 0
    %3164 = vmatprep.subr.bf16.mxu0 0
    %3165 = vmatpush1.bf16.msra.mxu0 %v2714
    %3166 = vmatprep.subr.bf16.mxu0 0
    %3167 = vmatpush1.bf16.msra.mxu0 0
    %3168 = vmatprep.subr.bf16.mxu0 0
    %3169 = vmatpush1.bf16.msra.mxu0 0
    %3170 = vmatprep.subr.bf16.mxu0 0
    %3171 = vmatpush1.bf16.msra.mxu0 0
    %3172 = vmatprep.subr.bf16.mxu0 0
    %3173 = vmatpush1.bf16.msra.mxu0 0
    %3174 = vmatprep.subr.bf16.mxu0 0
    %3175 = vmatpush1.bf16.msra.mxu0 0
    %3176 = vmatprep.subr.bf16.mxu0 0
    %3177 = vmatpush1.bf16.msra.mxu0 0
    %3178 = vmatprep.subr.bf16.mxu0 0
    %3179 = vmatpush1.bf16.msra.mxu0 0
    %3180 = vmatprep.subr.bf16.mxu0 0
    %3181 = vmatpush1.bf16.msra.mxu0 0
    %3182 = vmatprep.subr.bf16.mxu0 0
    %3183 = vmatpush1.bf16.msra.mxu0 0
    %3184 = vmatprep.subr.bf16.mxu0 0
    %3185 = vmatpush1.bf16.msra.mxu0 0
    %3186 = vmatprep.subr.bf16.mxu0 0
    %3187 = vmatpush1.bf16.msra.mxu0 0
    %3188 = vmatprep.subr.bf16.mxu0 0
    %3189 = vmatpush1.bf16.msra.mxu0 0
    %3190 = vmatprep.subr.bf16.mxu0 0
    %3191 = vmatpush1.bf16.msra.mxu0 0
    %3192 = vmatprep.subr.bf16.mxu0 0
    %3193 = vmatpush1.bf16.msra.mxu0 0
    %3194 = vmatprep.subr.bf16.mxu0 0
    %3195 = vmatpush1.bf16.msra.mxu0 0
    %3196 = vmatprep.mubr.bf16.mxu0 0
    %3197 = vmatmul.mubr.bf16.gmra.mrb[0].mxu0 %v3162
    %v3198 = vpop.f32.mrb[0].mxu0
    %v3199 = vadd.f32 0.0, %v3198
    %v3200 = vpop.f32.mrb[0].mxu0
    %v3201 = vpop.f32.mrb[0].mxu0
    %v3202 = vpop.f32.mrb[0].mxu0
    %3203 = vdwg.mxu0
    %v3204 = vadd.f32 %v2696, %v3199
    %v3205 = vmul.f32 %v3204, 0.5
    %v3206 = vtanh.pop %v3205
    %v3207 = vadd.f32 %v3206, 1.0
    %v3208 = vmul.f32 %v3207, 0.5
    %v3209 = vtanh.pop %v3204
    %v3211 = vrot.slane %v3108, 6
    %v3213 = vmul.f32 %v3208, %v3211
    %3215 = vrot.lane.b32.xlu0 %v3209, 112
    %v3216 = vpop.permute.xlu0 %3215
    %v3218 = vmul.f32 %v3208, %v3216
    %3220 = vrot.lane.b32.xlu0 %v3218, 8
    %v3221 = vpop.permute.xlu0 %3220
    %v3223 = vadd.f32 %v3213, %v3221
    %v3224 = vtanh.pop %v3223
    %3226 = vrot.lane.b32.xlu0 %v3224, 16
    %v3227 = vpop.permute.xlu0 %3226
    %v3229 = vmul.f32 %v3208, %v3227
    %v3230 = vadd.f32 %v2704, %v3199
    %v3231 = vmul.f32 %v3230, 0.5
    %v3232 = vtanh.pop %v3231
    %v3233 = vadd.f32 %v3232, 1.0
    %v3234 = vmul.f32 %v3233, 0.5
    %v3235 = vtanh.pop %v3230
    %v3237 = vrot.slane %v3136, 2
    %v3239 = vmul.f32 %v3234, %v3237
    %3241 = vrot.lane.b32.xlu0 %v3235, 112
    %v3242 = vpop.permute.xlu0 %3241
    %v3244 = vmul.f32 %v3234, %v3242
    %3246 = vrot.lane.b32.xlu0 %v3244, 8
    %v3247 = vpop.permute.xlu0 %3246
    %v3249 = vadd.f32 %v3239, %v3247
    %v3250 = vtanh.pop %v3249
    %3252 = vrot.lane.b32.xlu0 %v3250, 16
    %v3253 = vpop.permute.xlu0 %3252
    %v3255 = vmul.f32 %v3234, %v3253
    %3257 = vrot.lane.b32.xlu0 %v3229, 104
    %v3258 = vpop.permute.xlu0 %3257
    %3260 = vst.msk [vmem:[#allocation4 + $0x8] sm:$0x3] %vm810, %v3258
    %3262 = vrot.lane.b32.xlu0 %v3255, 80
    %v3263 = vpop.permute.xlu0 %3262
    %3265 = vst.msk [vmem:[#allocation4 + $0x18] sm:$0x3] %vm816, %v3263
    %v3266 = vsel %vm449, %v3258, %v3263
    %v3267 = vpack.c.bf16 %v3266, %v3266
    %v3269 = vsel %vm424, %v3267, 0
    %3271 = vmatprep.subr.bf16.mxu0 0
    %3272 = vmatpush1.bf16.msra.mxu0 %v2714
    %3273 = vmatprep.subr.bf16.mxu0 0
    %3274 = vmatpush1.bf16.msra.mxu0 0
    %3275 = vmatprep.subr.bf16.mxu0 0
    %3276 = vmatpush1.bf16.msra.mxu0 0
    %3277 = vmatprep.subr.bf16.mxu0 0
    %3278 = vmatpush1.bf16.msra.mxu0 0
    %3279 = vmatprep.subr.bf16.mxu0 0
    %3280 = vmatpush1.bf16.msra.mxu0 0
    %3281 = vmatprep.subr.bf16.mxu0 0
    %3282 = vmatpush1.bf16.msra.mxu0 0
    %3283 = vmatprep.subr.bf16.mxu0 0
    %3284 = vmatpush1.bf16.msra.mxu0 0
    %3285 = vmatprep.subr.bf16.mxu0 0
    %3286 = vmatpush1.bf16.msra.mxu0 0
    %3287 = vmatprep.subr.bf16.mxu0 0
    %3288 = vmatpush1.bf16.msra.mxu0 0
    %3289 = vmatprep.subr.bf16.mxu0 0
    %3290 = vmatpush1.bf16.msra.mxu0 0
    %3291 = vmatprep.subr.bf16.mxu0 0
    %3292 = vmatpush1.bf16.msra.mxu0 0
    %3293 = vmatprep.subr.bf16.mxu0 0
    %3294 = vmatpush1.bf16.msra.mxu0 0
    %3295 = vmatprep.subr.bf16.mxu0 0
    %3296 = vmatpush1.bf16.msra.mxu0 0
    %3297 = vmatprep.subr.bf16.mxu0 0
    %3298 = vmatpush1.bf16.msra.mxu0 0
    %3299 = vmatprep.subr.bf16.mxu0 0
    %3300 = vmatpush1.bf16.msra.mxu0 0
    %3301 = vmatprep.subr.bf16.mxu0 0
    %3302 = vmatpush1.bf16.msra.mxu0 0
    %3303 = vmatprep.mubr.bf16.mxu0 0
    %3304 = vmatmul.mubr.bf16.gmra.mrb[0].mxu0 %v3269
    %v3305 = vpop.f32.mrb[0].mxu0
    %v3306 = vadd.f32 0.0, %v3305
    %v3307 = vpop.f32.mrb[0].mxu0
    %v3308 = vpop.f32.mrb[0].mxu0
    %v3309 = vpop.f32.mrb[0].mxu0
    %3310 = vdwg.mxu0
    %v3312 = vrot.slane %v3306, 6
    %v3314 = vadd.f32 %v2696, %v3312
    %v3315 = vmul.f32 %v3314, 0.5
    %v3316 = vtanh.pop %v3315
    %v3317 = vadd.f32 %v3316, 1.0
    %v3318 = vmul.f32 %v3317, 0.5
    %v3319 = vtanh.pop %v3314
    %v3321 = vrot.slane %v3223, 6
    %v3323 = vmul.f32 %v3318, %v3321
    %3325 = vrot.lane.b32.xlu0 %v3319, 112
    %v3326 = vpop.permute.xlu0 %3325
    %v3328 = vmul.f32 %v3318, %v3326
    %3330 = vrot.lane.b32.xlu0 %v3328, 8
    %v3331 = vpop.permute.xlu0 %3330
    %v3333 = vadd.f32 %v3323, %v3331
    %v3334 = vtanh.pop %v3333
    %3336 = vrot.lane.b32.xlu0 %v3334, 16
    %v3337 = vpop.permute.xlu0 %3336
    %v3339 = vmul.f32 %v3318, %v3337
    %v3340 = vrot.slane %v3306, 2
    %v3342 = vadd.f32 %v2701, %v3340
    %v3343 = vmul.f32 %v3342, 0.5
    %v3344 = vtanh.pop %v3343
    %v3345 = vadd.f32 %v3344, 1.0
    %v3346 = vmul.f32 %v3345, 0.5
    %v3347 = vtanh.pop %v3342
    %v3349 = vrot.slane %v3249, 2
    %v3351 = vmul.f32 %v3346, %v3349
    %3353 = vrot.lane.b32.xlu0 %v3347, 112
    %v3354 = vpop.permute.xlu0 %3353
    %v3356 = vmul.f32 %v3346, %v3354
    %3358 = vrot.lane.b32.xlu0 %v3356, 8
    %v3359 = vpop.permute.xlu0 %3358
    %v3361 = vadd.f32 %v3351, %v3359
    %v3362 = vtanh.pop %v3361
    %3364 = vrot.lane.b32.xlu0 %v3362, 16
    %v3365 = vpop.permute.xlu0 %3364
    %v3367 = vmul.f32 %v3346, %v3365
    %3369 = vrot.lane.b32.xlu0 %v3339, 104
    %v3370 = vpop.permute.xlu0 %3369
    %3372 = vst.msk [vmem:[#allocation4 + $0x8] sm:$0xc] %vm924, %v3370
    %3374 = vrot.lane.b32.xlu0 %v3367, 80
    %v3375 = vpop.permute.xlu0 %3374
    %3377 = vst.msk [vmem:[#allocation4 + $0x10] sm:$0xc0] %vm930, %v3375
    %v3378 = vrot.slane %v3367, 4
    %3379 = vrot.lane.b32.xlu0 %v3378, 80
    %v3380 = vpop.permute.xlu0 %3379
    %v3382 = vsel %vm449, %v3370, %v3380
    %v3383 = vpack.c.bf16 %v3382, %v3382
    %v3385 = vrot.slane %v3383, 1
    %v3387 = vsel %vm424, %v3385, 0
    %3389 = vmatprep.subr.bf16.mxu0 0
    %3390 = vmatpush1.bf16.msra.mxu0 %v2714
    %3391 = vmatprep.subr.bf16.mxu0 0
    %3392 = vmatpush1.bf16.msra.mxu0 0
    %3393 = vmatprep.subr.bf16.mxu0 0
    %3394 = vmatpush1.bf16.msra.mxu0 0
    %3395 = vmatprep.subr.bf16.mxu0 0
    %3396 = vmatpush1.bf16.msra.mxu0 0
    %3397 = vmatprep.subr.bf16.mxu0 0
    %3398 = vmatpush1.bf16.msra.mxu0 0
    %3399 = vmatprep.subr.bf16.mxu0 0
    %3400 = vmatpush1.bf16.msra.mxu0 0
    %3401 = vmatprep.subr.bf16.mxu0 0
    %3402 = vmatpush1.bf16.msra.mxu0 0
    %3403 = vmatprep.subr.bf16.mxu0 0
    %3404 = vmatpush1.bf16.msra.mxu0 0
    %3405 = vmatprep.subr.bf16.mxu0 0
    %3406 = vmatpush1.bf16.msra.mxu0 0
    %3407 = vmatprep.subr.bf16.mxu0 0
    %3408 = vmatpush1.bf16.msra.mxu0 0
    %3409 = vmatprep.subr.bf16.mxu0 0
    %3410 = vmatpush1.bf16.msra.mxu0 0
    %3411 = vmatprep.subr.bf16.mxu0 0
    %3412 = vmatpush1.bf16.msra.mxu0 0
    %3413 = vmatprep.subr.bf16.mxu0 0
    %3414 = vmatpush1.bf16.msra.mxu0 0
    %3415 = vmatprep.subr.bf16.mxu0 0
    %3416 = vmatpush1.bf16.msra.mxu0 0
    %3417 = vmatprep.subr.bf16.mxu0 0
    %3418 = vmatpush1.bf16.msra.mxu0 0
    %3419 = vmatprep.subr.bf16.mxu0 0
    %3420 = vmatpush1.bf16.msra.mxu0 0
    %3421 = vmatprep.mubr.bf16.mxu0 0
    %3422 = vmatmul.mubr.bf16.gmra.mrb[0].mxu0 %v3387
    %v3423 = vpop.f32.mrb[0].mxu0
    %v3424 = vadd.f32 0.0, %v3423
    %v3425 = vpop.f32.mrb[0].mxu0
    %v3426 = vpop.f32.mrb[0].mxu0
    %v3427 = vpop.f32.mrb[0].mxu0
    %3428 = vdwg.mxu0
    %v3430 = vrot.slane %v3424, 4
    %v3432 = vadd.f32 %v2696, %v3430
    %v3433 = vmul.f32 %v3432, 0.5
    %v3434 = vtanh.pop %v3433
    %v3435 = vadd.f32 %v3434, 1.0
    %v3436 = vmul.f32 %v3435, 0.5
    %v3437 = vtanh.pop %v3432
    %v3439 = vrot.slane %v3333, 6
    %v3441 = vmul.f32 %v3436, %v3439
    %3443 = vrot.lane.b32.xlu0 %v3437, 112
    %v3444 = vpop.permute.xlu0 %3443
    %v3446 = vmul.f32 %v3436, %v3444
    %3448 = vrot.lane.b32.xlu0 %v3446, 8
    %v3449 = vpop.permute.xlu0 %3448
    %v3451 = vadd.f32 %v3441, %v3449
    %v3452 = vtanh.pop %v3451
    %3454 = vrot.lane.b32.xlu0 %v3452, 16
    %v3455 = vpop.permute.xlu0 %3454
    %v3457 = vmul.f32 %v3436, %v3455
    %v3458 = vadd.f32 %v2701, %v3430
    %v3459 = vmul.f32 %v3458, 0.5
    %v3460 = vtanh.pop %v3459
    %v3461 = vadd.f32 %v3460, 1.0
    %v3462 = vmul.f32 %v3461, 0.5
    %v3463 = vtanh.pop %v3458
    %v3465 = vrot.slane %v3361, 2
    %v3467 = vmul.f32 %v3462, %v3465
    %3469 = vrot.lane.b32.xlu0 %v3463, 112
    %v3470 = vpop.permute.xlu0 %3469
    %v3472 = vmul.f32 %v3462, %v3470
    %3474 = vrot.lane.b32.xlu0 %v3472, 8
    %v3475 = vpop.permute.xlu0 %3474
    %v3477 = vadd.f32 %v3467, %v3475
    %v3478 = vtanh.pop %v3477
    %3480 = vrot.lane.b32.xlu0 %v3478, 16
    %v3481 = vpop.permute.xlu0 %3480
    %v3483 = vmul.f32 %v3462, %v3481
    %3485 = vrot.lane.b32.xlu0 %v3457, 104
    %v3486 = vpop.permute.xlu0 %3485
    %3488 = vst.msk [vmem:[#allocation4 + $0x8] sm:$0x30] %vm1042, %v3486
    %3490 = vrot.lane.b32.xlu0 %v3483, 80
    %v3491 = vpop.permute.xlu0 %3490
    %3493 = vst.msk [vmem:[#allocation4 + $0x10] sm:$0x30] %vm1048, %v3491
    %v3494 = vsel %vm449, %v3486, %v3491
    %v3495 = vpack.c.bf16 %v3494, %v3494
    %v3497 = vrot.slane %v3495, 2
    %v3499 = vsel %vm424, %v3497, 0
    %3501 = vmatprep.subr.bf16.mxu0 0
    %3502 = vmatpush1.bf16.msra.mxu0 %v2714
    %3503 = vmatprep.subr.bf16.mxu0 0
    %3504 = vmatpush1.bf16.msra.mxu0 0
    %3505 = vmatprep.subr.bf16.mxu0 0
    %3506 = vmatpush1.bf16.msra.mxu0 0
    %3507 = vmatprep.subr.bf16.mxu0 0
    %3508 = vmatpush1.bf16.msra.mxu0 0
    %3509 = vmatprep.subr.bf16.mxu0 0
    %3510 = vmatpush1.bf16.msra.mxu0 0
    %3511 = vmatprep.subr.bf16.mxu0 0
    %3512 = vmatpush1.bf16.msra.mxu0 0
    %3513 = vmatprep.subr.bf16.mxu0 0
    %3514 = vmatpush1.bf16.msra.mxu0 0
    %3515 = vmatprep.subr.bf16.mxu0 0
    %3516 = vmatpush1.bf16.msra.mxu0 0
    %3517 = vmatprep.subr.bf16.mxu0 0
    %3518 = vmatpush1.bf16.msra.mxu0 0
    %3519 = vmatprep.subr.bf16.mxu0 0
    %3520 = vmatpush1.bf16.msra.mxu0 0
    %3521 = vmatprep.subr.bf16.mxu0 0
    %3522 = vmatpush1.bf16.msra.mxu0 0
    %3523 = vmatprep.subr.bf16.mxu0 0
    %3524 = vmatpush1.bf16.msra.mxu0 0
    %3525 = vmatprep.subr.bf16.mxu0 0
    %3526 = vmatpush1.bf16.msra.mxu0 0
    %3527 = vmatprep.subr.bf16.mxu0 0
    %3528 = vmatpush1.bf16.msra.mxu0 0
    %3529 = vmatprep.subr.bf16.mxu0 0
    %3530 = vmatpush1.bf16.msra.mxu0 0
    %3531 = vmatprep.subr.bf16.mxu0 0
    %3532 = vmatpush1.bf16.msra.mxu0 0
    %3533 = vmatprep.mubr.bf16.mxu0 0
    %3534 = vmatmul.mubr.bf16.gmra.mrb[0].mxu0 %v3499
    %v3535 = vpop.f32.mrb[0].mxu0
    %v3536 = vadd.f32 0.0, %v3535
    %v3537 = vpop.f32.mrb[0].mxu0
    %v3538 = vpop.f32.mrb[0].mxu0
    %v3539 = vpop.f32.mrb[0].mxu0
    %3540 = vdwg.mxu0
    %v3542 = vrot.slane %v3536, 2
    %v3544 = vadd.f32 %v2696, %v3542
    %v3545 = vmul.f32 %v3544, 0.5
    %v3546 = vtanh.pop %v3545
    %v3547 = vadd.f32 %v3546, 1.0
    %v3548 = vmul.f32 %v3547, 0.5
    %v3549 = vtanh.pop %v3544
    %v3551 = vrot.slane %v3451, 6
    %v3553 = vmul.f32 %v3548, %v3551
    %3555 = vrot.lane.b32.xlu0 %v3549, 112
    %v3556 = vpop.permute.xlu0 %3555
    %v3558 = vmul.f32 %v3548, %v3556
    %3560 = vrot.lane.b32.xlu0 %v3558, 8
    %v3561 = vpop.permute.xlu0 %3560
    %v3563 = vadd.f32 %v3553, %v3561
    %v3564 = vtanh.pop %v3563
    %3566 = vrot.lane.b32.xlu0 %v3564, 16
    %v3567 = vpop.permute.xlu0 %3566
    %v3569 = vmul.f32 %v3548, %v3567
    %v3570 = vrot.slane %v3536, 6
    %v3572 = vadd.f32 %v2701, %v3570
    %v3573 = vmul.f32 %v3572, 0.5
    %v3574 = vtanh.pop %v3573
    %v3575 = vadd.f32 %v3574, 1.0
    %v3576 = vmul.f32 %v3575, 0.5
    %v3577 = vtanh.pop %v3572
    %v3579 = vrot.slane %v3477, 2
    %v3581 = vmul.f32 %v3576, %v3579
    %3583 = vrot.lane.b32.xlu0 %v3577, 112
    %v3584 = vpop.permute.xlu0 %3583
    %v3586 = vmul.f32 %v3576, %v3584
    %3588 = vrot.lane.b32.xlu0 %v3586, 8
    %v3589 = vpop.permute.xlu0 %3588
    %v3591 = vadd.f32 %v3581, %v3589
    %v3592 = vtanh.pop %v3591
    %3594 = vrot.lane.b32.xlu0 %v3592, 16
    %v3595 = vpop.permute.xlu0 %3594
    %v3597 = vmul.f32 %v3576, %v3595
    %3599 = vrot.lane.b32.xlu0 %v3569, 104
    %v3600 = vpop.permute.xlu0 %3599
    %3602 = vst.msk [vmem:[#allocation4 + $0x8] sm:$0xc0] %vm1158, %v3600
    %3604 = vrot.lane.b32.xlu0 %v3597, 80
    %v3605 = vpop.permute.xlu0 %3604
    %3607 = vst.msk [vmem:[#allocation4 + $0x10] sm:$0xc] %vm1164, %v3605
    %v3608 = vrot.slane %v3597, 4
    %3609 = vrot.lane.b32.xlu0 %v3608, 80
    %v3610 = vpop.permute.xlu0 %3609
    %v3612 = vsel %vm449, %v3600, %v3610
    %v3613 = vpack.c.bf16 %v3612, %v3612
    %v3615 = vrot.slane %v3613, 3
    %v3617 = vsel %vm424, %v3615, 0
    %3619 = vmatprep.subr.bf16.mxu0 0
    %3620 = vmatpush1.bf16.msra.mxu0 %v2714
    %3621 = vmatprep.subr.bf16.mxu0 0
    %3622 = vmatpush1.bf16.msra.mxu0 0
    %3623 = vmatprep.subr.bf16.mxu0 0
    %3624 = vmatpush1.bf16.msra.mxu0 0
    %3625 = vmatprep.subr.bf16.mxu0 0
    %3626 = vmatpush1.bf16.msra.mxu0 0
    %3627 = vmatprep.subr.bf16.mxu0 0
    %3628 = vmatpush1.bf16.msra.mxu0 0
    %3629 = vmatprep.subr.bf16.mxu0 0
    %3630 = vmatpush1.bf16.msra.mxu0 0
    %3631 = vmatprep.subr.bf16.mxu0 0
    %3632 = vmatpush1.bf16.msra.mxu0 0
    %3633 = vmatprep.subr.bf16.mxu0 0
    %3634 = vmatpush1.bf16.msra.mxu0 0
    %3635 = vmatprep.subr.bf16.mxu0 0
    %3636 = vmatpush1.bf16.msra.mxu0 0
    %3637 = vmatprep.subr.bf16.mxu0 0
    %3638 = vmatpush1.bf16.msra.mxu0 0
    %3639 = vmatprep.subr.bf16.mxu0 0
    %3640 = vmatpush1.bf16.msra.mxu0 0
    %3641 = vmatprep.subr.bf16.mxu0 0
    %3642 = vmatpush1.bf16.msra.mxu0 0
    %3643 = vmatprep.subr.bf16.mxu0 0
    %3644 = vmatpush1.bf16.msra.mxu0 0
    %3645 = vmatprep.subr.bf16.mxu0 0
    %3646 = vmatpush1.bf16.msra.mxu0 0
    %3647 = vmatprep.subr.bf16.mxu0 0
    %3648 = vmatpush1.bf16.msra.mxu0 0
    %3649 = vmatprep.subr.bf16.mxu0 0
    %3650 = vmatpush1.bf16.msra.mxu0 0
    %3651 = vmatprep.mubr.bf16.mxu0 0
    %3652 = vmatmul.mubr.bf16.gmra.mrb[0].mxu0 %v3617
    %v3653 = vpop.f32.mrb[0].mxu0
    %v3654 = vadd.f32 0.0, %v3653
    %v3655 = vpop.f32.mrb[0].mxu0
    %v3656 = vpop.f32.mrb[0].mxu0
    %v3657 = vpop.f32.mrb[0].mxu0
    %3658 = vdwg.mxu0
    %v3659 = vadd.f32 %v2701, %v3654
    %v3660 = vmul.f32 %v3659, 0.5
    %v3661 = vtanh.pop %v3660
    %v3662 = vadd.f32 %v3661, 1.0
    %v3663 = vmul.f32 %v3662, 0.5
    %v3664 = vtanh.pop %v3659
    %v3666 = vrot.slane %v3563, 6
    %v3668 = vmul.f32 %v3663, %v3666
    %3670 = vrot.lane.b32.xlu0 %v3664, 112
    %v3671 = vpop.permute.xlu0 %3670
    %v3673 = vmul.f32 %v3663, %v3671
    %3675 = vrot.lane.b32.xlu0 %v3673, 8
    %v3676 = vpop.permute.xlu0 %3675
    %v3678 = vadd.f32 %v3668, %v3676
    %v3679 = vtanh.pop %v3678
    %3681 = vrot.lane.b32.xlu0 %v3679, 16
    %v3682 = vpop.permute.xlu0 %3681
    %v3684 = vmul.f32 %v3663, %v3682
    %v3686 = vrot.slane %v3591, 2
    %v3688 = vmul.f32 %v3663, %v3686
    %v3689 = vadd.f32 %v3688, %v3676
    %v3690 = vtanh.pop %v3689
    %3692 = vrot.lane.b32.xlu0 %v3690, 16
    %v3693 = vpop.permute.xlu0 %3692
    %v3695 = vmul.f32 %v3663, %v3693
    %3697 = vrot.lane.b32.xlu0 %v3684, 104
    %v3698 = vpop.permute.xlu0 %3697
    %3700 = vst.msk [vmem:[#allocation4 + $0x10] sm:$0x3] %vm810, %v3698
    %3702 = vrot.lane.b32.xlu0 %v3695, 80
    %v3703 = vpop.permute.xlu0 %3702
    %3705 = vst.msk [vmem:[#allocation4 + $0x10] sm:$0x3] %vm816, %v3703
    %v3706 = vsel %vm449, %v3698, %v3703
    %v3707 = vpack.c.bf16 %v3706, %v3706
    %v3709 = vsel %vm424, %v3707, 0
    %3711 = vmatprep.subr.bf16.mxu0 0
    %3712 = vmatpush1.bf16.msra.mxu0 %v2714
    %3713 = vmatprep.subr.bf16.mxu0 0
    %3714 = vmatpush1.bf16.msra.mxu0 0
    %3715 = vmatprep.subr.bf16.mxu0 0
    %3716 = vmatpush1.bf16.msra.mxu0 0
    %3717 = vmatprep.subr.bf16.mxu0 0
    %3718 = vmatpush1.bf16.msra.mxu0 0
    %3719 = vmatprep.subr.bf16.mxu0 0
    %3720 = vmatpush1.bf16.msra.mxu0 0
    %3721 = vmatprep.subr.bf16.mxu0 0
    %3722 = vmatpush1.bf16.msra.mxu0 0
    %3723 = vmatprep.subr.bf16.mxu0 0
    %3724 = vmatpush1.bf16.msra.mxu0 0
    %3725 = vmatprep.subr.bf16.mxu0 0
    %3726 = vmatpush1.bf16.msra.mxu0 0
    %3727 = vmatprep.subr.bf16.mxu0 0
    %3728 = vmatpush1.bf16.msra.mxu0 0
    %3729 = vmatprep.subr.bf16.mxu0 0
    %3730 = vmatpush1.bf16.msra.mxu0 0
    %3731 = vmatprep.subr.bf16.mxu0 0
    %3732 = vmatpush1.bf16.msra.mxu0 0
    %3733 = vmatprep.subr.bf16.mxu0 0
    %3734 = vmatpush1.bf16.msra.mxu0 0
    %3735 = vmatprep.subr.bf16.mxu0 0
    %3736 = vmatpush1.bf16.msra.mxu0 0
    %3737 = vmatprep.subr.bf16.mxu0 0
    %3738 = vmatpush1.bf16.msra.mxu0 0
    %3739 = vmatprep.subr.bf16.mxu0 0
    %3740 = vmatpush1.bf16.msra.mxu0 0
    %3741 = vmatprep.subr.bf16.mxu0 0
    %3742 = vmatpush1.bf16.msra.mxu0 0
    %3743 = vmatprep.mubr.bf16.mxu0 0
    %3744 = vmatmul.mubr.bf16.gmra.mrb[0].mxu0 %v3709
    %v3745 = vpop.f32.mrb[0].mxu0
    %v3746 = vadd.f32 0.0, %v3745
    %v3747 = vpop.f32.mrb[0].mxu0
    %v3748 = vpop.f32.mrb[0].mxu0
    %v3749 = vpop.f32.mrb[0].mxu0
    %3750 = vdwg.mxu0
    %v3752 = vrot.slane %v3746, 6
    %v3754 = vadd.f32 %v2701, %v3752
    %v3755 = vmul.f32 %v3754, 0.5
    %v3756 = vtanh.pop %v3755
    %v3757 = vadd.f32 %v3756, 1.0
    %v3758 = vmul.f32 %v3757, 0.5
    %v3759 = vtanh.pop %v3754
    %v3761 = vrot.slane %v3678, 6
    %v3763 = vmul.f32 %v3758, %v3761
    %3765 = vrot.lane.b32.xlu0 %v3759, 112
    %v3766 = vpop.permute.xlu0 %3765
    %v3768 = vmul.f32 %v3758, %v3766
    %3770 = vrot.lane.b32.xlu0 %v3768, 8
    %v3771 = vpop.permute.xlu0 %3770
    %v3773 = vadd.f32 %v3763, %v3771
    %v3774 = vtanh.pop %v3773
    %3776 = vrot.lane.b32.xlu0 %v3774, 16
    %v3777 = vpop.permute.xlu0 %3776
    %v3779 = vmul.f32 %v3758, %v3777
    %v3780 = vrot.slane %v3746, 2
    %v3782 = vadd.f32 %v2696, %v3780
    %v3783 = vmul.f32 %v3782, 0.5
    %v3784 = vtanh.pop %v3783
    %v3785 = vadd.f32 %v3784, 1.0
    %v3786 = vmul.f32 %v3785, 0.5
    %v3787 = vtanh.pop %v3782
    %v3789 = vrot.slane %v3689, 2
    %v3791 = vmul.f32 %v3786, %v3789
    %3793 = vrot.lane.b32.xlu0 %v3787, 112
    %v3794 = vpop.permute.xlu0 %3793
    %v3796 = vmul.f32 %v3786, %v3794
    %3798 = vrot.lane.b32.xlu0 %v3796, 8
    %v3799 = vpop.permute.xlu0 %3798
    %v3801 = vadd.f32 %v3791, %v3799
    %v3802 = vtanh.pop %v3801
    %3804 = vrot.lane.b32.xlu0 %v3802, 16
    %v3805 = vpop.permute.xlu0 %3804
    %v3807 = vmul.f32 %v3786, %v3805
    %3809 = vrot.lane.b32.xlu0 %v3779, 104
    %v3810 = vpop.permute.xlu0 %3809
    %3812 = vst.msk [vmem:[#allocation4 + $0x10] sm:$0xc] %vm924, %v3810
    %3814 = vrot.lane.b32.xlu0 %v3807, 80
    %v3815 = vpop.permute.xlu0 %3814
    %3817 = vst.msk [vmem:[#allocation4 + $0x8] sm:$0xc0] %vm930, %v3815
    %v3818 = vrot.slane %v3807, 4
    %3819 = vrot.lane.b32.xlu0 %v3818, 80
    %v3820 = vpop.permute.xlu0 %3819
    %v3822 = vsel %vm449, %v3810, %v3820
    %v3823 = vpack.c.bf16 %v3822, %v3822
    %v3825 = vrot.slane %v3823, 1
    %v3827 = vsel %vm424, %v3825, 0
    %3829 = vmatprep.subr.bf16.mxu0 0
    %3830 = vmatpush1.bf16.msra.mxu0 %v2714
    %3831 = vmatprep.subr.bf16.mxu0 0
    %3832 = vmatpush1.bf16.msra.mxu0 0
    %3833 = vmatprep.subr.bf16.mxu0 0
    %3834 = vmatpush1.bf16.msra.mxu0 0
    %3835 = vmatprep.subr.bf16.mxu0 0
    %3836 = vmatpush1.bf16.msra.mxu0 0
    %3837 = vmatprep.subr.bf16.mxu0 0
    %3838 = vmatpush1.bf16.msra.mxu0 0
    %3839 = vmatprep.subr.bf16.mxu0 0
    %3840 = vmatpush1.bf16.msra.mxu0 0
    %3841 = vmatprep.subr.bf16.mxu0 0
    %3842 = vmatpush1.bf16.msra.mxu0 0
    %3843 = vmatprep.subr.bf16.mxu0 0
    %3844 = vmatpush1.bf16.msra.mxu0 0
    %3845 = vmatprep.subr.bf16.mxu0 0
    %3846 = vmatpush1.bf16.msra.mxu0 0
    %3847 = vmatprep.subr.bf16.mxu0 0
    %3848 = vmatpush1.bf16.msra.mxu0 0
    %3849 = vmatprep.subr.bf16.mxu0 0
    %3850 = vmatpush1.bf16.msra.mxu0 0
    %3851 = vmatprep.subr.bf16.mxu0 0
    %3852 = vmatpush1.bf16.msra.mxu0 0
    %3853 = vmatprep.subr.bf16.mxu0 0
    %3854 = vmatpush1.bf16.msra.mxu0 0
    %3855 = vmatprep.subr.bf16.mxu0 0
    %3856 = vmatpush1.bf16.msra.mxu0 0
    %3857 = vmatprep.subr.bf16.mxu0 0
    %3858 = vmatpush1.bf16.msra.mxu0 0
    %3859 = vmatprep.subr.bf16.mxu0 0
    %3860 = vmatpush1.bf16.msra.mxu0 0
    %3861 = vmatprep.mubr.bf16.mxu0 0
    %3862 = vmatmul.mubr.bf16.gmra.mrb[0].mxu0 %v3827
    %v3863 = vpop.f32.mrb[0].mxu0
    %v3864 = vadd.f32 0.0, %v3863
    %v3865 = vpop.f32.mrb[0].mxu0
    %v3866 = vpop.f32.mrb[0].mxu0
    %v3867 = vpop.f32.mrb[0].mxu0
    %3868 = vdwg.mxu0
    %v3870 = vrot.slane %v3864, 4
    %v3872 = vadd.f32 %v2701, %v3870
    %v3873 = vmul.f32 %v3872, 0.5
    %v3874 = vtanh.pop %v3873
    %v3875 = vadd.f32 %v3874, 1.0
    %v3876 = vmul.f32 %v3875, 0.5
    %v3877 = vtanh.pop %v3872
    %v3879 = vrot.slane %v3773, 6
    %v3881 = vmul.f32 %v3876, %v3879
    %3883 = vrot.lane.b32.xlu0 %v3877, 112
    %v3884 = vpop.permute.xlu0 %3883
    %v3886 = vmul.f32 %v3876, %v3884
    %3888 = vrot.lane.b32.xlu0 %v3886, 8
    %v3889 = vpop.permute.xlu0 %3888
    %v3891 = vadd.f32 %v3881, %v3889
    %v3892 = vtanh.pop %v3891
    %3894 = vrot.lane.b32.xlu0 %v3892, 16
    %v3895 = vpop.permute.xlu0 %3894
    %v3897 = vmul.f32 %v3876, %v3895
    %v3898 = vadd.f32 %v2696, %v3870
    %v3899 = vmul.f32 %v3898, 0.5
    %v3900 = vtanh.pop %v3899
    %v3901 = vadd.f32 %v3900, 1.0
    %v3902 = vmul.f32 %v3901, 0.5
    %v3903 = vtanh.pop %v3898
    %v3905 = vrot.slane %v3801, 2
    %v3907 = vmul.f32 %v3902, %v3905
    %3909 = vrot.lane.b32.xlu0 %v3903, 112
    %v3910 = vpop.permute.xlu0 %3909
    %v3912 = vmul.f32 %v3902, %v3910
    %3914 = vrot.lane.b32.xlu0 %v3912, 8
    %v3915 = vpop.permute.xlu0 %3914
    %v3917 = vadd.f32 %v3907, %v3915
    %v3918 = vtanh.pop %v3917
    %3920 = vrot.lane.b32.xlu0 %v3918, 16
    %v3921 = vpop.permute.xlu0 %3920
    %v3923 = vmul.f32 %v3902, %v3921
    %3925 = vrot.lane.b32.xlu0 %v3897, 104
    %v3926 = vpop.permute.xlu0 %3925
    %3928 = vst.msk [vmem:[#allocation4 + $0x10] sm:$0x30] %vm1042, %v3926
    %3930 = vrot.lane.b32.xlu0 %v3923, 80
    %v3931 = vpop.permute.xlu0 %3930
    %3933 = vst.msk [vmem:[#allocation4 + $0x8] sm:$0x30] %vm1048, %v3931
    %v3934 = vsel %vm449, %v3926, %v3931
    %v3935 = vpack.c.bf16 %v3934, %v3934
    %v3937 = vrot.slane %v3935, 2
    %v3939 = vsel %vm424, %v3937, 0
    %3941 = vmatprep.subr.bf16.mxu0 0
    %3942 = vmatpush1.bf16.msra.mxu0 %v2714
    %3943 = vmatprep.subr.bf16.mxu0 0
    %3944 = vmatpush1.bf16.msra.mxu0 0
    %3945 = vmatprep.subr.bf16.mxu0 0
    %3946 = vmatpush1.bf16.msra.mxu0 0
    %3947 = vmatprep.subr.bf16.mxu0 0
    %3948 = vmatpush1.bf16.msra.mxu0 0
    %3949 = vmatprep.subr.bf16.mxu0 0
    %3950 = vmatpush1.bf16.msra.mxu0 0
    %3951 = vmatprep.subr.bf16.mxu0 0
    %3952 = vmatpush1.bf16.msra.mxu0 0
    %3953 = vmatprep.subr.bf16.mxu0 0
    %3954 = vmatpush1.bf16.msra.mxu0 0
    %3955 = vmatprep.subr.bf16.mxu0 0
    %3956 = vmatpush1.bf16.msra.mxu0 0
    %3957 = vmatprep.subr.bf16.mxu0 0
    %3958 = vmatpush1.bf16.msra.mxu0 0
    %3959 = vmatprep.subr.bf16.mxu0 0
    %3960 = vmatpush1.bf16.msra.mxu0 0
    %3961 = vmatprep.subr.bf16.mxu0 0
    %3962 = vmatpush1.bf16.msra.mxu0 0
    %3963 = vmatprep.subr.bf16.mxu0 0
    %3964 = vmatpush1.bf16.msra.mxu0 0
    %3965 = vmatprep.subr.bf16.mxu0 0
    %3966 = vmatpush1.bf16.msra.mxu0 0
    %3967 = vmatprep.subr.bf16.mxu0 0
    %3968 = vmatpush1.bf16.msra.mxu0 0
    %3969 = vmatprep.subr.bf16.mxu0 0
    %3970 = vmatpush1.bf16.msra.mxu0 0
    %3971 = vmatprep.subr.bf16.mxu0 0
    %3972 = vmatpush1.bf16.msra.mxu0 0
    %3973 = vmatprep.mubr.bf16.mxu0 0
    %3974 = vmatmul.mubr.bf16.gmra.mrb[0].mxu0 %v3939
    %v3975 = vpop.f32.mrb[0].mxu0
    %v3976 = vadd.f32 0.0, %v3975
    %v3977 = vpop.f32.mrb[0].mxu0
    %v3978 = vpop.f32.mrb[0].mxu0
    %v3979 = vpop.f32.mrb[0].mxu0
    %3980 = vdwg.mxu0
    %v3982 = vrot.slane %v3976, 2
    %v3984 = vadd.f32 %v2701, %v3982
    %v3985 = vmul.f32 %v3984, 0.5
    %v3986 = vtanh.pop %v3985
    %v3987 = vadd.f32 %v3986, 1.0
    %v3988 = vmul.f32 %v3987, 0.5
    %v3989 = vtanh.pop %v3984
    %v3991 = vrot.slane %v3891, 6
    %v3993 = vmul.f32 %v3988, %v3991
    %3995 = vrot.lane.b32.xlu0 %v3989, 112
    %v3996 = vpop.permute.xlu0 %3995
    %v3998 = vmul.f32 %v3988, %v3996
    %4000 = vrot.lane.b32.xlu0 %v3998, 8
    %v4001 = vpop.permute.xlu0 %4000
    %v4003 = vadd.f32 %v3993, %v4001
    %v4004 = vtanh.pop %v4003
    %4006 = vrot.lane.b32.xlu0 %v4004, 16
    %v4007 = vpop.permute.xlu0 %4006
    %v4009 = vmul.f32 %v3988, %v4007
    %v4010 = vrot.slane %v3976, 6
    %v4012 = vadd.f32 %v2696, %v4010
    %v4013 = vmul.f32 %v4012, 0.5
    %v4014 = vtanh.pop %v4013
    %v4015 = vadd.f32 %v4014, 1.0
    %v4016 = vmul.f32 %v4015, 0.5
    %v4017 = vtanh.pop %v4012
    %v4019 = vrot.slane %v3917, 2
    %v4021 = vmul.f32 %v4016, %v4019
    %4023 = vrot.lane.b32.xlu0 %v4017, 112
    %v4024 = vpop.permute.xlu0 %4023
    %v4026 = vmul.f32 %v4016, %v4024
    %4028 = vrot.lane.b32.xlu0 %v4026, 8
    %v4029 = vpop.permute.xlu0 %4028
    %v4031 = vadd.f32 %v4021, %v4029
    %v4032 = vtanh.pop %v4031
    %4034 = vrot.lane.b32.xlu0 %v4032, 16
    %v4035 = vpop.permute.xlu0 %4034
    %v4037 = vmul.f32 %v4016, %v4035
    %4039 = vrot.lane.b32.xlu0 %v4009, 104
    %v4040 = vpop.permute.xlu0 %4039
    %4042 = vst.msk [vmem:[#allocation4 + $0x10] sm:$0xc0] %vm1158, %v4040
    %4044 = vrot.lane.b32.xlu0 %v4037, 80
    %v4045 = vpop.permute.xlu0 %4044
    %4047 = vst.msk [vmem:[#allocation4 + $0x8] sm:$0xc] %vm1164, %v4045
    %v4048 = vrot.slane %v4037, 4
    %4049 = vrot.lane.b32.xlu0 %v4048, 80
    %v4050 = vpop.permute.xlu0 %4049
    %v4052 = vsel %vm449, %v4040, %v4050
    %v4053 = vpack.c.bf16 %v4052, %v4052
    %v4055 = vrot.slane %v4053, 3
    %v4057 = vsel %vm424, %v4055, 0
    %4059 = vmatprep.subr.bf16.mxu0 0
    %4060 = vmatpush1.bf16.msra.mxu0 %v2714
    %4061 = vmatprep.subr.bf16.mxu0 0
    %4062 = vmatpush1.bf16.msra.mxu0 0
    %4063 = vmatprep.subr.bf16.mxu0 0
    %4064 = vmatpush1.bf16.msra.mxu0 0
    %4065 = vmatprep.subr.bf16.mxu0 0
    %4066 = vmatpush1.bf16.msra.mxu0 0
    %4067 = vmatprep.subr.bf16.mxu0 0
    %4068 = vmatpush1.bf16.msra.mxu0 0
    %4069 = vmatprep.subr.bf16.mxu0 0
    %4070 = vmatpush1.bf16.msra.mxu0 0
    %4071 = vmatprep.subr.bf16.mxu0 0
    %4072 = vmatpush1.bf16.msra.mxu0 0
    %4073 = vmatprep.subr.bf16.mxu0 0
    %4074 = vmatpush1.bf16.msra.mxu0 0
    %4075 = vmatprep.subr.bf16.mxu0 0
    %4076 = vmatpush1.bf16.msra.mxu0 0
    %4077 = vmatprep.subr.bf16.mxu0 0
    %4078 = vmatpush1.bf16.msra.mxu0 0
    %4079 = vmatprep.subr.bf16.mxu0 0
    %4080 = vmatpush1.bf16.msra.mxu0 0
    %4081 = vmatprep.subr.bf16.mxu0 0
    %4082 = vmatpush1.bf16.msra.mxu0 0
    %4083 = vmatprep.subr.bf16.mxu0 0
    %4084 = vmatpush1.bf16.msra.mxu0 0
    %4085 = vmatprep.subr.bf16.mxu0 0
    %4086 = vmatpush1.bf16.msra.mxu0 0
    %4087 = vmatprep.subr.bf16.mxu0 0
    %4088 = vmatpush1.bf16.msra.mxu0 0
    %4089 = vmatprep.subr.bf16.mxu0 0
    %4090 = vmatpush1.bf16.msra.mxu0 0
    %4091 = vmatprep.mubr.bf16.mxu0 0
    %4092 = vmatmul.mubr.bf16.gmra.mrb[0].mxu0 %v4057
    %v4093 = vpop.f32.mrb[0].mxu0
    %v4094 = vadd.f32 0.0, %v4093
    %v4095 = vpop.f32.mrb[0].mxu0
    %v4096 = vpop.f32.mrb[0].mxu0
    %v4097 = vpop.f32.mrb[0].mxu0
    %4098 = vdwg.mxu0
    %v4099 = vadd.f32 %v2704, %v4094
    %v4100 = vmul.f32 %v4099, 0.5
    %v4101 = vtanh.pop %v4100
    %v4102 = vadd.f32 %v4101, 1.0
    %v4103 = vmul.f32 %v4102, 0.5
    %v4104 = vtanh.pop %v4099
    %v4106 = vrot.slane %v4003, 6
    %v4108 = vmul.f32 %v4103, %v4106
    %4110 = vrot.lane.b32.xlu0 %v4104, 112
    %v4111 = vpop.permute.xlu0 %4110
    %v4113 = vmul.f32 %v4103, %v4111
    %4115 = vrot.lane.b32.xlu0 %v4113, 8
    %v4116 = vpop.permute.xlu0 %4115
    %v4118 = vadd.f32 %v4108, %v4116
    %v4119 = vtanh.pop %v4118
    %4121 = vrot.lane.b32.xlu0 %v4119, 16
    %v4122 = vpop.permute.xlu0 %4121
    %v4124 = vmul.f32 %v4103, %v4122
    %v4125 = vadd.f32 %v2696, %v4094
    %v4126 = vmul.f32 %v4125, 0.5
    %v4127 = vtanh.pop %v4126
    %v4128 = vadd.f32 %v4127, 1.0
    %v4129 = vmul.f32 %v4128, 0.5
    %v4130 = vtanh.pop %v4125
    %v4132 = vrot.slane %v4031, 2
    %v4134 = vmul.f32 %v4129, %v4132
    %4136 = vrot.lane.b32.xlu0 %v4130, 112
    %v4137 = vpop.permute.xlu0 %4136
    %v4139 = vmul.f32 %v4129, %v4137
    %4141 = vrot.lane.b32.xlu0 %v4139, 8
    %v4142 = vpop.permute.xlu0 %4141
    %v4144 = vadd.f32 %v4134, %v4142
    %v4145 = vtanh.pop %v4144
    %4147 = vrot.lane.b32.xlu0 %v4145, 16
    %v4148 = vpop.permute.xlu0 %4147
    %v4150 = vmul.f32 %v4129, %v4148
    %4152 = vrot.lane.b32.xlu0 %v4124, 104
    %v4153 = vpop.permute.xlu0 %4152
    %4155 = vst.msk [vmem:[#allocation4 + $0x18] sm:$0x3] %vm810, %v4153
    %4157 = vrot.lane.b32.xlu0 %v4150, 80
    %v4158 = vpop.permute.xlu0 %4157
    %4160 = vst.msk [vmem:[#allocation4 + $0x8] sm:$0x3] %vm816, %v4158
    %v4161 = vsel %vm449, %v4153, %v4158
    %v4162 = vpack.c.bf16 %v4161, %v4161
    %v4164 = vsel %vm424, %v4162, 0
    %4166 = vmatprep.subr.bf16.mxu0 0
    %4167 = vmatpush1.bf16.msra.mxu0 %v2714
    %4168 = vmatprep.subr.bf16.mxu0 0
    %4169 = vmatpush1.bf16.msra.mxu0 0
    %4170 = vmatprep.subr.bf16.mxu0 0
    %4171 = vmatpush1.bf16.msra.mxu0 0
    %4172 = vmatprep.subr.bf16.mxu0 0
    %4173 = vmatpush1.bf16.msra.mxu0 0
    %4174 = vmatprep.subr.bf16.mxu0 0
    %4175 = vmatpush1.bf16.msra.mxu0 0
    %4176 = vmatprep.subr.bf16.mxu0 0
    %4177 = vmatpush1.bf16.msra.mxu0 0
    %4178 = vmatprep.subr.bf16.mxu0 0
    %4179 = vmatpush1.bf16.msra.mxu0 0
    %4180 = vmatprep.subr.bf16.mxu0 0
    %4181 = vmatpush1.bf16.msra.mxu0 0
    %4182 = vmatprep.subr.bf16.mxu0 0
    %4183 = vmatpush1.bf16.msra.mxu0 0
    %4184 = vmatprep.subr.bf16.mxu0 0
    %4185 = vmatpush1.bf16.msra.mxu0 0
    %4186 = vmatprep.subr.bf16.mxu0 0
    %4187 = vmatpush1.bf16.msra.mxu0 0
    %4188 = vmatprep.subr.bf16.mxu0 0
    %4189 = vmatpush1.bf16.msra.mxu0 0
    %4190 = vmatprep.subr.bf16.mxu0 0
    %4191 = vmatpush1.bf16.msra.mxu0 0
    %4192 = vmatprep.subr.bf16.mxu0 0
    %4193 = vmatpush1.bf16.msra.mxu0 0
    %4194 = vmatprep.subr.bf16.mxu0 0
    %4195 = vmatpush1.bf16.msra.mxu0 0
    %4196 = vmatprep.subr.bf16.mxu0 0
    %4197 = vmatpush1.bf16.msra.mxu0 0
    %4198 = vmatprep.mubr.bf16.mxu0 0
    %4199 = vmatmul.mubr.bf16.gmra.mrb[0].mxu0 %v4164
    %v4200 = vpop.f32.mrb[0].mxu0
    %v4201 = vadd.f32 0.0, %v4200
    %v4202 = vpop.f32.mrb[0].mxu0
    %v4203 = vpop.f32.mrb[0].mxu0
    %v4204 = vpop.f32.mrb[0].mxu0
    %4205 = vdwg.mxu0
    %v4207 = vrot.slane %v4201, 6
    %v4209 = vadd.f32 %v2704, %v4207
    %v4210 = vmul.f32 %v4209, 0.5
    %v4211 = vtanh.pop %v4210
    %v4212 = vadd.f32 %v4211, 1.0
    %v4213 = vmul.f32 %v4212, 0.5
    %v4214 = vtanh.pop %v4209
    %v4216 = vrot.slane %v4118, 6
    %v4218 = vmul.f32 %v4213, %v4216
    %4220 = vrot.lane.b32.xlu0 %v4214, 112
    %v4221 = vpop.permute.xlu0 %4220
    %v4223 = vmul.f32 %v4213, %v4221
    %4225 = vrot.lane.b32.xlu0 %v4223, 8
    %v4226 = vpop.permute.xlu0 %4225
    %v4228 = vadd.f32 %v4218, %v4226
    %v4229 = vtanh.pop %v4228
    %4231 = vrot.lane.b32.xlu0 %v4229, 16
    %v4232 = vpop.permute.xlu0 %4231
    %v4234 = vmul.f32 %v4213, %v4232
    %v4235 = vrot.slane %v4201, 2
    %v4237 = vadd.f32 %v2693, %v4235
    %v4238 = vmul.f32 %v4237, 0.5
    %v4239 = vtanh.pop %v4238
    %v4240 = vadd.f32 %v4239, 1.0
    %v4241 = vmul.f32 %v4240, 0.5
    %v4242 = vtanh.pop %v4237
    %v4244 = vrot.slane %v4144, 2
    %v4246 = vmul.f32 %v4241, %v4244
    %4248 = vrot.lane.b32.xlu0 %v4242, 112
    %v4249 = vpop.permute.xlu0 %4248
    %v4251 = vmul.f32 %v4241, %v4249
    %4253 = vrot.lane.b32.xlu0 %v4251, 8
    %v4254 = vpop.permute.xlu0 %4253
    %v4256 = vadd.f32 %v4246, %v4254
    %v4257 = vtanh.pop %v4256
    %4259 = vrot.lane.b32.xlu0 %v4257, 16
    %v4260 = vpop.permute.xlu0 %4259
    %v4262 = vmul.f32 %v4241, %v4260
    %4264 = vrot.lane.b32.xlu0 %v4234, 104
    %v4265 = vpop.permute.xlu0 %4264
    %4267 = vst.msk [vmem:[#allocation4 + $0x18] sm:$0xc] %vm924, %v4265
    %4269 = vrot.lane.b32.xlu0 %v4262, 80
    %v4270 = vpop.permute.xlu0 %4269
    %4272 = vst.msk [vmem:[#allocation4] sm:$0xc0] %vm930, %v4270
    %v4273 = vrot.slane %v4262, 4
    %4274 = vrot.lane.b32.xlu0 %v4273, 80
    %v4275 = vpop.permute.xlu0 %4274
    %v4277 = vsel %vm449, %v4265, %v4275
    %v4278 = vpack.c.bf16 %v4277, %v4277
    %v4280 = vrot.slane %v4278, 1
    %v4282 = vsel %vm424, %v4280, 0
    %4284 = vmatprep.subr.bf16.mxu0 0
    %4285 = vmatpush1.bf16.msra.mxu0 %v2714
    %4286 = vmatprep.subr.bf16.mxu0 0
    %4287 = vmatpush1.bf16.msra.mxu0 0
    %4288 = vmatprep.subr.bf16.mxu0 0
    %4289 = vmatpush1.bf16.msra.mxu0 0
    %4290 = vmatprep.subr.bf16.mxu0 0
    %4291 = vmatpush1.bf16.msra.mxu0 0
    %4292 = vmatprep.subr.bf16.mxu0 0
    %4293 = vmatpush1.bf16.msra.mxu0 0
    %4294 = vmatprep.subr.bf16.mxu0 0
    %4295 = vmatpush1.bf16.msra.mxu0 0
    %4296 = vmatprep.subr.bf16.mxu0 0
    %4297 = vmatpush1.bf16.msra.mxu0 0
    %4298 = vmatprep.subr.bf16.mxu0 0
    %4299 = vmatpush1.bf16.msra.mxu0 0
    %4300 = vmatprep.subr.bf16.mxu0 0
    %4301 = vmatpush1.bf16.msra.mxu0 0
    %4302 = vmatprep.subr.bf16.mxu0 0
    %4303 = vmatpush1.bf16.msra.mxu0 0
    %4304 = vmatprep.subr.bf16.mxu0 0
    %4305 = vmatpush1.bf16.msra.mxu0 0
    %4306 = vmatprep.subr.bf16.mxu0 0
    %4307 = vmatpush1.bf16.msra.mxu0 0
    %4308 = vmatprep.subr.bf16.mxu0 0
    %4309 = vmatpush1.bf16.msra.mxu0 0
    %4310 = vmatprep.subr.bf16.mxu0 0
    %4311 = vmatpush1.bf16.msra.mxu0 0
    %4312 = vmatprep.subr.bf16.mxu0 0
    %4313 = vmatpush1.bf16.msra.mxu0 0
    %4314 = vmatprep.subr.bf16.mxu0 0
    %4315 = vmatpush1.bf16.msra.mxu0 0
    %4316 = vmatprep.mubr.bf16.mxu0 0
    %4317 = vmatmul.mubr.bf16.gmra.mrb[0].mxu0 %v4282
    %v4318 = vpop.f32.mrb[0].mxu0
    %v4319 = vadd.f32 0.0, %v4318
    %v4320 = vpop.f32.mrb[0].mxu0
    %v4321 = vpop.f32.mrb[0].mxu0
    %v4322 = vpop.f32.mrb[0].mxu0
    %4323 = vdwg.mxu0
    %v4325 = vrot.slane %v4319, 4
    %v4327 = vadd.f32 %v2704, %v4325
    %v4328 = vmul.f32 %v4327, 0.5
    %v4329 = vtanh.pop %v4328
    %v4330 = vadd.f32 %v4329, 1.0
    %v4331 = vmul.f32 %v4330, 0.5
    %v4332 = vtanh.pop %v4327
    %v4334 = vrot.slane %v4228, 6
    %v4336 = vmul.f32 %v4331, %v4334
    %4338 = vrot.lane.b32.xlu0 %v4332, 112
    %v4339 = vpop.permute.xlu0 %4338
    %v4341 = vmul.f32 %v4331, %v4339
    %4343 = vrot.lane.b32.xlu0 %v4341, 8
    %v4344 = vpop.permute.xlu0 %4343
    %v4346 = vadd.f32 %v4336, %v4344
    %v4347 = vtanh.pop %v4346
    %4349 = vrot.lane.b32.xlu0 %v4347, 16
    %v4350 = vpop.permute.xlu0 %4349
    %v4352 = vmul.f32 %v4331, %v4350
    %v4353 = vadd.f32 %v2693, %v4325
    %v4354 = vmul.f32 %v4353, 0.5
    %v4355 = vtanh.pop %v4354
    %v4356 = vadd.f32 %v4355, 1.0
    %v4357 = vmul.f32 %v4356, 0.5
    %v4358 = vtanh.pop %v4353
    %v4360 = vrot.slane %v4256, 2
    %v4362 = vmul.f32 %v4357, %v4360
    %4364 = vrot.lane.b32.xlu0 %v4358, 112
    %v4365 = vpop.permute.xlu0 %4364
    %v4367 = vmul.f32 %v4357, %v4365
    %4369 = vrot.lane.b32.xlu0 %v4367, 8
    %v4370 = vpop.permute.xlu0 %4369
    %v4372 = vadd.f32 %v4362, %v4370
    %v4373 = vtanh.pop %v4372
    %4375 = vrot.lane.b32.xlu0 %v4373, 16
    %v4376 = vpop.permute.xlu0 %4375
    %v4378 = vmul.f32 %v4357, %v4376
    %4380 = vrot.lane.b32.xlu0 %v4352, 104
    %v4381 = vpop.permute.xlu0 %4380
    %4383 = vst.msk [vmem:[#allocation4 + $0x18] sm:$0x30] %vm1042, %v4381
    %4385 = vrot.lane.b32.xlu0 %v4378, 80
    %v4386 = vpop.permute.xlu0 %4385
    %4388 = vst.msk [vmem:[#allocation4] sm:$0x30] %vm1048, %v4386
    %v4389 = vsel %vm449, %v4381, %v4386
    %v4390 = vpack.c.bf16 %v4389, %v4389
    %v4392 = vrot.slane %v4390, 2
    %v4394 = vsel %vm424, %v4392, 0
    %4396 = vmatprep.subr.bf16.mxu0 0
    %4397 = vmatpush1.bf16.msra.mxu0 %v2714
    %4398 = vmatprep.subr.bf16.mxu0 0
    %4399 = vmatpush1.bf16.msra.mxu0 0
    %4400 = vmatprep.subr.bf16.mxu0 0
    %4401 = vmatpush1.bf16.msra.mxu0 0
    %4402 = vmatprep.subr.bf16.mxu0 0
    %4403 = vmatpush1.bf16.msra.mxu0 0
    %4404 = vmatprep.subr.bf16.mxu0 0
    %4405 = vmatpush1.bf16.msra.mxu0 0
    %4406 = vmatprep.subr.bf16.mxu0 0
    %4407 = vmatpush1.bf16.msra.mxu0 0
    %4408 = vmatprep.subr.bf16.mxu0 0
    %4409 = vmatpush1.bf16.msra.mxu0 0
    %4410 = vmatprep.subr.bf16.mxu0 0
    %4411 = vmatpush1.bf16.msra.mxu0 0
    %4412 = vmatprep.subr.bf16.mxu0 0
    %4413 = vmatpush1.bf16.msra.mxu0 0
    %4414 = vmatprep.subr.bf16.mxu0 0
    %4415 = vmatpush1.bf16.msra.mxu0 0
    %4416 = vmatprep.subr.bf16.mxu0 0
    %4417 = vmatpush1.bf16.msra.mxu0 0
    %4418 = vmatprep.subr.bf16.mxu0 0
    %4419 = vmatpush1.bf16.msra.mxu0 0
    %4420 = vmatprep.subr.bf16.mxu0 0
    %4421 = vmatpush1.bf16.msra.mxu0 0
    %4422 = vmatprep.subr.bf16.mxu0 0
    %4423 = vmatpush1.bf16.msra.mxu0 0
    %4424 = vmatprep.subr.bf16.mxu0 0
    %4425 = vmatpush1.bf16.msra.mxu0 0
    %4426 = vmatprep.subr.bf16.mxu0 0
    %4427 = vmatpush1.bf16.msra.mxu0 0
    %4428 = vmatprep.mubr.bf16.mxu0 0
    %4429 = vmatmul.mubr.bf16.gmra.mrb[0].mxu0 %v4394
    %v4430 = vpop.f32.mrb[0].mxu0
    %v4431 = vadd.f32 0.0, %v4430
    %v4432 = vpop.f32.mrb[0].mxu0
    %v4433 = vpop.f32.mrb[0].mxu0
    %v4434 = vpop.f32.mrb[0].mxu0
    %4435 = vdwg.mxu0
    %v4437 = vrot.slane %v4431, 2
    %v4439 = vadd.f32 %v2704, %v4437
    %v4440 = vmul.f32 %v4439, 0.5
    %v4441 = vtanh.pop %v4440
    %v4442 = vadd.f32 %v4441, 1.0
    %v4443 = vmul.f32 %v4442, 0.5
    %v4444 = vtanh.pop %v4439
    %v4446 = vrot.slane %v4346, 6
    %v4448 = vmul.f32 %v4443, %v4446
    %4450 = vrot.lane.b32.xlu0 %v4444, 112
    %v4451 = vpop.permute.xlu0 %4450
    %v4453 = vmul.f32 %v4443, %v4451
    %4455 = vrot.lane.b32.xlu0 %v4453, 8
    %v4456 = vpop.permute.xlu0 %4455
    %v4458 = vadd.f32 %v4448, %v4456
    %v4459 = vtanh.pop %v4458
    %4461 = vrot.lane.b32.xlu0 %v4459, 16
    %v4462 = vpop.permute.xlu0 %4461
    %v4464 = vmul.f32 %v4443, %v4462
    %v4465 = vrot.slane %v4431, 6
    %v4467 = vadd.f32 %v2693, %v4465
    %v4468 = vmul.f32 %v4467, 0.5
    %v4469 = vtanh.pop %v4468
    %v4470 = vadd.f32 %v4469, 1.0
    %v4471 = vmul.f32 %v4470, 0.5
    %v4472 = vtanh.pop %v4467
    %v4474 = vrot.slane %v4372, 2
    %v4476 = vmul.f32 %v4471, %v4474
    %4478 = vrot.lane.b32.xlu0 %v4472, 112
    %v4479 = vpop.permute.xlu0 %4478
    %v4481 = vmul.f32 %v4471, %v4479
    %4483 = vrot.lane.b32.xlu0 %v4481, 8
    %v4484 = vpop.permute.xlu0 %4483
    %v4486 = vadd.f32 %v4476, %v4484
    %v4487 = vtanh.pop %v4486
    %4489 = vrot.lane.b32.xlu0 %v4487, 16
    %v4490 = vpop.permute.xlu0 %4489
    %v4492 = vmul.f32 %v4471, %v4490
    %4494 = vrot.lane.b32.xlu0 %v4464, 104
    %v4495 = vpop.permute.xlu0 %4494
    %4497 = vst.msk [vmem:[#allocation4 + $0x18] sm:$0xc0] %vm1158, %v4495
    %4499 = vrot.lane.b32.xlu0 %v4492, 80
    %v4500 = vpop.permute.xlu0 %4499
    %4502 = vst.msk [vmem:[#allocation4] sm:$0xc] %vm1164, %v4500
    %v4503 = vrot.slane %v4492, 4
    %4504 = vrot.lane.b32.xlu0 %v4503, 80
    %v4505 = vpop.permute.xlu0 %4504
    %v4507 = vsel %vm449, %v4495, %v4505
    %v4508 = vpack.c.bf16 %v4507, %v4507
    %v4510 = vrot.slane %v4508, 3
    %v4512 = vsel %vm424, %v4510, 0
    %4514 = vmatprep.subr.bf16.mxu0 0
    %4515 = vmatpush1.bf16.msra.mxu0 %v2714
    %4516 = vmatprep.subr.bf16.mxu0 0
    %4517 = vmatpush1.bf16.msra.mxu0 0
    %4518 = vmatprep.subr.bf16.mxu0 0
    %4519 = vmatpush1.bf16.msra.mxu0 0
    %4520 = vmatprep.subr.bf16.mxu0 0
    %4521 = vmatpush1.bf16.msra.mxu0 0
    %4522 = vmatprep.subr.bf16.mxu0 0
    %4523 = vmatpush1.bf16.msra.mxu0 0
    %4524 = vmatprep.subr.bf16.mxu0 0
    %4525 = vmatpush1.bf16.msra.mxu0 0
    %4526 = vmatprep.subr.bf16.mxu0 0
    %4527 = vmatpush1.bf16.msra.mxu0 0
    %4528 = vmatprep.subr.bf16.mxu0 0
    %4529 = vmatpush1.bf16.msra.mxu0 0
    %4530 = vmatprep.subr.bf16.mxu0 0
    %4531 = vmatpush1.bf16.msra.mxu0 0
    %4532 = vmatprep.subr.bf16.mxu0 0
    %4533 = vmatpush1.bf16.msra.mxu0 0
    %4534 = vmatprep.subr.bf16.mxu0 0
    %4535 = vmatpush1.bf16.msra.mxu0 0
    %4536 = vmatprep.subr.bf16.mxu0 0
    %4537 = vmatpush1.bf16.msra.mxu0 0
    %4538 = vmatprep.subr.bf16.mxu0 0
    %4539 = vmatpush1.bf16.msra.mxu0 0
    %4540 = vmatprep.subr.bf16.mxu0 0
    %4541 = vmatpush1.bf16.msra.mxu0 0
    %4542 = vmatprep.subr.bf16.mxu0 0
    %4543 = vmatpush1.bf16.msra.mxu0 0
    %4544 = vmatprep.subr.bf16.mxu0 0
    %4545 = vmatpush1.bf16.msra.mxu0 0
    %4546 = vmatprep.mubr.bf16.mxu0 0
    %4547 = vmatmul.mubr.bf16.gmra.mrb[0].mxu0 %v4512
    %v4548 = vpop.f32.mrb[0].mxu0
    %v4549 = vadd.f32 0.0, %v4548
    %v4550 = vpop.f32.mrb[0].mxu0
    %v4551 = vpop.f32.mrb[0].mxu0
    %v4552 = vpop.f32.mrb[0].mxu0
    %4553 = vdwg.mxu0
    %v4554 = vadd.f32 %v2709, %v4549
    %v4555 = vmul.f32 %v4554, 0.5
    %v4556 = vtanh.pop %v4555
    %v4557 = vadd.f32 %v4556, 1.0
    %v4558 = vmul.f32 %v4557, 0.5
    %v4559 = vtanh.pop %v4554
    %v4561 = vrot.slane %v4458, 6
    %v4563 = vmul.f32 %v4558, %v4561
    %4565 = vrot.lane.b32.xlu0 %v4559, 112
    %v4566 = vpop.permute.xlu0 %4565
    %v4568 = vmul.f32 %v4558, %v4566
    %4570 = vrot.lane.b32.xlu0 %v4568, 8
    %v4571 = vpop.permute.xlu0 %4570
    %v4573 = vadd.f32 %v4563, %v4571
    %v4574 = vtanh.pop %v4573
    %4576 = vrot.lane.b32.xlu0 %v4574, 16
    %v4577 = vpop.permute.xlu0 %4576
    %v4579 = vmul.f32 %v4558, %v4577
    %v4580 = vadd.f32 %v2693, %v4549
    %v4581 = vmul.f32 %v4580, 0.5
    %v4582 = vtanh.pop %v4581
    %v4583 = vadd.f32 %v4582, 1.0
    %v4584 = vmul.f32 %v4583, 0.5
    %v4585 = vtanh.pop %v4580
    %v4587 = vrot.slane %v4486, 2
    %v4589 = vmul.f32 %v4584, %v4587
    %4591 = vrot.lane.b32.xlu0 %v4585, 112
    %v4592 = vpop.permute.xlu0 %4591
    %v4594 = vmul.f32 %v4584, %v4592
    %4596 = vrot.lane.b32.xlu0 %v4594, 8
    %v4597 = vpop.permute.xlu0 %4596
    %v4599 = vadd.f32 %v4589, %v4597
    %v4600 = vtanh.pop %v4599
    %4602 = vrot.lane.b32.xlu0 %v4600, 16
    %v4603 = vpop.permute.xlu0 %4602
    %v4605 = vmul.f32 %v4584, %v4603
    %4607 = vrot.lane.b32.xlu0 %v4579, 104
    %v4608 = vpop.permute.xlu0 %4607
    %4610 = vst.msk [vmem:[#allocation4 + $0x20] sm:$0x3] %vm810, %v4608
    %4612 = vrot.lane.b32.xlu0 %v4605, 80
    %v4613 = vpop.permute.xlu0 %4612
    %4615 = vst.msk [vmem:[#allocation4] sm:$0x3] %vm816, %v4613
    %v4616 = vld [vmem:[#allocation4] sm:$0xff]
    %v4617 = vld [vmem:[#allocation4 + $0x8] sm:$0xff]
    %v4618 = vld [vmem:[#allocation4 + $0x10] sm:$0xff]
    %v4619 = vld [vmem:[#allocation4 + $0x18] sm:$0xff]
    %v4620 = vld [vmem:[#allocation4 + $0x20] sm:$0x3]
    %v4621 = vpack.c.bf16 %v4617, %v4616
    %v4622 = vpack.c.bf16 %v4619, %v4618
    %v4623 = vpack.c.bf16 %v4620, %v4620
    %v4624 = vld [vmem:[#allocation14] sm:$0xff]
    %v4625 = vld [vmem:[#allocation14 + $0x8] sm:$0xff]
    %v4626 = vpack.c.bf16 %v4625, %v4624
    %v4627 = vld [vmem:[#allocation15] sm:$0x1]
    %v4629 = vlaneseq
    %v4630 = vshrl.u32 %v4629, 7
    %v4631 = vsub.s32 0, %v4630
    %v4632 = vrot.slane %v4627, %v4631
    %v4635 = vsel %vm424, %v4621, 0
    %v4638 = vsel %vm424, %v4622, 0
    %v4641 = vsel %vm424, %v4623, 0
    %4643 = vmatprep.subr.bf16.mxu0 0
    %4644 = vmatpush1.bf16.msra.mxu0 %v4626
    %4645 = vmatprep.subr.bf16.mxu0 0
    %4646 = vmatpush1.bf16.msra.mxu0 0
    %4647 = vmatprep.subr.bf16.mxu0 0
    %4648 = vmatpush1.bf16.msra.mxu0 0
    %4649 = vmatprep.subr.bf16.mxu0 0
    %4650 = vmatpush1.bf16.msra.mxu0 0
    %4651 = vmatprep.subr.bf16.mxu0 0
    %4652 = vmatpush1.bf16.msra.mxu0 0
    %4653 = vmatprep.subr.bf16.mxu0 0
    %4654 = vmatpush1.bf16.msra.mxu0 0
    %4655 = vmatprep.subr.bf16.mxu0 0
    %4656 = vmatpush1.bf16.msra.mxu0 0
    %4657 = vmatprep.subr.bf16.mxu0 0
    %4658 = vmatpush1.bf16.msra.mxu0 0
    %4659 = vmatprep.subr.bf16.mxu0 0
    %4660 = vmatpush1.bf16.msra.mxu0 0
    %4661 = vmatprep.subr.bf16.mxu0 0
    %4662 = vmatpush1.bf16.msra.mxu0 0
    %4663 = vmatprep.subr.bf16.mxu0 0
    %4664 = vmatpush1.bf16.msra.mxu0 0
    %4665 = vmatprep.subr.bf16.mxu0 0
    %4666 = vmatpush1.bf16.msra.mxu0 0
    %4667 = vmatprep.subr.bf16.mxu0 0
    %4668 = vmatpush1.bf16.msra.mxu0 0
    %4669 = vmatprep.subr.bf16.mxu0 0
    %4670 = vmatpush1.bf16.msra.mxu0 0
    %4671 = vmatprep.subr.bf16.mxu0 0
    %4672 = vmatpush1.bf16.msra.mxu0 0
    %4673 = vmatprep.subr.bf16.mxu0 0
    %4674 = vmatpush1.bf16.msra.mxu0 0
    %4675 = vmatprep.mubr.bf16.mxu0 0
    %4676 = vmatmul.mubr.bf16.gmra.mrb[0].mxu0 %v4635
    %v4677 = vpop.f32.mrb[0].mxu0
    %v4678 = vadd.f32 %v4632, %v4677
    %v4679 = vpop.f32.mrb[0].mxu0
    %v4680 = vpop.f32.mrb[0].mxu0
    %v4681 = vadd.f32 %v4632, %v4680
    %v4682 = vpop.f32.mrb[0].mxu0
    %4683 = vmatprep.mubr.bf16.mxu0 0
    %4684 = vmatmul.mubr.bf16.gmra.mrb[0].mxu0 %v4638
    %v4685 = vpop.f32.mrb[0].mxu0
    %v4686 = vadd.f32 %v4632, %v4685
    %v4687 = vpop.f32.mrb[0].mxu0
    %v4688 = vpop.f32.mrb[0].mxu0
    %v4689 = vadd.f32 %v4632, %v4688
    %v4690 = vpop.f32.mrb[0].mxu0
    %4691 = vmatprep.mubr.bf16.mxu0 0
    %4692 = vmatmul.mubr.bf16.gmra.mrb[0].mxu0 %v4641
    %v4693 = vpop.f32.mrb[0].mxu0
    %v4694 = vadd.f32 %v4632, %v4693
    %v4695 = vpop.f32.mrb[0].mxu0
    %v4696 = vpop.f32.mrb[0].mxu0
    %v4697 = vpop.f32.mrb[0].mxu0
    %4698 = vdwg.mxu0
    %v4699 = vmax.f32 %v4678, 0.0
    %v4700 = vmax.f32 %v4681, 0.0
    %v4701 = vmax.f32 %v4686, 0.0
    %v4702 = vmax.f32 %v4689, 0.0
    %v4703 = vmax.f32 %v4694, 0.0
    %v4704 = vld [vmem:[#allocation17] sm:$0x1]
    %v4706 = vlaneseq
    %v4707 = vshrl.u32 %v4706, 7
    %v4708 = vsub.s32 0, %v4707
    %v4709 = vrot.slane %v4704, %v4708
    %v4711 = vmul.f32 %v4699, %v4709
    %v4712 = vmul.f32 %v4700, %v4709
    %v4713 = vmul.f32 %v4701, %v4709
    %v4714 = vmul.f32 %v4702, %v4709
    %v4715 = vmul.f32 %v4703, %v4709
    %v4716 = vsel %vm470, %v4711, 0.0
    %4717 = vadd.xlane.f32.xlu0 %v4716
    %v4718 = vpop.xlane.xlu0 %4717
    %v4719 = vsel %vm470, %v4712, 0.0
    %4720 = vadd.xlane.f32.xlu0 %v4719
    %v4721 = vpop.xlane.xlu0 %4720
    %v4722 = vsel %vm470, %v4713, 0.0
    %4723 = vadd.xlane.f32.xlu0 %v4722
    %v4724 = vpop.xlane.xlu0 %4723
    %v4725 = vsel %vm470, %v4714, 0.0
    %4726 = vadd.xlane.f32.xlu0 %v4725
    %v4727 = vpop.xlane.xlu0 %4726
    %v4728 = vsel %vm165, %v4715, 0.0
    %4729 = vadd.xlane.f32.xlu0 %v4728
    %v4730 = vpop.xlane.xlu0 %4729
    %v4731 = vld [vmem:[#allocation5] sm:$0x1]
    %v4733 = vlaneseq
    %v4734 = vshrl.u32 %v4733, 7
    %v4735 = vsub.s32 0, %v4734
    %v4736 = vrot.slane %v4731, %v4735
    %v4738 = vadd.f32 %v4718, %v4736
    %v4739 = vadd.f32 %v4721, %v4736
    %v4740 = vadd.f32 %v4724, %v4736
    %v4741 = vadd.f32 %v4727, %v4736
    %v4742 = vadd.f32 %v4730, %v4736
    %v4743 = vlaneseq
    %v4744 = vshrl.u32 %v4743, 7
    %v4745 = vadd.s32 %v4744, 8
    %v4746 = vadd.s32 %v4744, 16
    %v4747 = vadd.s32 %v4744, 24
    %v4748 = vadd.s32 %v4744, 32
    %vm4749 = vcmp.lt.s32.totalorder %v4744, 0
    %v4750 = vsub.s32 0, %v4744
    %v4751 = vsel %vm4749, %v4750, %v4744
    %v4752 = vshrl.u32 %v4751, 1
    %v4753 = vand.u32 %v4751, 1
    %v4754 = vsub.s32 0, %v4753
    %v4755 = vsel %vm4749, %v4754, %v4753
    %vm4756 = vcmp.lt.s32.totalorder %v4745, 0
    %v4757 = vsub.s32 0, %v4745
    %v4758 = vsel %vm4756, %v4757, %v4745
    %v4759 = vshrl.u32 %v4758, 1
    %v4760 = vand.u32 %v4758, 1
    %v4761 = vsub.s32 0, %v4760
    %v4762 = vsel %vm4756, %v4761, %v4760
    %vm4763 = vcmp.lt.s32.totalorder %v4746, 0
    %v4764 = vsub.s32 0, %v4746
    %v4765 = vsel %vm4763, %v4764, %v4746
    %v4766 = vshrl.u32 %v4765, 1
    %v4767 = vand.u32 %v4765, 1
    %v4768 = vsub.s32 0, %v4767
    %v4769 = vsel %vm4763, %v4768, %v4767
    %vm4770 = vcmp.lt.s32.totalorder %v4747, 0
    %v4771 = vsub.s32 0, %v4747
    %v4772 = vsel %vm4770, %v4771, %v4747
    %v4773 = vshrl.u32 %v4772, 1
    %v4774 = vand.u32 %v4772, 1
    %v4775 = vsub.s32 0, %v4774
    %v4776 = vsel %vm4770, %v4775, %v4774
    %vm4777 = vcmp.lt.s32.totalorder %v4748, 0
    %v4778 = vsub.s32 0, %v4748
    %v4779 = vsel %vm4777, %v4778, %v4748
    %v4780 = vshrl.u32 %v4779, 1
    %v4781 = vand.u32 %v4779, 1
    %v4782 = vsub.s32 0, %v4781
    %v4783 = vsel %vm4777, %v4782, %v4781
    %vm4784 = vcmp.ne.s32.totalorder %v4755, 0
    %vm4785 = vcmp.ne.s32.totalorder %v4762, 0
    %vm4786 = vcmp.ne.s32.totalorder %v4769, 0
    %vm4787 = vcmp.ne.s32.totalorder %v4776, 0
    %vm4788 = vcmp.ne.s32.totalorder %v4783, 0
    %vm4789 = vcmp.lt.s32.totalorder %v4755, 0
    %vm4790 = vcmp.lt.s32.totalorder %v4762, 0
    %vm4791 = vcmp.lt.s32.totalorder %v4769, 0
    %vm4792 = vcmp.lt.s32.totalorder %v4776, 0
    %vm4793 = vcmp.lt.s32.totalorder %v4783, 0
    %vm4794 = vmand %vm4789, %vm4784
    %vm4795 = vmand %vm4790, %vm4785
    %vm4796 = vmand %vm4791, %vm4786
    %vm4797 = vmand %vm4792, %vm4787
    %vm4798 = vmand %vm4793, %vm4788
    %v4799 = vadd.s32 %v4755, 2
    %v4800 = vadd.s32 %v4762, 2
    %v4801 = vadd.s32 %v4769, 2
    %v4802 = vadd.s32 %v4776, 2
    %v4803 = vadd.s32 %v4783, 2
    %v4804 = vsel %vm4794, %v4799, %v4755
    %v4805 = vsel %vm4795, %v4800, %v4762
    %v4806 = vsel %vm4796, %v4801, %v4769
    %v4807 = vsel %vm4797, %v4802, %v4776
    %v4808 = vsel %vm4798, %v4803, %v4783
    %vm4809 = vcmp.eq.s32.totalorder %v4804, 0
    %vm4810 = vcmp.eq.s32.totalorder %v4805, 0
    %vm4811 = vcmp.eq.s32.totalorder %v4806, 0
    %vm4812 = vcmp.eq.s32.totalorder %v4807, 0
    %vm4813 = vcmp.eq.s32.totalorder %v4808, 0
    %v4814 = vsel %vm4809, %v4738, -1e+30
    %v4815 = vsel %vm4810, %v4739, -1e+30
    %v4816 = vsel %vm4811, %v4740, -1e+30
    %v4817 = vsel %vm4812, %v4741, -1e+30
    %v4818 = vsel %vm4813, %v4742, -1e+30
    %vm4819 = vcmask 7168
    %v4820 = vsel %vm4819, %v4814, -inf
    %v4821 = vsel %vm4819, %v4815, -inf
    %v4822 = vsel %vm4819, %v4816, -inf
    %v4823 = vsel %vm4819, %v4817, -inf
    %vm4824 = vcmask 1024
    %v4825 = vsel %vm4824, %v4818, -inf
    %v4826 = vmax.f32 %v4820, %v4825
    %v4827 = vmax.f32 %v4826, %v4821
    %v4828 = vmax.f32 %v4822, %v4823
    %v4829 = vmax.f32 %v4827, %v4828
    %v4830 = vrot.slane %v4829, 4
    %v4831 = vmax.f32 %v4829, %v4830
    %v4832 = vrot.slane %v4831, 2
    %v4833 = vmax.f32 %v4831, %v4832
    %v4834 = vrot.slane %v4833, 1
    %v4835 = vmax.f32 %v4833, %v4834
    %v4836 = vsub.f32 %v4814, %v4835
    %v4837 = vsub.f32 %v4815, %v4835
    %v4838 = vsub.f32 %v4816, %v4835
    %v4839 = vsub.f32 %v4817, %v4835
    %v4840 = vsub.f32 %v4818, %v4835
    %v4841 = vmul.f32 %v4836, 1.442695
    %v4842 = vpow.pop %v4841
    %v4843 = vmul.f32 %v4837, 1.442695
    %v4844 = vpow.pop %v4843
    %v4845 = vmul.f32 %v4838, 1.442695
    %v4846 = vpow.pop %v4845
    %v4847 = vmul.f32 %v4839, 1.442695
    %v4848 = vpow.pop %v4847
    %v4849 = vmul.f32 %v4840, 1.442695
    %v4850 = vpow.pop %v4849
    %v4851 = vsel %vm4819, %v4842, 0.0
    %v4852 = vsel %vm4819, %v4844, 0.0
    %v4853 = vadd.f32 %v4851, %v4852
    %v4854 = vsel %vm4819, %v4846, 0.0
    %v4855 = vadd.f32 %v4853, %v4854
    %v4856 = vsel %vm4819, %v4848, 0.0
    %v4857 = vadd.f32 %v4855, %v4856
    %v4858 = vsel %vm4824, %v4850, 0.0
    %v4859 = vadd.f32 %v4857, %v4858
    %v4860 = vrot.slane %v4859, 4
    %v4861 = vadd.f32 %v4859, %v4860
    %v4862 = vrot.slane %v4861, 2
    %v4863 = vadd.f32 %v4861, %v4862
    %v4864 = vrot.slane %v4863, 1
    %v4865 = vadd.f32 %v4863, %v4864
    %v4866 = vrcp.pop %v4865
    %v4867 = vmul.f32 %v4842, %v4866
    %v4868 = vmul.f32 %v4844, %v4866
    %v4869 = vmul.f32 %v4846, %v4866
    %v4870 = vmul.f32 %v4848, %v4866
    %v4871 = vmul.f32 %v4850, %v4866
    %4873 = vset.pattern.permute.xlu0 0
    %4874 = vperm.xlu0 %4873, %v4867
    %v4875 = vpop.permute.xlu0 %4874
    %4878 = vset.pattern.permute.xlu0 0
    %4879 = vperm.xlu0 %4878, %v4868
    %v4880 = vpop.permute.xlu0 %4879
    %4883 = vset.pattern.permute.xlu0 0
    %4884 = vperm.xlu0 %4883, %v4869
    %v4885 = vpop.permute.xlu0 %4884
    %4888 = vset.pattern.permute.xlu0 0
    %4889 = vperm.xlu0 %4888, %v4870
    %v4890 = vpop.permute.xlu0 %4889
    %4893 = vset.pattern.permute.xlu0 0
    %4894 = vperm.xlu0 %4893, %v4871
    %v4895 = vpop.permute.xlu0 %4894
    %v4897 = vmul.f32 %v4875, %v4616
    %v4898 = vmul.f32 %v4880, %v4617
    %v4899 = vmul.f32 %v4885, %v4618
    %v4900 = vmul.f32 %v4890, %v4619
    %v4901 = vmul.f32 %v4895, %v4620
    %v4902 = vsel %vm424, %v4897, 0.0
    %v4903 = vsel %vm424, %v4898, 0.0
    %v4904 = vadd.f32 %v4902, %v4903
    %v4905 = vsel %vm424, %v4899, 0.0
    %v4906 = vadd.f32 %v4904, %v4905
    %v4907 = vsel %vm424, %v4900, 0.0
    %v4908 = vadd.f32 %v4906, %v4907
    %vm4909 = vcmask 123904
    %v4910 = vsel %vm4909, %v4901, 0.0
    %v4911 = vadd.f32 %v4908, %v4910
    %v4912 = vrot.slane %v4911, 4
    %v4913 = vadd.f32 %v4911, %v4912
    %v4914 = vrot.slane %v4913, 2
    %v4915 = vadd.f32 %v4913, %v4914
    %v4916 = vrot.slane %v4915, 1
    %v4917 = vadd.f32 %v4915, %v4916
    %vm4918 = vcmp.eq.s32.totalorder %v4804, 1
    %vm4919 = vcmp.eq.s32.totalorder %v4805, 1
    %vm4920 = vcmp.eq.s32.totalorder %v4806, 1
    %vm4921 = vcmp.eq.s32.totalorder %v4807, 1
    %vm4922 = vcmp.eq.s32.totalorder %v4808, 1
    %v4923 = vsel %vm4918, %v4738, -1e+30
    %v4924 = vsel %vm4919, %v4739, -1e+30
    %v4925 = vsel %vm4920, %v4740, -1e+30
    %v4926 = vsel %vm4921, %v4741, -1e+30
    %v4927 = vsel %vm4922, %v4742, -1e+30
    %v4928 = vsel %vm4819, %v4923, -inf
    %v4929 = vsel %vm4819, %v4924, -inf
    %v4930 = vsel %vm4819, %v4925, -inf
    %v4931 = vsel %vm4819, %v4926, -inf
    %v4932 = vsel %vm4824, %v4927, -inf
    %v4933 = vmax.f32 %v4928, %v4932
    %v4934 = vmax.f32 %v4933, %v4929
    %v4935 = vmax.f32 %v4930, %v4931
    %v4936 = vmax.f32 %v4934, %v4935
    %v4937 = vrot.slane %v4936, 4
    %v4938 = vmax.f32 %v4936, %v4937
    %v4939 = vrot.slane %v4938, 2
    %v4940 = vmax.f32 %v4938, %v4939
    %v4941 = vrot.slane %v4940, 1
    %v4942 = vmax.f32 %v4940, %v4941
    %v4943 = vsub.f32 %v4923, %v4942
    %v4944 = vsub.f32 %v4924, %v4942
    %v4945 = vsub.f32 %v4925, %v4942
    %v4946 = vsub.f32 %v4926, %v4942
    %v4947 = vsub.f32 %v4927, %v4942
    %v4948 = vmul.f32 %v4943, 1.442695
    %v4949 = vpow.pop %v4948
    %v4950 = vmul.f32 %v4944, 1.442695
    %v4951 = vpow.pop %v4950
    %v4952 = vmul.f32 %v4945, 1.442695
    %v4953 = vpow.pop %v4952
    %v4954 = vmul.f32 %v4946, 1.442695
    %v4955 = vpow.pop %v4954
    %v4956 = vmul.f32 %v4947, 1.442695
    %v4957 = vpow.pop %v4956
    %v4958 = vsel %vm4819, %v4949, 0.0
    %v4959 = vsel %vm4819, %v4951, 0.0
    %v4960 = vadd.f32 %v4958, %v4959
    %v4961 = vsel %vm4819, %v4953, 0.0
    %v4962 = vadd.f32 %v4960, %v4961
    %v4963 = vsel %vm4819, %v4955, 0.0
    %v4964 = vadd.f32 %v4962, %v4963
    %v4965 = vsel %vm4824, %v4957, 0.0
    %v4966 = vadd.f32 %v4964, %v4965
    %v4967 = vrot.slane %v4966, 4
    %v4968 = vadd.f32 %v4966, %v4967
    %v4969 = vrot.slane %v4968, 2
    %v4970 = vadd.f32 %v4968, %v4969
    %v4971 = vrot.slane %v4970, 1
    %v4972 = vadd.f32 %v4970, %v4971
    %v4973 = vrcp.pop %v4972
    %v4974 = vmul.f32 %v4949, %v4973
    %v4975 = vmul.f32 %v4951, %v4973
    %v4976 = vmul.f32 %v4953, %v4973
    %v4977 = vmul.f32 %v4955, %v4973
    %v4978 = vmul.f32 %v4957, %v4973
    %4980 = vset.pattern.permute.xlu0 0
    %4981 = vperm.xlu0 %4980, %v4974
    %v4982 = vpop.permute.xlu0 %4981
    %4985 = vset.pattern.permute.xlu0 0
    %4986 = vperm.xlu0 %4985, %v4975
    %v4987 = vpop.permute.xlu0 %4986
    %4990 = vset.pattern.permute.xlu0 0
    %4991 = vperm.xlu0 %4990, %v4976
    %v4992 = vpop.permute.xlu0 %4991
    %4995 = vset.pattern.permute.xlu0 0
    %4996 = vperm.xlu0 %4995, %v4977
    %v4997 = vpop.permute.xlu0 %4996
    %5000 = vset.pattern.permute.xlu0 0
    %5001 = vperm.xlu0 %5000, %v4978
    %v5002 = vpop.permute.xlu0 %5001
    %v5004 = vmul.f32 %v4982, %v4616
    %v5005 = vmul.f32 %v4987, %v4617
    %v5006 = vmul.f32 %v4992, %v4618
    %v5007 = vmul.f32 %v4997, %v4619
    %v5008 = vmul.f32 %v5002, %v4620
    %v5009 = vsel %vm424, %v5004, 0.0
    %v5010 = vsel %vm424, %v5005, 0.0
    %v5011 = vadd.f32 %v5009, %v5010
    %v5012 = vsel %vm424, %v5006, 0.0
    %v5013 = vadd.f32 %v5011, %v5012
    %v5014 = vsel %vm424, %v5007, 0.0
    %v5015 = vadd.f32 %v5013, %v5014
    %v5016 = vsel %vm4909, %v5008, 0.0
    %v5017 = vadd.f32 %v5015, %v5016
    %v5018 = vrot.slane %v5017, 4
    %v5019 = vadd.f32 %v5017, %v5018
    %v5020 = vrot.slane %v5019, 2
    %v5021 = vadd.f32 %v5019, %v5020
    %v5022 = vrot.slane %v5021, 1
    %v5023 = vadd.f32 %v5021, %v5022
    %v5024 = vsel %vm654, %v4917, %v5023
    %v5025 = vld [vmem:[#allocation18] sm:$0x1]
    %v5027 = vlaneseq
    %v5028 = vshrl.u32 %v5027, 7
    %v5029 = vsub.s32 0, %v5028
    %v5030 = vrot.slane %v5025, %v5029
    %v5032 = vmul.f32 %v5024, %v5030
    %v5033 = vsel %vm4909, %v5032, 0.0
    %5034 = vadd.xlane.f32.xlu0 %v5033
    %v5035 = vpop.xlane.xlu0 %5034
    %v5036 = vld [vmem:[#allocation6] sm:$0x1]
    %v5038 = vlaneseq
    %v5039 = vshrl.u32 %v5038, 7
    %v5040 = vsub.s32 0, %v5039
    %v5041 = vrot.slane %v5036, %v5040
    %v5043 = vadd.f32 %v5035, %v5041
    %v5044 = vmul.f32 %v5043, 0.5
    %v5045 = vtanh.pop %v5044
    %v5046 = vadd.f32 %v5045, 1.0
    %v5047 = vmul.f32 %v5046, 0.5
    %5048 = vst.msk [vmem:[%s15] sm:$0x3] %vm4824, %v5047
    // Predicated region
    $region94: #{forward.1} parent=1 // pred_check
      _
    $region95: #{forward.1} parent=1 // pred_check_branch
      %5050 = sbr.rel (0) target = $region97
    $region96: #{forward.1} parent=1 // pred_region
      _
    $region97: #{forward.1} parent=1 // pred_fallthru
      _
    // Predicated region
    $region98: #{forward.1} parent=1 // pred_check
      _
    $region99: #{forward.1} parent=1 // pred_check_branch
      %5052 = sbr.rel (0) target = $region101
    $region100: #{forward.1} parent=1 // pred_region
      _
    $region101: #{forward.1} parent=1 // pred_fallthru
      _
    // Predicated region
    $region102: #{forward.1} parent=1 // pred_check
      _
    $region103: #{forward.1} parent=1 // pred_check_branch
      %5054 = sbr.rel (0) target = $region105
    $region104: #{forward.1} parent=1 // pred_region
      _
    $region105: #{forward.1} parent=1 // pred_fallthru
      _
    // Predicated region
    $region106: #{forward.1} parent=1 // pred_check
      _
    $region107: #{forward.1} parent=1 // pred_check_branch
      %5056 = sbr.rel (0) target = $region109
    $region108: #{forward.1} parent=1 // pred_region
      _
    $region109: #{forward.1} parent=1 // pred_fallthru
      _
    %5057 = vsyncpa [#allocation8], 1
    %5058 = vsyncpa [#allocation10], 1
    %5059 = vsyncpa [#allocation13], 1
    %5060 = vsyncpa [#allocation16], 1
    %5061 = vsyncpa [#allocation19], 1

</llo_original>
